<compile_context>
chip_gen: v6e
topology: v6e:2x2x1
jax: 0.10.0
libtpu: 0.0.40
codegen_flags: <defaults>
</compile_context>

<pallas_src>
import functools

import jax
import jax.numpy as jnp
from jax.experimental import pallas as pl
from jax.experimental.pallas import tpu as pltpu


def convt_kernel(x_ref, w_ref, b_ref, o_ref, *, KH, KW, DW, OWIDE):
    # x_ref: (1, Cin, LFLAT)   flattened dilated+padded image (VMEM)
    # w_ref: (KH*KW, Cout, Cin) per-tap flipped weights (resident)
    # b_ref: (Cout, 1)
    # o_ref: (1, Cout, OWIDE)  wide output, OWIDE = OH*DW (cols >= OW are junk)
    cout = o_ref.shape[1]
    xall = x_ref[0]                                            # (Cin, LFLAT)
    acc = jnp.broadcast_to(b_ref[...].astype(jnp.float32), (cout, OWIDE))
    for kh in range(KH):                                       # unrolled taps
        for kw in range(KW):
            start = kh * DW + kw                               # static offset
            xs = xall[:, start:start + OWIDE]                  # (Cin, OWIDE)
            wk = w_ref[kh * KW + kw]                           # (Cout, Cin)
            acc = acc + jnp.dot(wk, xs, preferred_element_type=jnp.float32)
    o_ref[0] = acc.astype(o_ref.dtype)


def conv_transpose2d_forward(x, weight, bias, *, stride=1, padding=0,
                             compute_dtype=None):
    """Forward of torch.nn.ConvTranspose2d(stride, padding, bias).

    x:      (N, Cin, H, W)        float32 (NCHW, PyTorch convention)
    weight: (Cin, Cout, KH, KW)   (PyTorch ConvTranspose2d weight layout)
    bias:   (Cout,) or None
    returns (N, Cout, OH, OW) with OH = (H-1)*stride - 2*padding + KH.
    compute_dtype: e.g. jnp.bfloat16 to feed bf16 operands to the MXU on
                   v6e/v7x (accumulation stays f32).
    """
    N, Cin, H, W = x.shape
    cin_w, Cout, KH, KW = weight.shape
    assert cin_w == Cin
    assert padding <= KH - 1 and padding <= KW - 1, \
        "padding > kernel_size - 1 not supported"  # TODO(synk): crop path

    OH = (H - 1) * stride - 2 * padding + KH
    OW = (W - 1) * stride - 2 * padding + KW
    qh, qw = KH - 1 - padding, KW - 1 - padding

    # ---- glue (XLA, ~input-sized): zero-dilate, pad, flatten spatially ----
    if stride > 1:
        xd = jnp.zeros((N, Cin, (H - 1) * stride + 1, (W - 1) * stride + 1),
                       x.dtype)
        xd = xd.at[:, :, ::stride, ::stride].set(x)
    else:
        xd = x
    xd = jnp.pad(xd, ((0, 0), (0, 0), (qh, qh), (qw, qw)))
    DH, DW = xd.shape[2], xd.shape[3]
    OWIDE = OH * DW

    lflat_min = DH * DW + KW - 1            # last tap's slab must stay in-bounds
    LFLAT = ((lflat_min + 127) // 128) * 128
    xf = jnp.pad(xd.reshape(N, Cin, DH * DW),
                 ((0, 0), (0, 0), (0, LFLAT - DH * DW)))

    # Flipped per-tap weights: wtap[kh*KW+kw, co, ci] = W[ci, co, KH-1-kh, KW-1-kw]
    wtap = weight[:, :, ::-1, ::-1].transpose(2, 3, 1, 0).reshape(KH * KW, Cout, Cin)
    b = bias if bias is not None else jnp.zeros((Cout,), x.dtype)
    bmat = b.reshape(Cout, 1).astype(jnp.float32)

    if compute_dtype is not None:           # bf16 MXU operands on v6e/v7x
        xf = xf.astype(compute_dtype)
        wtap = wtap.astype(compute_dtype)

    kernel = functools.partial(convt_kernel, KH=KH, KW=KW, DW=DW, OWIDE=OWIDE)
    outw = pl.pallas_call(
        kernel,
        out_shape=jax.ShapeDtypeStruct((N, Cout, OWIDE), x.dtype),
        grid_spec=pltpu.PrefetchScalarGridSpec(
            num_scalar_prefetch=0,
            grid=(N,),                                     # one image per step
            in_specs=[
                pl.BlockSpec((1, Cin, LFLAT), lambda n: (n, 0, 0)),
                pl.BlockSpec((KH * KW, Cout, Cin), lambda n: (0, 0, 0)),
                pl.BlockSpec((Cout, 1), lambda n: (0, 0)),
            ],
            out_specs=pl.BlockSpec((1, Cout, OWIDE), lambda n: (n, 0, 0)),
        ),
        compiler_params=pltpu.CompilerParams(
            dimension_semantics=("parallel",)),
    )(xf, wtap, bmat)

    # Free reshape + crop of the (DW-OW) junk columns; no transpose needed.
    out = outw.reshape(N, Cout, OH, DW)[:, :, :, :OW]
    return out


def convt_reference(x, weight, bias, stride, padding):
    """Independent direct (scatter-add) implementation of PyTorch semantics."""
    N, Cin, H, W = x.shape
    _, Cout, KH, KW = weight.shape
    OH = (H - 1) * stride - 2 * padding + KH
    OW = (W - 1) * stride - 2 * padding + KW
    full = jnp.zeros((N, Cout, (H - 1) * stride + KH, (W - 1) * stride + KW),
                     jnp.float32)
    c = jnp.einsum('ncij,cokl->noklij', x, weight)   # (N,Cout,KH,KW,H,W)
    for kh in range(KH):
        for kw in range(KW):
            full = full.at[:, :, kh:kh + (H - 1) * stride + 1:stride,
                                 kw:kw + (W - 1) * stride + 1:stride].add(
                c[:, :, kh, kw])
    out = full[:, :, padding:padding + OH, padding:padding + OW]
    return out + bias[None, :, None, None]


if __name__ == "__main__":
    # ConvTranspose2d(in_channels=4, out_channels=8, kernel_size=4, stride=2,
    #                 padding=1, std=0.1, bias=True)  -> 2x spatial upsample
    N, Cin, H, W = 2, 4, 16, 16
    Cout, KH, KW = 8, 4, 4
    stride, padding = 2, 1
    std = 0.1

    key = jax.random.PRNGKey(0)
    kx, kw_, kb = jax.random.split(key, 3)

    x = jax.random.normal(kx, (N, Cin, H, W), dtype=jnp.float32)
    # std-init branch of the module: weight/bias ~ N(0, std); ConvTranspose2d
    # weight layout is (in_channels, out_channels, KH, KW).
    weight = std * jax.random.normal(kw_, (Cin, Cout, KH, KW), dtype=jnp.float32)
    bias = std * jax.random.normal(kb, (Cout,), dtype=jnp.float32)

    fwd = jax.jit(functools.partial(conv_transpose2d_forward,
                                    stride=stride, padding=padding))
    y = fwd(x, weight, bias)
    y = jax.block_until_ready(y)

    OH = (H - 1) * stride - 2 * padding + KH
    OW = (W - 1) * stride - 2 * padding + KW
    assert y.shape == (N, Cout, OH, OW), y.shape

    ref = convt_reference(x, weight, bias, stride, padding)
    err = float(jnp.abs(y - ref).max())
    assert jnp.allclose(y, ref, atol=1e-4, rtol=1e-4), err

    print("KERNEL_OK")
</pallas_src>

<mosaic_0001>
module attributes {stable_mosaic.version = 11 : i64} {
  func.func @convt_kernel(%arg0: i32, %arg1: memref<1x4x1280xf32, #tpu.memory_space<vmem>>, %arg2: memref<16x8x4xf32, #tpu.memory_space<vmem>>, %arg3: memref<8x1xf32, #tpu.memory_space<vmem>>, %arg4: memref<1x8x1120xf32, #tpu.memory_space<vmem>>) attributes {dimension_semantics = [#tpu.dimension_semantics<parallel>], iteration_bounds = array<i64: 2>, scalar_prefetch = 0 : i64, scratch_operands = 0 : i64, tpu.core_type = #tpu.core_type<tc>, window_params = [{transform_indices = @transform_0, window_bounds = array<i64: 1, 4, 1280>}, {pipeline_mode = #tpu.pipeline_mode<synchronous>, transform_indices = @transform_1, window_bounds = array<i64: 16, 8, 4>}, {pipeline_mode = #tpu.pipeline_mode<synchronous>, transform_indices = @transform_2, window_bounds = array<i64: 8, 1>}, {transform_indices = @transform_3, window_bounds = array<i64: 1, 8, 1120>}]} {
    %c0 = arith.constant 0 : index
    %c0_0 = arith.constant 0 : index
    %c0_1 = arith.constant 0 : index
    %0 = vector.load %arg1[%c0, %c0_0, %c0_1] : memref<1x4x1280xf32, #tpu.memory_space<vmem>>, vector<1x4x1280xf32>
    %1 = vector.shape_cast %0 : vector<1x4x1280xf32> to vector<4x1280xf32>
    %c0_2 = arith.constant 0 : index
    %c0_3 = arith.constant 0 : index
    %2 = vector.load %arg3[%c0_2, %c0_3] : memref<8x1xf32, #tpu.memory_space<vmem>>, vector<8x1xf32>
    %3 = vector.shape_cast %2 : vector<8x1xf32> to vector<8x1xf32>
    %4 = vector.broadcast %3 : vector<8x1xf32> to vector<8x1120xf32>
    %5 = vector.extract_strided_slice %1 {offsets = [0, 0], sizes = [4, 1120], strides = [1, 1]} : vector<4x1280xf32> to vector<4x1120xf32>
    %c0_4 = arith.constant 0 : index
    %c0_5 = arith.constant 0 : index
    %c0_6 = arith.constant 0 : index
    %6 = vector.load %arg2[%c0_4, %c0_5, %c0_6] : memref<16x8x4xf32, #tpu.memory_space<vmem>>, vector<1x8x4xf32>
    %7 = vector.shape_cast %6 : vector<1x8x4xf32> to vector<8x4xf32>
    %cst = arith.constant dense<0.000000e+00> : vector<8x1120xf32>
    %8 = tpu.matmul %7, %5, %cst {dimension_numbers = #tpu.dot_dimension_numbers<[1], [0], [0], [1], [0, 0, 1, 1], [], []>} : vector<8x4xf32>, vector<4x1120xf32>, vector<8x1120xf32> -> vector<8x1120xf32>
    %9 = arith.addf %4, %8 : vector<8x1120xf32>
    %10 = vector.extract_strided_slice %1 {offsets = [0, 1], sizes = [4, 1120], strides = [1, 1]} : vector<4x1280xf32> to vector<4x1120xf32>
    %c1 = arith.constant 1 : index
    %c0_7 = arith.constant 0 : index
    %c0_8 = arith.constant 0 : index
    %11 = vector.load %arg2[%c1, %c0_7, %c0_8] : memref<16x8x4xf32, #tpu.memory_space<vmem>>, vector<1x8x4xf32>
    %12 = vector.shape_cast %11 : vector<1x8x4xf32> to vector<8x4xf32>
    %cst_9 = arith.constant dense<0.000000e+00> : vector<8x1120xf32>
    %13 = tpu.matmul %12, %10, %cst_9 {dimension_numbers = #tpu.dot_dimension_numbers<[1], [0], [0], [1], [0, 0, 1, 1], [], []>} : vector<8x4xf32>, vector<4x1120xf32>, vector<8x1120xf32> -> vector<8x1120xf32>
    %14 = arith.addf %9, %13 : vector<8x1120xf32>
    %15 = vector.extract_strided_slice %1 {offsets = [0, 2], sizes = [4, 1120], strides = [1, 1]} : vector<4x1280xf32> to vector<4x1120xf32>
    %c2 = arith.constant 2 : index
    %c0_10 = arith.constant 0 : index
    %c0_11 = arith.constant 0 : index
    %16 = vector.load %arg2[%c2, %c0_10, %c0_11] : memref<16x8x4xf32, #tpu.memory_space<vmem>>, vector<1x8x4xf32>
    %17 = vector.shape_cast %16 : vector<1x8x4xf32> to vector<8x4xf32>
    %cst_12 = arith.constant dense<0.000000e+00> : vector<8x1120xf32>
    %18 = tpu.matmul %17, %15, %cst_12 {dimension_numbers = #tpu.dot_dimension_numbers<[1], [0], [0], [1], [0, 0, 1, 1], [], []>} : vector<8x4xf32>, vector<4x1120xf32>, vector<8x1120xf32> -> vector<8x1120xf32>
    %19 = arith.addf %14, %18 : vector<8x1120xf32>
    %20 = vector.extract_strided_slice %1 {offsets = [0, 3], sizes = [4, 1120], strides = [1, 1]} : vector<4x1280xf32> to vector<4x1120xf32>
    %c3 = arith.constant 3 : index
    %c0_13 = arith.constant 0 : index
    %c0_14 = arith.constant 0 : index
    %21 = vector.load %arg2[%c3, %c0_13, %c0_14] : memref<16x8x4xf32, #tpu.memory_space<vmem>>, vector<1x8x4xf32>
    %22 = vector.shape_cast %21 : vector<1x8x4xf32> to vector<8x4xf32>
    %cst_15 = arith.constant dense<0.000000e+00> : vector<8x1120xf32>
    %23 = tpu.matmul %22, %20, %cst_15 {dimension_numbers = #tpu.dot_dimension_numbers<[1], [0], [0], [1], [0, 0, 1, 1], [], []>} : vector<8x4xf32>, vector<4x1120xf32>, vector<8x1120xf32> -> vector<8x1120xf32>
    %24 = arith.addf %19, %23 : vector<8x1120xf32>
    %25 = vector.extract_strided_slice %1 {offsets = [0, 35], sizes = [4, 1120], strides = [1, 1]} : vector<4x1280xf32> to vector<4x1120xf32>
    %c4 = arith.constant 4 : index
    %c0_16 = arith.constant 0 : index
    %c0_17 = arith.constant 0 : index
    %26 = vector.load %arg2[%c4, %c0_16, %c0_17] : memref<16x8x4xf32, #tpu.memory_space<vmem>>, vector<1x8x4xf32>
    %27 = vector.shape_cast %26 : vector<1x8x4xf32> to vector<8x4xf32>
    %cst_18 = arith.constant dense<0.000000e+00> : vector<8x1120xf32>
    %28 = tpu.matmul %27, %25, %cst_18 {dimension_numbers = #tpu.dot_dimension_numbers<[1], [0], [0], [1], [0, 0, 1, 1], [], []>} : vector<8x4xf32>, vector<4x1120xf32>, vector<8x1120xf32> -> vector<8x1120xf32>
    %29 = arith.addf %24, %28 : vector<8x1120xf32>
    %30 = vector.extract_strided_slice %1 {offsets = [0, 36], sizes = [4, 1120], strides = [1, 1]} : vector<4x1280xf32> to vector<4x1120xf32>
    %c5 = arith.constant 5 : index
    %c0_19 = arith.constant 0 : index
    %c0_20 = arith.constant 0 : index
    %31 = vector.load %arg2[%c5, %c0_19, %c0_20] : memref<16x8x4xf32, #tpu.memory_space<vmem>>, vector<1x8x4xf32>
    %32 = vector.shape_cast %31 : vector<1x8x4xf32> to vector<8x4xf32>
    %cst_21 = arith.constant dense<0.000000e+00> : vector<8x1120xf32>
    %33 = tpu.matmul %32, %30, %cst_21 {dimension_numbers = #tpu.dot_dimension_numbers<[1], [0], [0], [1], [0, 0, 1, 1], [], []>} : vector<8x4xf32>, vector<4x1120xf32>, vector<8x1120xf32> -> vector<8x1120xf32>
    %34 = arith.addf %29, %33 : vector<8x1120xf32>
    %35 = vector.extract_strided_slice %1 {offsets = [0, 37], sizes = [4, 1120], strides = [1, 1]} : vector<4x1280xf32> to vector<4x1120xf32>
    %c6 = arith.constant 6 : index
    %c0_22 = arith.constant 0 : index
    %c0_23 = arith.constant 0 : index
    %36 = vector.load %arg2[%c6, %c0_22, %c0_23] : memref<16x8x4xf32, #tpu.memory_space<vmem>>, vector<1x8x4xf32>
    %37 = vector.shape_cast %36 : vector<1x8x4xf32> to vector<8x4xf32>
    %cst_24 = arith.constant dense<0.000000e+00> : vector<8x1120xf32>
    %38 = tpu.matmul %37, %35, %cst_24 {dimension_numbers = #tpu.dot_dimension_numbers<[1], [0], [0], [1], [0, 0, 1, 1], [], []>} : vector<8x4xf32>, vector<4x1120xf32>, vector<8x1120xf32> -> vector<8x1120xf32>
    %39 = arith.addf %34, %38 : vector<8x1120xf32>
    %40 = vector.extract_strided_slice %1 {offsets = [0, 38], sizes = [4, 1120], strides = [1, 1]} : vector<4x1280xf32> to vector<4x1120xf32>
    %c7 = arith.constant 7 : index
    %c0_25 = arith.constant 0 : index
    %c0_26 = arith.constant 0 : index
    %41 = vector.load %arg2[%c7, %c0_25, %c0_26] : memref<16x8x4xf32, #tpu.memory_space<vmem>>, vector<1x8x4xf32>
    %42 = vector.shape_cast %41 : vector<1x8x4xf32> to vector<8x4xf32>
    %cst_27 = arith.constant dense<0.000000e+00> : vector<8x1120xf32>
    %43 = tpu.matmul %42, %40, %cst_27 {dimension_numbers = #tpu.dot_dimension_numbers<[1], [0], [0], [1], [0, 0, 1, 1], [], []>} : vector<8x4xf32>, vector<4x1120xf32>, vector<8x1120xf32> -> vector<8x1120xf32>
    %44 = arith.addf %39, %43 : vector<8x1120xf32>
    %45 = vector.extract_strided_slice %1 {offsets = [0, 70], sizes = [4, 1120], strides = [1, 1]} : vector<4x1280xf32> to vector<4x1120xf32>
    %c8 = arith.constant 8 : index
    %c0_28 = arith.constant 0 : index
    %c0_29 = arith.constant 0 : index
    %46 = vector.load %arg2[%c8, %c0_28, %c0_29] : memref<16x8x4xf32, #tpu.memory_space<vmem>>, vector<1x8x4xf32>
    %47 = vector.shape_cast %46 : vector<1x8x4xf32> to vector<8x4xf32>
    %cst_30 = arith.constant dense<0.000000e+00> : vector<8x1120xf32>
    %48 = tpu.matmul %47, %45, %cst_30 {dimension_numbers = #tpu.dot_dimension_numbers<[1], [0], [0], [1], [0, 0, 1, 1], [], []>} : vector<8x4xf32>, vector<4x1120xf32>, vector<8x1120xf32> -> vector<8x1120xf32>
    %49 = arith.addf %44, %48 : vector<8x1120xf32>
    %50 = vector.extract_strided_slice %1 {offsets = [0, 71], sizes = [4, 1120], strides = [1, 1]} : vector<4x1280xf32> to vector<4x1120xf32>
    %c9 = arith.constant 9 : index
    %c0_31 = arith.constant 0 : index
    %c0_32 = arith.constant 0 : index
    %51 = vector.load %arg2[%c9, %c0_31, %c0_32] : memref<16x8x4xf32, #tpu.memory_space<vmem>>, vector<1x8x4xf32>
    %52 = vector.shape_cast %51 : vector<1x8x4xf32> to vector<8x4xf32>
    %cst_33 = arith.constant dense<0.000000e+00> : vector<8x1120xf32>
    %53 = tpu.matmul %52, %50, %cst_33 {dimension_numbers = #tpu.dot_dimension_numbers<[1], [0], [0], [1], [0, 0, 1, 1], [], []>} : vector<8x4xf32>, vector<4x1120xf32>, vector<8x1120xf32> -> vector<8x1120xf32>
    %54 = arith.addf %49, %53 : vector<8x1120xf32>
    %55 = vector.extract_strided_slice %1 {offsets = [0, 72], sizes = [4, 1120], strides = [1, 1]} : vector<4x1280xf32> to vector<4x1120xf32>
    %c10 = arith.constant 10 : index
    %c0_34 = arith.constant 0 : index
    %c0_35 = arith.constant 0 : index
    %56 = vector.load %arg2[%c10, %c0_34, %c0_35] : memref<16x8x4xf32, #tpu.memory_space<vmem>>, vector<1x8x4xf32>
    %57 = vector.shape_cast %56 : vector<1x8x4xf32> to vector<8x4xf32>
    %cst_36 = arith.constant dense<0.000000e+00> : vector<8x1120xf32>
    %58 = tpu.matmul %57, %55, %cst_36 {dimension_numbers = #tpu.dot_dimension_numbers<[1], [0], [0], [1], [0, 0, 1, 1], [], []>} : vector<8x4xf32>, vector<4x1120xf32>, vector<8x1120xf32> -> vector<8x1120xf32>
    %59 = arith.addf %54, %58 : vector<8x1120xf32>
    %60 = vector.extract_strided_slice %1 {offsets = [0, 73], sizes = [4, 1120], strides = [1, 1]} : vector<4x1280xf32> to vector<4x1120xf32>
    %c11 = arith.constant 11 : index
    %c0_37 = arith.constant 0 : index
    %c0_38 = arith.constant 0 : index
    %61 = vector.load %arg2[%c11, %c0_37, %c0_38] : memref<16x8x4xf32, #tpu.memory_space<vmem>>, vector<1x8x4xf32>
    %62 = vector.shape_cast %61 : vector<1x8x4xf32> to vector<8x4xf32>
    %cst_39 = arith.constant dense<0.000000e+00> : vector<8x1120xf32>
    %63 = tpu.matmul %62, %60, %cst_39 {dimension_numbers = #tpu.dot_dimension_numbers<[1], [0], [0], [1], [0, 0, 1, 1], [], []>} : vector<8x4xf32>, vector<4x1120xf32>, vector<8x1120xf32> -> vector<8x1120xf32>
    %64 = arith.addf %59, %63 : vector<8x1120xf32>
    %65 = vector.extract_strided_slice %1 {offsets = [0, 105], sizes = [4, 1120], strides = [1, 1]} : vector<4x1280xf32> to vector<4x1120xf32>
    %c12 = arith.constant 12 : index
    %c0_40 = arith.constant 0 : index
    %c0_41 = arith.constant 0 : index
    %66 = vector.load %arg2[%c12, %c0_40, %c0_41] : memref<16x8x4xf32, #tpu.memory_space<vmem>>, vector<1x8x4xf32>
    %67 = vector.shape_cast %66 : vector<1x8x4xf32> to vector<8x4xf32>
    %cst_42 = arith.constant dense<0.000000e+00> : vector<8x1120xf32>
    %68 = tpu.matmul %67, %65, %cst_42 {dimension_numbers = #tpu.dot_dimension_numbers<[1], [0], [0], [1], [0, 0, 1, 1], [], []>} : vector<8x4xf32>, vector<4x1120xf32>, vector<8x1120xf32> -> vector<8x1120xf32>
    %69 = arith.addf %64, %68 : vector<8x1120xf32>
    %70 = vector.extract_strided_slice %1 {offsets = [0, 106], sizes = [4, 1120], strides = [1, 1]} : vector<4x1280xf32> to vector<4x1120xf32>
    %c13 = arith.constant 13 : index
    %c0_43 = arith.constant 0 : index
    %c0_44 = arith.constant 0 : index
    %71 = vector.load %arg2[%c13, %c0_43, %c0_44] : memref<16x8x4xf32, #tpu.memory_space<vmem>>, vector<1x8x4xf32>
    %72 = vector.shape_cast %71 : vector<1x8x4xf32> to vector<8x4xf32>
    %cst_45 = arith.constant dense<0.000000e+00> : vector<8x1120xf32>
    %73 = tpu.matmul %72, %70, %cst_45 {dimension_numbers = #tpu.dot_dimension_numbers<[1], [0], [0], [1], [0, 0, 1, 1], [], []>} : vector<8x4xf32>, vector<4x1120xf32>, vector<8x1120xf32> -> vector<8x1120xf32>
    %74 = arith.addf %69, %73 : vector<8x1120xf32>
    %75 = vector.extract_strided_slice %1 {offsets = [0, 107], sizes = [4, 1120], strides = [1, 1]} : vector<4x1280xf32> to vector<4x1120xf32>
    %c14 = arith.constant 14 : index
    %c0_46 = arith.constant 0 : index
    %c0_47 = arith.constant 0 : index
    %76 = vector.load %arg2[%c14, %c0_46, %c0_47] : memref<16x8x4xf32, #tpu.memory_space<vmem>>, vector<1x8x4xf32>
    %77 = vector.shape_cast %76 : vector<1x8x4xf32> to vector<8x4xf32>
    %cst_48 = arith.constant dense<0.000000e+00> : vector<8x1120xf32>
    %78 = tpu.matmul %77, %75, %cst_48 {dimension_numbers = #tpu.dot_dimension_numbers<[1], [0], [0], [1], [0, 0, 1, 1], [], []>} : vector<8x4xf32>, vector<4x1120xf32>, vector<8x1120xf32> -> vector<8x1120xf32>
    %79 = arith.addf %74, %78 : vector<8x1120xf32>
    %80 = vector.extract_strided_slice %1 {offsets = [0, 108], sizes = [4, 1120], strides = [1, 1]} : vector<4x1280xf32> to vector<4x1120xf32>
    %c15 = arith.constant 15 : index
    %c0_49 = arith.constant 0 : index
    %c0_50 = arith.constant 0 : index
    %81 = vector.load %arg2[%c15, %c0_49, %c0_50] : memref<16x8x4xf32, #tpu.memory_space<vmem>>, vector<1x8x4xf32>
    %82 = vector.shape_cast %81 : vector<1x8x4xf32> to vector<8x4xf32>
    %cst_51 = arith.constant dense<0.000000e+00> : vector<8x1120xf32>
    %83 = tpu.matmul %82, %80, %cst_51 {dimension_numbers = #tpu.dot_dimension_numbers<[1], [0], [0], [1], [0, 0, 1, 1], [], []>} : vector<8x4xf32>, vector<4x1120xf32>, vector<8x1120xf32> -> vector<8x1120xf32>
    %84 = arith.addf %79, %83 : vector<8x1120xf32>
    %c0_52 = arith.constant 0 : index
    %c0_53 = arith.constant 0 : index
    %c0_54 = arith.constant 0 : index
    %85 = vector.load %arg4[%c0_52, %c0_53, %c0_54] : memref<1x8x1120xf32, #tpu.memory_space<vmem>>, vector<1x8x1120xf32>
    %86 = vector.shape_cast %85 : vector<1x8x1120xf32> to vector<8x1120xf32>
    %87 = vector.shape_cast %84 : vector<8x1120xf32> to vector<1x8x1120xf32>
    tpu.vector_store %arg4[%c0_52, %c0_53, %c0_54], %87 {strides = array<i32>} : memref<1x8x1120xf32, #tpu.memory_space<vmem>>, vector<1x8x1120xf32>,
    return
  }
  func.func @transform_0(%arg0: i32) -> (i32, i32, i32) {
    %c0_i32 = arith.constant 0 : i32
    %c0_i32_0 = arith.constant 0 : i32
    %c0_i32_1 = arith.constant 0 : i32
    return %arg0, %c0_i32, %c0_i32_0 : i32, i32, i32
  }
  func.func @transform_1(%arg0: i32) -> (i32, i32, i32) {
    %c0_i32 = arith.constant 0 : i32
    %c0_i32_0 = arith.constant 0 : i32
    %c0_i32_1 = arith.constant 0 : i32
    %c0_i32_2 = arith.constant 0 : i32
    return %c0_i32, %c0_i32_0, %c0_i32_1 : i32, i32, i32
  }
  func.func @transform_2(%arg0: i32) -> (i32, i32) {
    %c0_i32 = arith.constant 0 : i32
    %c0_i32_0 = arith.constant 0 : i32
    %c0_i32_1 = arith.constant 0 : i32
    return %c0_i32, %c0_i32_0 : i32, i32
  }
  func.func @transform_3(%arg0: i32) -> (i32, i32, i32) {
    %c0_i32 = arith.constant 0 : i32
    %c0_i32_0 = arith.constant 0 : i32
    %c0_i32_1 = arith.constant 0 : i32
    return %arg0, %c0_i32, %c0_i32_0 : i32, i32, i32
  }
}

</mosaic_0001>

<llo_original>
// kernel: conv_transpose2d_forward.1
$region0: #{conv_transpose2d_forward.1}
  #allocation0 [shape = 'u32[]', space=smem, size = 0x4, offset = 0x4, fixed_abs, tag = 'smem constant byte address 0x4 - core index']
  #allocation1 [shape = 'u32[144,128]{1,0:T(1,128)}', space=vmem, size = 0x12000, scoped, tag = 'internal scratch']
  %s0 = inlined_call_operand.vmem [shape: f32[2,4,1280], index: 0, kind: input, shape index: {}]
  %s1 = inlined_call_operand.vmem [shape: f32[16,8,4], index: 1, kind: input, shape index: {}]
  %s2 = inlined_call_operand.vmem [shape: f32[8,1], index: 2, kind: input, shape index: {}]
  %s3 = inlined_call_operand.vmem [shape: f32[2,8,1120], index: 3, kind: output, shape index: {}]
  %s4 = sld [smem:[#allocation0]]
  $region45: #{conv_transpose2d_forward.1} parent=0
    _
  %s6 = ssub.s32 1, %s4
  %s7 = scalar_select 0, %s6, %s4
  loop: start=0, step=1, limit=4
  $region2: #{conv_transpose2d_forward.1} parent=0 // loop_pre_header
    _
  $region3: #{conv_transpose2d_forward.1} parent=0 // loop_header
    %s9 = sphi 0, %s13
    %p10 = scmp.ge.s32.totalorder %s9, 4
    %s19 = sphi 0, %s21
    %s22 = sphi 0, %s19
    %s23 = sphi 0, %s22
    %s39 = sphi 0, %s23
    %s43 = sphi 0, %s43
    %s45 = sphi 0, %s43
    %s46 = sphi 0, %s45
    %s60 = sphi 0, %s46
    %s64 = sphi 0, %s64
    %s66 = sphi 0, %s64
    %s67 = sphi 0, %s66
    %s81 = sphi 0, %s67
    %s87 = sphi 0, %s89
    %s90 = sphi 0, %s87
    %s91 = sphi 0, %s90
    %s107 = sphi 0, %s91
  $region4: #{conv_transpose2d_forward.1} parent=0 // loop_header_branch
    %12 = sbr.rel (%p10) target = $region8
  $region5: #{conv_transpose2d_forward.1} parent=0 // loop_body
    %s14 = ssub.s32 %s9, 1
    %s15 = ssub.s32 %s9, 2
    %s16 = sadd.s32 %s9, 1
    %s17 = ssub.s32 %s9, %s16
    %p18 = scmp.eq.s32.totalorder %s17, 0
    %s20 = sadd.s32 %s19, 1
    %s21 = scalar_select %p18, %s19, %s20
    %p24 = pneg %p18
    %p25 = scmp.eq.s32.totalorder %s9, 1
    %p26 = por %p24, %p25
    %p27 = scmp.ne.s32.totalorder %s19, %s22
    %p28 = scmp.eq.s32.totalorder %s9, 0
    %p29 = por %p27, %p28
    %p30 = scmp.ne.s32.totalorder %s19, %s22
    %p31 = scmp.eq.s32.totalorder %s14, 1
    %p32 = por %p30, %p31
    %p33 = scmp.ne.s32.totalorder %s22, %s23
    %p34 = scmp.eq.s32.totalorder %s14, 0
    %p35 = por %p33, %p34
    %p36 = scmp.ne.s32.totalorder %s22, %s23
    %p37 = scmp.eq.s32.totalorder %s15, 1
    %p38 = por %p36, %p37
    %p40 = scmp.ne.s32.totalorder %s23, %s39
    %p41 = scmp.eq.s32.totalorder %s15, 0
    %p42 = por %p40, %p41
    %s44 = sadd.s32 %s43, 1
    %p47 = scmp.eq.s32.totalorder %s9, 1
    %p48 = scmp.ne.s32.totalorder %s43, %s45
    %p49 = scmp.eq.s32.totalorder %s9, 0
    %p50 = por %p48, %p49
    %p51 = scmp.ne.s32.totalorder %s43, %s45
    %p52 = scmp.eq.s32.totalorder %s14, 1
    %p53 = por %p51, %p52
    %p54 = scmp.ne.s32.totalorder %s45, %s46
    %p55 = scmp.eq.s32.totalorder %s14, 0
    %p56 = por %p54, %p55
    %p57 = scmp.ne.s32.totalorder %s45, %s46
    %p58 = scmp.eq.s32.totalorder %s15, 1
    %p59 = por %p57, %p58
    %p61 = scmp.ne.s32.totalorder %s46, %s60
    %p62 = scmp.eq.s32.totalorder %s15, 0
    %p63 = por %p61, %p62
    %s65 = sadd.s32 %s64, 1
    %p68 = scmp.eq.s32.totalorder %s9, 1
    %p69 = scmp.ne.s32.totalorder %s64, %s66
    %p70 = scmp.eq.s32.totalorder %s9, 0
    %p71 = por %p69, %p70
    %p72 = scmp.ne.s32.totalorder %s64, %s66
    %p73 = scmp.eq.s32.totalorder %s14, 1
    %p74 = por %p72, %p73
    %p75 = scmp.ne.s32.totalorder %s66, %s67
    %p76 = scmp.eq.s32.totalorder %s14, 0
    %p77 = por %p75, %p76
    %p78 = scmp.ne.s32.totalorder %s66, %s67
    %p79 = scmp.eq.s32.totalorder %s15, 1
    %p80 = por %p78, %p79
    %p82 = scmp.ne.s32.totalorder %s67, %s81
    %p83 = scmp.eq.s32.totalorder %s15, 0
    %p84 = por %p82, %p83
    %s85 = ssub.s32 %s9, %s16
    %p86 = scmp.eq.s32.totalorder %s85, 0
    %s88 = sadd.s32 %s87, 1
    %s89 = scalar_select %p86, %s87, %s88
    %p92 = pneg %p86
    %p93 = scmp.eq.s32.totalorder %s9, 1
    %p94 = por %p92, %p93
    %p95 = scmp.ne.s32.totalorder %s87, %s90
    %p96 = scmp.eq.s32.totalorder %s9, 0
    %p97 = por %p95, %p96
    %p98 = scmp.ne.s32.totalorder %s87, %s90
    %p99 = scmp.eq.s32.totalorder %s14, 1
    %p100 = por %p98, %p99
    %p101 = scmp.ne.s32.totalorder %s90, %s91
    %p102 = scmp.eq.s32.totalorder %s14, 0
    %p103 = por %p101, %p102
    %p104 = scmp.ne.s32.totalorder %s90, %s91
    %p105 = scmp.eq.s32.totalorder %s15, 1
    %p106 = por %p104, %p105
    %p108 = scmp.ne.s32.totalorder %s91, %s107
    %p109 = scmp.eq.s32.totalorder %s15, 0
    %p110 = por %p108, %p109
    %p111 = scmp.le.s32.totalorder 1, %s9
    %p112 = scmp.lt.s32.totalorder %s9, 3
    %p113 = pnand %p111, %p112
    %p114 = pneg %p113
    // Predicated region
    $region9: #{conv_transpose2d_forward.1} parent=5 // pred_check
      _
    $region10: #{conv_transpose2d_forward.1} parent=5 // pred_check_branch
      %116 = sbr.rel (%p113) target = $region12
    $region11: #{conv_transpose2d_forward.1} parent=5 // pred_region
      %s117 = ssub.s32 %s9, 1
      // Predicated region
      $region13: #{conv_transpose2d_forward.1} parent=11 // pred_check
        %p118 = pneg %p56
      $region14: #{conv_transpose2d_forward.1} parent=11 // pred_check_branch
        %120 = sbr.rel (%p118) target = $region16
      $region15: #{conv_transpose2d_forward.1} parent=11 // pred_region
        _
      $region16: #{conv_transpose2d_forward.1} parent=11 // pred_fallthru
        _
      // Predicated region
      $region17: #{conv_transpose2d_forward.1} parent=11 // pred_check
        %p121 = pneg %p77
      $region18: #{conv_transpose2d_forward.1} parent=11 // pred_check_branch
        %123 = sbr.rel (%p121) target = $region20
      $region19: #{conv_transpose2d_forward.1} parent=11 // pred_region
        _
      $region20: #{conv_transpose2d_forward.1} parent=11 // pred_fallthru
        _
    $region12: #{conv_transpose2d_forward.1} parent=5 // pred_fallthru
      _
    %p124 = scmp.lt.s32.totalorder %s9, 2
    // Predicated region
    $region21: #{conv_transpose2d_forward.1} parent=5 // pred_check
      %p125 = pneg %p124
    $region22: #{conv_transpose2d_forward.1} parent=5 // pred_check_branch
      %127 = sbr.rel (%p125) target = $region24
    $region23: #{conv_transpose2d_forward.1} parent=5 // pred_region
      // Predicated region
      $region25: #{conv_transpose2d_forward.1} parent=23 // pred_check
        %p128 = pneg %p29
      $region26: #{conv_transpose2d_forward.1} parent=23 // pred_check_branch
        %130 = sbr.rel (%p128) target = $region28
      $region27: #{conv_transpose2d_forward.1} parent=23 // pred_region
        %p131 = scmp.lt.s32.totalorder %s9, 1
        %s132 = scalar_select %p131, %s9, 1
        %s133 = smul.addr %s132, 10
        %s134 = smul.addr %s133, 4
        %s135 = scalar_lea.vmem %s0, %s134
      $region28: #{conv_transpose2d_forward.1} parent=23 // pred_fallthru
        _
    $region24: #{conv_transpose2d_forward.1} parent=5 // pred_fallthru
      _
    %p136 = scmp.le.s32.totalorder 1, %s9
    %p137 = scmp.lt.s32.totalorder %s9, 3
    %p138 = pnand %p136, %p137
    %p139 = pneg %p138
    // Predicated region
    $region29: #{conv_transpose2d_forward.1} parent=5 // pred_check
      _
    $region30: #{conv_transpose2d_forward.1} parent=5 // pred_check_branch
      %141 = sbr.rel (%p138) target = $region32
    $region31: #{conv_transpose2d_forward.1} parent=5 // pred_region
      %s142 = ssub.s32 %s9, 1
      %p143 = scmp.lt.s32.totalorder %s14, 1
      %s144 = scalar_select %p143, %s14, 1
      %s145 = smul.addr %s144, 10
      %s146 = smul.addr %s145, 4
      %s147 = scalar_lea.vmem %s0, %s146
      %p148 = pneg %p35
      %p149 = pneg %p32
      %p150 = pneg %p56
      %p151 = pneg %p53
      %p152 = pneg %p77
      %p153 = pneg %p74
      %p154 = pneg %p103
      %p155 = pneg %p100
      %p156 = scmp.lt.s32.totalorder %s14, 1
      %s157 = scalar_select %p156, %s14, 1
      %s158 = smul.addr %s157, 9
      %s159 = smul.addr %s158, 8
      %s160 = scalar_lea.vmem %s3, %s159
      %p161 = scmp.lt.s32.totalorder %s14, 1
      %s162 = scalar_select %p161, %s14, 1
      %s163 = smul.addr %s162, 10
      %s164 = smul.addr %s163, 4
      %s165 = scalar_lea.vmem %s0, %s164
      %p166 = scmp.lt.s32.totalorder %s14, 1
      %s167 = scalar_select %p166, %s14, 1
      %s168 = smul.addr %s167, 9
      %s169 = smul.addr %s168, 8
      %s170 = scalar_lea.vmem %s3, %s169
      %v171 = vld [vmem:[%s165] sm:$0xff]
      %v172 = vld [vmem:[%s165 + $0x8] sm:$0xff]
      %v173 = vld [vmem:[%s165 + $0x10] sm:$0xff]
      %v174 = vld [vmem:[%s165 + $0x18] sm:$0xff]
      %v175 = vld [vmem:[%s165 + $0x20] sm:$0xff]
      %v176 = vld [vmem:[%s2] sm:$0xff]
      %178 = vset.pattern.permute.xlu0 0
      %179 = vperm.xlu0 %178, %v176
      %v180 = vpop.permute.xlu0 %179
      %v182 = vld [vmem:[%s1] sm:$0xff]
      %v188 = vcombine.high %v171, %v171
      %v189 = vcombine.high %v172, %v172
      %v190 = vcombine.high %v173, %v173
      %v191 = vcombine.high %v174, %v174
      %vm192 = vcmask 31744
      %v194 = vsel %vm192, %v182, 0
      %vm196 = vcmask 1043456
      %v197 = vsel %vm196, %v171, 0
      %v199 = vsel %vm196, %v188, 0
      %v201 = vsel %vm196, %v172, 0
      %v203 = vsel %vm196, %v189, 0
      %v205 = vsel %vm196, %v173, 0
      %v207 = vsel %vm196, %v190, 0
      %v209 = vsel %vm196, %v174, 0
      %v211 = vsel %vm196, %v191, 0
      %v213 = vsel %vm196, %v175, 0
      %215 = vmatprep.subr.mxu0 0.0
      %216 = vmatpush1.msra.mxu0 0.0
      %217 = vmatprep.subr.mxu0 0.0
      %218 = vmatpush1.msra.mxu0 0.0
      %219 = vmatprep.subr.mxu0 0.0
      %220 = vmatpush1.msra.mxu0 0.0
      %221 = vmatprep.subr.mxu0 0.0
      %222 = vmatpush1.msra.mxu0 0.0
      %223 = vmatprep.subr.mxu0 0.0
      %224 = vmatpush1.msra.mxu0 0.0
      %225 = vmatprep.subr.mxu0 0.0
      %226 = vmatpush1.msra.mxu0 0.0
      %227 = vmatprep.subr.mxu0 0.0
      %228 = vmatpush1.msra.mxu0 0.0
      %229 = vmatprep.subr.mxu0 0.0
      %230 = vmatpush1.msra.mxu0 0.0
      %231 = vmatprep.subr.mxu0 0.0
      %232 = vmatpush1.msra.mxu0 0.0
      %233 = vmatprep.subr.mxu0 0.0
      %234 = vmatpush1.msra.mxu0 0.0
      %235 = vmatprep.subr.mxu0 0.0
      %236 = vmatpush1.msra.mxu0 0.0
      %237 = vmatprep.subr.mxu0 0.0
      %238 = vmatpush1.msra.mxu0 0.0
      %239 = vmatprep.subr.mxu0 0.0
      %240 = vmatpush1.msra.mxu0 0.0
      %241 = vmatprep.subr.mxu0 0.0
      %242 = vmatpush1.msra.mxu0 0.0
      %243 = vmatprep.subr.mxu0 0.0
      %244 = vmatpush1.msra.mxu0 0.0
      %245 = vmatprep.subr.mxu0 %v199
      %246 = vmatpush1.msra.mxu0 %v197
      %247 = vmatprep.subr.mxu0 0.0
      %248 = vmatpush2.msra.mxu0 0.0
      %249 = vmatprep.subr.mxu0 0.0
      %250 = vmatpush2.msra.mxu0 0.0
      %251 = vmatprep.subr.mxu0 0.0
      %252 = vmatpush2.msra.mxu0 0.0
      %253 = vmatprep.subr.mxu0 0.0
      %254 = vmatpush2.msra.mxu0 0.0
      %255 = vmatprep.subr.mxu0 0.0
      %256 = vmatpush2.msra.mxu0 0.0
      %257 = vmatprep.subr.mxu0 0.0
      %258 = vmatpush2.msra.mxu0 0.0
      %259 = vmatprep.subr.mxu0 0.0
      %260 = vmatpush2.msra.mxu0 0.0
      %261 = vmatprep.subr.mxu0 0.0
      %262 = vmatpush2.msra.mxu0 0.0
      %263 = vmatprep.subr.mxu0 0.0
      %264 = vmatpush2.msra.mxu0 0.0
      %265 = vmatprep.subr.mxu0 0.0
      %266 = vmatpush2.msra.mxu0 0.0
      %267 = vmatprep.subr.mxu0 0.0
      %268 = vmatpush2.msra.mxu0 0.0
      %269 = vmatprep.subr.mxu0 0.0
      %270 = vmatpush2.msra.mxu0 0.0
      %271 = vmatprep.subr.mxu0 0.0
      %272 = vmatpush2.msra.mxu0 0.0
      %273 = vmatprep.subr.mxu0 0.0
      %274 = vmatpush2.msra.mxu0 0.0
      %275 = vmatprep.subr.mxu0 0.0
      %276 = vmatpush2.msra.mxu0 0.0
      %277 = vmatprep.subr.mxu0 0.0
      %278 = vmatpush2.msra.mxu0 0.0
      %279 = vmatprep.mubr.f32.mxu0 0.0
      %280 = vmatmul.mubr.f32.gmra.mxu0 %v194
      %v281 = vpop.f32.mrf.mxu0
      %v282 = vadd.f32 0.0, %v281
      %v283 = vpop.f32.mrf.mxu0
      %v284 = vadd.f32 0.0, %v283
      %285 = vdwg.mxu0
      %286 = vmatprep.subr.mxu0 0.0
      %287 = vmatpush1.msra.mxu0 0.0
      %288 = vmatprep.subr.mxu0 0.0
      %289 = vmatpush1.msra.mxu0 0.0
      %290 = vmatprep.subr.mxu0 0.0
      %291 = vmatpush1.msra.mxu0 0.0
      %292 = vmatprep.subr.mxu0 0.0
      %293 = vmatpush1.msra.mxu0 0.0
      %294 = vmatprep.subr.mxu0 0.0
      %295 = vmatpush1.msra.mxu0 0.0
      %296 = vmatprep.subr.mxu0 0.0
      %297 = vmatpush1.msra.mxu0 0.0
      %298 = vmatprep.subr.mxu0 0.0
      %299 = vmatpush1.msra.mxu0 0.0
      %300 = vmatprep.subr.mxu0 0.0
      %301 = vmatpush1.msra.mxu0 0.0
      %302 = vmatprep.subr.mxu0 0.0
      %303 = vmatpush1.msra.mxu0 0.0
      %304 = vmatprep.subr.mxu0 0.0
      %305 = vmatpush1.msra.mxu0 0.0
      %306 = vmatprep.subr.mxu0 0.0
      %307 = vmatpush1.msra.mxu0 0.0
      %308 = vmatprep.subr.mxu0 0.0
      %309 = vmatpush1.msra.mxu0 0.0
      %310 = vmatprep.subr.mxu0 0.0
      %311 = vmatpush1.msra.mxu0 0.0
      %312 = vmatprep.subr.mxu0 0.0
      %313 = vmatpush1.msra.mxu0 0.0
      %314 = vmatprep.subr.mxu0 0.0
      %315 = vmatpush1.msra.mxu0 0.0
      %316 = vmatprep.subr.mxu0 %v203
      %317 = vmatpush1.msra.mxu0 %v201
      %318 = vmatprep.subr.mxu0 0.0
      %319 = vmatpush2.msra.mxu0 0.0
      %320 = vmatprep.subr.mxu0 0.0
      %321 = vmatpush2.msra.mxu0 0.0
      %322 = vmatprep.subr.mxu0 0.0
      %323 = vmatpush2.msra.mxu0 0.0
      %324 = vmatprep.subr.mxu0 0.0
      %325 = vmatpush2.msra.mxu0 0.0
      %326 = vmatprep.subr.mxu0 0.0
      %327 = vmatpush2.msra.mxu0 0.0
      %328 = vmatprep.subr.mxu0 0.0
      %329 = vmatpush2.msra.mxu0 0.0
      %330 = vmatprep.subr.mxu0 0.0
      %331 = vmatpush2.msra.mxu0 0.0
      %332 = vmatprep.subr.mxu0 0.0
      %333 = vmatpush2.msra.mxu0 0.0
      %334 = vmatprep.subr.mxu0 0.0
      %335 = vmatpush2.msra.mxu0 0.0
      %336 = vmatprep.subr.mxu0 0.0
      %337 = vmatpush2.msra.mxu0 0.0
      %338 = vmatprep.subr.mxu0 0.0
      %339 = vmatpush2.msra.mxu0 0.0
      %340 = vmatprep.subr.mxu0 0.0
      %341 = vmatpush2.msra.mxu0 0.0
      %342 = vmatprep.subr.mxu0 0.0
      %343 = vmatpush2.msra.mxu0 0.0
      %344 = vmatprep.subr.mxu0 0.0
      %345 = vmatpush2.msra.mxu0 0.0
      %346 = vmatprep.subr.mxu0 0.0
      %347 = vmatpush2.msra.mxu0 0.0
      %348 = vmatprep.subr.mxu0 0.0
      %349 = vmatpush2.msra.mxu0 0.0
      %350 = vmatprep.mubr.f32.mxu0 0.0
      %351 = vmatmul.mubr.f32.gmra.mxu0 %v194
      %v352 = vpop.f32.mrf.mxu0
      %v353 = vadd.f32 0.0, %v352
      %v354 = vpop.f32.mrf.mxu0
      %v355 = vadd.f32 0.0, %v354
      %356 = vdwg.mxu0
      %357 = vmatprep.subr.mxu0 0.0
      %358 = vmatpush1.msra.mxu0 0.0
      %359 = vmatprep.subr.mxu0 0.0
      %360 = vmatpush1.msra.mxu0 0.0
      %361 = vmatprep.subr.mxu0 0.0
      %362 = vmatpush1.msra.mxu0 0.0
      %363 = vmatprep.subr.mxu0 0.0
      %364 = vmatpush1.msra.mxu0 0.0
      %365 = vmatprep.subr.mxu0 0.0
      %366 = vmatpush1.msra.mxu0 0.0
      %367 = vmatprep.subr.mxu0 0.0
      %368 = vmatpush1.msra.mxu0 0.0
      %369 = vmatprep.subr.mxu0 0.0
      %370 = vmatpush1.msra.mxu0 0.0
      %371 = vmatprep.subr.mxu0 0.0
      %372 = vmatpush1.msra.mxu0 0.0
      %373 = vmatprep.subr.mxu0 0.0
      %374 = vmatpush1.msra.mxu0 0.0
      %375 = vmatprep.subr.mxu0 0.0
      %376 = vmatpush1.msra.mxu0 0.0
      %377 = vmatprep.subr.mxu0 0.0
      %378 = vmatpush1.msra.mxu0 0.0
      %379 = vmatprep.subr.mxu0 0.0
      %380 = vmatpush1.msra.mxu0 0.0
      %381 = vmatprep.subr.mxu0 0.0
      %382 = vmatpush1.msra.mxu0 0.0
      %383 = vmatprep.subr.mxu0 0.0
      %384 = vmatpush1.msra.mxu0 0.0
      %385 = vmatprep.subr.mxu0 0.0
      %386 = vmatpush1.msra.mxu0 0.0
      %387 = vmatprep.subr.mxu0 %v207
      %388 = vmatpush1.msra.mxu0 %v205
      %389 = vmatprep.subr.mxu0 0.0
      %390 = vmatpush2.msra.mxu0 0.0
      %391 = vmatprep.subr.mxu0 0.0
      %392 = vmatpush2.msra.mxu0 0.0
      %393 = vmatprep.subr.mxu0 0.0
      %394 = vmatpush2.msra.mxu0 0.0
      %395 = vmatprep.subr.mxu0 0.0
      %396 = vmatpush2.msra.mxu0 0.0
      %397 = vmatprep.subr.mxu0 0.0
      %398 = vmatpush2.msra.mxu0 0.0
      %399 = vmatprep.subr.mxu0 0.0
      %400 = vmatpush2.msra.mxu0 0.0
      %401 = vmatprep.subr.mxu0 0.0
      %402 = vmatpush2.msra.mxu0 0.0
      %403 = vmatprep.subr.mxu0 0.0
      %404 = vmatpush2.msra.mxu0 0.0
      %405 = vmatprep.subr.mxu0 0.0
      %406 = vmatpush2.msra.mxu0 0.0
      %407 = vmatprep.subr.mxu0 0.0
      %408 = vmatpush2.msra.mxu0 0.0
      %409 = vmatprep.subr.mxu0 0.0
      %410 = vmatpush2.msra.mxu0 0.0
      %411 = vmatprep.subr.mxu0 0.0
      %412 = vmatpush2.msra.mxu0 0.0
      %413 = vmatprep.subr.mxu0 0.0
      %414 = vmatpush2.msra.mxu0 0.0
      %415 = vmatprep.subr.mxu0 0.0
      %416 = vmatpush2.msra.mxu0 0.0
      %417 = vmatprep.subr.mxu0 0.0
      %418 = vmatpush2.msra.mxu0 0.0
      %419 = vmatprep.subr.mxu0 0.0
      %420 = vmatpush2.msra.mxu0 0.0
      %421 = vmatprep.mubr.f32.mxu0 0.0
      %422 = vmatmul.mubr.f32.gmra.mxu0 %v194
      %v423 = vpop.f32.mrf.mxu0
      %v424 = vadd.f32 0.0, %v423
      %v425 = vpop.f32.mrf.mxu0
      %v426 = vadd.f32 0.0, %v425
      %427 = vdwg.mxu0
      %428 = vmatprep.subr.mxu0 0.0
      %429 = vmatpush1.msra.mxu0 0.0
      %430 = vmatprep.subr.mxu0 0.0
      %431 = vmatpush1.msra.mxu0 0.0
      %432 = vmatprep.subr.mxu0 0.0
      %433 = vmatpush1.msra.mxu0 0.0
      %434 = vmatprep.subr.mxu0 0.0
      %435 = vmatpush1.msra.mxu0 0.0
      %436 = vmatprep.subr.mxu0 0.0
      %437 = vmatpush1.msra.mxu0 0.0
      %438 = vmatprep.subr.mxu0 0.0
      %439 = vmatpush1.msra.mxu0 0.0
      %440 = vmatprep.subr.mxu0 0.0
      %441 = vmatpush1.msra.mxu0 0.0
      %442 = vmatprep.subr.mxu0 0.0
      %443 = vmatpush1.msra.mxu0 0.0
      %444 = vmatprep.subr.mxu0 0.0
      %445 = vmatpush1.msra.mxu0 0.0
      %446 = vmatprep.subr.mxu0 0.0
      %447 = vmatpush1.msra.mxu0 0.0
      %448 = vmatprep.subr.mxu0 0.0
      %449 = vmatpush1.msra.mxu0 0.0
      %450 = vmatprep.subr.mxu0 0.0
      %451 = vmatpush1.msra.mxu0 0.0
      %452 = vmatprep.subr.mxu0 0.0
      %453 = vmatpush1.msra.mxu0 0.0
      %454 = vmatprep.subr.mxu0 0.0
      %455 = vmatpush1.msra.mxu0 0.0
      %456 = vmatprep.subr.mxu0 0.0
      %457 = vmatpush1.msra.mxu0 0.0
      %458 = vmatprep.subr.mxu0 %v211
      %459 = vmatpush1.msra.mxu0 %v209
      %460 = vmatprep.subr.mxu0 0.0
      %461 = vmatpush2.msra.mxu0 0.0
      %462 = vmatprep.subr.mxu0 0.0
      %463 = vmatpush2.msra.mxu0 0.0
      %464 = vmatprep.subr.mxu0 0.0
      %465 = vmatpush2.msra.mxu0 0.0
      %466 = vmatprep.subr.mxu0 0.0
      %467 = vmatpush2.msra.mxu0 0.0
      %468 = vmatprep.subr.mxu0 0.0
      %469 = vmatpush2.msra.mxu0 0.0
      %470 = vmatprep.subr.mxu0 0.0
      %471 = vmatpush2.msra.mxu0 0.0
      %472 = vmatprep.subr.mxu0 0.0
      %473 = vmatpush2.msra.mxu0 0.0
      %474 = vmatprep.subr.mxu0 0.0
      %475 = vmatpush2.msra.mxu0 0.0
      %476 = vmatprep.subr.mxu0 0.0
      %477 = vmatpush2.msra.mxu0 0.0
      %478 = vmatprep.subr.mxu0 0.0
      %479 = vmatpush2.msra.mxu0 0.0
      %480 = vmatprep.subr.mxu0 0.0
      %481 = vmatpush2.msra.mxu0 0.0
      %482 = vmatprep.subr.mxu0 0.0
      %483 = vmatpush2.msra.mxu0 0.0
      %484 = vmatprep.subr.mxu0 0.0
      %485 = vmatpush2.msra.mxu0 0.0
      %486 = vmatprep.subr.mxu0 0.0
      %487 = vmatpush2.msra.mxu0 0.0
      %488 = vmatprep.subr.mxu0 0.0
      %489 = vmatpush2.msra.mxu0 0.0
      %490 = vmatprep.subr.mxu0 0.0
      %491 = vmatpush2.msra.mxu0 0.0
      %492 = vmatprep.mubr.f32.mxu0 0.0
      %493 = vmatmul.mubr.f32.gmra.mxu0 %v194
      %v494 = vpop.f32.mrf.mxu0
      %v495 = vadd.f32 0.0, %v494
      %v496 = vpop.f32.mrf.mxu0
      %v497 = vadd.f32 0.0, %v496
      %498 = vdwg.mxu0
      %499 = vmatprep.subr.mxu0 0.0
      %500 = vmatpush1.msra.mxu0 0.0
      %501 = vmatprep.subr.mxu0 0.0
      %502 = vmatpush1.msra.mxu0 0.0
      %503 = vmatprep.subr.mxu0 0.0
      %504 = vmatpush1.msra.mxu0 0.0
      %505 = vmatprep.subr.mxu0 0.0
      %506 = vmatpush1.msra.mxu0 0.0
      %507 = vmatprep.subr.mxu0 0.0
      %508 = vmatpush1.msra.mxu0 0.0
      %509 = vmatprep.subr.mxu0 0.0
      %510 = vmatpush1.msra.mxu0 0.0
      %511 = vmatprep.subr.mxu0 0.0
      %512 = vmatpush1.msra.mxu0 0.0
      %513 = vmatprep.subr.mxu0 0.0
      %514 = vmatpush1.msra.mxu0 0.0
      %515 = vmatprep.subr.mxu0 0.0
      %516 = vmatpush1.msra.mxu0 0.0
      %517 = vmatprep.subr.mxu0 0.0
      %518 = vmatpush1.msra.mxu0 0.0
      %519 = vmatprep.subr.mxu0 0.0
      %520 = vmatpush1.msra.mxu0 0.0
      %521 = vmatprep.subr.mxu0 0.0
      %522 = vmatpush1.msra.mxu0 0.0
      %523 = vmatprep.subr.mxu0 0.0
      %524 = vmatpush1.msra.mxu0 0.0
      %525 = vmatprep.subr.mxu0 0.0
      %526 = vmatpush1.msra.mxu0 0.0
      %527 = vmatprep.subr.mxu0 0.0
      %528 = vmatpush1.msra.mxu0 0.0
      %529 = vmatprep.subr.mxu0 0.0
      %530 = vmatpush1.msra.mxu0 %v213
      %531 = vmatprep.subr.mxu0 0.0
      %532 = vmatpush2.msra.mxu0 0.0
      %533 = vmatprep.subr.mxu0 0.0
      %534 = vmatpush2.msra.mxu0 0.0
      %535 = vmatprep.subr.mxu0 0.0
      %536 = vmatpush2.msra.mxu0 0.0
      %537 = vmatprep.subr.mxu0 0.0
      %538 = vmatpush2.msra.mxu0 0.0
      %539 = vmatprep.subr.mxu0 0.0
      %540 = vmatpush2.msra.mxu0 0.0
      %541 = vmatprep.subr.mxu0 0.0
      %542 = vmatpush2.msra.mxu0 0.0
      %543 = vmatprep.subr.mxu0 0.0
      %544 = vmatpush2.msra.mxu0 0.0
      %545 = vmatprep.subr.mxu0 0.0
      %546 = vmatpush2.msra.mxu0 0.0
      %547 = vmatprep.subr.mxu0 0.0
      %548 = vmatpush2.msra.mxu0 0.0
      %549 = vmatprep.subr.mxu0 0.0
      %550 = vmatpush2.msra.mxu0 0.0
      %551 = vmatprep.subr.mxu0 0.0
      %552 = vmatpush2.msra.mxu0 0.0
      %553 = vmatprep.subr.mxu0 0.0
      %554 = vmatpush2.msra.mxu0 0.0
      %555 = vmatprep.subr.mxu0 0.0
      %556 = vmatpush2.msra.mxu0 0.0
      %557 = vmatprep.subr.mxu0 0.0
      %558 = vmatpush2.msra.mxu0 0.0
      %559 = vmatprep.subr.mxu0 0.0
      %560 = vmatpush2.msra.mxu0 0.0
      %561 = vmatprep.subr.mxu0 0.0
      %562 = vmatpush2.msra.mxu0 0.0
      %563 = vmatprep.mubr.f32.mxu0 0.0
      %564 = vmatmul.mubr.f32.gmra.mxu0 %v194
      %v565 = vpop.f32.mrf.mxu0
      %v566 = vadd.f32 0.0, %v565
      %v567 = vpop.f32.mrf.mxu0
      %568 = vdwg.mxu0
      %v569 = vadd.f32 %v180, %v282
      %v570 = vadd.f32 %v180, %v284
      %v571 = vadd.f32 %v180, %v353
      %v572 = vadd.f32 %v180, %v355
      %v573 = vadd.f32 %v180, %v424
      %v574 = vadd.f32 %v180, %v426
      %v575 = vadd.f32 %v180, %v495
      %v576 = vadd.f32 %v180, %v497
      %v577 = vadd.f32 %v180, %v566
      %s578 = scalar_lea.vmem %s1, 8
      %v579 = vld [vmem:[%s578] sm:$0xff]
      %580 = vrot.lane.b32.xlu0 %v171, 127
      %v581 = vpop.permute.xlu0 %580
      %582 = vrot.lane.b32.xlu0 %v188, 127
      %v583 = vpop.permute.xlu0 %582
      %584 = vrot.lane.b32.xlu0 %v172, 127
      %v585 = vpop.permute.xlu0 %584
      %586 = vrot.lane.b32.xlu0 %v189, 127
      %v587 = vpop.permute.xlu0 %586
      %588 = vrot.lane.b32.xlu0 %v173, 127
      %v589 = vpop.permute.xlu0 %588
      %590 = vrot.lane.b32.xlu0 %v190, 127
      %v591 = vpop.permute.xlu0 %590
      %592 = vrot.lane.b32.xlu0 %v174, 127
      %v593 = vpop.permute.xlu0 %592
      %594 = vrot.lane.b32.xlu0 %v191, 127
      %v595 = vpop.permute.xlu0 %594
      %596 = vrot.lane.b32.xlu0 %v175, 127
      %v597 = vpop.permute.xlu0 %596
      %vm598 = vcmask 1039360
      %v599 = vsel %vm598, %v581, %v583
      %v600 = vsel %vm598, %v583, %v585
      %v601 = vsel %vm598, %v585, %v587
      %v602 = vsel %vm598, %v587, %v589
      %v603 = vsel %vm598, %v589, %v591
      %v604 = vsel %vm598, %v591, %v593
      %v605 = vsel %vm598, %v593, %v595
      %v606 = vsel %vm598, %v595, %v597
      %v608 = vsel %vm192, %v579, 0
      %v610 = vsel %vm196, %v599, 0
      %v612 = vsel %vm196, %v600, 0
      %v614 = vsel %vm196, %v601, 0
      %v616 = vsel %vm196, %v602, 0
      %v618 = vsel %vm196, %v603, 0
      %v620 = vsel %vm196, %v604, 0
      %v622 = vsel %vm196, %v605, 0
      %v624 = vsel %vm196, %v606, 0
      %v626 = vsel %vm196, %v597, 0
      %628 = vmatprep.subr.mxu0 0.0
      %629 = vmatpush1.msra.mxu0 0.0
      %630 = vmatprep.subr.mxu0 0.0
      %631 = vmatpush1.msra.mxu0 0.0
      %632 = vmatprep.subr.mxu0 0.0
      %633 = vmatpush1.msra.mxu0 0.0
      %634 = vmatprep.subr.mxu0 0.0
      %635 = vmatpush1.msra.mxu0 0.0
      %636 = vmatprep.subr.mxu0 0.0
      %637 = vmatpush1.msra.mxu0 0.0
      %638 = vmatprep.subr.mxu0 0.0
      %639 = vmatpush1.msra.mxu0 0.0
      %640 = vmatprep.subr.mxu0 0.0
      %641 = vmatpush1.msra.mxu0 0.0
      %642 = vmatprep.subr.mxu0 0.0
      %643 = vmatpush1.msra.mxu0 0.0
      %644 = vmatprep.subr.mxu0 0.0
      %645 = vmatpush1.msra.mxu0 0.0
      %646 = vmatprep.subr.mxu0 0.0
      %647 = vmatpush1.msra.mxu0 0.0
      %648 = vmatprep.subr.mxu0 0.0
      %649 = vmatpush1.msra.mxu0 0.0
      %650 = vmatprep.subr.mxu0 0.0
      %651 = vmatpush1.msra.mxu0 0.0
      %652 = vmatprep.subr.mxu0 0.0
      %653 = vmatpush1.msra.mxu0 0.0
      %654 = vmatprep.subr.mxu0 0.0
      %655 = vmatpush1.msra.mxu0 0.0
      %656 = vmatprep.subr.mxu0 0.0
      %657 = vmatpush1.msra.mxu0 0.0
      %658 = vmatprep.subr.mxu0 %v612
      %659 = vmatpush1.msra.mxu0 %v610
      %660 = vmatprep.subr.mxu0 0.0
      %661 = vmatpush2.msra.mxu0 0.0
      %662 = vmatprep.subr.mxu0 0.0
      %663 = vmatpush2.msra.mxu0 0.0
      %664 = vmatprep.subr.mxu0 0.0
      %665 = vmatpush2.msra.mxu0 0.0
      %666 = vmatprep.subr.mxu0 0.0
      %667 = vmatpush2.msra.mxu0 0.0
      %668 = vmatprep.subr.mxu0 0.0
      %669 = vmatpush2.msra.mxu0 0.0
      %670 = vmatprep.subr.mxu0 0.0
      %671 = vmatpush2.msra.mxu0 0.0
      %672 = vmatprep.subr.mxu0 0.0
      %673 = vmatpush2.msra.mxu0 0.0
      %674 = vmatprep.subr.mxu0 0.0
      %675 = vmatpush2.msra.mxu0 0.0
      %676 = vmatprep.subr.mxu0 0.0
      %677 = vmatpush2.msra.mxu0 0.0
      %678 = vmatprep.subr.mxu0 0.0
      %679 = vmatpush2.msra.mxu0 0.0
      %680 = vmatprep.subr.mxu0 0.0
      %681 = vmatpush2.msra.mxu0 0.0
      %682 = vmatprep.subr.mxu0 0.0
      %683 = vmatpush2.msra.mxu0 0.0
      %684 = vmatprep.subr.mxu0 0.0
      %685 = vmatpush2.msra.mxu0 0.0
      %686 = vmatprep.subr.mxu0 0.0
      %687 = vmatpush2.msra.mxu0 0.0
      %688 = vmatprep.subr.mxu0 0.0
      %689 = vmatpush2.msra.mxu0 0.0
      %690 = vmatprep.subr.mxu0 0.0
      %691 = vmatpush2.msra.mxu0 0.0
      %692 = vmatprep.mubr.f32.mxu0 0.0
      %693 = vmatmul.mubr.f32.gmra.mxu0 %v608
      %v694 = vpop.f32.mrf.mxu0
      %v695 = vadd.f32 0.0, %v694
      %v696 = vpop.f32.mrf.mxu0
      %v697 = vadd.f32 0.0, %v696
      %698 = vdwg.mxu0
      %699 = vmatprep.subr.mxu0 0.0
      %700 = vmatpush1.msra.mxu0 0.0
      %701 = vmatprep.subr.mxu0 0.0
      %702 = vmatpush1.msra.mxu0 0.0
      %703 = vmatprep.subr.mxu0 0.0
      %704 = vmatpush1.msra.mxu0 0.0
      %705 = vmatprep.subr.mxu0 0.0
      %706 = vmatpush1.msra.mxu0 0.0
      %707 = vmatprep.subr.mxu0 0.0
      %708 = vmatpush1.msra.mxu0 0.0
      %709 = vmatprep.subr.mxu0 0.0
      %710 = vmatpush1.msra.mxu0 0.0
      %711 = vmatprep.subr.mxu0 0.0
      %712 = vmatpush1.msra.mxu0 0.0
      %713 = vmatprep.subr.mxu0 0.0
      %714 = vmatpush1.msra.mxu0 0.0
      %715 = vmatprep.subr.mxu0 0.0
      %716 = vmatpush1.msra.mxu0 0.0
      %717 = vmatprep.subr.mxu0 0.0
      %718 = vmatpush1.msra.mxu0 0.0
      %719 = vmatprep.subr.mxu0 0.0
      %720 = vmatpush1.msra.mxu0 0.0
      %721 = vmatprep.subr.mxu0 0.0
      %722 = vmatpush1.msra.mxu0 0.0
      %723 = vmatprep.subr.mxu0 0.0
      %724 = vmatpush1.msra.mxu0 0.0
      %725 = vmatprep.subr.mxu0 0.0
      %726 = vmatpush1.msra.mxu0 0.0
      %727 = vmatprep.subr.mxu0 0.0
      %728 = vmatpush1.msra.mxu0 0.0
      %729 = vmatprep.subr.mxu0 %v616
      %730 = vmatpush1.msra.mxu0 %v614
      %731 = vmatprep.subr.mxu0 0.0
      %732 = vmatpush2.msra.mxu0 0.0
      %733 = vmatprep.subr.mxu0 0.0
      %734 = vmatpush2.msra.mxu0 0.0
      %735 = vmatprep.subr.mxu0 0.0
      %736 = vmatpush2.msra.mxu0 0.0
      %737 = vmatprep.subr.mxu0 0.0
      %738 = vmatpush2.msra.mxu0 0.0
      %739 = vmatprep.subr.mxu0 0.0
      %740 = vmatpush2.msra.mxu0 0.0
      %741 = vmatprep.subr.mxu0 0.0
      %742 = vmatpush2.msra.mxu0 0.0
      %743 = vmatprep.subr.mxu0 0.0
      %744 = vmatpush2.msra.mxu0 0.0
      %745 = vmatprep.subr.mxu0 0.0
      %746 = vmatpush2.msra.mxu0 0.0
      %747 = vmatprep.subr.mxu0 0.0
      %748 = vmatpush2.msra.mxu0 0.0
      %749 = vmatprep.subr.mxu0 0.0
      %750 = vmatpush2.msra.mxu0 0.0
      %751 = vmatprep.subr.mxu0 0.0
      %752 = vmatpush2.msra.mxu0 0.0
      %753 = vmatprep.subr.mxu0 0.0
      %754 = vmatpush2.msra.mxu0 0.0
      %755 = vmatprep.subr.mxu0 0.0
      %756 = vmatpush2.msra.mxu0 0.0
      %757 = vmatprep.subr.mxu0 0.0
      %758 = vmatpush2.msra.mxu0 0.0
      %759 = vmatprep.subr.mxu0 0.0
      %760 = vmatpush2.msra.mxu0 0.0
      %761 = vmatprep.subr.mxu0 0.0
      %762 = vmatpush2.msra.mxu0 0.0
      %763 = vmatprep.mubr.f32.mxu0 0.0
      %764 = vmatmul.mubr.f32.gmra.mxu0 %v608
      %v765 = vpop.f32.mrf.mxu0
      %v766 = vadd.f32 0.0, %v765
      %v767 = vpop.f32.mrf.mxu0
      %v768 = vadd.f32 0.0, %v767
      %769 = vdwg.mxu0
      %770 = vmatprep.subr.mxu0 0.0
      %771 = vmatpush1.msra.mxu0 0.0
      %772 = vmatprep.subr.mxu0 0.0
      %773 = vmatpush1.msra.mxu0 0.0
      %774 = vmatprep.subr.mxu0 0.0
      %775 = vmatpush1.msra.mxu0 0.0
      %776 = vmatprep.subr.mxu0 0.0
      %777 = vmatpush1.msra.mxu0 0.0
      %778 = vmatprep.subr.mxu0 0.0
      %779 = vmatpush1.msra.mxu0 0.0
      %780 = vmatprep.subr.mxu0 0.0
      %781 = vmatpush1.msra.mxu0 0.0
      %782 = vmatprep.subr.mxu0 0.0
      %783 = vmatpush1.msra.mxu0 0.0
      %784 = vmatprep.subr.mxu0 0.0
      %785 = vmatpush1.msra.mxu0 0.0
      %786 = vmatprep.subr.mxu0 0.0
      %787 = vmatpush1.msra.mxu0 0.0
      %788 = vmatprep.subr.mxu0 0.0
      %789 = vmatpush1.msra.mxu0 0.0
      %790 = vmatprep.subr.mxu0 0.0
      %791 = vmatpush1.msra.mxu0 0.0
      %792 = vmatprep.subr.mxu0 0.0
      %793 = vmatpush1.msra.mxu0 0.0
      %794 = vmatprep.subr.mxu0 0.0
      %795 = vmatpush1.msra.mxu0 0.0
      %796 = vmatprep.subr.mxu0 0.0
      %797 = vmatpush1.msra.mxu0 0.0
      %798 = vmatprep.subr.mxu0 0.0
      %799 = vmatpush1.msra.mxu0 0.0
      %800 = vmatprep.subr.mxu0 %v620
      %801 = vmatpush1.msra.mxu0 %v618
      %802 = vmatprep.subr.mxu0 0.0
      %803 = vmatpush2.msra.mxu0 0.0
      %804 = vmatprep.subr.mxu0 0.0
      %805 = vmatpush2.msra.mxu0 0.0
      %806 = vmatprep.subr.mxu0 0.0
      %807 = vmatpush2.msra.mxu0 0.0
      %808 = vmatprep.subr.mxu0 0.0
      %809 = vmatpush2.msra.mxu0 0.0
      %810 = vmatprep.subr.mxu0 0.0
      %811 = vmatpush2.msra.mxu0 0.0
      %812 = vmatprep.subr.mxu0 0.0
      %813 = vmatpush2.msra.mxu0 0.0
      %814 = vmatprep.subr.mxu0 0.0
      %815 = vmatpush2.msra.mxu0 0.0
      %816 = vmatprep.subr.mxu0 0.0
      %817 = vmatpush2.msra.mxu0 0.0
      %818 = vmatprep.subr.mxu0 0.0
      %819 = vmatpush2.msra.mxu0 0.0
      %820 = vmatprep.subr.mxu0 0.0
      %821 = vmatpush2.msra.mxu0 0.0
      %822 = vmatprep.subr.mxu0 0.0
      %823 = vmatpush2.msra.mxu0 0.0
      %824 = vmatprep.subr.mxu0 0.0
      %825 = vmatpush2.msra.mxu0 0.0
      %826 = vmatprep.subr.mxu0 0.0
      %827 = vmatpush2.msra.mxu0 0.0
      %828 = vmatprep.subr.mxu0 0.0
      %829 = vmatpush2.msra.mxu0 0.0
      %830 = vmatprep.subr.mxu0 0.0
      %831 = vmatpush2.msra.mxu0 0.0
      %832 = vmatprep.subr.mxu0 0.0
      %833 = vmatpush2.msra.mxu0 0.0
      %834 = vmatprep.mubr.f32.mxu0 0.0
      %835 = vmatmul.mubr.f32.gmra.mxu0 %v608
      %v836 = vpop.f32.mrf.mxu0
      %v837 = vadd.f32 0.0, %v836
      %v838 = vpop.f32.mrf.mxu0
      %v839 = vadd.f32 0.0, %v838
      %840 = vdwg.mxu0
      %841 = vmatprep.subr.mxu0 0.0
      %842 = vmatpush1.msra.mxu0 0.0
      %843 = vmatprep.subr.mxu0 0.0
      %844 = vmatpush1.msra.mxu0 0.0
      %845 = vmatprep.subr.mxu0 0.0
      %846 = vmatpush1.msra.mxu0 0.0
      %847 = vmatprep.subr.mxu0 0.0
      %848 = vmatpush1.msra.mxu0 0.0
      %849 = vmatprep.subr.mxu0 0.0
      %850 = vmatpush1.msra.mxu0 0.0
      %851 = vmatprep.subr.mxu0 0.0
      %852 = vmatpush1.msra.mxu0 0.0
      %853 = vmatprep.subr.mxu0 0.0
      %854 = vmatpush1.msra.mxu0 0.0
      %855 = vmatprep.subr.mxu0 0.0
      %856 = vmatpush1.msra.mxu0 0.0
      %857 = vmatprep.subr.mxu0 0.0
      %858 = vmatpush1.msra.mxu0 0.0
      %859 = vmatprep.subr.mxu0 0.0
      %860 = vmatpush1.msra.mxu0 0.0
      %861 = vmatprep.subr.mxu0 0.0
      %862 = vmatpush1.msra.mxu0 0.0
      %863 = vmatprep.subr.mxu0 0.0
      %864 = vmatpush1.msra.mxu0 0.0
      %865 = vmatprep.subr.mxu0 0.0
      %866 = vmatpush1.msra.mxu0 0.0
      %867 = vmatprep.subr.mxu0 0.0
      %868 = vmatpush1.msra.mxu0 0.0
      %869 = vmatprep.subr.mxu0 0.0
      %870 = vmatpush1.msra.mxu0 0.0
      %871 = vmatprep.subr.mxu0 %v624
      %872 = vmatpush1.msra.mxu0 %v622
      %873 = vmatprep.subr.mxu0 0.0
      %874 = vmatpush2.msra.mxu0 0.0
      %875 = vmatprep.subr.mxu0 0.0
      %876 = vmatpush2.msra.mxu0 0.0
      %877 = vmatprep.subr.mxu0 0.0
      %878 = vmatpush2.msra.mxu0 0.0
      %879 = vmatprep.subr.mxu0 0.0
      %880 = vmatpush2.msra.mxu0 0.0
      %881 = vmatprep.subr.mxu0 0.0
      %882 = vmatpush2.msra.mxu0 0.0
      %883 = vmatprep.subr.mxu0 0.0
      %884 = vmatpush2.msra.mxu0 0.0
      %885 = vmatprep.subr.mxu0 0.0
      %886 = vmatpush2.msra.mxu0 0.0
      %887 = vmatprep.subr.mxu0 0.0
      %888 = vmatpush2.msra.mxu0 0.0
      %889 = vmatprep.subr.mxu0 0.0
      %890 = vmatpush2.msra.mxu0 0.0
      %891 = vmatprep.subr.mxu0 0.0
      %892 = vmatpush2.msra.mxu0 0.0
      %893 = vmatprep.subr.mxu0 0.0
      %894 = vmatpush2.msra.mxu0 0.0
      %895 = vmatprep.subr.mxu0 0.0
      %896 = vmatpush2.msra.mxu0 0.0
      %897 = vmatprep.subr.mxu0 0.0
      %898 = vmatpush2.msra.mxu0 0.0
      %899 = vmatprep.subr.mxu0 0.0
      %900 = vmatpush2.msra.mxu0 0.0
      %901 = vmatprep.subr.mxu0 0.0
      %902 = vmatpush2.msra.mxu0 0.0
      %903 = vmatprep.subr.mxu0 0.0
      %904 = vmatpush2.msra.mxu0 0.0
      %905 = vmatprep.mubr.f32.mxu0 0.0
      %906 = vmatmul.mubr.f32.gmra.mxu0 %v608
      %v907 = vpop.f32.mrf.mxu0
      %v908 = vadd.f32 0.0, %v907
      %v909 = vpop.f32.mrf.mxu0
      %v910 = vadd.f32 0.0, %v909
      %911 = vdwg.mxu0
      %912 = vmatprep.subr.mxu0 0.0
      %913 = vmatpush1.msra.mxu0 0.0
      %914 = vmatprep.subr.mxu0 0.0
      %915 = vmatpush1.msra.mxu0 0.0
      %916 = vmatprep.subr.mxu0 0.0
      %917 = vmatpush1.msra.mxu0 0.0
      %918 = vmatprep.subr.mxu0 0.0
      %919 = vmatpush1.msra.mxu0 0.0
      %920 = vmatprep.subr.mxu0 0.0
      %921 = vmatpush1.msra.mxu0 0.0
      %922 = vmatprep.subr.mxu0 0.0
      %923 = vmatpush1.msra.mxu0 0.0
      %924 = vmatprep.subr.mxu0 0.0
      %925 = vmatpush1.msra.mxu0 0.0
      %926 = vmatprep.subr.mxu0 0.0
      %927 = vmatpush1.msra.mxu0 0.0
      %928 = vmatprep.subr.mxu0 0.0
      %929 = vmatpush1.msra.mxu0 0.0
      %930 = vmatprep.subr.mxu0 0.0
      %931 = vmatpush1.msra.mxu0 0.0
      %932 = vmatprep.subr.mxu0 0.0
      %933 = vmatpush1.msra.mxu0 0.0
      %934 = vmatprep.subr.mxu0 0.0
      %935 = vmatpush1.msra.mxu0 0.0
      %936 = vmatprep.subr.mxu0 0.0
      %937 = vmatpush1.msra.mxu0 0.0
      %938 = vmatprep.subr.mxu0 0.0
      %939 = vmatpush1.msra.mxu0 0.0
      %940 = vmatprep.subr.mxu0 0.0
      %941 = vmatpush1.msra.mxu0 0.0
      %942 = vmatprep.subr.mxu0 0.0
      %943 = vmatpush1.msra.mxu0 %v626
      %944 = vmatprep.subr.mxu0 0.0
      %945 = vmatpush2.msra.mxu0 0.0
      %946 = vmatprep.subr.mxu0 0.0
      %947 = vmatpush2.msra.mxu0 0.0
      %948 = vmatprep.subr.mxu0 0.0
      %949 = vmatpush2.msra.mxu0 0.0
      %950 = vmatprep.subr.mxu0 0.0
      %951 = vmatpush2.msra.mxu0 0.0
      %952 = vmatprep.subr.mxu0 0.0
      %953 = vmatpush2.msra.mxu0 0.0
      %954 = vmatprep.subr.mxu0 0.0
      %955 = vmatpush2.msra.mxu0 0.0
      %956 = vmatprep.subr.mxu0 0.0
      %957 = vmatpush2.msra.mxu0 0.0
      %958 = vmatprep.subr.mxu0 0.0
      %959 = vmatpush2.msra.mxu0 0.0
      %960 = vmatprep.subr.mxu0 0.0
      %961 = vmatpush2.msra.mxu0 0.0
      %962 = vmatprep.subr.mxu0 0.0
      %963 = vmatpush2.msra.mxu0 0.0
      %964 = vmatprep.subr.mxu0 0.0
      %965 = vmatpush2.msra.mxu0 0.0
      %966 = vmatprep.subr.mxu0 0.0
      %967 = vmatpush2.msra.mxu0 0.0
      %968 = vmatprep.subr.mxu0 0.0
      %969 = vmatpush2.msra.mxu0 0.0
      %970 = vmatprep.subr.mxu0 0.0
      %971 = vmatpush2.msra.mxu0 0.0
      %972 = vmatprep.subr.mxu0 0.0
      %973 = vmatpush2.msra.mxu0 0.0
      %974 = vmatprep.subr.mxu0 0.0
      %975 = vmatpush2.msra.mxu0 0.0
      %976 = vmatprep.mubr.f32.mxu0 0.0
      %977 = vmatmul.mubr.f32.gmra.mxu0 %v608
      %v978 = vpop.f32.mrf.mxu0
      %v979 = vadd.f32 0.0, %v978
      %v980 = vpop.f32.mrf.mxu0
      %981 = vdwg.mxu0
      %v982 = vadd.f32 %v569, %v695
      %v983 = vadd.f32 %v570, %v697
      %v984 = vadd.f32 %v571, %v766
      %v985 = vadd.f32 %v572, %v768
      %v986 = vadd.f32 %v573, %v837
      %v987 = vadd.f32 %v574, %v839
      %v988 = vadd.f32 %v575, %v908
      %v989 = vadd.f32 %v576, %v910
      %v990 = vadd.f32 %v577, %v979
      %s991 = scalar_lea.vmem %s1, 16
      %v992 = vld [vmem:[%s991] sm:$0xff]
      %993 = vrot.lane.b32.xlu0 %v171, 126
      %v994 = vpop.permute.xlu0 %993
      %995 = vrot.lane.b32.xlu0 %v188, 126
      %v996 = vpop.permute.xlu0 %995
      %997 = vrot.lane.b32.xlu0 %v172, 126
      %v998 = vpop.permute.xlu0 %997
      %999 = vrot.lane.b32.xlu0 %v189, 126
      %v1000 = vpop.permute.xlu0 %999
      %1001 = vrot.lane.b32.xlu0 %v173, 126
      %v1002 = vpop.permute.xlu0 %1001
      %1003 = vrot.lane.b32.xlu0 %v190, 126
      %v1004 = vpop.permute.xlu0 %1003
      %1005 = vrot.lane.b32.xlu0 %v174, 126
      %v1006 = vpop.permute.xlu0 %1005
      %1007 = vrot.lane.b32.xlu0 %v191, 126
      %v1008 = vpop.permute.xlu0 %1007
      %1009 = vrot.lane.b32.xlu0 %v175, 126
      %v1010 = vpop.permute.xlu0 %1009
      %vm1011 = vcmask 1031168
      %v1012 = vsel %vm1011, %v994, %v996
      %v1013 = vsel %vm1011, %v996, %v998
      %v1014 = vsel %vm1011, %v998, %v1000
      %v1015 = vsel %vm1011, %v1000, %v1002
      %v1016 = vsel %vm1011, %v1002, %v1004
      %v1017 = vsel %vm1011, %v1004, %v1006
      %v1018 = vsel %vm1011, %v1006, %v1008
      %v1019 = vsel %vm1011, %v1008, %v1010
      %v1021 = vsel %vm192, %v992, 0
      %v1023 = vsel %vm196, %v1012, 0
      %v1025 = vsel %vm196, %v1013, 0
      %v1027 = vsel %vm196, %v1014, 0
      %v1029 = vsel %vm196, %v1015, 0
      %v1031 = vsel %vm196, %v1016, 0
      %v1033 = vsel %vm196, %v1017, 0
      %v1035 = vsel %vm196, %v1018, 0
      %v1037 = vsel %vm196, %v1019, 0
      %v1039 = vsel %vm196, %v1010, 0
      %1041 = vmatprep.subr.mxu0 0.0
      %1042 = vmatpush1.msra.mxu0 0.0
      %1043 = vmatprep.subr.mxu0 0.0
      %1044 = vmatpush1.msra.mxu0 0.0
      %1045 = vmatprep.subr.mxu0 0.0
      %1046 = vmatpush1.msra.mxu0 0.0
      %1047 = vmatprep.subr.mxu0 0.0
      %1048 = vmatpush1.msra.mxu0 0.0
      %1049 = vmatprep.subr.mxu0 0.0
      %1050 = vmatpush1.msra.mxu0 0.0
      %1051 = vmatprep.subr.mxu0 0.0
      %1052 = vmatpush1.msra.mxu0 0.0
      %1053 = vmatprep.subr.mxu0 0.0
      %1054 = vmatpush1.msra.mxu0 0.0
      %1055 = vmatprep.subr.mxu0 0.0
      %1056 = vmatpush1.msra.mxu0 0.0
      %1057 = vmatprep.subr.mxu0 0.0
      %1058 = vmatpush1.msra.mxu0 0.0
      %1059 = vmatprep.subr.mxu0 0.0
      %1060 = vmatpush1.msra.mxu0 0.0
      %1061 = vmatprep.subr.mxu0 0.0
      %1062 = vmatpush1.msra.mxu0 0.0
      %1063 = vmatprep.subr.mxu0 0.0
      %1064 = vmatpush1.msra.mxu0 0.0
      %1065 = vmatprep.subr.mxu0 0.0
      %1066 = vmatpush1.msra.mxu0 0.0
      %1067 = vmatprep.subr.mxu0 0.0
      %1068 = vmatpush1.msra.mxu0 0.0
      %1069 = vmatprep.subr.mxu0 0.0
      %1070 = vmatpush1.msra.mxu0 0.0
      %1071 = vmatprep.subr.mxu0 %v1025
      %1072 = vmatpush1.msra.mxu0 %v1023
      %1073 = vmatprep.subr.mxu0 0.0
      %1074 = vmatpush2.msra.mxu0 0.0
      %1075 = vmatprep.subr.mxu0 0.0
      %1076 = vmatpush2.msra.mxu0 0.0
      %1077 = vmatprep.subr.mxu0 0.0
      %1078 = vmatpush2.msra.mxu0 0.0
      %1079 = vmatprep.subr.mxu0 0.0
      %1080 = vmatpush2.msra.mxu0 0.0
      %1081 = vmatprep.subr.mxu0 0.0
      %1082 = vmatpush2.msra.mxu0 0.0
      %1083 = vmatprep.subr.mxu0 0.0
      %1084 = vmatpush2.msra.mxu0 0.0
      %1085 = vmatprep.subr.mxu0 0.0
      %1086 = vmatpush2.msra.mxu0 0.0
      %1087 = vmatprep.subr.mxu0 0.0
      %1088 = vmatpush2.msra.mxu0 0.0
      %1089 = vmatprep.subr.mxu0 0.0
      %1090 = vmatpush2.msra.mxu0 0.0
      %1091 = vmatprep.subr.mxu0 0.0
      %1092 = vmatpush2.msra.mxu0 0.0
      %1093 = vmatprep.subr.mxu0 0.0
      %1094 = vmatpush2.msra.mxu0 0.0
      %1095 = vmatprep.subr.mxu0 0.0
      %1096 = vmatpush2.msra.mxu0 0.0
      %1097 = vmatprep.subr.mxu0 0.0
      %1098 = vmatpush2.msra.mxu0 0.0
      %1099 = vmatprep.subr.mxu0 0.0
      %1100 = vmatpush2.msra.mxu0 0.0
      %1101 = vmatprep.subr.mxu0 0.0
      %1102 = vmatpush2.msra.mxu0 0.0
      %1103 = vmatprep.subr.mxu0 0.0
      %1104 = vmatpush2.msra.mxu0 0.0
      %1105 = vmatprep.mubr.f32.mxu0 0.0
      %1106 = vmatmul.mubr.f32.gmra.mxu0 %v1021
      %v1107 = vpop.f32.mrf.mxu0
      %v1108 = vadd.f32 0.0, %v1107
      %v1109 = vpop.f32.mrf.mxu0
      %v1110 = vadd.f32 0.0, %v1109
      %1111 = vdwg.mxu0
      %1112 = vmatprep.subr.mxu0 0.0
      %1113 = vmatpush1.msra.mxu0 0.0
      %1114 = vmatprep.subr.mxu0 0.0
      %1115 = vmatpush1.msra.mxu0 0.0
      %1116 = vmatprep.subr.mxu0 0.0
      %1117 = vmatpush1.msra.mxu0 0.0
      %1118 = vmatprep.subr.mxu0 0.0
      %1119 = vmatpush1.msra.mxu0 0.0
      %1120 = vmatprep.subr.mxu0 0.0
      %1121 = vmatpush1.msra.mxu0 0.0
      %1122 = vmatprep.subr.mxu0 0.0
      %1123 = vmatpush1.msra.mxu0 0.0
      %1124 = vmatprep.subr.mxu0 0.0
      %1125 = vmatpush1.msra.mxu0 0.0
      %1126 = vmatprep.subr.mxu0 0.0
      %1127 = vmatpush1.msra.mxu0 0.0
      %1128 = vmatprep.subr.mxu0 0.0
      %1129 = vmatpush1.msra.mxu0 0.0
      %1130 = vmatprep.subr.mxu0 0.0
      %1131 = vmatpush1.msra.mxu0 0.0
      %1132 = vmatprep.subr.mxu0 0.0
      %1133 = vmatpush1.msra.mxu0 0.0
      %1134 = vmatprep.subr.mxu0 0.0
      %1135 = vmatpush1.msra.mxu0 0.0
      %1136 = vmatprep.subr.mxu0 0.0
      %1137 = vmatpush1.msra.mxu0 0.0
      %1138 = vmatprep.subr.mxu0 0.0
      %1139 = vmatpush1.msra.mxu0 0.0
      %1140 = vmatprep.subr.mxu0 0.0
      %1141 = vmatpush1.msra.mxu0 0.0
      %1142 = vmatprep.subr.mxu0 %v1029
      %1143 = vmatpush1.msra.mxu0 %v1027
      %1144 = vmatprep.subr.mxu0 0.0
      %1145 = vmatpush2.msra.mxu0 0.0
      %1146 = vmatprep.subr.mxu0 0.0
      %1147 = vmatpush2.msra.mxu0 0.0
      %1148 = vmatprep.subr.mxu0 0.0
      %1149 = vmatpush2.msra.mxu0 0.0
      %1150 = vmatprep.subr.mxu0 0.0
      %1151 = vmatpush2.msra.mxu0 0.0
      %1152 = vmatprep.subr.mxu0 0.0
      %1153 = vmatpush2.msra.mxu0 0.0
      %1154 = vmatprep.subr.mxu0 0.0
      %1155 = vmatpush2.msra.mxu0 0.0
      %1156 = vmatprep.subr.mxu0 0.0
      %1157 = vmatpush2.msra.mxu0 0.0
      %1158 = vmatprep.subr.mxu0 0.0
      %1159 = vmatpush2.msra.mxu0 0.0
      %1160 = vmatprep.subr.mxu0 0.0
      %1161 = vmatpush2.msra.mxu0 0.0
      %1162 = vmatprep.subr.mxu0 0.0
      %1163 = vmatpush2.msra.mxu0 0.0
      %1164 = vmatprep.subr.mxu0 0.0
      %1165 = vmatpush2.msra.mxu0 0.0
      %1166 = vmatprep.subr.mxu0 0.0
      %1167 = vmatpush2.msra.mxu0 0.0
      %1168 = vmatprep.subr.mxu0 0.0
      %1169 = vmatpush2.msra.mxu0 0.0
      %1170 = vmatprep.subr.mxu0 0.0
      %1171 = vmatpush2.msra.mxu0 0.0
      %1172 = vmatprep.subr.mxu0 0.0
      %1173 = vmatpush2.msra.mxu0 0.0
      %1174 = vmatprep.subr.mxu0 0.0
      %1175 = vmatpush2.msra.mxu0 0.0
      %1176 = vmatprep.mubr.f32.mxu0 0.0
      %1177 = vmatmul.mubr.f32.gmra.mxu0 %v1021
      %v1178 = vpop.f32.mrf.mxu0
      %v1179 = vadd.f32 0.0, %v1178
      %v1180 = vpop.f32.mrf.mxu0
      %v1181 = vadd.f32 0.0, %v1180
      %1182 = vdwg.mxu0
      %1183 = vmatprep.subr.mxu0 0.0
      %1184 = vmatpush1.msra.mxu0 0.0
      %1185 = vmatprep.subr.mxu0 0.0
      %1186 = vmatpush1.msra.mxu0 0.0
      %1187 = vmatprep.subr.mxu0 0.0
      %1188 = vmatpush1.msra.mxu0 0.0
      %1189 = vmatprep.subr.mxu0 0.0
      %1190 = vmatpush1.msra.mxu0 0.0
      %1191 = vmatprep.subr.mxu0 0.0
      %1192 = vmatpush1.msra.mxu0 0.0
      %1193 = vmatprep.subr.mxu0 0.0
      %1194 = vmatpush1.msra.mxu0 0.0
      %1195 = vmatprep.subr.mxu0 0.0
      %1196 = vmatpush1.msra.mxu0 0.0
      %1197 = vmatprep.subr.mxu0 0.0
      %1198 = vmatpush1.msra.mxu0 0.0
      %1199 = vmatprep.subr.mxu0 0.0
      %1200 = vmatpush1.msra.mxu0 0.0
      %1201 = vmatprep.subr.mxu0 0.0
      %1202 = vmatpush1.msra.mxu0 0.0
      %1203 = vmatprep.subr.mxu0 0.0
      %1204 = vmatpush1.msra.mxu0 0.0
      %1205 = vmatprep.subr.mxu0 0.0
      %1206 = vmatpush1.msra.mxu0 0.0
      %1207 = vmatprep.subr.mxu0 0.0
      %1208 = vmatpush1.msra.mxu0 0.0
      %1209 = vmatprep.subr.mxu0 0.0
      %1210 = vmatpush1.msra.mxu0 0.0
      %1211 = vmatprep.subr.mxu0 0.0
      %1212 = vmatpush1.msra.mxu0 0.0
      %1213 = vmatprep.subr.mxu0 %v1033
      %1214 = vmatpush1.msra.mxu0 %v1031
      %1215 = vmatprep.subr.mxu0 0.0
      %1216 = vmatpush2.msra.mxu0 0.0
      %1217 = vmatprep.subr.mxu0 0.0
      %1218 = vmatpush2.msra.mxu0 0.0
      %1219 = vmatprep.subr.mxu0 0.0
      %1220 = vmatpush2.msra.mxu0 0.0
      %1221 = vmatprep.subr.mxu0 0.0
      %1222 = vmatpush2.msra.mxu0 0.0
      %1223 = vmatprep.subr.mxu0 0.0
      %1224 = vmatpush2.msra.mxu0 0.0
      %1225 = vmatprep.subr.mxu0 0.0
      %1226 = vmatpush2.msra.mxu0 0.0
      %1227 = vmatprep.subr.mxu0 0.0
      %1228 = vmatpush2.msra.mxu0 0.0
      %1229 = vmatprep.subr.mxu0 0.0
      %1230 = vmatpush2.msra.mxu0 0.0
      %1231 = vmatprep.subr.mxu0 0.0
      %1232 = vmatpush2.msra.mxu0 0.0
      %1233 = vmatprep.subr.mxu0 0.0
      %1234 = vmatpush2.msra.mxu0 0.0
      %1235 = vmatprep.subr.mxu0 0.0
      %1236 = vmatpush2.msra.mxu0 0.0
      %1237 = vmatprep.subr.mxu0 0.0
      %1238 = vmatpush2.msra.mxu0 0.0
      %1239 = vmatprep.subr.mxu0 0.0
      %1240 = vmatpush2.msra.mxu0 0.0
      %1241 = vmatprep.subr.mxu0 0.0
      %1242 = vmatpush2.msra.mxu0 0.0
      %1243 = vmatprep.subr.mxu0 0.0
      %1244 = vmatpush2.msra.mxu0 0.0
      %1245 = vmatprep.subr.mxu0 0.0
      %1246 = vmatpush2.msra.mxu0 0.0
      %1247 = vmatprep.mubr.f32.mxu0 0.0
      %1248 = vmatmul.mubr.f32.gmra.mxu0 %v1021
      %v1249 = vpop.f32.mrf.mxu0
      %v1250 = vadd.f32 0.0, %v1249
      %v1251 = vpop.f32.mrf.mxu0
      %v1252 = vadd.f32 0.0, %v1251
      %1253 = vdwg.mxu0
      %1254 = vmatprep.subr.mxu0 0.0
      %1255 = vmatpush1.msra.mxu0 0.0
      %1256 = vmatprep.subr.mxu0 0.0
      %1257 = vmatpush1.msra.mxu0 0.0
      %1258 = vmatprep.subr.mxu0 0.0
      %1259 = vmatpush1.msra.mxu0 0.0
      %1260 = vmatprep.subr.mxu0 0.0
      %1261 = vmatpush1.msra.mxu0 0.0
      %1262 = vmatprep.subr.mxu0 0.0
      %1263 = vmatpush1.msra.mxu0 0.0
      %1264 = vmatprep.subr.mxu0 0.0
      %1265 = vmatpush1.msra.mxu0 0.0
      %1266 = vmatprep.subr.mxu0 0.0
      %1267 = vmatpush1.msra.mxu0 0.0
      %1268 = vmatprep.subr.mxu0 0.0
      %1269 = vmatpush1.msra.mxu0 0.0
      %1270 = vmatprep.subr.mxu0 0.0
      %1271 = vmatpush1.msra.mxu0 0.0
      %1272 = vmatprep.subr.mxu0 0.0
      %1273 = vmatpush1.msra.mxu0 0.0
      %1274 = vmatprep.subr.mxu0 0.0
      %1275 = vmatpush1.msra.mxu0 0.0
      %1276 = vmatprep.subr.mxu0 0.0
      %1277 = vmatpush1.msra.mxu0 0.0
      %1278 = vmatprep.subr.mxu0 0.0
      %1279 = vmatpush1.msra.mxu0 0.0
      %1280 = vmatprep.subr.mxu0 0.0
      %1281 = vmatpush1.msra.mxu0 0.0
      %1282 = vmatprep.subr.mxu0 0.0
      %1283 = vmatpush1.msra.mxu0 0.0
      %1284 = vmatprep.subr.mxu0 %v1037
      %1285 = vmatpush1.msra.mxu0 %v1035
      %1286 = vmatprep.subr.mxu0 0.0
      %1287 = vmatpush2.msra.mxu0 0.0
      %1288 = vmatprep.subr.mxu0 0.0
      %1289 = vmatpush2.msra.mxu0 0.0
      %1290 = vmatprep.subr.mxu0 0.0
      %1291 = vmatpush2.msra.mxu0 0.0
      %1292 = vmatprep.subr.mxu0 0.0
      %1293 = vmatpush2.msra.mxu0 0.0
      %1294 = vmatprep.subr.mxu0 0.0
      %1295 = vmatpush2.msra.mxu0 0.0
      %1296 = vmatprep.subr.mxu0 0.0
      %1297 = vmatpush2.msra.mxu0 0.0
      %1298 = vmatprep.subr.mxu0 0.0
      %1299 = vmatpush2.msra.mxu0 0.0
      %1300 = vmatprep.subr.mxu0 0.0
      %1301 = vmatpush2.msra.mxu0 0.0
      %1302 = vmatprep.subr.mxu0 0.0
      %1303 = vmatpush2.msra.mxu0 0.0
      %1304 = vmatprep.subr.mxu0 0.0
      %1305 = vmatpush2.msra.mxu0 0.0
      %1306 = vmatprep.subr.mxu0 0.0
      %1307 = vmatpush2.msra.mxu0 0.0
      %1308 = vmatprep.subr.mxu0 0.0
      %1309 = vmatpush2.msra.mxu0 0.0
      %1310 = vmatprep.subr.mxu0 0.0
      %1311 = vmatpush2.msra.mxu0 0.0
      %1312 = vmatprep.subr.mxu0 0.0
      %1313 = vmatpush2.msra.mxu0 0.0
      %1314 = vmatprep.subr.mxu0 0.0
      %1315 = vmatpush2.msra.mxu0 0.0
      %1316 = vmatprep.subr.mxu0 0.0
      %1317 = vmatpush2.msra.mxu0 0.0
      %1318 = vmatprep.mubr.f32.mxu0 0.0
      %1319 = vmatmul.mubr.f32.gmra.mxu0 %v1021
      %v1320 = vpop.f32.mrf.mxu0
      %v1321 = vadd.f32 0.0, %v1320
      %v1322 = vpop.f32.mrf.mxu0
      %v1323 = vadd.f32 0.0, %v1322
      %1324 = vdwg.mxu0
      %1325 = vmatprep.subr.mxu0 0.0
      %1326 = vmatpush1.msra.mxu0 0.0
      %1327 = vmatprep.subr.mxu0 0.0
      %1328 = vmatpush1.msra.mxu0 0.0
      %1329 = vmatprep.subr.mxu0 0.0
      %1330 = vmatpush1.msra.mxu0 0.0
      %1331 = vmatprep.subr.mxu0 0.0
      %1332 = vmatpush1.msra.mxu0 0.0
      %1333 = vmatprep.subr.mxu0 0.0
      %1334 = vmatpush1.msra.mxu0 0.0
      %1335 = vmatprep.subr.mxu0 0.0
      %1336 = vmatpush1.msra.mxu0 0.0
      %1337 = vmatprep.subr.mxu0 0.0
      %1338 = vmatpush1.msra.mxu0 0.0
      %1339 = vmatprep.subr.mxu0 0.0
      %1340 = vmatpush1.msra.mxu0 0.0
      %1341 = vmatprep.subr.mxu0 0.0
      %1342 = vmatpush1.msra.mxu0 0.0
      %1343 = vmatprep.subr.mxu0 0.0
      %1344 = vmatpush1.msra.mxu0 0.0
      %1345 = vmatprep.subr.mxu0 0.0
      %1346 = vmatpush1.msra.mxu0 0.0
      %1347 = vmatprep.subr.mxu0 0.0
      %1348 = vmatpush1.msra.mxu0 0.0
      %1349 = vmatprep.subr.mxu0 0.0
      %1350 = vmatpush1.msra.mxu0 0.0
      %1351 = vmatprep.subr.mxu0 0.0
      %1352 = vmatpush1.msra.mxu0 0.0
      %1353 = vmatprep.subr.mxu0 0.0
      %1354 = vmatpush1.msra.mxu0 0.0
      %1355 = vmatprep.subr.mxu0 0.0
      %1356 = vmatpush1.msra.mxu0 %v1039
      %1357 = vmatprep.subr.mxu0 0.0
      %1358 = vmatpush2.msra.mxu0 0.0
      %1359 = vmatprep.subr.mxu0 0.0
      %1360 = vmatpush2.msra.mxu0 0.0
      %1361 = vmatprep.subr.mxu0 0.0
      %1362 = vmatpush2.msra.mxu0 0.0
      %1363 = vmatprep.subr.mxu0 0.0
      %1364 = vmatpush2.msra.mxu0 0.0
      %1365 = vmatprep.subr.mxu0 0.0
      %1366 = vmatpush2.msra.mxu0 0.0
      %1367 = vmatprep.subr.mxu0 0.0
      %1368 = vmatpush2.msra.mxu0 0.0
      %1369 = vmatprep.subr.mxu0 0.0
      %1370 = vmatpush2.msra.mxu0 0.0
      %1371 = vmatprep.subr.mxu0 0.0
      %1372 = vmatpush2.msra.mxu0 0.0
      %1373 = vmatprep.subr.mxu0 0.0
      %1374 = vmatpush2.msra.mxu0 0.0
      %1375 = vmatprep.subr.mxu0 0.0
      %1376 = vmatpush2.msra.mxu0 0.0
      %1377 = vmatprep.subr.mxu0 0.0
      %1378 = vmatpush2.msra.mxu0 0.0
      %1379 = vmatprep.subr.mxu0 0.0
      %1380 = vmatpush2.msra.mxu0 0.0
      %1381 = vmatprep.subr.mxu0 0.0
      %1382 = vmatpush2.msra.mxu0 0.0
      %1383 = vmatprep.subr.mxu0 0.0
      %1384 = vmatpush2.msra.mxu0 0.0
      %1385 = vmatprep.subr.mxu0 0.0
      %1386 = vmatpush2.msra.mxu0 0.0
      %1387 = vmatprep.subr.mxu0 0.0
      %1388 = vmatpush2.msra.mxu0 0.0
      %1389 = vmatprep.mubr.f32.mxu0 0.0
      %1390 = vmatmul.mubr.f32.gmra.mxu0 %v1021
      %v1391 = vpop.f32.mrf.mxu0
      %v1392 = vadd.f32 0.0, %v1391
      %v1393 = vpop.f32.mrf.mxu0
      %1394 = vdwg.mxu0
      %v1395 = vadd.f32 %v982, %v1108
      %v1396 = vadd.f32 %v983, %v1110
      %v1397 = vadd.f32 %v984, %v1179
      %v1398 = vadd.f32 %v985, %v1181
      %v1399 = vadd.f32 %v986, %v1250
      %v1400 = vadd.f32 %v987, %v1252
      %v1401 = vadd.f32 %v988, %v1321
      %v1402 = vadd.f32 %v989, %v1323
      %v1403 = vadd.f32 %v990, %v1392
      %s1404 = scalar_lea.vmem %s1, 24
      %v1405 = vld [vmem:[%s1404] sm:$0xff]
      %1406 = vrot.lane.b32.xlu0 %v171, 125
      %v1407 = vpop.permute.xlu0 %1406
      %1408 = vrot.lane.b32.xlu0 %v188, 125
      %v1409 = vpop.permute.xlu0 %1408
      %1410 = vrot.lane.b32.xlu0 %v172, 125
      %v1411 = vpop.permute.xlu0 %1410
      %1412 = vrot.lane.b32.xlu0 %v189, 125
      %v1413 = vpop.permute.xlu0 %1412
      %1414 = vrot.lane.b32.xlu0 %v173, 125
      %v1415 = vpop.permute.xlu0 %1414
      %1416 = vrot.lane.b32.xlu0 %v190, 125
      %v1417 = vpop.permute.xlu0 %1416
      %1418 = vrot.lane.b32.xlu0 %v174, 125
      %v1419 = vpop.permute.xlu0 %1418
      %1420 = vrot.lane.b32.xlu0 %v191, 125
      %v1421 = vpop.permute.xlu0 %1420
      %1422 = vrot.lane.b32.xlu0 %v175, 125
      %v1423 = vpop.permute.xlu0 %1422
      %vm1424 = vcmask 1022976
      %v1425 = vsel %vm1424, %v1407, %v1409
      %v1426 = vsel %vm1424, %v1409, %v1411
      %v1427 = vsel %vm1424, %v1411, %v1413
      %v1428 = vsel %vm1424, %v1413, %v1415
      %v1429 = vsel %vm1424, %v1415, %v1417
      %v1430 = vsel %vm1424, %v1417, %v1419
      %v1431 = vsel %vm1424, %v1419, %v1421
      %v1432 = vsel %vm1424, %v1421, %v1423
      %v1434 = vsel %vm192, %v1405, 0
      %v1436 = vsel %vm196, %v1425, 0
      %v1438 = vsel %vm196, %v1426, 0
      %v1440 = vsel %vm196, %v1427, 0
      %v1442 = vsel %vm196, %v1428, 0
      %v1444 = vsel %vm196, %v1429, 0
      %v1446 = vsel %vm196, %v1430, 0
      %v1448 = vsel %vm196, %v1431, 0
      %v1450 = vsel %vm196, %v1432, 0
      %v1452 = vsel %vm196, %v1423, 0
      %1454 = vmatprep.subr.mxu0 0.0
      %1455 = vmatpush1.msra.mxu0 0.0
      %1456 = vmatprep.subr.mxu0 0.0
      %1457 = vmatpush1.msra.mxu0 0.0
      %1458 = vmatprep.subr.mxu0 0.0
      %1459 = vmatpush1.msra.mxu0 0.0
      %1460 = vmatprep.subr.mxu0 0.0
      %1461 = vmatpush1.msra.mxu0 0.0
      %1462 = vmatprep.subr.mxu0 0.0
      %1463 = vmatpush1.msra.mxu0 0.0
      %1464 = vmatprep.subr.mxu0 0.0
      %1465 = vmatpush1.msra.mxu0 0.0
      %1466 = vmatprep.subr.mxu0 0.0
      %1467 = vmatpush1.msra.mxu0 0.0
      %1468 = vmatprep.subr.mxu0 0.0
      %1469 = vmatpush1.msra.mxu0 0.0
      %1470 = vmatprep.subr.mxu0 0.0
      %1471 = vmatpush1.msra.mxu0 0.0
      %1472 = vmatprep.subr.mxu0 0.0
      %1473 = vmatpush1.msra.mxu0 0.0
      %1474 = vmatprep.subr.mxu0 0.0
      %1475 = vmatpush1.msra.mxu0 0.0
      %1476 = vmatprep.subr.mxu0 0.0
      %1477 = vmatpush1.msra.mxu0 0.0
      %1478 = vmatprep.subr.mxu0 0.0
      %1479 = vmatpush1.msra.mxu0 0.0
      %1480 = vmatprep.subr.mxu0 0.0
      %1481 = vmatpush1.msra.mxu0 0.0
      %1482 = vmatprep.subr.mxu0 0.0
      %1483 = vmatpush1.msra.mxu0 0.0
      %1484 = vmatprep.subr.mxu0 %v1438
      %1485 = vmatpush1.msra.mxu0 %v1436
      %1486 = vmatprep.subr.mxu0 0.0
      %1487 = vmatpush2.msra.mxu0 0.0
      %1488 = vmatprep.subr.mxu0 0.0
      %1489 = vmatpush2.msra.mxu0 0.0
      %1490 = vmatprep.subr.mxu0 0.0
      %1491 = vmatpush2.msra.mxu0 0.0
      %1492 = vmatprep.subr.mxu0 0.0
      %1493 = vmatpush2.msra.mxu0 0.0
      %1494 = vmatprep.subr.mxu0 0.0
      %1495 = vmatpush2.msra.mxu0 0.0
      %1496 = vmatprep.subr.mxu0 0.0
      %1497 = vmatpush2.msra.mxu0 0.0
      %1498 = vmatprep.subr.mxu0 0.0
      %1499 = vmatpush2.msra.mxu0 0.0
      %1500 = vmatprep.subr.mxu0 0.0
      %1501 = vmatpush2.msra.mxu0 0.0
      %1502 = vmatprep.subr.mxu0 0.0
      %1503 = vmatpush2.msra.mxu0 0.0
      %1504 = vmatprep.subr.mxu0 0.0
      %1505 = vmatpush2.msra.mxu0 0.0
      %1506 = vmatprep.subr.mxu0 0.0
      %1507 = vmatpush2.msra.mxu0 0.0
      %1508 = vmatprep.subr.mxu0 0.0
      %1509 = vmatpush2.msra.mxu0 0.0
      %1510 = vmatprep.subr.mxu0 0.0
      %1511 = vmatpush2.msra.mxu0 0.0
      %1512 = vmatprep.subr.mxu0 0.0
      %1513 = vmatpush2.msra.mxu0 0.0
      %1514 = vmatprep.subr.mxu0 0.0
      %1515 = vmatpush2.msra.mxu0 0.0
      %1516 = vmatprep.subr.mxu0 0.0
      %1517 = vmatpush2.msra.mxu0 0.0
      %1518 = vmatprep.mubr.f32.mxu0 0.0
      %1519 = vmatmul.mubr.f32.gmra.mxu0 %v1434
      %v1520 = vpop.f32.mrf.mxu0
      %v1521 = vadd.f32 0.0, %v1520
      %v1522 = vpop.f32.mrf.mxu0
      %v1523 = vadd.f32 0.0, %v1522
      %1524 = vdwg.mxu0
      %1525 = vmatprep.subr.mxu0 0.0
      %1526 = vmatpush1.msra.mxu0 0.0
      %1527 = vmatprep.subr.mxu0 0.0
      %1528 = vmatpush1.msra.mxu0 0.0
      %1529 = vmatprep.subr.mxu0 0.0
      %1530 = vmatpush1.msra.mxu0 0.0
      %1531 = vmatprep.subr.mxu0 0.0
      %1532 = vmatpush1.msra.mxu0 0.0
      %1533 = vmatprep.subr.mxu0 0.0
      %1534 = vmatpush1.msra.mxu0 0.0
      %1535 = vmatprep.subr.mxu0 0.0
      %1536 = vmatpush1.msra.mxu0 0.0
      %1537 = vmatprep.subr.mxu0 0.0
      %1538 = vmatpush1.msra.mxu0 0.0
      %1539 = vmatprep.subr.mxu0 0.0
      %1540 = vmatpush1.msra.mxu0 0.0
      %1541 = vmatprep.subr.mxu0 0.0
      %1542 = vmatpush1.msra.mxu0 0.0
      %1543 = vmatprep.subr.mxu0 0.0
      %1544 = vmatpush1.msra.mxu0 0.0
      %1545 = vmatprep.subr.mxu0 0.0
      %1546 = vmatpush1.msra.mxu0 0.0
      %1547 = vmatprep.subr.mxu0 0.0
      %1548 = vmatpush1.msra.mxu0 0.0
      %1549 = vmatprep.subr.mxu0 0.0
      %1550 = vmatpush1.msra.mxu0 0.0
      %1551 = vmatprep.subr.mxu0 0.0
      %1552 = vmatpush1.msra.mxu0 0.0
      %1553 = vmatprep.subr.mxu0 0.0
      %1554 = vmatpush1.msra.mxu0 0.0
      %1555 = vmatprep.subr.mxu0 %v1442
      %1556 = vmatpush1.msra.mxu0 %v1440
      %1557 = vmatprep.subr.mxu0 0.0
      %1558 = vmatpush2.msra.mxu0 0.0
      %1559 = vmatprep.subr.mxu0 0.0
      %1560 = vmatpush2.msra.mxu0 0.0
      %1561 = vmatprep.subr.mxu0 0.0
      %1562 = vmatpush2.msra.mxu0 0.0
      %1563 = vmatprep.subr.mxu0 0.0
      %1564 = vmatpush2.msra.mxu0 0.0
      %1565 = vmatprep.subr.mxu0 0.0
      %1566 = vmatpush2.msra.mxu0 0.0
      %1567 = vmatprep.subr.mxu0 0.0
      %1568 = vmatpush2.msra.mxu0 0.0
      %1569 = vmatprep.subr.mxu0 0.0
      %1570 = vmatpush2.msra.mxu0 0.0
      %1571 = vmatprep.subr.mxu0 0.0
      %1572 = vmatpush2.msra.mxu0 0.0
      %1573 = vmatprep.subr.mxu0 0.0
      %1574 = vmatpush2.msra.mxu0 0.0
      %1575 = vmatprep.subr.mxu0 0.0
      %1576 = vmatpush2.msra.mxu0 0.0
      %1577 = vmatprep.subr.mxu0 0.0
      %1578 = vmatpush2.msra.mxu0 0.0
      %1579 = vmatprep.subr.mxu0 0.0
      %1580 = vmatpush2.msra.mxu0 0.0
      %1581 = vmatprep.subr.mxu0 0.0
      %1582 = vmatpush2.msra.mxu0 0.0
      %1583 = vmatprep.subr.mxu0 0.0
      %1584 = vmatpush2.msra.mxu0 0.0
      %1585 = vmatprep.subr.mxu0 0.0
      %1586 = vmatpush2.msra.mxu0 0.0
      %1587 = vmatprep.subr.mxu0 0.0
      %1588 = vmatpush2.msra.mxu0 0.0
      %1589 = vmatprep.mubr.f32.mxu0 0.0
      %1590 = vmatmul.mubr.f32.gmra.mxu0 %v1434
      %v1591 = vpop.f32.mrf.mxu0
      %v1592 = vadd.f32 0.0, %v1591
      %v1593 = vpop.f32.mrf.mxu0
      %v1594 = vadd.f32 0.0, %v1593
      %1595 = vdwg.mxu0
      %1596 = vmatprep.subr.mxu0 0.0
      %1597 = vmatpush1.msra.mxu0 0.0
      %1598 = vmatprep.subr.mxu0 0.0
      %1599 = vmatpush1.msra.mxu0 0.0
      %1600 = vmatprep.subr.mxu0 0.0
      %1601 = vmatpush1.msra.mxu0 0.0
      %1602 = vmatprep.subr.mxu0 0.0
      %1603 = vmatpush1.msra.mxu0 0.0
      %1604 = vmatprep.subr.mxu0 0.0
      %1605 = vmatpush1.msra.mxu0 0.0
      %1606 = vmatprep.subr.mxu0 0.0
      %1607 = vmatpush1.msra.mxu0 0.0
      %1608 = vmatprep.subr.mxu0 0.0
      %1609 = vmatpush1.msra.mxu0 0.0
      %1610 = vmatprep.subr.mxu0 0.0
      %1611 = vmatpush1.msra.mxu0 0.0
      %1612 = vmatprep.subr.mxu0 0.0
      %1613 = vmatpush1.msra.mxu0 0.0
      %1614 = vmatprep.subr.mxu0 0.0
      %1615 = vmatpush1.msra.mxu0 0.0
      %1616 = vmatprep.subr.mxu0 0.0
      %1617 = vmatpush1.msra.mxu0 0.0
      %1618 = vmatprep.subr.mxu0 0.0
      %1619 = vmatpush1.msra.mxu0 0.0
      %1620 = vmatprep.subr.mxu0 0.0
      %1621 = vmatpush1.msra.mxu0 0.0
      %1622 = vmatprep.subr.mxu0 0.0
      %1623 = vmatpush1.msra.mxu0 0.0
      %1624 = vmatprep.subr.mxu0 0.0
      %1625 = vmatpush1.msra.mxu0 0.0
      %1626 = vmatprep.subr.mxu0 %v1446
      %1627 = vmatpush1.msra.mxu0 %v1444
      %1628 = vmatprep.subr.mxu0 0.0
      %1629 = vmatpush2.msra.mxu0 0.0
      %1630 = vmatprep.subr.mxu0 0.0
      %1631 = vmatpush2.msra.mxu0 0.0
      %1632 = vmatprep.subr.mxu0 0.0
      %1633 = vmatpush2.msra.mxu0 0.0
      %1634 = vmatprep.subr.mxu0 0.0
      %1635 = vmatpush2.msra.mxu0 0.0
      %1636 = vmatprep.subr.mxu0 0.0
      %1637 = vmatpush2.msra.mxu0 0.0
      %1638 = vmatprep.subr.mxu0 0.0
      %1639 = vmatpush2.msra.mxu0 0.0
      %1640 = vmatprep.subr.mxu0 0.0
      %1641 = vmatpush2.msra.mxu0 0.0
      %1642 = vmatprep.subr.mxu0 0.0
      %1643 = vmatpush2.msra.mxu0 0.0
      %1644 = vmatprep.subr.mxu0 0.0
      %1645 = vmatpush2.msra.mxu0 0.0
      %1646 = vmatprep.subr.mxu0 0.0
      %1647 = vmatpush2.msra.mxu0 0.0
      %1648 = vmatprep.subr.mxu0 0.0
      %1649 = vmatpush2.msra.mxu0 0.0
      %1650 = vmatprep.subr.mxu0 0.0
      %1651 = vmatpush2.msra.mxu0 0.0
      %1652 = vmatprep.subr.mxu0 0.0
      %1653 = vmatpush2.msra.mxu0 0.0
      %1654 = vmatprep.subr.mxu0 0.0
      %1655 = vmatpush2.msra.mxu0 0.0
      %1656 = vmatprep.subr.mxu0 0.0
      %1657 = vmatpush2.msra.mxu0 0.0
      %1658 = vmatprep.subr.mxu0 0.0
      %1659 = vmatpush2.msra.mxu0 0.0
      %1660 = vmatprep.mubr.f32.mxu0 0.0
      %1661 = vmatmul.mubr.f32.gmra.mxu0 %v1434
      %v1662 = vpop.f32.mrf.mxu0
      %v1663 = vadd.f32 0.0, %v1662
      %v1664 = vpop.f32.mrf.mxu0
      %v1665 = vadd.f32 0.0, %v1664
      %1666 = vdwg.mxu0
      %1667 = vmatprep.subr.mxu0 0.0
      %1668 = vmatpush1.msra.mxu0 0.0
      %1669 = vmatprep.subr.mxu0 0.0
      %1670 = vmatpush1.msra.mxu0 0.0
      %1671 = vmatprep.subr.mxu0 0.0
      %1672 = vmatpush1.msra.mxu0 0.0
      %1673 = vmatprep.subr.mxu0 0.0
      %1674 = vmatpush1.msra.mxu0 0.0
      %1675 = vmatprep.subr.mxu0 0.0
      %1676 = vmatpush1.msra.mxu0 0.0
      %1677 = vmatprep.subr.mxu0 0.0
      %1678 = vmatpush1.msra.mxu0 0.0
      %1679 = vmatprep.subr.mxu0 0.0
      %1680 = vmatpush1.msra.mxu0 0.0
      %1681 = vmatprep.subr.mxu0 0.0
      %1682 = vmatpush1.msra.mxu0 0.0
      %1683 = vmatprep.subr.mxu0 0.0
      %1684 = vmatpush1.msra.mxu0 0.0
      %1685 = vmatprep.subr.mxu0 0.0
      %1686 = vmatpush1.msra.mxu0 0.0
      %1687 = vmatprep.subr.mxu0 0.0
      %1688 = vmatpush1.msra.mxu0 0.0
      %1689 = vmatprep.subr.mxu0 0.0
      %1690 = vmatpush1.msra.mxu0 0.0
      %1691 = vmatprep.subr.mxu0 0.0
      %1692 = vmatpush1.msra.mxu0 0.0
      %1693 = vmatprep.subr.mxu0 0.0
      %1694 = vmatpush1.msra.mxu0 0.0
      %1695 = vmatprep.subr.mxu0 0.0
      %1696 = vmatpush1.msra.mxu0 0.0
      %1697 = vmatprep.subr.mxu0 %v1450
      %1698 = vmatpush1.msra.mxu0 %v1448
      %1699 = vmatprep.subr.mxu0 0.0
      %1700 = vmatpush2.msra.mxu0 0.0
      %1701 = vmatprep.subr.mxu0 0.0
      %1702 = vmatpush2.msra.mxu0 0.0
      %1703 = vmatprep.subr.mxu0 0.0
      %1704 = vmatpush2.msra.mxu0 0.0
      %1705 = vmatprep.subr.mxu0 0.0
      %1706 = vmatpush2.msra.mxu0 0.0
      %1707 = vmatprep.subr.mxu0 0.0
      %1708 = vmatpush2.msra.mxu0 0.0
      %1709 = vmatprep.subr.mxu0 0.0
      %1710 = vmatpush2.msra.mxu0 0.0
      %1711 = vmatprep.subr.mxu0 0.0
      %1712 = vmatpush2.msra.mxu0 0.0
      %1713 = vmatprep.subr.mxu0 0.0
      %1714 = vmatpush2.msra.mxu0 0.0
      %1715 = vmatprep.subr.mxu0 0.0
      %1716 = vmatpush2.msra.mxu0 0.0
      %1717 = vmatprep.subr.mxu0 0.0
      %1718 = vmatpush2.msra.mxu0 0.0
      %1719 = vmatprep.subr.mxu0 0.0
      %1720 = vmatpush2.msra.mxu0 0.0
      %1721 = vmatprep.subr.mxu0 0.0
      %1722 = vmatpush2.msra.mxu0 0.0
      %1723 = vmatprep.subr.mxu0 0.0
      %1724 = vmatpush2.msra.mxu0 0.0
      %1725 = vmatprep.subr.mxu0 0.0
      %1726 = vmatpush2.msra.mxu0 0.0
      %1727 = vmatprep.subr.mxu0 0.0
      %1728 = vmatpush2.msra.mxu0 0.0
      %1729 = vmatprep.subr.mxu0 0.0
      %1730 = vmatpush2.msra.mxu0 0.0
      %1731 = vmatprep.mubr.f32.mxu0 0.0
      %1732 = vmatmul.mubr.f32.gmra.mxu0 %v1434
      %v1733 = vpop.f32.mrf.mxu0
      %v1734 = vadd.f32 0.0, %v1733
      %v1735 = vpop.f32.mrf.mxu0
      %v1736 = vadd.f32 0.0, %v1735
      %1737 = vdwg.mxu0
      %1738 = vmatprep.subr.mxu0 0.0
      %1739 = vmatpush1.msra.mxu0 0.0
      %1740 = vmatprep.subr.mxu0 0.0
      %1741 = vmatpush1.msra.mxu0 0.0
      %1742 = vmatprep.subr.mxu0 0.0
      %1743 = vmatpush1.msra.mxu0 0.0
      %1744 = vmatprep.subr.mxu0 0.0
      %1745 = vmatpush1.msra.mxu0 0.0
      %1746 = vmatprep.subr.mxu0 0.0
      %1747 = vmatpush1.msra.mxu0 0.0
      %1748 = vmatprep.subr.mxu0 0.0
      %1749 = vmatpush1.msra.mxu0 0.0
      %1750 = vmatprep.subr.mxu0 0.0
      %1751 = vmatpush1.msra.mxu0 0.0
      %1752 = vmatprep.subr.mxu0 0.0
      %1753 = vmatpush1.msra.mxu0 0.0
      %1754 = vmatprep.subr.mxu0 0.0
      %1755 = vmatpush1.msra.mxu0 0.0
      %1756 = vmatprep.subr.mxu0 0.0
      %1757 = vmatpush1.msra.mxu0 0.0
      %1758 = vmatprep.subr.mxu0 0.0
      %1759 = vmatpush1.msra.mxu0 0.0
      %1760 = vmatprep.subr.mxu0 0.0
      %1761 = vmatpush1.msra.mxu0 0.0
      %1762 = vmatprep.subr.mxu0 0.0
      %1763 = vmatpush1.msra.mxu0 0.0
      %1764 = vmatprep.subr.mxu0 0.0
      %1765 = vmatpush1.msra.mxu0 0.0
      %1766 = vmatprep.subr.mxu0 0.0
      %1767 = vmatpush1.msra.mxu0 0.0
      %1768 = vmatprep.subr.mxu0 0.0
      %1769 = vmatpush1.msra.mxu0 %v1452
      %1770 = vmatprep.subr.mxu0 0.0
      %1771 = vmatpush2.msra.mxu0 0.0
      %1772 = vmatprep.subr.mxu0 0.0
      %1773 = vmatpush2.msra.mxu0 0.0
      %1774 = vmatprep.subr.mxu0 0.0
      %1775 = vmatpush2.msra.mxu0 0.0
      %1776 = vmatprep.subr.mxu0 0.0
      %1777 = vmatpush2.msra.mxu0 0.0
      %1778 = vmatprep.subr.mxu0 0.0
      %1779 = vmatpush2.msra.mxu0 0.0
      %1780 = vmatprep.subr.mxu0 0.0
      %1781 = vmatpush2.msra.mxu0 0.0
      %1782 = vmatprep.subr.mxu0 0.0
      %1783 = vmatpush2.msra.mxu0 0.0
      %1784 = vmatprep.subr.mxu0 0.0
      %1785 = vmatpush2.msra.mxu0 0.0
      %1786 = vmatprep.subr.mxu0 0.0
      %1787 = vmatpush2.msra.mxu0 0.0
      %1788 = vmatprep.subr.mxu0 0.0
      %1789 = vmatpush2.msra.mxu0 0.0
      %1790 = vmatprep.subr.mxu0 0.0
      %1791 = vmatpush2.msra.mxu0 0.0
      %1792 = vmatprep.subr.mxu0 0.0
      %1793 = vmatpush2.msra.mxu0 0.0
      %1794 = vmatprep.subr.mxu0 0.0
      %1795 = vmatpush2.msra.mxu0 0.0
      %1796 = vmatprep.subr.mxu0 0.0
      %1797 = vmatpush2.msra.mxu0 0.0
      %1798 = vmatprep.subr.mxu0 0.0
      %1799 = vmatpush2.msra.mxu0 0.0
      %1800 = vmatprep.subr.mxu0 0.0
      %1801 = vmatpush2.msra.mxu0 0.0
      %1802 = vmatprep.mubr.f32.mxu0 0.0
      %1803 = vmatmul.mubr.f32.gmra.mxu0 %v1434
      %v1804 = vpop.f32.mrf.mxu0
      %v1805 = vadd.f32 0.0, %v1804
      %v1806 = vpop.f32.mrf.mxu0
      %1807 = vdwg.mxu0
      %v1808 = vadd.f32 %v1395, %v1521
      %v1809 = vadd.f32 %v1396, %v1523
      %v1810 = vadd.f32 %v1397, %v1592
      %v1811 = vadd.f32 %v1398, %v1594
      %v1812 = vadd.f32 %v1399, %v1663
      %v1813 = vadd.f32 %v1400, %v1665
      %v1814 = vadd.f32 %v1401, %v1734
      %v1815 = vadd.f32 %v1402, %v1736
      %v1816 = vadd.f32 %v1403, %v1805
      %s1817 = scalar_lea.vmem %s1, 32
      %v1818 = vld [vmem:[%s1817] sm:$0xff]
      %v1819 = vcombine.high %v175, %v175
      %1820 = vrot.lane.b32.xlu0 %v171, 93
      %v1821 = vpop.permute.xlu0 %1820
      %1822 = vrot.lane.b32.xlu0 %v188, 93
      %v1823 = vpop.permute.xlu0 %1822
      %1824 = vrot.lane.b32.xlu0 %v172, 93
      %v1825 = vpop.permute.xlu0 %1824
      %1826 = vrot.lane.b32.xlu0 %v189, 93
      %v1827 = vpop.permute.xlu0 %1826
      %1828 = vrot.lane.b32.xlu0 %v173, 93
      %v1829 = vpop.permute.xlu0 %1828
      %1830 = vrot.lane.b32.xlu0 %v190, 93
      %v1831 = vpop.permute.xlu0 %1830
      %1832 = vrot.lane.b32.xlu0 %v174, 93
      %v1833 = vpop.permute.xlu0 %1832
      %1834 = vrot.lane.b32.xlu0 %v191, 93
      %v1835 = vpop.permute.xlu0 %1834
      %1836 = vrot.lane.b32.xlu0 %v175, 93
      %v1837 = vpop.permute.xlu0 %1836
      %1838 = vrot.lane.b32.xlu0 %v1819, 93
      %v1839 = vpop.permute.xlu0 %1838
      %vm1840 = vcmask 760832
      %v1841 = vsel %vm1840, %v1821, %v1823
      %v1842 = vsel %vm1840, %v1823, %v1825
      %v1843 = vsel %vm1840, %v1825, %v1827
      %v1844 = vsel %vm1840, %v1827, %v1829
      %v1845 = vsel %vm1840, %v1829, %v1831
      %v1846 = vsel %vm1840, %v1831, %v1833
      %v1847 = vsel %vm1840, %v1833, %v1835
      %v1848 = vsel %vm1840, %v1835, %v1837
      %v1849 = vsel %vm1840, %v1837, %v1839
      %v1851 = vsel %vm192, %v1818, 0
      %v1853 = vsel %vm196, %v1841, 0
      %v1855 = vsel %vm196, %v1842, 0
      %v1857 = vsel %vm196, %v1843, 0
      %v1859 = vsel %vm196, %v1844, 0
      %v1861 = vsel %vm196, %v1845, 0
      %v1863 = vsel %vm196, %v1846, 0
      %v1865 = vsel %vm196, %v1847, 0
      %v1867 = vsel %vm196, %v1848, 0
      %v1869 = vsel %vm196, %v1849, 0
      %1871 = vmatprep.subr.mxu0 0.0
      %1872 = vmatpush1.msra.mxu0 0.0
      %1873 = vmatprep.subr.mxu0 0.0
      %1874 = vmatpush1.msra.mxu0 0.0
      %1875 = vmatprep.subr.mxu0 0.0
      %1876 = vmatpush1.msra.mxu0 0.0
      %1877 = vmatprep.subr.mxu0 0.0
      %1878 = vmatpush1.msra.mxu0 0.0
      %1879 = vmatprep.subr.mxu0 0.0
      %1880 = vmatpush1.msra.mxu0 0.0
      %1881 = vmatprep.subr.mxu0 0.0
      %1882 = vmatpush1.msra.mxu0 0.0
      %1883 = vmatprep.subr.mxu0 0.0
      %1884 = vmatpush1.msra.mxu0 0.0
      %1885 = vmatprep.subr.mxu0 0.0
      %1886 = vmatpush1.msra.mxu0 0.0
      %1887 = vmatprep.subr.mxu0 0.0
      %1888 = vmatpush1.msra.mxu0 0.0
      %1889 = vmatprep.subr.mxu0 0.0
      %1890 = vmatpush1.msra.mxu0 0.0
      %1891 = vmatprep.subr.mxu0 0.0
      %1892 = vmatpush1.msra.mxu0 0.0
      %1893 = vmatprep.subr.mxu0 0.0
      %1894 = vmatpush1.msra.mxu0 0.0
      %1895 = vmatprep.subr.mxu0 0.0
      %1896 = vmatpush1.msra.mxu0 0.0
      %1897 = vmatprep.subr.mxu0 0.0
      %1898 = vmatpush1.msra.mxu0 0.0
      %1899 = vmatprep.subr.mxu0 0.0
      %1900 = vmatpush1.msra.mxu0 0.0
      %1901 = vmatprep.subr.mxu0 %v1855
      %1902 = vmatpush1.msra.mxu0 %v1853
      %1903 = vmatprep.subr.mxu0 0.0
      %1904 = vmatpush2.msra.mxu0 0.0
      %1905 = vmatprep.subr.mxu0 0.0
      %1906 = vmatpush2.msra.mxu0 0.0
      %1907 = vmatprep.subr.mxu0 0.0
      %1908 = vmatpush2.msra.mxu0 0.0
      %1909 = vmatprep.subr.mxu0 0.0
      %1910 = vmatpush2.msra.mxu0 0.0
      %1911 = vmatprep.subr.mxu0 0.0
      %1912 = vmatpush2.msra.mxu0 0.0
      %1913 = vmatprep.subr.mxu0 0.0
      %1914 = vmatpush2.msra.mxu0 0.0
      %1915 = vmatprep.subr.mxu0 0.0
      %1916 = vmatpush2.msra.mxu0 0.0
      %1917 = vmatprep.subr.mxu0 0.0
      %1918 = vmatpush2.msra.mxu0 0.0
      %1919 = vmatprep.subr.mxu0 0.0
      %1920 = vmatpush2.msra.mxu0 0.0
      %1921 = vmatprep.subr.mxu0 0.0
      %1922 = vmatpush2.msra.mxu0 0.0
      %1923 = vmatprep.subr.mxu0 0.0
      %1924 = vmatpush2.msra.mxu0 0.0
      %1925 = vmatprep.subr.mxu0 0.0
      %1926 = vmatpush2.msra.mxu0 0.0
      %1927 = vmatprep.subr.mxu0 0.0
      %1928 = vmatpush2.msra.mxu0 0.0
      %1929 = vmatprep.subr.mxu0 0.0
      %1930 = vmatpush2.msra.mxu0 0.0
      %1931 = vmatprep.subr.mxu0 0.0
      %1932 = vmatpush2.msra.mxu0 0.0
      %1933 = vmatprep.subr.mxu0 0.0
      %1934 = vmatpush2.msra.mxu0 0.0
      %1935 = vmatprep.mubr.f32.mxu0 0.0
      %1936 = vmatmul.mubr.f32.gmra.mxu0 %v1851
      %v1937 = vpop.f32.mrf.mxu0
      %v1938 = vadd.f32 0.0, %v1937
      %v1939 = vpop.f32.mrf.mxu0
      %v1940 = vadd.f32 0.0, %v1939
      %1941 = vdwg.mxu0
      %1942 = vmatprep.subr.mxu0 0.0
      %1943 = vmatpush1.msra.mxu0 0.0
      %1944 = vmatprep.subr.mxu0 0.0
      %1945 = vmatpush1.msra.mxu0 0.0
      %1946 = vmatprep.subr.mxu0 0.0
      %1947 = vmatpush1.msra.mxu0 0.0
      %1948 = vmatprep.subr.mxu0 0.0
      %1949 = vmatpush1.msra.mxu0 0.0
      %1950 = vmatprep.subr.mxu0 0.0
      %1951 = vmatpush1.msra.mxu0 0.0
      %1952 = vmatprep.subr.mxu0 0.0
      %1953 = vmatpush1.msra.mxu0 0.0
      %1954 = vmatprep.subr.mxu0 0.0
      %1955 = vmatpush1.msra.mxu0 0.0
      %1956 = vmatprep.subr.mxu0 0.0
      %1957 = vmatpush1.msra.mxu0 0.0
      %1958 = vmatprep.subr.mxu0 0.0
      %1959 = vmatpush1.msra.mxu0 0.0
      %1960 = vmatprep.subr.mxu0 0.0
      %1961 = vmatpush1.msra.mxu0 0.0
      %1962 = vmatprep.subr.mxu0 0.0
      %1963 = vmatpush1.msra.mxu0 0.0
      %1964 = vmatprep.subr.mxu0 0.0
      %1965 = vmatpush1.msra.mxu0 0.0
      %1966 = vmatprep.subr.mxu0 0.0
      %1967 = vmatpush1.msra.mxu0 0.0
      %1968 = vmatprep.subr.mxu0 0.0
      %1969 = vmatpush1.msra.mxu0 0.0
      %1970 = vmatprep.subr.mxu0 0.0
      %1971 = vmatpush1.msra.mxu0 0.0
      %1972 = vmatprep.subr.mxu0 %v1859
      %1973 = vmatpush1.msra.mxu0 %v1857
      %1974 = vmatprep.subr.mxu0 0.0
      %1975 = vmatpush2.msra.mxu0 0.0
      %1976 = vmatprep.subr.mxu0 0.0
      %1977 = vmatpush2.msra.mxu0 0.0
      %1978 = vmatprep.subr.mxu0 0.0
      %1979 = vmatpush2.msra.mxu0 0.0
      %1980 = vmatprep.subr.mxu0 0.0
      %1981 = vmatpush2.msra.mxu0 0.0
      %1982 = vmatprep.subr.mxu0 0.0
      %1983 = vmatpush2.msra.mxu0 0.0
      %1984 = vmatprep.subr.mxu0 0.0
      %1985 = vmatpush2.msra.mxu0 0.0
      %1986 = vmatprep.subr.mxu0 0.0
      %1987 = vmatpush2.msra.mxu0 0.0
      %1988 = vmatprep.subr.mxu0 0.0
      %1989 = vmatpush2.msra.mxu0 0.0
      %1990 = vmatprep.subr.mxu0 0.0
      %1991 = vmatpush2.msra.mxu0 0.0
      %1992 = vmatprep.subr.mxu0 0.0
      %1993 = vmatpush2.msra.mxu0 0.0
      %1994 = vmatprep.subr.mxu0 0.0
      %1995 = vmatpush2.msra.mxu0 0.0
      %1996 = vmatprep.subr.mxu0 0.0
      %1997 = vmatpush2.msra.mxu0 0.0
      %1998 = vmatprep.subr.mxu0 0.0
      %1999 = vmatpush2.msra.mxu0 0.0
      %2000 = vmatprep.subr.mxu0 0.0
      %2001 = vmatpush2.msra.mxu0 0.0
      %2002 = vmatprep.subr.mxu0 0.0
      %2003 = vmatpush2.msra.mxu0 0.0
      %2004 = vmatprep.subr.mxu0 0.0
      %2005 = vmatpush2.msra.mxu0 0.0
      %2006 = vmatprep.mubr.f32.mxu0 0.0
      %2007 = vmatmul.mubr.f32.gmra.mxu0 %v1851
      %v2008 = vpop.f32.mrf.mxu0
      %v2009 = vadd.f32 0.0, %v2008
      %v2010 = vpop.f32.mrf.mxu0
      %v2011 = vadd.f32 0.0, %v2010
      %2012 = vdwg.mxu0
      %2013 = vmatprep.subr.mxu0 0.0
      %2014 = vmatpush1.msra.mxu0 0.0
      %2015 = vmatprep.subr.mxu0 0.0
      %2016 = vmatpush1.msra.mxu0 0.0
      %2017 = vmatprep.subr.mxu0 0.0
      %2018 = vmatpush1.msra.mxu0 0.0
      %2019 = vmatprep.subr.mxu0 0.0
      %2020 = vmatpush1.msra.mxu0 0.0
      %2021 = vmatprep.subr.mxu0 0.0
      %2022 = vmatpush1.msra.mxu0 0.0
      %2023 = vmatprep.subr.mxu0 0.0
      %2024 = vmatpush1.msra.mxu0 0.0
      %2025 = vmatprep.subr.mxu0 0.0
      %2026 = vmatpush1.msra.mxu0 0.0
      %2027 = vmatprep.subr.mxu0 0.0
      %2028 = vmatpush1.msra.mxu0 0.0
      %2029 = vmatprep.subr.mxu0 0.0
      %2030 = vmatpush1.msra.mxu0 0.0
      %2031 = vmatprep.subr.mxu0 0.0
      %2032 = vmatpush1.msra.mxu0 0.0
      %2033 = vmatprep.subr.mxu0 0.0
      %2034 = vmatpush1.msra.mxu0 0.0
      %2035 = vmatprep.subr.mxu0 0.0
      %2036 = vmatpush1.msra.mxu0 0.0
      %2037 = vmatprep.subr.mxu0 0.0
      %2038 = vmatpush1.msra.mxu0 0.0
      %2039 = vmatprep.subr.mxu0 0.0
      %2040 = vmatpush1.msra.mxu0 0.0
      %2041 = vmatprep.subr.mxu0 0.0
      %2042 = vmatpush1.msra.mxu0 0.0
      %2043 = vmatprep.subr.mxu0 %v1863
      %2044 = vmatpush1.msra.mxu0 %v1861
      %2045 = vmatprep.subr.mxu0 0.0
      %2046 = vmatpush2.msra.mxu0 0.0
      %2047 = vmatprep.subr.mxu0 0.0
      %2048 = vmatpush2.msra.mxu0 0.0
      %2049 = vmatprep.subr.mxu0 0.0
      %2050 = vmatpush2.msra.mxu0 0.0
      %2051 = vmatprep.subr.mxu0 0.0
      %2052 = vmatpush2.msra.mxu0 0.0
      %2053 = vmatprep.subr.mxu0 0.0
      %2054 = vmatpush2.msra.mxu0 0.0
      %2055 = vmatprep.subr.mxu0 0.0
      %2056 = vmatpush2.msra.mxu0 0.0
      %2057 = vmatprep.subr.mxu0 0.0
      %2058 = vmatpush2.msra.mxu0 0.0
      %2059 = vmatprep.subr.mxu0 0.0
      %2060 = vmatpush2.msra.mxu0 0.0
      %2061 = vmatprep.subr.mxu0 0.0
      %2062 = vmatpush2.msra.mxu0 0.0
      %2063 = vmatprep.subr.mxu0 0.0
      %2064 = vmatpush2.msra.mxu0 0.0
      %2065 = vmatprep.subr.mxu0 0.0
      %2066 = vmatpush2.msra.mxu0 0.0
      %2067 = vmatprep.subr.mxu0 0.0
      %2068 = vmatpush2.msra.mxu0 0.0
      %2069 = vmatprep.subr.mxu0 0.0
      %2070 = vmatpush2.msra.mxu0 0.0
      %2071 = vmatprep.subr.mxu0 0.0
      %2072 = vmatpush2.msra.mxu0 0.0
      %2073 = vmatprep.subr.mxu0 0.0
      %2074 = vmatpush2.msra.mxu0 0.0
      %2075 = vmatprep.subr.mxu0 0.0
      %2076 = vmatpush2.msra.mxu0 0.0
      %2077 = vmatprep.mubr.f32.mxu0 0.0
      %2078 = vmatmul.mubr.f32.gmra.mxu0 %v1851
      %v2079 = vpop.f32.mrf.mxu0
      %v2080 = vadd.f32 0.0, %v2079
      %v2081 = vpop.f32.mrf.mxu0
      %v2082 = vadd.f32 0.0, %v2081
      %2083 = vdwg.mxu0
      %2084 = vmatprep.subr.mxu0 0.0
      %2085 = vmatpush1.msra.mxu0 0.0
      %2086 = vmatprep.subr.mxu0 0.0
      %2087 = vmatpush1.msra.mxu0 0.0
      %2088 = vmatprep.subr.mxu0 0.0
      %2089 = vmatpush1.msra.mxu0 0.0
      %2090 = vmatprep.subr.mxu0 0.0
      %2091 = vmatpush1.msra.mxu0 0.0
      %2092 = vmatprep.subr.mxu0 0.0
      %2093 = vmatpush1.msra.mxu0 0.0
      %2094 = vmatprep.subr.mxu0 0.0
      %2095 = vmatpush1.msra.mxu0 0.0
      %2096 = vmatprep.subr.mxu0 0.0
      %2097 = vmatpush1.msra.mxu0 0.0
      %2098 = vmatprep.subr.mxu0 0.0
      %2099 = vmatpush1.msra.mxu0 0.0
      %2100 = vmatprep.subr.mxu0 0.0
      %2101 = vmatpush1.msra.mxu0 0.0
      %2102 = vmatprep.subr.mxu0 0.0
      %2103 = vmatpush1.msra.mxu0 0.0
      %2104 = vmatprep.subr.mxu0 0.0
      %2105 = vmatpush1.msra.mxu0 0.0
      %2106 = vmatprep.subr.mxu0 0.0
      %2107 = vmatpush1.msra.mxu0 0.0
      %2108 = vmatprep.subr.mxu0 0.0
      %2109 = vmatpush1.msra.mxu0 0.0
      %2110 = vmatprep.subr.mxu0 0.0
      %2111 = vmatpush1.msra.mxu0 0.0
      %2112 = vmatprep.subr.mxu0 0.0
      %2113 = vmatpush1.msra.mxu0 0.0
      %2114 = vmatprep.subr.mxu0 %v1867
      %2115 = vmatpush1.msra.mxu0 %v1865
      %2116 = vmatprep.subr.mxu0 0.0
      %2117 = vmatpush2.msra.mxu0 0.0
      %2118 = vmatprep.subr.mxu0 0.0
      %2119 = vmatpush2.msra.mxu0 0.0
      %2120 = vmatprep.subr.mxu0 0.0
      %2121 = vmatpush2.msra.mxu0 0.0
      %2122 = vmatprep.subr.mxu0 0.0
      %2123 = vmatpush2.msra.mxu0 0.0
      %2124 = vmatprep.subr.mxu0 0.0
      %2125 = vmatpush2.msra.mxu0 0.0
      %2126 = vmatprep.subr.mxu0 0.0
      %2127 = vmatpush2.msra.mxu0 0.0
      %2128 = vmatprep.subr.mxu0 0.0
      %2129 = vmatpush2.msra.mxu0 0.0
      %2130 = vmatprep.subr.mxu0 0.0
      %2131 = vmatpush2.msra.mxu0 0.0
      %2132 = vmatprep.subr.mxu0 0.0
      %2133 = vmatpush2.msra.mxu0 0.0
      %2134 = vmatprep.subr.mxu0 0.0
      %2135 = vmatpush2.msra.mxu0 0.0
      %2136 = vmatprep.subr.mxu0 0.0
      %2137 = vmatpush2.msra.mxu0 0.0
      %2138 = vmatprep.subr.mxu0 0.0
      %2139 = vmatpush2.msra.mxu0 0.0
      %2140 = vmatprep.subr.mxu0 0.0
      %2141 = vmatpush2.msra.mxu0 0.0
      %2142 = vmatprep.subr.mxu0 0.0
      %2143 = vmatpush2.msra.mxu0 0.0
      %2144 = vmatprep.subr.mxu0 0.0
      %2145 = vmatpush2.msra.mxu0 0.0
      %2146 = vmatprep.subr.mxu0 0.0
      %2147 = vmatpush2.msra.mxu0 0.0
      %2148 = vmatprep.mubr.f32.mxu0 0.0
      %2149 = vmatmul.mubr.f32.gmra.mxu0 %v1851
      %v2150 = vpop.f32.mrf.mxu0
      %v2151 = vadd.f32 0.0, %v2150
      %v2152 = vpop.f32.mrf.mxu0
      %v2153 = vadd.f32 0.0, %v2152
      %2154 = vdwg.mxu0
      %2155 = vmatprep.subr.mxu0 0.0
      %2156 = vmatpush1.msra.mxu0 0.0
      %2157 = vmatprep.subr.mxu0 0.0
      %2158 = vmatpush1.msra.mxu0 0.0
      %2159 = vmatprep.subr.mxu0 0.0
      %2160 = vmatpush1.msra.mxu0 0.0
      %2161 = vmatprep.subr.mxu0 0.0
      %2162 = vmatpush1.msra.mxu0 0.0
      %2163 = vmatprep.subr.mxu0 0.0
      %2164 = vmatpush1.msra.mxu0 0.0
      %2165 = vmatprep.subr.mxu0 0.0
      %2166 = vmatpush1.msra.mxu0 0.0
      %2167 = vmatprep.subr.mxu0 0.0
      %2168 = vmatpush1.msra.mxu0 0.0
      %2169 = vmatprep.subr.mxu0 0.0
      %2170 = vmatpush1.msra.mxu0 0.0
      %2171 = vmatprep.subr.mxu0 0.0
      %2172 = vmatpush1.msra.mxu0 0.0
      %2173 = vmatprep.subr.mxu0 0.0
      %2174 = vmatpush1.msra.mxu0 0.0
      %2175 = vmatprep.subr.mxu0 0.0
      %2176 = vmatpush1.msra.mxu0 0.0
      %2177 = vmatprep.subr.mxu0 0.0
      %2178 = vmatpush1.msra.mxu0 0.0
      %2179 = vmatprep.subr.mxu0 0.0
      %2180 = vmatpush1.msra.mxu0 0.0
      %2181 = vmatprep.subr.mxu0 0.0
      %2182 = vmatpush1.msra.mxu0 0.0
      %2183 = vmatprep.subr.mxu0 0.0
      %2184 = vmatpush1.msra.mxu0 0.0
      %2185 = vmatprep.subr.mxu0 0.0
      %2186 = vmatpush1.msra.mxu0 %v1869
      %2187 = vmatprep.subr.mxu0 0.0
      %2188 = vmatpush2.msra.mxu0 0.0
      %2189 = vmatprep.subr.mxu0 0.0
      %2190 = vmatpush2.msra.mxu0 0.0
      %2191 = vmatprep.subr.mxu0 0.0
      %2192 = vmatpush2.msra.mxu0 0.0
      %2193 = vmatprep.subr.mxu0 0.0
      %2194 = vmatpush2.msra.mxu0 0.0
      %2195 = vmatprep.subr.mxu0 0.0
      %2196 = vmatpush2.msra.mxu0 0.0
      %2197 = vmatprep.subr.mxu0 0.0
      %2198 = vmatpush2.msra.mxu0 0.0
      %2199 = vmatprep.subr.mxu0 0.0
      %2200 = vmatpush2.msra.mxu0 0.0
      %2201 = vmatprep.subr.mxu0 0.0
      %2202 = vmatpush2.msra.mxu0 0.0
      %2203 = vmatprep.subr.mxu0 0.0
      %2204 = vmatpush2.msra.mxu0 0.0
      %2205 = vmatprep.subr.mxu0 0.0
      %2206 = vmatpush2.msra.mxu0 0.0
      %2207 = vmatprep.subr.mxu0 0.0
      %2208 = vmatpush2.msra.mxu0 0.0
      %2209 = vmatprep.subr.mxu0 0.0
      %2210 = vmatpush2.msra.mxu0 0.0
      %2211 = vmatprep.subr.mxu0 0.0
      %2212 = vmatpush2.msra.mxu0 0.0
      %2213 = vmatprep.subr.mxu0 0.0
      %2214 = vmatpush2.msra.mxu0 0.0
      %2215 = vmatprep.subr.mxu0 0.0
      %2216 = vmatpush2.msra.mxu0 0.0
      %2217 = vmatprep.subr.mxu0 0.0
      %2218 = vmatpush2.msra.mxu0 0.0
      %2219 = vmatprep.mubr.f32.mxu0 0.0
      %2220 = vmatmul.mubr.f32.gmra.mxu0 %v1851
      %v2221 = vpop.f32.mrf.mxu0
      %v2222 = vadd.f32 0.0, %v2221
      %v2223 = vpop.f32.mrf.mxu0
      %2224 = vdwg.mxu0
      %v2225 = vadd.f32 %v1808, %v1938
      %v2226 = vadd.f32 %v1809, %v1940
      %v2227 = vadd.f32 %v1810, %v2009
      %v2228 = vadd.f32 %v1811, %v2011
      %v2229 = vadd.f32 %v1812, %v2080
      %v2230 = vadd.f32 %v1813, %v2082
      %v2231 = vadd.f32 %v1814, %v2151
      %v2232 = vadd.f32 %v1815, %v2153
      %v2233 = vadd.f32 %v1816, %v2222
      %s2234 = scalar_lea.vmem %s1, 40
      %v2235 = vld [vmem:[%s2234] sm:$0xff]
      %2236 = vrot.lane.b32.xlu0 %v171, 92
      %v2237 = vpop.permute.xlu0 %2236
      %2238 = vrot.lane.b32.xlu0 %v188, 92
      %v2239 = vpop.permute.xlu0 %2238
      %2240 = vrot.lane.b32.xlu0 %v172, 92
      %v2241 = vpop.permute.xlu0 %2240
      %2242 = vrot.lane.b32.xlu0 %v189, 92
      %v2243 = vpop.permute.xlu0 %2242
      %2244 = vrot.lane.b32.xlu0 %v173, 92
      %v2245 = vpop.permute.xlu0 %2244
      %2246 = vrot.lane.b32.xlu0 %v190, 92
      %v2247 = vpop.permute.xlu0 %2246
      %2248 = vrot.lane.b32.xlu0 %v174, 92
      %v2249 = vpop.permute.xlu0 %2248
      %2250 = vrot.lane.b32.xlu0 %v191, 92
      %v2251 = vpop.permute.xlu0 %2250
      %2252 = vrot.lane.b32.xlu0 %v175, 92
      %v2253 = vpop.permute.xlu0 %2252
      %2254 = vrot.lane.b32.xlu0 %v1819, 92
      %v2255 = vpop.permute.xlu0 %2254
      %vm2256 = vcmask 752640
      %v2257 = vsel %vm2256, %v2237, %v2239
      %v2258 = vsel %vm2256, %v2239, %v2241
      %v2259 = vsel %vm2256, %v2241, %v2243
      %v2260 = vsel %vm2256, %v2243, %v2245
      %v2261 = vsel %vm2256, %v2245, %v2247
      %v2262 = vsel %vm2256, %v2247, %v2249
      %v2263 = vsel %vm2256, %v2249, %v2251
      %v2264 = vsel %vm2256, %v2251, %v2253
      %v2265 = vsel %vm2256, %v2253, %v2255
      %v2267 = vsel %vm192, %v2235, 0
      %v2269 = vsel %vm196, %v2257, 0
      %v2271 = vsel %vm196, %v2258, 0
      %v2273 = vsel %vm196, %v2259, 0
      %v2275 = vsel %vm196, %v2260, 0
      %v2277 = vsel %vm196, %v2261, 0
      %v2279 = vsel %vm196, %v2262, 0
      %v2281 = vsel %vm196, %v2263, 0
      %v2283 = vsel %vm196, %v2264, 0
      %v2285 = vsel %vm196, %v2265, 0
      %2287 = vmatprep.subr.mxu0 0.0
      %2288 = vmatpush1.msra.mxu0 0.0
      %2289 = vmatprep.subr.mxu0 0.0
      %2290 = vmatpush1.msra.mxu0 0.0
      %2291 = vmatprep.subr.mxu0 0.0
      %2292 = vmatpush1.msra.mxu0 0.0
      %2293 = vmatprep.subr.mxu0 0.0
      %2294 = vmatpush1.msra.mxu0 0.0
      %2295 = vmatprep.subr.mxu0 0.0
      %2296 = vmatpush1.msra.mxu0 0.0
      %2297 = vmatprep.subr.mxu0 0.0
      %2298 = vmatpush1.msra.mxu0 0.0
      %2299 = vmatprep.subr.mxu0 0.0
      %2300 = vmatpush1.msra.mxu0 0.0
      %2301 = vmatprep.subr.mxu0 0.0
      %2302 = vmatpush1.msra.mxu0 0.0
      %2303 = vmatprep.subr.mxu0 0.0
      %2304 = vmatpush1.msra.mxu0 0.0
      %2305 = vmatprep.subr.mxu0 0.0
      %2306 = vmatpush1.msra.mxu0 0.0
      %2307 = vmatprep.subr.mxu0 0.0
      %2308 = vmatpush1.msra.mxu0 0.0
      %2309 = vmatprep.subr.mxu0 0.0
      %2310 = vmatpush1.msra.mxu0 0.0
      %2311 = vmatprep.subr.mxu0 0.0
      %2312 = vmatpush1.msra.mxu0 0.0
      %2313 = vmatprep.subr.mxu0 0.0
      %2314 = vmatpush1.msra.mxu0 0.0
      %2315 = vmatprep.subr.mxu0 0.0
      %2316 = vmatpush1.msra.mxu0 0.0
      %2317 = vmatprep.subr.mxu0 %v2271
      %2318 = vmatpush1.msra.mxu0 %v2269
      %2319 = vmatprep.subr.mxu0 0.0
      %2320 = vmatpush2.msra.mxu0 0.0
      %2321 = vmatprep.subr.mxu0 0.0
      %2322 = vmatpush2.msra.mxu0 0.0
      %2323 = vmatprep.subr.mxu0 0.0
      %2324 = vmatpush2.msra.mxu0 0.0
      %2325 = vmatprep.subr.mxu0 0.0
      %2326 = vmatpush2.msra.mxu0 0.0
      %2327 = vmatprep.subr.mxu0 0.0
      %2328 = vmatpush2.msra.mxu0 0.0
      %2329 = vmatprep.subr.mxu0 0.0
      %2330 = vmatpush2.msra.mxu0 0.0
      %2331 = vmatprep.subr.mxu0 0.0
      %2332 = vmatpush2.msra.mxu0 0.0
      %2333 = vmatprep.subr.mxu0 0.0
      %2334 = vmatpush2.msra.mxu0 0.0
      %2335 = vmatprep.subr.mxu0 0.0
      %2336 = vmatpush2.msra.mxu0 0.0
      %2337 = vmatprep.subr.mxu0 0.0
      %2338 = vmatpush2.msra.mxu0 0.0
      %2339 = vmatprep.subr.mxu0 0.0
      %2340 = vmatpush2.msra.mxu0 0.0
      %2341 = vmatprep.subr.mxu0 0.0
      %2342 = vmatpush2.msra.mxu0 0.0
      %2343 = vmatprep.subr.mxu0 0.0
      %2344 = vmatpush2.msra.mxu0 0.0
      %2345 = vmatprep.subr.mxu0 0.0
      %2346 = vmatpush2.msra.mxu0 0.0
      %2347 = vmatprep.subr.mxu0 0.0
      %2348 = vmatpush2.msra.mxu0 0.0
      %2349 = vmatprep.subr.mxu0 0.0
      %2350 = vmatpush2.msra.mxu0 0.0
      %2351 = vmatprep.mubr.f32.mxu0 0.0
      %2352 = vmatmul.mubr.f32.gmra.mxu0 %v2267
      %v2353 = vpop.f32.mrf.mxu0
      %v2354 = vadd.f32 0.0, %v2353
      %v2355 = vpop.f32.mrf.mxu0
      %v2356 = vadd.f32 0.0, %v2355
      %2357 = vdwg.mxu0
      %2358 = vmatprep.subr.mxu0 0.0
      %2359 = vmatpush1.msra.mxu0 0.0
      %2360 = vmatprep.subr.mxu0 0.0
      %2361 = vmatpush1.msra.mxu0 0.0
      %2362 = vmatprep.subr.mxu0 0.0
      %2363 = vmatpush1.msra.mxu0 0.0
      %2364 = vmatprep.subr.mxu0 0.0
      %2365 = vmatpush1.msra.mxu0 0.0
      %2366 = vmatprep.subr.mxu0 0.0
      %2367 = vmatpush1.msra.mxu0 0.0
      %2368 = vmatprep.subr.mxu0 0.0
      %2369 = vmatpush1.msra.mxu0 0.0
      %2370 = vmatprep.subr.mxu0 0.0
      %2371 = vmatpush1.msra.mxu0 0.0
      %2372 = vmatprep.subr.mxu0 0.0
      %2373 = vmatpush1.msra.mxu0 0.0
      %2374 = vmatprep.subr.mxu0 0.0
      %2375 = vmatpush1.msra.mxu0 0.0
      %2376 = vmatprep.subr.mxu0 0.0
      %2377 = vmatpush1.msra.mxu0 0.0
      %2378 = vmatprep.subr.mxu0 0.0
      %2379 = vmatpush1.msra.mxu0 0.0
      %2380 = vmatprep.subr.mxu0 0.0
      %2381 = vmatpush1.msra.mxu0 0.0
      %2382 = vmatprep.subr.mxu0 0.0
      %2383 = vmatpush1.msra.mxu0 0.0
      %2384 = vmatprep.subr.mxu0 0.0
      %2385 = vmatpush1.msra.mxu0 0.0
      %2386 = vmatprep.subr.mxu0 0.0
      %2387 = vmatpush1.msra.mxu0 0.0
      %2388 = vmatprep.subr.mxu0 %v2275
      %2389 = vmatpush1.msra.mxu0 %v2273
      %2390 = vmatprep.subr.mxu0 0.0
      %2391 = vmatpush2.msra.mxu0 0.0
      %2392 = vmatprep.subr.mxu0 0.0
      %2393 = vmatpush2.msra.mxu0 0.0
      %2394 = vmatprep.subr.mxu0 0.0
      %2395 = vmatpush2.msra.mxu0 0.0
      %2396 = vmatprep.subr.mxu0 0.0
      %2397 = vmatpush2.msra.mxu0 0.0
      %2398 = vmatprep.subr.mxu0 0.0
      %2399 = vmatpush2.msra.mxu0 0.0
      %2400 = vmatprep.subr.mxu0 0.0
      %2401 = vmatpush2.msra.mxu0 0.0
      %2402 = vmatprep.subr.mxu0 0.0
      %2403 = vmatpush2.msra.mxu0 0.0
      %2404 = vmatprep.subr.mxu0 0.0
      %2405 = vmatpush2.msra.mxu0 0.0
      %2406 = vmatprep.subr.mxu0 0.0
      %2407 = vmatpush2.msra.mxu0 0.0
      %2408 = vmatprep.subr.mxu0 0.0
      %2409 = vmatpush2.msra.mxu0 0.0
      %2410 = vmatprep.subr.mxu0 0.0
      %2411 = vmatpush2.msra.mxu0 0.0
      %2412 = vmatprep.subr.mxu0 0.0
      %2413 = vmatpush2.msra.mxu0 0.0
      %2414 = vmatprep.subr.mxu0 0.0
      %2415 = vmatpush2.msra.mxu0 0.0
      %2416 = vmatprep.subr.mxu0 0.0
      %2417 = vmatpush2.msra.mxu0 0.0
      %2418 = vmatprep.subr.mxu0 0.0
      %2419 = vmatpush2.msra.mxu0 0.0
      %2420 = vmatprep.subr.mxu0 0.0
      %2421 = vmatpush2.msra.mxu0 0.0
      %2422 = vmatprep.mubr.f32.mxu0 0.0
      %2423 = vmatmul.mubr.f32.gmra.mxu0 %v2267
      %v2424 = vpop.f32.mrf.mxu0
      %v2425 = vadd.f32 0.0, %v2424
      %v2426 = vpop.f32.mrf.mxu0
      %v2427 = vadd.f32 0.0, %v2426
      %2428 = vdwg.mxu0
      %2429 = vmatprep.subr.mxu0 0.0
      %2430 = vmatpush1.msra.mxu0 0.0
      %2431 = vmatprep.subr.mxu0 0.0
      %2432 = vmatpush1.msra.mxu0 0.0
      %2433 = vmatprep.subr.mxu0 0.0
      %2434 = vmatpush1.msra.mxu0 0.0
      %2435 = vmatprep.subr.mxu0 0.0
      %2436 = vmatpush1.msra.mxu0 0.0
      %2437 = vmatprep.subr.mxu0 0.0
      %2438 = vmatpush1.msra.mxu0 0.0
      %2439 = vmatprep.subr.mxu0 0.0
      %2440 = vmatpush1.msra.mxu0 0.0
      %2441 = vmatprep.subr.mxu0 0.0
      %2442 = vmatpush1.msra.mxu0 0.0
      %2443 = vmatprep.subr.mxu0 0.0
      %2444 = vmatpush1.msra.mxu0 0.0
      %2445 = vmatprep.subr.mxu0 0.0
      %2446 = vmatpush1.msra.mxu0 0.0
      %2447 = vmatprep.subr.mxu0 0.0
      %2448 = vmatpush1.msra.mxu0 0.0
      %2449 = vmatprep.subr.mxu0 0.0
      %2450 = vmatpush1.msra.mxu0 0.0
      %2451 = vmatprep.subr.mxu0 0.0
      %2452 = vmatpush1.msra.mxu0 0.0
      %2453 = vmatprep.subr.mxu0 0.0
      %2454 = vmatpush1.msra.mxu0 0.0
      %2455 = vmatprep.subr.mxu0 0.0
      %2456 = vmatpush1.msra.mxu0 0.0
      %2457 = vmatprep.subr.mxu0 0.0
      %2458 = vmatpush1.msra.mxu0 0.0
      %2459 = vmatprep.subr.mxu0 %v2279
      %2460 = vmatpush1.msra.mxu0 %v2277
      %2461 = vmatprep.subr.mxu0 0.0
      %2462 = vmatpush2.msra.mxu0 0.0
      %2463 = vmatprep.subr.mxu0 0.0
      %2464 = vmatpush2.msra.mxu0 0.0
      %2465 = vmatprep.subr.mxu0 0.0
      %2466 = vmatpush2.msra.mxu0 0.0
      %2467 = vmatprep.subr.mxu0 0.0
      %2468 = vmatpush2.msra.mxu0 0.0
      %2469 = vmatprep.subr.mxu0 0.0
      %2470 = vmatpush2.msra.mxu0 0.0
      %2471 = vmatprep.subr.mxu0 0.0
      %2472 = vmatpush2.msra.mxu0 0.0
      %2473 = vmatprep.subr.mxu0 0.0
      %2474 = vmatpush2.msra.mxu0 0.0
      %2475 = vmatprep.subr.mxu0 0.0
      %2476 = vmatpush2.msra.mxu0 0.0
      %2477 = vmatprep.subr.mxu0 0.0
      %2478 = vmatpush2.msra.mxu0 0.0
      %2479 = vmatprep.subr.mxu0 0.0
      %2480 = vmatpush2.msra.mxu0 0.0
      %2481 = vmatprep.subr.mxu0 0.0
      %2482 = vmatpush2.msra.mxu0 0.0
      %2483 = vmatprep.subr.mxu0 0.0
      %2484 = vmatpush2.msra.mxu0 0.0
      %2485 = vmatprep.subr.mxu0 0.0
      %2486 = vmatpush2.msra.mxu0 0.0
      %2487 = vmatprep.subr.mxu0 0.0
      %2488 = vmatpush2.msra.mxu0 0.0
      %2489 = vmatprep.subr.mxu0 0.0
      %2490 = vmatpush2.msra.mxu0 0.0
      %2491 = vmatprep.subr.mxu0 0.0
      %2492 = vmatpush2.msra.mxu0 0.0
      %2493 = vmatprep.mubr.f32.mxu0 0.0
      %2494 = vmatmul.mubr.f32.gmra.mxu0 %v2267
      %v2495 = vpop.f32.mrf.mxu0
      %v2496 = vadd.f32 0.0, %v2495
      %v2497 = vpop.f32.mrf.mxu0
      %v2498 = vadd.f32 0.0, %v2497
      %2499 = vdwg.mxu0
      %2500 = vmatprep.subr.mxu0 0.0
      %2501 = vmatpush1.msra.mxu0 0.0
      %2502 = vmatprep.subr.mxu0 0.0
      %2503 = vmatpush1.msra.mxu0 0.0
      %2504 = vmatprep.subr.mxu0 0.0
      %2505 = vmatpush1.msra.mxu0 0.0
      %2506 = vmatprep.subr.mxu0 0.0
      %2507 = vmatpush1.msra.mxu0 0.0
      %2508 = vmatprep.subr.mxu0 0.0
      %2509 = vmatpush1.msra.mxu0 0.0
      %2510 = vmatprep.subr.mxu0 0.0
      %2511 = vmatpush1.msra.mxu0 0.0
      %2512 = vmatprep.subr.mxu0 0.0
      %2513 = vmatpush1.msra.mxu0 0.0
      %2514 = vmatprep.subr.mxu0 0.0
      %2515 = vmatpush1.msra.mxu0 0.0
      %2516 = vmatprep.subr.mxu0 0.0
      %2517 = vmatpush1.msra.mxu0 0.0
      %2518 = vmatprep.subr.mxu0 0.0
      %2519 = vmatpush1.msra.mxu0 0.0
      %2520 = vmatprep.subr.mxu0 0.0
      %2521 = vmatpush1.msra.mxu0 0.0
      %2522 = vmatprep.subr.mxu0 0.0
      %2523 = vmatpush1.msra.mxu0 0.0
      %2524 = vmatprep.subr.mxu0 0.0
      %2525 = vmatpush1.msra.mxu0 0.0
      %2526 = vmatprep.subr.mxu0 0.0
      %2527 = vmatpush1.msra.mxu0 0.0
      %2528 = vmatprep.subr.mxu0 0.0
      %2529 = vmatpush1.msra.mxu0 0.0
      %2530 = vmatprep.subr.mxu0 %v2283
      %2531 = vmatpush1.msra.mxu0 %v2281
      %2532 = vmatprep.subr.mxu0 0.0
      %2533 = vmatpush2.msra.mxu0 0.0
      %2534 = vmatprep.subr.mxu0 0.0
      %2535 = vmatpush2.msra.mxu0 0.0
      %2536 = vmatprep.subr.mxu0 0.0
      %2537 = vmatpush2.msra.mxu0 0.0
      %2538 = vmatprep.subr.mxu0 0.0
      %2539 = vmatpush2.msra.mxu0 0.0
      %2540 = vmatprep.subr.mxu0 0.0
      %2541 = vmatpush2.msra.mxu0 0.0
      %2542 = vmatprep.subr.mxu0 0.0
      %2543 = vmatpush2.msra.mxu0 0.0
      %2544 = vmatprep.subr.mxu0 0.0
      %2545 = vmatpush2.msra.mxu0 0.0
      %2546 = vmatprep.subr.mxu0 0.0
      %2547 = vmatpush2.msra.mxu0 0.0
      %2548 = vmatprep.subr.mxu0 0.0
      %2549 = vmatpush2.msra.mxu0 0.0
      %2550 = vmatprep.subr.mxu0 0.0
      %2551 = vmatpush2.msra.mxu0 0.0
      %2552 = vmatprep.subr.mxu0 0.0
      %2553 = vmatpush2.msra.mxu0 0.0
      %2554 = vmatprep.subr.mxu0 0.0
      %2555 = vmatpush2.msra.mxu0 0.0
      %2556 = vmatprep.subr.mxu0 0.0
      %2557 = vmatpush2.msra.mxu0 0.0
      %2558 = vmatprep.subr.mxu0 0.0
      %2559 = vmatpush2.msra.mxu0 0.0
      %2560 = vmatprep.subr.mxu0 0.0
      %2561 = vmatpush2.msra.mxu0 0.0
      %2562 = vmatprep.subr.mxu0 0.0
      %2563 = vmatpush2.msra.mxu0 0.0
      %2564 = vmatprep.mubr.f32.mxu0 0.0
      %2565 = vmatmul.mubr.f32.gmra.mxu0 %v2267
      %v2566 = vpop.f32.mrf.mxu0
      %v2567 = vadd.f32 0.0, %v2566
      %v2568 = vpop.f32.mrf.mxu0
      %v2569 = vadd.f32 0.0, %v2568
      %2570 = vdwg.mxu0
      %2571 = vmatprep.subr.mxu0 0.0
      %2572 = vmatpush1.msra.mxu0 0.0
      %2573 = vmatprep.subr.mxu0 0.0
      %2574 = vmatpush1.msra.mxu0 0.0
      %2575 = vmatprep.subr.mxu0 0.0
      %2576 = vmatpush1.msra.mxu0 0.0
      %2577 = vmatprep.subr.mxu0 0.0
      %2578 = vmatpush1.msra.mxu0 0.0
      %2579 = vmatprep.subr.mxu0 0.0
      %2580 = vmatpush1.msra.mxu0 0.0
      %2581 = vmatprep.subr.mxu0 0.0
      %2582 = vmatpush1.msra.mxu0 0.0
      %2583 = vmatprep.subr.mxu0 0.0
      %2584 = vmatpush1.msra.mxu0 0.0
      %2585 = vmatprep.subr.mxu0 0.0
      %2586 = vmatpush1.msra.mxu0 0.0
      %2587 = vmatprep.subr.mxu0 0.0
      %2588 = vmatpush1.msra.mxu0 0.0
      %2589 = vmatprep.subr.mxu0 0.0
      %2590 = vmatpush1.msra.mxu0 0.0
      %2591 = vmatprep.subr.mxu0 0.0
      %2592 = vmatpush1.msra.mxu0 0.0
      %2593 = vmatprep.subr.mxu0 0.0
      %2594 = vmatpush1.msra.mxu0 0.0
      %2595 = vmatprep.subr.mxu0 0.0
      %2596 = vmatpush1.msra.mxu0 0.0
      %2597 = vmatprep.subr.mxu0 0.0
      %2598 = vmatpush1.msra.mxu0 0.0
      %2599 = vmatprep.subr.mxu0 0.0
      %2600 = vmatpush1.msra.mxu0 0.0
      %2601 = vmatprep.subr.mxu0 0.0
      %2602 = vmatpush1.msra.mxu0 %v2285
      %2603 = vmatprep.subr.mxu0 0.0
      %2604 = vmatpush2.msra.mxu0 0.0
      %2605 = vmatprep.subr.mxu0 0.0
      %2606 = vmatpush2.msra.mxu0 0.0
      %2607 = vmatprep.subr.mxu0 0.0
      %2608 = vmatpush2.msra.mxu0 0.0
      %2609 = vmatprep.subr.mxu0 0.0
      %2610 = vmatpush2.msra.mxu0 0.0
      %2611 = vmatprep.subr.mxu0 0.0
      %2612 = vmatpush2.msra.mxu0 0.0
      %2613 = vmatprep.subr.mxu0 0.0
      %2614 = vmatpush2.msra.mxu0 0.0
      %2615 = vmatprep.subr.mxu0 0.0
      %2616 = vmatpush2.msra.mxu0 0.0
      %2617 = vmatprep.subr.mxu0 0.0
      %2618 = vmatpush2.msra.mxu0 0.0
      %2619 = vmatprep.subr.mxu0 0.0
      %2620 = vmatpush2.msra.mxu0 0.0
      %2621 = vmatprep.subr.mxu0 0.0
      %2622 = vmatpush2.msra.mxu0 0.0
      %2623 = vmatprep.subr.mxu0 0.0
      %2624 = vmatpush2.msra.mxu0 0.0
      %2625 = vmatprep.subr.mxu0 0.0
      %2626 = vmatpush2.msra.mxu0 0.0
      %2627 = vmatprep.subr.mxu0 0.0
      %2628 = vmatpush2.msra.mxu0 0.0
      %2629 = vmatprep.subr.mxu0 0.0
      %2630 = vmatpush2.msra.mxu0 0.0
      %2631 = vmatprep.subr.mxu0 0.0
      %2632 = vmatpush2.msra.mxu0 0.0
      %2633 = vmatprep.subr.mxu0 0.0
      %2634 = vmatpush2.msra.mxu0 0.0
      %2635 = vmatprep.mubr.f32.mxu0 0.0
      %2636 = vmatmul.mubr.f32.gmra.mxu0 %v2267
      %v2637 = vpop.f32.mrf.mxu0
      %v2638 = vadd.f32 0.0, %v2637
      %v2639 = vpop.f32.mrf.mxu0
      %2640 = vdwg.mxu0
      %v2641 = vadd.f32 %v2225, %v2354
      %v2642 = vadd.f32 %v2226, %v2356
      %v2643 = vadd.f32 %v2227, %v2425
      %v2644 = vadd.f32 %v2228, %v2427
      %v2645 = vadd.f32 %v2229, %v2496
      %v2646 = vadd.f32 %v2230, %v2498
      %v2647 = vadd.f32 %v2231, %v2567
      %v2648 = vadd.f32 %v2232, %v2569
      %v2649 = vadd.f32 %v2233, %v2638
      %s2650 = scalar_lea.vmem %s1, 48
      %v2651 = vld [vmem:[%s2650] sm:$0xff]
      %2652 = vrot.lane.b32.xlu0 %v171, 91
      %v2653 = vpop.permute.xlu0 %2652
      %2654 = vrot.lane.b32.xlu0 %v188, 91
      %v2655 = vpop.permute.xlu0 %2654
      %2656 = vrot.lane.b32.xlu0 %v172, 91
      %v2657 = vpop.permute.xlu0 %2656
      %2658 = vrot.lane.b32.xlu0 %v189, 91
      %v2659 = vpop.permute.xlu0 %2658
      %2660 = vrot.lane.b32.xlu0 %v173, 91
      %v2661 = vpop.permute.xlu0 %2660
      %2662 = vrot.lane.b32.xlu0 %v190, 91
      %v2663 = vpop.permute.xlu0 %2662
      %2664 = vrot.lane.b32.xlu0 %v174, 91
      %v2665 = vpop.permute.xlu0 %2664
      %2666 = vrot.lane.b32.xlu0 %v191, 91
      %v2667 = vpop.permute.xlu0 %2666
      %2668 = vrot.lane.b32.xlu0 %v175, 91
      %v2669 = vpop.permute.xlu0 %2668
      %2670 = vrot.lane.b32.xlu0 %v1819, 91
      %v2671 = vpop.permute.xlu0 %2670
      %vm2672 = vcmask 744448
      %v2673 = vsel %vm2672, %v2653, %v2655
      %v2674 = vsel %vm2672, %v2655, %v2657
      %v2675 = vsel %vm2672, %v2657, %v2659
      %v2676 = vsel %vm2672, %v2659, %v2661
      %v2677 = vsel %vm2672, %v2661, %v2663
      %v2678 = vsel %vm2672, %v2663, %v2665
      %v2679 = vsel %vm2672, %v2665, %v2667
      %v2680 = vsel %vm2672, %v2667, %v2669
      %v2681 = vsel %vm2672, %v2669, %v2671
      %v2683 = vsel %vm192, %v2651, 0
      %v2685 = vsel %vm196, %v2673, 0
      %v2687 = vsel %vm196, %v2674, 0
      %v2689 = vsel %vm196, %v2675, 0
      %v2691 = vsel %vm196, %v2676, 0
      %v2693 = vsel %vm196, %v2677, 0
      %v2695 = vsel %vm196, %v2678, 0
      %v2697 = vsel %vm196, %v2679, 0
      %v2699 = vsel %vm196, %v2680, 0
      %v2701 = vsel %vm196, %v2681, 0
      %2703 = vmatprep.subr.mxu0 0.0
      %2704 = vmatpush1.msra.mxu0 0.0
      %2705 = vmatprep.subr.mxu0 0.0
      %2706 = vmatpush1.msra.mxu0 0.0
      %2707 = vmatprep.subr.mxu0 0.0
      %2708 = vmatpush1.msra.mxu0 0.0
      %2709 = vmatprep.subr.mxu0 0.0
      %2710 = vmatpush1.msra.mxu0 0.0
      %2711 = vmatprep.subr.mxu0 0.0
      %2712 = vmatpush1.msra.mxu0 0.0
      %2713 = vmatprep.subr.mxu0 0.0
      %2714 = vmatpush1.msra.mxu0 0.0
      %2715 = vmatprep.subr.mxu0 0.0
      %2716 = vmatpush1.msra.mxu0 0.0
      %2717 = vmatprep.subr.mxu0 0.0
      %2718 = vmatpush1.msra.mxu0 0.0
      %2719 = vmatprep.subr.mxu0 0.0
      %2720 = vmatpush1.msra.mxu0 0.0
      %2721 = vmatprep.subr.mxu0 0.0
      %2722 = vmatpush1.msra.mxu0 0.0
      %2723 = vmatprep.subr.mxu0 0.0
      %2724 = vmatpush1.msra.mxu0 0.0
      %2725 = vmatprep.subr.mxu0 0.0
      %2726 = vmatpush1.msra.mxu0 0.0
      %2727 = vmatprep.subr.mxu0 0.0
      %2728 = vmatpush1.msra.mxu0 0.0
      %2729 = vmatprep.subr.mxu0 0.0
      %2730 = vmatpush1.msra.mxu0 0.0
      %2731 = vmatprep.subr.mxu0 0.0
      %2732 = vmatpush1.msra.mxu0 0.0
      %2733 = vmatprep.subr.mxu0 %v2687
      %2734 = vmatpush1.msra.mxu0 %v2685
      %2735 = vmatprep.subr.mxu0 0.0
      %2736 = vmatpush2.msra.mxu0 0.0
      %2737 = vmatprep.subr.mxu0 0.0
      %2738 = vmatpush2.msra.mxu0 0.0
      %2739 = vmatprep.subr.mxu0 0.0
      %2740 = vmatpush2.msra.mxu0 0.0
      %2741 = vmatprep.subr.mxu0 0.0
      %2742 = vmatpush2.msra.mxu0 0.0
      %2743 = vmatprep.subr.mxu0 0.0
      %2744 = vmatpush2.msra.mxu0 0.0
      %2745 = vmatprep.subr.mxu0 0.0
      %2746 = vmatpush2.msra.mxu0 0.0
      %2747 = vmatprep.subr.mxu0 0.0
      %2748 = vmatpush2.msra.mxu0 0.0
      %2749 = vmatprep.subr.mxu0 0.0
      %2750 = vmatpush2.msra.mxu0 0.0
      %2751 = vmatprep.subr.mxu0 0.0
      %2752 = vmatpush2.msra.mxu0 0.0
      %2753 = vmatprep.subr.mxu0 0.0
      %2754 = vmatpush2.msra.mxu0 0.0
      %2755 = vmatprep.subr.mxu0 0.0
      %2756 = vmatpush2.msra.mxu0 0.0
      %2757 = vmatprep.subr.mxu0 0.0
      %2758 = vmatpush2.msra.mxu0 0.0
      %2759 = vmatprep.subr.mxu0 0.0
      %2760 = vmatpush2.msra.mxu0 0.0
      %2761 = vmatprep.subr.mxu0 0.0
      %2762 = vmatpush2.msra.mxu0 0.0
      %2763 = vmatprep.subr.mxu0 0.0
      %2764 = vmatpush2.msra.mxu0 0.0
      %2765 = vmatprep.subr.mxu0 0.0
      %2766 = vmatpush2.msra.mxu0 0.0
      %2767 = vmatprep.mubr.f32.mxu0 0.0
      %2768 = vmatmul.mubr.f32.gmra.mxu0 %v2683
      %v2769 = vpop.f32.mrf.mxu0
      %v2770 = vadd.f32 0.0, %v2769
      %v2771 = vpop.f32.mrf.mxu0
      %v2772 = vadd.f32 0.0, %v2771
      %2773 = vdwg.mxu0
      %2774 = vmatprep.subr.mxu0 0.0
      %2775 = vmatpush1.msra.mxu0 0.0
      %2776 = vmatprep.subr.mxu0 0.0
      %2777 = vmatpush1.msra.mxu0 0.0
      %2778 = vmatprep.subr.mxu0 0.0
      %2779 = vmatpush1.msra.mxu0 0.0
      %2780 = vmatprep.subr.mxu0 0.0
      %2781 = vmatpush1.msra.mxu0 0.0
      %2782 = vmatprep.subr.mxu0 0.0
      %2783 = vmatpush1.msra.mxu0 0.0
      %2784 = vmatprep.subr.mxu0 0.0
      %2785 = vmatpush1.msra.mxu0 0.0
      %2786 = vmatprep.subr.mxu0 0.0
      %2787 = vmatpush1.msra.mxu0 0.0
      %2788 = vmatprep.subr.mxu0 0.0
      %2789 = vmatpush1.msra.mxu0 0.0
      %2790 = vmatprep.subr.mxu0 0.0
      %2791 = vmatpush1.msra.mxu0 0.0
      %2792 = vmatprep.subr.mxu0 0.0
      %2793 = vmatpush1.msra.mxu0 0.0
      %2794 = vmatprep.subr.mxu0 0.0
      %2795 = vmatpush1.msra.mxu0 0.0
      %2796 = vmatprep.subr.mxu0 0.0
      %2797 = vmatpush1.msra.mxu0 0.0
      %2798 = vmatprep.subr.mxu0 0.0
      %2799 = vmatpush1.msra.mxu0 0.0
      %2800 = vmatprep.subr.mxu0 0.0
      %2801 = vmatpush1.msra.mxu0 0.0
      %2802 = vmatprep.subr.mxu0 0.0
      %2803 = vmatpush1.msra.mxu0 0.0
      %2804 = vmatprep.subr.mxu0 %v2691
      %2805 = vmatpush1.msra.mxu0 %v2689
      %2806 = vmatprep.subr.mxu0 0.0
      %2807 = vmatpush2.msra.mxu0 0.0
      %2808 = vmatprep.subr.mxu0 0.0
      %2809 = vmatpush2.msra.mxu0 0.0
      %2810 = vmatprep.subr.mxu0 0.0
      %2811 = vmatpush2.msra.mxu0 0.0
      %2812 = vmatprep.subr.mxu0 0.0
      %2813 = vmatpush2.msra.mxu0 0.0
      %2814 = vmatprep.subr.mxu0 0.0
      %2815 = vmatpush2.msra.mxu0 0.0
      %2816 = vmatprep.subr.mxu0 0.0
      %2817 = vmatpush2.msra.mxu0 0.0
      %2818 = vmatprep.subr.mxu0 0.0
      %2819 = vmatpush2.msra.mxu0 0.0
      %2820 = vmatprep.subr.mxu0 0.0
      %2821 = vmatpush2.msra.mxu0 0.0
      %2822 = vmatprep.subr.mxu0 0.0
      %2823 = vmatpush2.msra.mxu0 0.0
      %2824 = vmatprep.subr.mxu0 0.0
      %2825 = vmatpush2.msra.mxu0 0.0
      %2826 = vmatprep.subr.mxu0 0.0
      %2827 = vmatpush2.msra.mxu0 0.0
      %2828 = vmatprep.subr.mxu0 0.0
      %2829 = vmatpush2.msra.mxu0 0.0
      %2830 = vmatprep.subr.mxu0 0.0
      %2831 = vmatpush2.msra.mxu0 0.0
      %2832 = vmatprep.subr.mxu0 0.0
      %2833 = vmatpush2.msra.mxu0 0.0
      %2834 = vmatprep.subr.mxu0 0.0
      %2835 = vmatpush2.msra.mxu0 0.0
      %2836 = vmatprep.subr.mxu0 0.0
      %2837 = vmatpush2.msra.mxu0 0.0
      %2838 = vmatprep.mubr.f32.mxu0 0.0
      %2839 = vmatmul.mubr.f32.gmra.mxu0 %v2683
      %v2840 = vpop.f32.mrf.mxu0
      %v2841 = vadd.f32 0.0, %v2840
      %v2842 = vpop.f32.mrf.mxu0
      %v2843 = vadd.f32 0.0, %v2842
      %2844 = vdwg.mxu0
      %2845 = vmatprep.subr.mxu0 0.0
      %2846 = vmatpush1.msra.mxu0 0.0
      %2847 = vmatprep.subr.mxu0 0.0
      %2848 = vmatpush1.msra.mxu0 0.0
      %2849 = vmatprep.subr.mxu0 0.0
      %2850 = vmatpush1.msra.mxu0 0.0
      %2851 = vmatprep.subr.mxu0 0.0
      %2852 = vmatpush1.msra.mxu0 0.0
      %2853 = vmatprep.subr.mxu0 0.0
      %2854 = vmatpush1.msra.mxu0 0.0
      %2855 = vmatprep.subr.mxu0 0.0
      %2856 = vmatpush1.msra.mxu0 0.0
      %2857 = vmatprep.subr.mxu0 0.0
      %2858 = vmatpush1.msra.mxu0 0.0
      %2859 = vmatprep.subr.mxu0 0.0
      %2860 = vmatpush1.msra.mxu0 0.0
      %2861 = vmatprep.subr.mxu0 0.0
      %2862 = vmatpush1.msra.mxu0 0.0
      %2863 = vmatprep.subr.mxu0 0.0
      %2864 = vmatpush1.msra.mxu0 0.0
      %2865 = vmatprep.subr.mxu0 0.0
      %2866 = vmatpush1.msra.mxu0 0.0
      %2867 = vmatprep.subr.mxu0 0.0
      %2868 = vmatpush1.msra.mxu0 0.0
      %2869 = vmatprep.subr.mxu0 0.0
      %2870 = vmatpush1.msra.mxu0 0.0
      %2871 = vmatprep.subr.mxu0 0.0
      %2872 = vmatpush1.msra.mxu0 0.0
      %2873 = vmatprep.subr.mxu0 0.0
      %2874 = vmatpush1.msra.mxu0 0.0
      %2875 = vmatprep.subr.mxu0 %v2695
      %2876 = vmatpush1.msra.mxu0 %v2693
      %2877 = vmatprep.subr.mxu0 0.0
      %2878 = vmatpush2.msra.mxu0 0.0
      %2879 = vmatprep.subr.mxu0 0.0
      %2880 = vmatpush2.msra.mxu0 0.0
      %2881 = vmatprep.subr.mxu0 0.0
      %2882 = vmatpush2.msra.mxu0 0.0
      %2883 = vmatprep.subr.mxu0 0.0
      %2884 = vmatpush2.msra.mxu0 0.0
      %2885 = vmatprep.subr.mxu0 0.0
      %2886 = vmatpush2.msra.mxu0 0.0
      %2887 = vmatprep.subr.mxu0 0.0
      %2888 = vmatpush2.msra.mxu0 0.0
      %2889 = vmatprep.subr.mxu0 0.0
      %2890 = vmatpush2.msra.mxu0 0.0
      %2891 = vmatprep.subr.mxu0 0.0
      %2892 = vmatpush2.msra.mxu0 0.0
      %2893 = vmatprep.subr.mxu0 0.0
      %2894 = vmatpush2.msra.mxu0 0.0
      %2895 = vmatprep.subr.mxu0 0.0
      %2896 = vmatpush2.msra.mxu0 0.0
      %2897 = vmatprep.subr.mxu0 0.0
      %2898 = vmatpush2.msra.mxu0 0.0
      %2899 = vmatprep.subr.mxu0 0.0
      %2900 = vmatpush2.msra.mxu0 0.0
      %2901 = vmatprep.subr.mxu0 0.0
      %2902 = vmatpush2.msra.mxu0 0.0
      %2903 = vmatprep.subr.mxu0 0.0
      %2904 = vmatpush2.msra.mxu0 0.0
      %2905 = vmatprep.subr.mxu0 0.0
      %2906 = vmatpush2.msra.mxu0 0.0
      %2907 = vmatprep.subr.mxu0 0.0
      %2908 = vmatpush2.msra.mxu0 0.0
      %2909 = vmatprep.mubr.f32.mxu0 0.0
      %2910 = vmatmul.mubr.f32.gmra.mxu0 %v2683
      %v2911 = vpop.f32.mrf.mxu0
      %v2912 = vadd.f32 0.0, %v2911
      %v2913 = vpop.f32.mrf.mxu0
      %v2914 = vadd.f32 0.0, %v2913
      %2915 = vdwg.mxu0
      %2916 = vmatprep.subr.mxu0 0.0
      %2917 = vmatpush1.msra.mxu0 0.0
      %2918 = vmatprep.subr.mxu0 0.0
      %2919 = vmatpush1.msra.mxu0 0.0
      %2920 = vmatprep.subr.mxu0 0.0
      %2921 = vmatpush1.msra.mxu0 0.0
      %2922 = vmatprep.subr.mxu0 0.0
      %2923 = vmatpush1.msra.mxu0 0.0
      %2924 = vmatprep.subr.mxu0 0.0
      %2925 = vmatpush1.msra.mxu0 0.0
      %2926 = vmatprep.subr.mxu0 0.0
      %2927 = vmatpush1.msra.mxu0 0.0
      %2928 = vmatprep.subr.mxu0 0.0
      %2929 = vmatpush1.msra.mxu0 0.0
      %2930 = vmatprep.subr.mxu0 0.0
      %2931 = vmatpush1.msra.mxu0 0.0
      %2932 = vmatprep.subr.mxu0 0.0
      %2933 = vmatpush1.msra.mxu0 0.0
      %2934 = vmatprep.subr.mxu0 0.0
      %2935 = vmatpush1.msra.mxu0 0.0
      %2936 = vmatprep.subr.mxu0 0.0
      %2937 = vmatpush1.msra.mxu0 0.0
      %2938 = vmatprep.subr.mxu0 0.0
      %2939 = vmatpush1.msra.mxu0 0.0
      %2940 = vmatprep.subr.mxu0 0.0
      %2941 = vmatpush1.msra.mxu0 0.0
      %2942 = vmatprep.subr.mxu0 0.0
      %2943 = vmatpush1.msra.mxu0 0.0
      %2944 = vmatprep.subr.mxu0 0.0
      %2945 = vmatpush1.msra.mxu0 0.0
      %2946 = vmatprep.subr.mxu0 %v2699
      %2947 = vmatpush1.msra.mxu0 %v2697
      %2948 = vmatprep.subr.mxu0 0.0
      %2949 = vmatpush2.msra.mxu0 0.0
      %2950 = vmatprep.subr.mxu0 0.0
      %2951 = vmatpush2.msra.mxu0 0.0
      %2952 = vmatprep.subr.mxu0 0.0
      %2953 = vmatpush2.msra.mxu0 0.0
      %2954 = vmatprep.subr.mxu0 0.0
      %2955 = vmatpush2.msra.mxu0 0.0
      %2956 = vmatprep.subr.mxu0 0.0
      %2957 = vmatpush2.msra.mxu0 0.0
      %2958 = vmatprep.subr.mxu0 0.0
      %2959 = vmatpush2.msra.mxu0 0.0
      %2960 = vmatprep.subr.mxu0 0.0
      %2961 = vmatpush2.msra.mxu0 0.0
      %2962 = vmatprep.subr.mxu0 0.0
      %2963 = vmatpush2.msra.mxu0 0.0
      %2964 = vmatprep.subr.mxu0 0.0
      %2965 = vmatpush2.msra.mxu0 0.0
      %2966 = vmatprep.subr.mxu0 0.0
      %2967 = vmatpush2.msra.mxu0 0.0
      %2968 = vmatprep.subr.mxu0 0.0
      %2969 = vmatpush2.msra.mxu0 0.0
      %2970 = vmatprep.subr.mxu0 0.0
      %2971 = vmatpush2.msra.mxu0 0.0
      %2972 = vmatprep.subr.mxu0 0.0
      %2973 = vmatpush2.msra.mxu0 0.0
      %2974 = vmatprep.subr.mxu0 0.0
      %2975 = vmatpush2.msra.mxu0 0.0
      %2976 = vmatprep.subr.mxu0 0.0
      %2977 = vmatpush2.msra.mxu0 0.0
      %2978 = vmatprep.subr.mxu0 0.0
      %2979 = vmatpush2.msra.mxu0 0.0
      %2980 = vmatprep.mubr.f32.mxu0 0.0
      %2981 = vmatmul.mubr.f32.gmra.mxu0 %v2683
      %v2982 = vpop.f32.mrf.mxu0
      %v2983 = vadd.f32 0.0, %v2982
      %v2984 = vpop.f32.mrf.mxu0
      %v2985 = vadd.f32 0.0, %v2984
      %2986 = vdwg.mxu0
      %2987 = vmatprep.subr.mxu0 0.0
      %2988 = vmatpush1.msra.mxu0 0.0
      %2989 = vmatprep.subr.mxu0 0.0
      %2990 = vmatpush1.msra.mxu0 0.0
      %2991 = vmatprep.subr.mxu0 0.0
      %2992 = vmatpush1.msra.mxu0 0.0
      %2993 = vmatprep.subr.mxu0 0.0
      %2994 = vmatpush1.msra.mxu0 0.0
      %2995 = vmatprep.subr.mxu0 0.0
      %2996 = vmatpush1.msra.mxu0 0.0
      %2997 = vmatprep.subr.mxu0 0.0
      %2998 = vmatpush1.msra.mxu0 0.0
      %2999 = vmatprep.subr.mxu0 0.0
      %3000 = vmatpush1.msra.mxu0 0.0
      %3001 = vmatprep.subr.mxu0 0.0
      %3002 = vmatpush1.msra.mxu0 0.0
      %3003 = vmatprep.subr.mxu0 0.0
      %3004 = vmatpush1.msra.mxu0 0.0
      %3005 = vmatprep.subr.mxu0 0.0
      %3006 = vmatpush1.msra.mxu0 0.0
      %3007 = vmatprep.subr.mxu0 0.0
      %3008 = vmatpush1.msra.mxu0 0.0
      %3009 = vmatprep.subr.mxu0 0.0
      %3010 = vmatpush1.msra.mxu0 0.0
      %3011 = vmatprep.subr.mxu0 0.0
      %3012 = vmatpush1.msra.mxu0 0.0
      %3013 = vmatprep.subr.mxu0 0.0
      %3014 = vmatpush1.msra.mxu0 0.0
      %3015 = vmatprep.subr.mxu0 0.0
      %3016 = vmatpush1.msra.mxu0 0.0
      %3017 = vmatprep.subr.mxu0 0.0
      %3018 = vmatpush1.msra.mxu0 %v2701
      %3019 = vmatprep.subr.mxu0 0.0
      %3020 = vmatpush2.msra.mxu0 0.0
      %3021 = vmatprep.subr.mxu0 0.0
      %3022 = vmatpush2.msra.mxu0 0.0
      %3023 = vmatprep.subr.mxu0 0.0
      %3024 = vmatpush2.msra.mxu0 0.0
      %3025 = vmatprep.subr.mxu0 0.0
      %3026 = vmatpush2.msra.mxu0 0.0
      %3027 = vmatprep.subr.mxu0 0.0
      %3028 = vmatpush2.msra.mxu0 0.0
      %3029 = vmatprep.subr.mxu0 0.0
      %3030 = vmatpush2.msra.mxu0 0.0
      %3031 = vmatprep.subr.mxu0 0.0
      %3032 = vmatpush2.msra.mxu0 0.0
      %3033 = vmatprep.subr.mxu0 0.0
      %3034 = vmatpush2.msra.mxu0 0.0
      %3035 = vmatprep.subr.mxu0 0.0
      %3036 = vmatpush2.msra.mxu0 0.0
      %3037 = vmatprep.subr.mxu0 0.0
      %3038 = vmatpush2.msra.mxu0 0.0
      %3039 = vmatprep.subr.mxu0 0.0
      %3040 = vmatpush2.msra.mxu0 0.0
      %3041 = vmatprep.subr.mxu0 0.0
      %3042 = vmatpush2.msra.mxu0 0.0
      %3043 = vmatprep.subr.mxu0 0.0
      %3044 = vmatpush2.msra.mxu0 0.0
      %3045 = vmatprep.subr.mxu0 0.0
      %3046 = vmatpush2.msra.mxu0 0.0
      %3047 = vmatprep.subr.mxu0 0.0
      %3048 = vmatpush2.msra.mxu0 0.0
      %3049 = vmatprep.subr.mxu0 0.0
      %3050 = vmatpush2.msra.mxu0 0.0
      %3051 = vmatprep.mubr.f32.mxu0 0.0
      %3052 = vmatmul.mubr.f32.gmra.mxu0 %v2683
      %v3053 = vpop.f32.mrf.mxu0
      %v3054 = vadd.f32 0.0, %v3053
      %v3055 = vpop.f32.mrf.mxu0
      %3056 = vdwg.mxu0
      %v3057 = vadd.f32 %v2641, %v2770
      %v3058 = vadd.f32 %v2642, %v2772
      %v3059 = vadd.f32 %v2643, %v2841
      %v3060 = vadd.f32 %v2644, %v2843
      %v3061 = vadd.f32 %v2645, %v2912
      %v3062 = vadd.f32 %v2646, %v2914
      %v3063 = vadd.f32 %v2647, %v2983
      %v3064 = vadd.f32 %v2648, %v2985
      %v3065 = vadd.f32 %v2649, %v3054
      %s3066 = scalar_lea.vmem %s1, 56
      %v3067 = vld [vmem:[%s3066] sm:$0xff]
      %3068 = vrot.lane.b32.xlu0 %v171, 90
      %v3069 = vpop.permute.xlu0 %3068
      %3070 = vrot.lane.b32.xlu0 %v188, 90
      %v3071 = vpop.permute.xlu0 %3070
      %3072 = vrot.lane.b32.xlu0 %v172, 90
      %v3073 = vpop.permute.xlu0 %3072
      %3074 = vrot.lane.b32.xlu0 %v189, 90
      %v3075 = vpop.permute.xlu0 %3074
      %3076 = vrot.lane.b32.xlu0 %v173, 90
      %v3077 = vpop.permute.xlu0 %3076
      %3078 = vrot.lane.b32.xlu0 %v190, 90
      %v3079 = vpop.permute.xlu0 %3078
      %3080 = vrot.lane.b32.xlu0 %v174, 90
      %v3081 = vpop.permute.xlu0 %3080
      %3082 = vrot.lane.b32.xlu0 %v191, 90
      %v3083 = vpop.permute.xlu0 %3082
      %3084 = vrot.lane.b32.xlu0 %v175, 90
      %v3085 = vpop.permute.xlu0 %3084
      %3086 = vrot.lane.b32.xlu0 %v1819, 90
      %v3087 = vpop.permute.xlu0 %3086
      %vm3088 = vcmask 736256
      %v3089 = vsel %vm3088, %v3069, %v3071
      %v3090 = vsel %vm3088, %v3071, %v3073
      %v3091 = vsel %vm3088, %v3073, %v3075
      %v3092 = vsel %vm3088, %v3075, %v3077
      %v3093 = vsel %vm3088, %v3077, %v3079
      %v3094 = vsel %vm3088, %v3079, %v3081
      %v3095 = vsel %vm3088, %v3081, %v3083
      %v3096 = vsel %vm3088, %v3083, %v3085
      %v3097 = vsel %vm3088, %v3085, %v3087
      %v3099 = vsel %vm192, %v3067, 0
      %v3101 = vsel %vm196, %v3089, 0
      %v3103 = vsel %vm196, %v3090, 0
      %v3105 = vsel %vm196, %v3091, 0
      %v3107 = vsel %vm196, %v3092, 0
      %v3109 = vsel %vm196, %v3093, 0
      %v3111 = vsel %vm196, %v3094, 0
      %v3113 = vsel %vm196, %v3095, 0
      %v3115 = vsel %vm196, %v3096, 0
      %v3117 = vsel %vm196, %v3097, 0
      %3119 = vmatprep.subr.mxu0 0.0
      %3120 = vmatpush1.msra.mxu0 0.0
      %3121 = vmatprep.subr.mxu0 0.0
      %3122 = vmatpush1.msra.mxu0 0.0
      %3123 = vmatprep.subr.mxu0 0.0
      %3124 = vmatpush1.msra.mxu0 0.0
      %3125 = vmatprep.subr.mxu0 0.0
      %3126 = vmatpush1.msra.mxu0 0.0
      %3127 = vmatprep.subr.mxu0 0.0
      %3128 = vmatpush1.msra.mxu0 0.0
      %3129 = vmatprep.subr.mxu0 0.0
      %3130 = vmatpush1.msra.mxu0 0.0
      %3131 = vmatprep.subr.mxu0 0.0
      %3132 = vmatpush1.msra.mxu0 0.0
      %3133 = vmatprep.subr.mxu0 0.0
      %3134 = vmatpush1.msra.mxu0 0.0
      %3135 = vmatprep.subr.mxu0 0.0
      %3136 = vmatpush1.msra.mxu0 0.0
      %3137 = vmatprep.subr.mxu0 0.0
      %3138 = vmatpush1.msra.mxu0 0.0
      %3139 = vmatprep.subr.mxu0 0.0
      %3140 = vmatpush1.msra.mxu0 0.0
      %3141 = vmatprep.subr.mxu0 0.0
      %3142 = vmatpush1.msra.mxu0 0.0
      %3143 = vmatprep.subr.mxu0 0.0
      %3144 = vmatpush1.msra.mxu0 0.0
      %3145 = vmatprep.subr.mxu0 0.0
      %3146 = vmatpush1.msra.mxu0 0.0
      %3147 = vmatprep.subr.mxu0 0.0
      %3148 = vmatpush1.msra.mxu0 0.0
      %3149 = vmatprep.subr.mxu0 %v3103
      %3150 = vmatpush1.msra.mxu0 %v3101
      %3151 = vmatprep.subr.mxu0 0.0
      %3152 = vmatpush2.msra.mxu0 0.0
      %3153 = vmatprep.subr.mxu0 0.0
      %3154 = vmatpush2.msra.mxu0 0.0
      %3155 = vmatprep.subr.mxu0 0.0
      %3156 = vmatpush2.msra.mxu0 0.0
      %3157 = vmatprep.subr.mxu0 0.0
      %3158 = vmatpush2.msra.mxu0 0.0
      %3159 = vmatprep.subr.mxu0 0.0
      %3160 = vmatpush2.msra.mxu0 0.0
      %3161 = vmatprep.subr.mxu0 0.0
      %3162 = vmatpush2.msra.mxu0 0.0
      %3163 = vmatprep.subr.mxu0 0.0
      %3164 = vmatpush2.msra.mxu0 0.0
      %3165 = vmatprep.subr.mxu0 0.0
      %3166 = vmatpush2.msra.mxu0 0.0
      %3167 = vmatprep.subr.mxu0 0.0
      %3168 = vmatpush2.msra.mxu0 0.0
      %3169 = vmatprep.subr.mxu0 0.0
      %3170 = vmatpush2.msra.mxu0 0.0
      %3171 = vmatprep.subr.mxu0 0.0
      %3172 = vmatpush2.msra.mxu0 0.0
      %3173 = vmatprep.subr.mxu0 0.0
      %3174 = vmatpush2.msra.mxu0 0.0
      %3175 = vmatprep.subr.mxu0 0.0
      %3176 = vmatpush2.msra.mxu0 0.0
      %3177 = vmatprep.subr.mxu0 0.0
      %3178 = vmatpush2.msra.mxu0 0.0
      %3179 = vmatprep.subr.mxu0 0.0
      %3180 = vmatpush2.msra.mxu0 0.0
      %3181 = vmatprep.subr.mxu0 0.0
      %3182 = vmatpush2.msra.mxu0 0.0
      %3183 = vmatprep.mubr.f32.mxu0 0.0
      %3184 = vmatmul.mubr.f32.gmra.mxu0 %v3099
      %v3185 = vpop.f32.mrf.mxu0
      %v3186 = vadd.f32 0.0, %v3185
      %v3187 = vpop.f32.mrf.mxu0
      %v3188 = vadd.f32 0.0, %v3187
      %3189 = vdwg.mxu0
      %3190 = vmatprep.subr.mxu0 0.0
      %3191 = vmatpush1.msra.mxu0 0.0
      %3192 = vmatprep.subr.mxu0 0.0
      %3193 = vmatpush1.msra.mxu0 0.0
      %3194 = vmatprep.subr.mxu0 0.0
      %3195 = vmatpush1.msra.mxu0 0.0
      %3196 = vmatprep.subr.mxu0 0.0
      %3197 = vmatpush1.msra.mxu0 0.0
      %3198 = vmatprep.subr.mxu0 0.0
      %3199 = vmatpush1.msra.mxu0 0.0
      %3200 = vmatprep.subr.mxu0 0.0
      %3201 = vmatpush1.msra.mxu0 0.0
      %3202 = vmatprep.subr.mxu0 0.0
      %3203 = vmatpush1.msra.mxu0 0.0
      %3204 = vmatprep.subr.mxu0 0.0
      %3205 = vmatpush1.msra.mxu0 0.0
      %3206 = vmatprep.subr.mxu0 0.0
      %3207 = vmatpush1.msra.mxu0 0.0
      %3208 = vmatprep.subr.mxu0 0.0
      %3209 = vmatpush1.msra.mxu0 0.0
      %3210 = vmatprep.subr.mxu0 0.0
      %3211 = vmatpush1.msra.mxu0 0.0
      %3212 = vmatprep.subr.mxu0 0.0
      %3213 = vmatpush1.msra.mxu0 0.0
      %3214 = vmatprep.subr.mxu0 0.0
      %3215 = vmatpush1.msra.mxu0 0.0
      %3216 = vmatprep.subr.mxu0 0.0
      %3217 = vmatpush1.msra.mxu0 0.0
      %3218 = vmatprep.subr.mxu0 0.0
      %3219 = vmatpush1.msra.mxu0 0.0
      %3220 = vmatprep.subr.mxu0 %v3107
      %3221 = vmatpush1.msra.mxu0 %v3105
      %3222 = vmatprep.subr.mxu0 0.0
      %3223 = vmatpush2.msra.mxu0 0.0
      %3224 = vmatprep.subr.mxu0 0.0
      %3225 = vmatpush2.msra.mxu0 0.0
      %3226 = vmatprep.subr.mxu0 0.0
      %3227 = vmatpush2.msra.mxu0 0.0
      %3228 = vmatprep.subr.mxu0 0.0
      %3229 = vmatpush2.msra.mxu0 0.0
      %3230 = vmatprep.subr.mxu0 0.0
      %3231 = vmatpush2.msra.mxu0 0.0
      %3232 = vmatprep.subr.mxu0 0.0
      %3233 = vmatpush2.msra.mxu0 0.0
      %3234 = vmatprep.subr.mxu0 0.0
      %3235 = vmatpush2.msra.mxu0 0.0
      %3236 = vmatprep.subr.mxu0 0.0
      %3237 = vmatpush2.msra.mxu0 0.0
      %3238 = vmatprep.subr.mxu0 0.0
      %3239 = vmatpush2.msra.mxu0 0.0
      %3240 = vmatprep.subr.mxu0 0.0
      %3241 = vmatpush2.msra.mxu0 0.0
      %3242 = vmatprep.subr.mxu0 0.0
      %3243 = vmatpush2.msra.mxu0 0.0
      %3244 = vmatprep.subr.mxu0 0.0
      %3245 = vmatpush2.msra.mxu0 0.0
      %3246 = vmatprep.subr.mxu0 0.0
      %3247 = vmatpush2.msra.mxu0 0.0
      %3248 = vmatprep.subr.mxu0 0.0
      %3249 = vmatpush2.msra.mxu0 0.0
      %3250 = vmatprep.subr.mxu0 0.0
      %3251 = vmatpush2.msra.mxu0 0.0
      %3252 = vmatprep.subr.mxu0 0.0
      %3253 = vmatpush2.msra.mxu0 0.0
      %3254 = vmatprep.mubr.f32.mxu0 0.0
      %3255 = vmatmul.mubr.f32.gmra.mxu0 %v3099
      %v3256 = vpop.f32.mrf.mxu0
      %v3257 = vadd.f32 0.0, %v3256
      %v3258 = vpop.f32.mrf.mxu0
      %v3259 = vadd.f32 0.0, %v3258
      %3260 = vdwg.mxu0
      %3261 = vmatprep.subr.mxu0 0.0
      %3262 = vmatpush1.msra.mxu0 0.0
      %3263 = vmatprep.subr.mxu0 0.0
      %3264 = vmatpush1.msra.mxu0 0.0
      %3265 = vmatprep.subr.mxu0 0.0
      %3266 = vmatpush1.msra.mxu0 0.0
      %3267 = vmatprep.subr.mxu0 0.0
      %3268 = vmatpush1.msra.mxu0 0.0
      %3269 = vmatprep.subr.mxu0 0.0
      %3270 = vmatpush1.msra.mxu0 0.0
      %3271 = vmatprep.subr.mxu0 0.0
      %3272 = vmatpush1.msra.mxu0 0.0
      %3273 = vmatprep.subr.mxu0 0.0
      %3274 = vmatpush1.msra.mxu0 0.0
      %3275 = vmatprep.subr.mxu0 0.0
      %3276 = vmatpush1.msra.mxu0 0.0
      %3277 = vmatprep.subr.mxu0 0.0
      %3278 = vmatpush1.msra.mxu0 0.0
      %3279 = vmatprep.subr.mxu0 0.0
      %3280 = vmatpush1.msra.mxu0 0.0
      %3281 = vmatprep.subr.mxu0 0.0
      %3282 = vmatpush1.msra.mxu0 0.0
      %3283 = vmatprep.subr.mxu0 0.0
      %3284 = vmatpush1.msra.mxu0 0.0
      %3285 = vmatprep.subr.mxu0 0.0
      %3286 = vmatpush1.msra.mxu0 0.0
      %3287 = vmatprep.subr.mxu0 0.0
      %3288 = vmatpush1.msra.mxu0 0.0
      %3289 = vmatprep.subr.mxu0 0.0
      %3290 = vmatpush1.msra.mxu0 0.0
      %3291 = vmatprep.subr.mxu0 %v3111
      %3292 = vmatpush1.msra.mxu0 %v3109
      %3293 = vmatprep.subr.mxu0 0.0
      %3294 = vmatpush2.msra.mxu0 0.0
      %3295 = vmatprep.subr.mxu0 0.0
      %3296 = vmatpush2.msra.mxu0 0.0
      %3297 = vmatprep.subr.mxu0 0.0
      %3298 = vmatpush2.msra.mxu0 0.0
      %3299 = vmatprep.subr.mxu0 0.0
      %3300 = vmatpush2.msra.mxu0 0.0
      %3301 = vmatprep.subr.mxu0 0.0
      %3302 = vmatpush2.msra.mxu0 0.0
      %3303 = vmatprep.subr.mxu0 0.0
      %3304 = vmatpush2.msra.mxu0 0.0
      %3305 = vmatprep.subr.mxu0 0.0
      %3306 = vmatpush2.msra.mxu0 0.0
      %3307 = vmatprep.subr.mxu0 0.0
      %3308 = vmatpush2.msra.mxu0 0.0
      %3309 = vmatprep.subr.mxu0 0.0
      %3310 = vmatpush2.msra.mxu0 0.0
      %3311 = vmatprep.subr.mxu0 0.0
      %3312 = vmatpush2.msra.mxu0 0.0
      %3313 = vmatprep.subr.mxu0 0.0
      %3314 = vmatpush2.msra.mxu0 0.0
      %3315 = vmatprep.subr.mxu0 0.0
      %3316 = vmatpush2.msra.mxu0 0.0
      %3317 = vmatprep.subr.mxu0 0.0
      %3318 = vmatpush2.msra.mxu0 0.0
      %3319 = vmatprep.subr.mxu0 0.0
      %3320 = vmatpush2.msra.mxu0 0.0
      %3321 = vmatprep.subr.mxu0 0.0
      %3322 = vmatpush2.msra.mxu0 0.0
      %3323 = vmatprep.subr.mxu0 0.0
      %3324 = vmatpush2.msra.mxu0 0.0
      %3325 = vmatprep.mubr.f32.mxu0 0.0
      %3326 = vmatmul.mubr.f32.gmra.mxu0 %v3099
      %v3327 = vpop.f32.mrf.mxu0
      %v3328 = vadd.f32 0.0, %v3327
      %v3329 = vpop.f32.mrf.mxu0
      %v3330 = vadd.f32 0.0, %v3329
      %3331 = vdwg.mxu0
      %3332 = vmatprep.subr.mxu0 0.0
      %3333 = vmatpush1.msra.mxu0 0.0
      %3334 = vmatprep.subr.mxu0 0.0
      %3335 = vmatpush1.msra.mxu0 0.0
      %3336 = vmatprep.subr.mxu0 0.0
      %3337 = vmatpush1.msra.mxu0 0.0
      %3338 = vmatprep.subr.mxu0 0.0
      %3339 = vmatpush1.msra.mxu0 0.0
      %3340 = vmatprep.subr.mxu0 0.0
      %3341 = vmatpush1.msra.mxu0 0.0
      %3342 = vmatprep.subr.mxu0 0.0
      %3343 = vmatpush1.msra.mxu0 0.0
      %3344 = vmatprep.subr.mxu0 0.0
      %3345 = vmatpush1.msra.mxu0 0.0
      %3346 = vmatprep.subr.mxu0 0.0
      %3347 = vmatpush1.msra.mxu0 0.0
      %3348 = vmatprep.subr.mxu0 0.0
      %3349 = vmatpush1.msra.mxu0 0.0
      %3350 = vmatprep.subr.mxu0 0.0
      %3351 = vmatpush1.msra.mxu0 0.0
      %3352 = vmatprep.subr.mxu0 0.0
      %3353 = vmatpush1.msra.mxu0 0.0
      %3354 = vmatprep.subr.mxu0 0.0
      %3355 = vmatpush1.msra.mxu0 0.0
      %3356 = vmatprep.subr.mxu0 0.0
      %3357 = vmatpush1.msra.mxu0 0.0
      %3358 = vmatprep.subr.mxu0 0.0
      %3359 = vmatpush1.msra.mxu0 0.0
      %3360 = vmatprep.subr.mxu0 0.0
      %3361 = vmatpush1.msra.mxu0 0.0
      %3362 = vmatprep.subr.mxu0 %v3115
      %3363 = vmatpush1.msra.mxu0 %v3113
      %3364 = vmatprep.subr.mxu0 0.0
      %3365 = vmatpush2.msra.mxu0 0.0
      %3366 = vmatprep.subr.mxu0 0.0
      %3367 = vmatpush2.msra.mxu0 0.0
      %3368 = vmatprep.subr.mxu0 0.0
      %3369 = vmatpush2.msra.mxu0 0.0
      %3370 = vmatprep.subr.mxu0 0.0
      %3371 = vmatpush2.msra.mxu0 0.0
      %3372 = vmatprep.subr.mxu0 0.0
      %3373 = vmatpush2.msra.mxu0 0.0
      %3374 = vmatprep.subr.mxu0 0.0
      %3375 = vmatpush2.msra.mxu0 0.0
      %3376 = vmatprep.subr.mxu0 0.0
      %3377 = vmatpush2.msra.mxu0 0.0
      %3378 = vmatprep.subr.mxu0 0.0
      %3379 = vmatpush2.msra.mxu0 0.0
      %3380 = vmatprep.subr.mxu0 0.0
      %3381 = vmatpush2.msra.mxu0 0.0
      %3382 = vmatprep.subr.mxu0 0.0
      %3383 = vmatpush2.msra.mxu0 0.0
      %3384 = vmatprep.subr.mxu0 0.0
      %3385 = vmatpush2.msra.mxu0 0.0
      %3386 = vmatprep.subr.mxu0 0.0
      %3387 = vmatpush2.msra.mxu0 0.0
      %3388 = vmatprep.subr.mxu0 0.0
      %3389 = vmatpush2.msra.mxu0 0.0
      %3390 = vmatprep.subr.mxu0 0.0
      %3391 = vmatpush2.msra.mxu0 0.0
      %3392 = vmatprep.subr.mxu0 0.0
      %3393 = vmatpush2.msra.mxu0 0.0
      %3394 = vmatprep.subr.mxu0 0.0
      %3395 = vmatpush2.msra.mxu0 0.0
      %3396 = vmatprep.mubr.f32.mxu0 0.0
      %3397 = vmatmul.mubr.f32.gmra.mxu0 %v3099
      %v3398 = vpop.f32.mrf.mxu0
      %v3399 = vadd.f32 0.0, %v3398
      %v3400 = vpop.f32.mrf.mxu0
      %v3401 = vadd.f32 0.0, %v3400
      %3402 = vdwg.mxu0
      %3403 = vmatprep.subr.mxu0 0.0
      %3404 = vmatpush1.msra.mxu0 0.0
      %3405 = vmatprep.subr.mxu0 0.0
      %3406 = vmatpush1.msra.mxu0 0.0
      %3407 = vmatprep.subr.mxu0 0.0
      %3408 = vmatpush1.msra.mxu0 0.0
      %3409 = vmatprep.subr.mxu0 0.0
      %3410 = vmatpush1.msra.mxu0 0.0
      %3411 = vmatprep.subr.mxu0 0.0
      %3412 = vmatpush1.msra.mxu0 0.0
      %3413 = vmatprep.subr.mxu0 0.0
      %3414 = vmatpush1.msra.mxu0 0.0
      %3415 = vmatprep.subr.mxu0 0.0
      %3416 = vmatpush1.msra.mxu0 0.0
      %3417 = vmatprep.subr.mxu0 0.0
      %3418 = vmatpush1.msra.mxu0 0.0
      %3419 = vmatprep.subr.mxu0 0.0
      %3420 = vmatpush1.msra.mxu0 0.0
      %3421 = vmatprep.subr.mxu0 0.0
      %3422 = vmatpush1.msra.mxu0 0.0
      %3423 = vmatprep.subr.mxu0 0.0
      %3424 = vmatpush1.msra.mxu0 0.0
      %3425 = vmatprep.subr.mxu0 0.0
      %3426 = vmatpush1.msra.mxu0 0.0
      %3427 = vmatprep.subr.mxu0 0.0
      %3428 = vmatpush1.msra.mxu0 0.0
      %3429 = vmatprep.subr.mxu0 0.0
      %3430 = vmatpush1.msra.mxu0 0.0
      %3431 = vmatprep.subr.mxu0 0.0
      %3432 = vmatpush1.msra.mxu0 0.0
      %3433 = vmatprep.subr.mxu0 0.0
      %3434 = vmatpush1.msra.mxu0 %v3117
      %3435 = vmatprep.subr.mxu0 0.0
      %3436 = vmatpush2.msra.mxu0 0.0
      %3437 = vmatprep.subr.mxu0 0.0
      %3438 = vmatpush2.msra.mxu0 0.0
      %3439 = vmatprep.subr.mxu0 0.0
      %3440 = vmatpush2.msra.mxu0 0.0
      %3441 = vmatprep.subr.mxu0 0.0
      %3442 = vmatpush2.msra.mxu0 0.0
      %3443 = vmatprep.subr.mxu0 0.0
      %3444 = vmatpush2.msra.mxu0 0.0
      %3445 = vmatprep.subr.mxu0 0.0
      %3446 = vmatpush2.msra.mxu0 0.0
      %3447 = vmatprep.subr.mxu0 0.0
      %3448 = vmatpush2.msra.mxu0 0.0
      %3449 = vmatprep.subr.mxu0 0.0
      %3450 = vmatpush2.msra.mxu0 0.0
      %3451 = vmatprep.subr.mxu0 0.0
      %3452 = vmatpush2.msra.mxu0 0.0
      %3453 = vmatprep.subr.mxu0 0.0
      %3454 = vmatpush2.msra.mxu0 0.0
      %3455 = vmatprep.subr.mxu0 0.0
      %3456 = vmatpush2.msra.mxu0 0.0
      %3457 = vmatprep.subr.mxu0 0.0
      %3458 = vmatpush2.msra.mxu0 0.0
      %3459 = vmatprep.subr.mxu0 0.0
      %3460 = vmatpush2.msra.mxu0 0.0
      %3461 = vmatprep.subr.mxu0 0.0
      %3462 = vmatpush2.msra.mxu0 0.0
      %3463 = vmatprep.subr.mxu0 0.0
      %3464 = vmatpush2.msra.mxu0 0.0
      %3465 = vmatprep.subr.mxu0 0.0
      %3466 = vmatpush2.msra.mxu0 0.0
      %3467 = vmatprep.mubr.f32.mxu0 0.0
      %3468 = vmatmul.mubr.f32.gmra.mxu0 %v3099
      %v3469 = vpop.f32.mrf.mxu0
      %v3470 = vadd.f32 0.0, %v3469
      %v3471 = vpop.f32.mrf.mxu0
      %3472 = vdwg.mxu0
      %v3473 = vadd.f32 %v3057, %v3186
      %v3474 = vadd.f32 %v3058, %v3188
      %v3475 = vadd.f32 %v3059, %v3257
      %v3476 = vadd.f32 %v3060, %v3259
      %v3477 = vadd.f32 %v3061, %v3328
      %v3478 = vadd.f32 %v3062, %v3330
      %v3479 = vadd.f32 %v3063, %v3399
      %v3480 = vadd.f32 %v3064, %v3401
      %v3481 = vadd.f32 %v3065, %v3470
      %s3482 = scalar_lea.vmem %s1, 64
      %v3483 = vld [vmem:[%s3482] sm:$0xff]
      %3484 = vrot.lane.b32.xlu0 %v171, 58
      %v3485 = vpop.permute.xlu0 %3484
      %3486 = vrot.lane.b32.xlu0 %v188, 58
      %v3487 = vpop.permute.xlu0 %3486
      %3488 = vrot.lane.b32.xlu0 %v172, 58
      %v3489 = vpop.permute.xlu0 %3488
      %3490 = vrot.lane.b32.xlu0 %v189, 58
      %v3491 = vpop.permute.xlu0 %3490
      %3492 = vrot.lane.b32.xlu0 %v173, 58
      %v3493 = vpop.permute.xlu0 %3492
      %3494 = vrot.lane.b32.xlu0 %v190, 58
      %v3495 = vpop.permute.xlu0 %3494
      %3496 = vrot.lane.b32.xlu0 %v174, 58
      %v3497 = vpop.permute.xlu0 %3496
      %3498 = vrot.lane.b32.xlu0 %v191, 58
      %v3499 = vpop.permute.xlu0 %3498
      %3500 = vrot.lane.b32.xlu0 %v175, 58
      %v3501 = vpop.permute.xlu0 %3500
      %3502 = vrot.lane.b32.xlu0 %v1819, 58
      %v3503 = vpop.permute.xlu0 %3502
      %vm3504 = vcmask 474112
      %v3505 = vsel %vm3504, %v3485, %v3487
      %v3506 = vsel %vm3504, %v3487, %v3489
      %v3507 = vsel %vm3504, %v3489, %v3491
      %v3508 = vsel %vm3504, %v3491, %v3493
      %v3509 = vsel %vm3504, %v3493, %v3495
      %v3510 = vsel %vm3504, %v3495, %v3497
      %v3511 = vsel %vm3504, %v3497, %v3499
      %v3512 = vsel %vm3504, %v3499, %v3501
      %v3513 = vsel %vm3504, %v3501, %v3503
      %v3515 = vsel %vm192, %v3483, 0
      %v3517 = vsel %vm196, %v3505, 0
      %v3519 = vsel %vm196, %v3506, 0
      %v3521 = vsel %vm196, %v3507, 0
      %v3523 = vsel %vm196, %v3508, 0
      %v3525 = vsel %vm196, %v3509, 0
      %v3527 = vsel %vm196, %v3510, 0
      %v3529 = vsel %vm196, %v3511, 0
      %v3531 = vsel %vm196, %v3512, 0
      %v3533 = vsel %vm196, %v3513, 0
      %3535 = vmatprep.subr.mxu0 0.0
      %3536 = vmatpush1.msra.mxu0 0.0
      %3537 = vmatprep.subr.mxu0 0.0
      %3538 = vmatpush1.msra.mxu0 0.0
      %3539 = vmatprep.subr.mxu0 0.0
      %3540 = vmatpush1.msra.mxu0 0.0
      %3541 = vmatprep.subr.mxu0 0.0
      %3542 = vmatpush1.msra.mxu0 0.0
      %3543 = vmatprep.subr.mxu0 0.0
      %3544 = vmatpush1.msra.mxu0 0.0
      %3545 = vmatprep.subr.mxu0 0.0
      %3546 = vmatpush1.msra.mxu0 0.0
      %3547 = vmatprep.subr.mxu0 0.0
      %3548 = vmatpush1.msra.mxu0 0.0
      %3549 = vmatprep.subr.mxu0 0.0
      %3550 = vmatpush1.msra.mxu0 0.0
      %3551 = vmatprep.subr.mxu0 0.0
      %3552 = vmatpush1.msra.mxu0 0.0
      %3553 = vmatprep.subr.mxu0 0.0
      %3554 = vmatpush1.msra.mxu0 0.0
      %3555 = vmatprep.subr.mxu0 0.0
      %3556 = vmatpush1.msra.mxu0 0.0
      %3557 = vmatprep.subr.mxu0 0.0
      %3558 = vmatpush1.msra.mxu0 0.0
      %3559 = vmatprep.subr.mxu0 0.0
      %3560 = vmatpush1.msra.mxu0 0.0
      %3561 = vmatprep.subr.mxu0 0.0
      %3562 = vmatpush1.msra.mxu0 0.0
      %3563 = vmatprep.subr.mxu0 0.0
      %3564 = vmatpush1.msra.mxu0 0.0
      %3565 = vmatprep.subr.mxu0 %v3519
      %3566 = vmatpush1.msra.mxu0 %v3517
      %3567 = vmatprep.subr.mxu0 0.0
      %3568 = vmatpush2.msra.mxu0 0.0
      %3569 = vmatprep.subr.mxu0 0.0
      %3570 = vmatpush2.msra.mxu0 0.0
      %3571 = vmatprep.subr.mxu0 0.0
      %3572 = vmatpush2.msra.mxu0 0.0
      %3573 = vmatprep.subr.mxu0 0.0
      %3574 = vmatpush2.msra.mxu0 0.0
      %3575 = vmatprep.subr.mxu0 0.0
      %3576 = vmatpush2.msra.mxu0 0.0
      %3577 = vmatprep.subr.mxu0 0.0
      %3578 = vmatpush2.msra.mxu0 0.0
      %3579 = vmatprep.subr.mxu0 0.0
      %3580 = vmatpush2.msra.mxu0 0.0
      %3581 = vmatprep.subr.mxu0 0.0
      %3582 = vmatpush2.msra.mxu0 0.0
      %3583 = vmatprep.subr.mxu0 0.0
      %3584 = vmatpush2.msra.mxu0 0.0
      %3585 = vmatprep.subr.mxu0 0.0
      %3586 = vmatpush2.msra.mxu0 0.0
      %3587 = vmatprep.subr.mxu0 0.0
      %3588 = vmatpush2.msra.mxu0 0.0
      %3589 = vmatprep.subr.mxu0 0.0
      %3590 = vmatpush2.msra.mxu0 0.0
      %3591 = vmatprep.subr.mxu0 0.0
      %3592 = vmatpush2.msra.mxu0 0.0
      %3593 = vmatprep.subr.mxu0 0.0
      %3594 = vmatpush2.msra.mxu0 0.0
      %3595 = vmatprep.subr.mxu0 0.0
      %3596 = vmatpush2.msra.mxu0 0.0
      %3597 = vmatprep.subr.mxu0 0.0
      %3598 = vmatpush2.msra.mxu0 0.0
      %3599 = vmatprep.mubr.f32.mxu0 0.0
      %3600 = vmatmul.mubr.f32.gmra.mxu0 %v3515
      %v3601 = vpop.f32.mrf.mxu0
      %v3602 = vadd.f32 0.0, %v3601
      %v3603 = vpop.f32.mrf.mxu0
      %v3604 = vadd.f32 0.0, %v3603
      %3605 = vdwg.mxu0
      %3606 = vmatprep.subr.mxu0 0.0
      %3607 = vmatpush1.msra.mxu0 0.0
      %3608 = vmatprep.subr.mxu0 0.0
      %3609 = vmatpush1.msra.mxu0 0.0
      %3610 = vmatprep.subr.mxu0 0.0
      %3611 = vmatpush1.msra.mxu0 0.0
      %3612 = vmatprep.subr.mxu0 0.0
      %3613 = vmatpush1.msra.mxu0 0.0
      %3614 = vmatprep.subr.mxu0 0.0
      %3615 = vmatpush1.msra.mxu0 0.0
      %3616 = vmatprep.subr.mxu0 0.0
      %3617 = vmatpush1.msra.mxu0 0.0
      %3618 = vmatprep.subr.mxu0 0.0
      %3619 = vmatpush1.msra.mxu0 0.0
      %3620 = vmatprep.subr.mxu0 0.0
      %3621 = vmatpush1.msra.mxu0 0.0
      %3622 = vmatprep.subr.mxu0 0.0
      %3623 = vmatpush1.msra.mxu0 0.0
      %3624 = vmatprep.subr.mxu0 0.0
      %3625 = vmatpush1.msra.mxu0 0.0
      %3626 = vmatprep.subr.mxu0 0.0
      %3627 = vmatpush1.msra.mxu0 0.0
      %3628 = vmatprep.subr.mxu0 0.0
      %3629 = vmatpush1.msra.mxu0 0.0
      %3630 = vmatprep.subr.mxu0 0.0
      %3631 = vmatpush1.msra.mxu0 0.0
      %3632 = vmatprep.subr.mxu0 0.0
      %3633 = vmatpush1.msra.mxu0 0.0
      %3634 = vmatprep.subr.mxu0 0.0
      %3635 = vmatpush1.msra.mxu0 0.0
      %3636 = vmatprep.subr.mxu0 %v3523
      %3637 = vmatpush1.msra.mxu0 %v3521
      %3638 = vmatprep.subr.mxu0 0.0
      %3639 = vmatpush2.msra.mxu0 0.0
      %3640 = vmatprep.subr.mxu0 0.0
      %3641 = vmatpush2.msra.mxu0 0.0
      %3642 = vmatprep.subr.mxu0 0.0
      %3643 = vmatpush2.msra.mxu0 0.0
      %3644 = vmatprep.subr.mxu0 0.0
      %3645 = vmatpush2.msra.mxu0 0.0
      %3646 = vmatprep.subr.mxu0 0.0
      %3647 = vmatpush2.msra.mxu0 0.0
      %3648 = vmatprep.subr.mxu0 0.0
      %3649 = vmatpush2.msra.mxu0 0.0
      %3650 = vmatprep.subr.mxu0 0.0
      %3651 = vmatpush2.msra.mxu0 0.0
      %3652 = vmatprep.subr.mxu0 0.0
      %3653 = vmatpush2.msra.mxu0 0.0
      %3654 = vmatprep.subr.mxu0 0.0
      %3655 = vmatpush2.msra.mxu0 0.0
      %3656 = vmatprep.subr.mxu0 0.0
      %3657 = vmatpush2.msra.mxu0 0.0
      %3658 = vmatprep.subr.mxu0 0.0
      %3659 = vmatpush2.msra.mxu0 0.0
      %3660 = vmatprep.subr.mxu0 0.0
      %3661 = vmatpush2.msra.mxu0 0.0
      %3662 = vmatprep.subr.mxu0 0.0
      %3663 = vmatpush2.msra.mxu0 0.0
      %3664 = vmatprep.subr.mxu0 0.0
      %3665 = vmatpush2.msra.mxu0 0.0
      %3666 = vmatprep.subr.mxu0 0.0
      %3667 = vmatpush2.msra.mxu0 0.0
      %3668 = vmatprep.subr.mxu0 0.0
      %3669 = vmatpush2.msra.mxu0 0.0
      %3670 = vmatprep.mubr.f32.mxu0 0.0
      %3671 = vmatmul.mubr.f32.gmra.mxu0 %v3515
      %v3672 = vpop.f32.mrf.mxu0
      %v3673 = vadd.f32 0.0, %v3672
      %v3674 = vpop.f32.mrf.mxu0
      %v3675 = vadd.f32 0.0, %v3674
      %3676 = vdwg.mxu0
      %3677 = vmatprep.subr.mxu0 0.0
      %3678 = vmatpush1.msra.mxu0 0.0
      %3679 = vmatprep.subr.mxu0 0.0
      %3680 = vmatpush1.msra.mxu0 0.0
      %3681 = vmatprep.subr.mxu0 0.0
      %3682 = vmatpush1.msra.mxu0 0.0
      %3683 = vmatprep.subr.mxu0 0.0
      %3684 = vmatpush1.msra.mxu0 0.0
      %3685 = vmatprep.subr.mxu0 0.0
      %3686 = vmatpush1.msra.mxu0 0.0
      %3687 = vmatprep.subr.mxu0 0.0
      %3688 = vmatpush1.msra.mxu0 0.0
      %3689 = vmatprep.subr.mxu0 0.0
      %3690 = vmatpush1.msra.mxu0 0.0
      %3691 = vmatprep.subr.mxu0 0.0
      %3692 = vmatpush1.msra.mxu0 0.0
      %3693 = vmatprep.subr.mxu0 0.0
      %3694 = vmatpush1.msra.mxu0 0.0
      %3695 = vmatprep.subr.mxu0 0.0
      %3696 = vmatpush1.msra.mxu0 0.0
      %3697 = vmatprep.subr.mxu0 0.0
      %3698 = vmatpush1.msra.mxu0 0.0
      %3699 = vmatprep.subr.mxu0 0.0
      %3700 = vmatpush1.msra.mxu0 0.0
      %3701 = vmatprep.subr.mxu0 0.0
      %3702 = vmatpush1.msra.mxu0 0.0
      %3703 = vmatprep.subr.mxu0 0.0
      %3704 = vmatpush1.msra.mxu0 0.0
      %3705 = vmatprep.subr.mxu0 0.0
      %3706 = vmatpush1.msra.mxu0 0.0
      %3707 = vmatprep.subr.mxu0 %v3527
      %3708 = vmatpush1.msra.mxu0 %v3525
      %3709 = vmatprep.subr.mxu0 0.0
      %3710 = vmatpush2.msra.mxu0 0.0
      %3711 = vmatprep.subr.mxu0 0.0
      %3712 = vmatpush2.msra.mxu0 0.0
      %3713 = vmatprep.subr.mxu0 0.0
      %3714 = vmatpush2.msra.mxu0 0.0
      %3715 = vmatprep.subr.mxu0 0.0
      %3716 = vmatpush2.msra.mxu0 0.0
      %3717 = vmatprep.subr.mxu0 0.0
      %3718 = vmatpush2.msra.mxu0 0.0
      %3719 = vmatprep.subr.mxu0 0.0
      %3720 = vmatpush2.msra.mxu0 0.0
      %3721 = vmatprep.subr.mxu0 0.0
      %3722 = vmatpush2.msra.mxu0 0.0
      %3723 = vmatprep.subr.mxu0 0.0
      %3724 = vmatpush2.msra.mxu0 0.0
      %3725 = vmatprep.subr.mxu0 0.0
      %3726 = vmatpush2.msra.mxu0 0.0
      %3727 = vmatprep.subr.mxu0 0.0
      %3728 = vmatpush2.msra.mxu0 0.0
      %3729 = vmatprep.subr.mxu0 0.0
      %3730 = vmatpush2.msra.mxu0 0.0
      %3731 = vmatprep.subr.mxu0 0.0
      %3732 = vmatpush2.msra.mxu0 0.0
      %3733 = vmatprep.subr.mxu0 0.0
      %3734 = vmatpush2.msra.mxu0 0.0
      %3735 = vmatprep.subr.mxu0 0.0
      %3736 = vmatpush2.msra.mxu0 0.0
      %3737 = vmatprep.subr.mxu0 0.0
      %3738 = vmatpush2.msra.mxu0 0.0
      %3739 = vmatprep.subr.mxu0 0.0
      %3740 = vmatpush2.msra.mxu0 0.0
      %3741 = vmatprep.mubr.f32.mxu0 0.0
      %3742 = vmatmul.mubr.f32.gmra.mxu0 %v3515
      %v3743 = vpop.f32.mrf.mxu0
      %v3744 = vadd.f32 0.0, %v3743
      %v3745 = vpop.f32.mrf.mxu0
      %v3746 = vadd.f32 0.0, %v3745
      %3747 = vdwg.mxu0
      %3748 = vmatprep.subr.mxu0 0.0
      %3749 = vmatpush1.msra.mxu0 0.0
      %3750 = vmatprep.subr.mxu0 0.0
      %3751 = vmatpush1.msra.mxu0 0.0
      %3752 = vmatprep.subr.mxu0 0.0
      %3753 = vmatpush1.msra.mxu0 0.0
      %3754 = vmatprep.subr.mxu0 0.0
      %3755 = vmatpush1.msra.mxu0 0.0
      %3756 = vmatprep.subr.mxu0 0.0
      %3757 = vmatpush1.msra.mxu0 0.0
      %3758 = vmatprep.subr.mxu0 0.0
      %3759 = vmatpush1.msra.mxu0 0.0
      %3760 = vmatprep.subr.mxu0 0.0
      %3761 = vmatpush1.msra.mxu0 0.0
      %3762 = vmatprep.subr.mxu0 0.0
      %3763 = vmatpush1.msra.mxu0 0.0
      %3764 = vmatprep.subr.mxu0 0.0
      %3765 = vmatpush1.msra.mxu0 0.0
      %3766 = vmatprep.subr.mxu0 0.0
      %3767 = vmatpush1.msra.mxu0 0.0
      %3768 = vmatprep.subr.mxu0 0.0
      %3769 = vmatpush1.msra.mxu0 0.0
      %3770 = vmatprep.subr.mxu0 0.0
      %3771 = vmatpush1.msra.mxu0 0.0
      %3772 = vmatprep.subr.mxu0 0.0
      %3773 = vmatpush1.msra.mxu0 0.0
      %3774 = vmatprep.subr.mxu0 0.0
      %3775 = vmatpush1.msra.mxu0 0.0
      %3776 = vmatprep.subr.mxu0 0.0
      %3777 = vmatpush1.msra.mxu0 0.0
      %3778 = vmatprep.subr.mxu0 %v3531
      %3779 = vmatpush1.msra.mxu0 %v3529
      %3780 = vmatprep.subr.mxu0 0.0
      %3781 = vmatpush2.msra.mxu0 0.0
      %3782 = vmatprep.subr.mxu0 0.0
      %3783 = vmatpush2.msra.mxu0 0.0
      %3784 = vmatprep.subr.mxu0 0.0
      %3785 = vmatpush2.msra.mxu0 0.0
      %3786 = vmatprep.subr.mxu0 0.0
      %3787 = vmatpush2.msra.mxu0 0.0
      %3788 = vmatprep.subr.mxu0 0.0
      %3789 = vmatpush2.msra.mxu0 0.0
      %3790 = vmatprep.subr.mxu0 0.0
      %3791 = vmatpush2.msra.mxu0 0.0
      %3792 = vmatprep.subr.mxu0 0.0
      %3793 = vmatpush2.msra.mxu0 0.0
      %3794 = vmatprep.subr.mxu0 0.0
      %3795 = vmatpush2.msra.mxu0 0.0
      %3796 = vmatprep.subr.mxu0 0.0
      %3797 = vmatpush2.msra.mxu0 0.0
      %3798 = vmatprep.subr.mxu0 0.0
      %3799 = vmatpush2.msra.mxu0 0.0
      %3800 = vmatprep.subr.mxu0 0.0
      %3801 = vmatpush2.msra.mxu0 0.0
      %3802 = vmatprep.subr.mxu0 0.0
      %3803 = vmatpush2.msra.mxu0 0.0
      %3804 = vmatprep.subr.mxu0 0.0
      %3805 = vmatpush2.msra.mxu0 0.0
      %3806 = vmatprep.subr.mxu0 0.0
      %3807 = vmatpush2.msra.mxu0 0.0
      %3808 = vmatprep.subr.mxu0 0.0
      %3809 = vmatpush2.msra.mxu0 0.0
      %3810 = vmatprep.subr.mxu0 0.0
      %3811 = vmatpush2.msra.mxu0 0.0
      %3812 = vmatprep.mubr.f32.mxu0 0.0
      %3813 = vmatmul.mubr.f32.gmra.mxu0 %v3515
      %v3814 = vpop.f32.mrf.mxu0
      %v3815 = vadd.f32 0.0, %v3814
      %v3816 = vpop.f32.mrf.mxu0
      %v3817 = vadd.f32 0.0, %v3816
      %3818 = vdwg.mxu0
      %3819 = vmatprep.subr.mxu0 0.0
      %3820 = vmatpush1.msra.mxu0 0.0
      %3821 = vmatprep.subr.mxu0 0.0
      %3822 = vmatpush1.msra.mxu0 0.0
      %3823 = vmatprep.subr.mxu0 0.0
      %3824 = vmatpush1.msra.mxu0 0.0
      %3825 = vmatprep.subr.mxu0 0.0
      %3826 = vmatpush1.msra.mxu0 0.0
      %3827 = vmatprep.subr.mxu0 0.0
      %3828 = vmatpush1.msra.mxu0 0.0
      %3829 = vmatprep.subr.mxu0 0.0
      %3830 = vmatpush1.msra.mxu0 0.0
      %3831 = vmatprep.subr.mxu0 0.0
      %3832 = vmatpush1.msra.mxu0 0.0
      %3833 = vmatprep.subr.mxu0 0.0
      %3834 = vmatpush1.msra.mxu0 0.0
      %3835 = vmatprep.subr.mxu0 0.0
      %3836 = vmatpush1.msra.mxu0 0.0
      %3837 = vmatprep.subr.mxu0 0.0
      %3838 = vmatpush1.msra.mxu0 0.0
      %3839 = vmatprep.subr.mxu0 0.0
      %3840 = vmatpush1.msra.mxu0 0.0
      %3841 = vmatprep.subr.mxu0 0.0
      %3842 = vmatpush1.msra.mxu0 0.0
      %3843 = vmatprep.subr.mxu0 0.0
      %3844 = vmatpush1.msra.mxu0 0.0
      %3845 = vmatprep.subr.mxu0 0.0
      %3846 = vmatpush1.msra.mxu0 0.0
      %3847 = vmatprep.subr.mxu0 0.0
      %3848 = vmatpush1.msra.mxu0 0.0
      %3849 = vmatprep.subr.mxu0 0.0
      %3850 = vmatpush1.msra.mxu0 %v3533
      %3851 = vmatprep.subr.mxu0 0.0
      %3852 = vmatpush2.msra.mxu0 0.0
      %3853 = vmatprep.subr.mxu0 0.0
      %3854 = vmatpush2.msra.mxu0 0.0
      %3855 = vmatprep.subr.mxu0 0.0
      %3856 = vmatpush2.msra.mxu0 0.0
      %3857 = vmatprep.subr.mxu0 0.0
      %3858 = vmatpush2.msra.mxu0 0.0
      %3859 = vmatprep.subr.mxu0 0.0
      %3860 = vmatpush2.msra.mxu0 0.0
      %3861 = vmatprep.subr.mxu0 0.0
      %3862 = vmatpush2.msra.mxu0 0.0
      %3863 = vmatprep.subr.mxu0 0.0
      %3864 = vmatpush2.msra.mxu0 0.0
      %3865 = vmatprep.subr.mxu0 0.0
      %3866 = vmatpush2.msra.mxu0 0.0
      %3867 = vmatprep.subr.mxu0 0.0
      %3868 = vmatpush2.msra.mxu0 0.0
      %3869 = vmatprep.subr.mxu0 0.0
      %3870 = vmatpush2.msra.mxu0 0.0
      %3871 = vmatprep.subr.mxu0 0.0
      %3872 = vmatpush2.msra.mxu0 0.0
      %3873 = vmatprep.subr.mxu0 0.0
      %3874 = vmatpush2.msra.mxu0 0.0
      %3875 = vmatprep.subr.mxu0 0.0
      %3876 = vmatpush2.msra.mxu0 0.0
      %3877 = vmatprep.subr.mxu0 0.0
      %3878 = vmatpush2.msra.mxu0 0.0
      %3879 = vmatprep.subr.mxu0 0.0
      %3880 = vmatpush2.msra.mxu0 0.0
      %3881 = vmatprep.subr.mxu0 0.0
      %3882 = vmatpush2.msra.mxu0 0.0
      %3883 = vmatprep.mubr.f32.mxu0 0.0
      %3884 = vmatmul.mubr.f32.gmra.mxu0 %v3515
      %v3885 = vpop.f32.mrf.mxu0
      %v3886 = vadd.f32 0.0, %v3885
      %v3887 = vpop.f32.mrf.mxu0
      %3888 = vdwg.mxu0
      %v3889 = vadd.f32 %v3473, %v3602
      %v3890 = vadd.f32 %v3474, %v3604
      %v3891 = vadd.f32 %v3475, %v3673
      %v3892 = vadd.f32 %v3476, %v3675
      %v3893 = vadd.f32 %v3477, %v3744
      %v3894 = vadd.f32 %v3478, %v3746
      %v3895 = vadd.f32 %v3479, %v3815
      %v3896 = vadd.f32 %v3480, %v3817
      %v3897 = vadd.f32 %v3481, %v3886
      %s3898 = scalar_lea.vmem %s1, 72
      %v3899 = vld [vmem:[%s3898] sm:$0xff]
      %3900 = vrot.lane.b32.xlu0 %v171, 57
      %v3901 = vpop.permute.xlu0 %3900
      %3902 = vrot.lane.b32.xlu0 %v188, 57
      %v3903 = vpop.permute.xlu0 %3902
      %3904 = vrot.lane.b32.xlu0 %v172, 57
      %v3905 = vpop.permute.xlu0 %3904
      %3906 = vrot.lane.b32.xlu0 %v189, 57
      %v3907 = vpop.permute.xlu0 %3906
      %3908 = vrot.lane.b32.xlu0 %v173, 57
      %v3909 = vpop.permute.xlu0 %3908
      %3910 = vrot.lane.b32.xlu0 %v190, 57
      %v3911 = vpop.permute.xlu0 %3910
      %3912 = vrot.lane.b32.xlu0 %v174, 57
      %v3913 = vpop.permute.xlu0 %3912
      %3914 = vrot.lane.b32.xlu0 %v191, 57
      %v3915 = vpop.permute.xlu0 %3914
      %3916 = vrot.lane.b32.xlu0 %v175, 57
      %v3917 = vpop.permute.xlu0 %3916
      %3918 = vrot.lane.b32.xlu0 %v1819, 57
      %v3919 = vpop.permute.xlu0 %3918
      %vm3920 = vcmask 465920
      %v3921 = vsel %vm3920, %v3901, %v3903
      %v3922 = vsel %vm3920, %v3903, %v3905
      %v3923 = vsel %vm3920, %v3905, %v3907
      %v3924 = vsel %vm3920, %v3907, %v3909
      %v3925 = vsel %vm3920, %v3909, %v3911
      %v3926 = vsel %vm3920, %v3911, %v3913
      %v3927 = vsel %vm3920, %v3913, %v3915
      %v3928 = vsel %vm3920, %v3915, %v3917
      %v3929 = vsel %vm3920, %v3917, %v3919
      %v3931 = vsel %vm192, %v3899, 0
      %v3933 = vsel %vm196, %v3921, 0
      %v3935 = vsel %vm196, %v3922, 0
      %v3937 = vsel %vm196, %v3923, 0
      %v3939 = vsel %vm196, %v3924, 0
      %v3941 = vsel %vm196, %v3925, 0
      %v3943 = vsel %vm196, %v3926, 0
      %v3945 = vsel %vm196, %v3927, 0
      %v3947 = vsel %vm196, %v3928, 0
      %v3949 = vsel %vm196, %v3929, 0
      %3951 = vmatprep.subr.mxu0 0.0
      %3952 = vmatpush1.msra.mxu0 0.0
      %3953 = vmatprep.subr.mxu0 0.0
      %3954 = vmatpush1.msra.mxu0 0.0
      %3955 = vmatprep.subr.mxu0 0.0
      %3956 = vmatpush1.msra.mxu0 0.0
      %3957 = vmatprep.subr.mxu0 0.0
      %3958 = vmatpush1.msra.mxu0 0.0
      %3959 = vmatprep.subr.mxu0 0.0
      %3960 = vmatpush1.msra.mxu0 0.0
      %3961 = vmatprep.subr.mxu0 0.0
      %3962 = vmatpush1.msra.mxu0 0.0
      %3963 = vmatprep.subr.mxu0 0.0
      %3964 = vmatpush1.msra.mxu0 0.0
      %3965 = vmatprep.subr.mxu0 0.0
      %3966 = vmatpush1.msra.mxu0 0.0
      %3967 = vmatprep.subr.mxu0 0.0
      %3968 = vmatpush1.msra.mxu0 0.0
      %3969 = vmatprep.subr.mxu0 0.0
      %3970 = vmatpush1.msra.mxu0 0.0
      %3971 = vmatprep.subr.mxu0 0.0
      %3972 = vmatpush1.msra.mxu0 0.0
      %3973 = vmatprep.subr.mxu0 0.0
      %3974 = vmatpush1.msra.mxu0 0.0
      %3975 = vmatprep.subr.mxu0 0.0
      %3976 = vmatpush1.msra.mxu0 0.0
      %3977 = vmatprep.subr.mxu0 0.0
      %3978 = vmatpush1.msra.mxu0 0.0
      %3979 = vmatprep.subr.mxu0 0.0
      %3980 = vmatpush1.msra.mxu0 0.0
      %3981 = vmatprep.subr.mxu0 %v3935
      %3982 = vmatpush1.msra.mxu0 %v3933
      %3983 = vmatprep.subr.mxu0 0.0
      %3984 = vmatpush2.msra.mxu0 0.0
      %3985 = vmatprep.subr.mxu0 0.0
      %3986 = vmatpush2.msra.mxu0 0.0
      %3987 = vmatprep.subr.mxu0 0.0
      %3988 = vmatpush2.msra.mxu0 0.0
      %3989 = vmatprep.subr.mxu0 0.0
      %3990 = vmatpush2.msra.mxu0 0.0
      %3991 = vmatprep.subr.mxu0 0.0
      %3992 = vmatpush2.msra.mxu0 0.0
      %3993 = vmatprep.subr.mxu0 0.0
      %3994 = vmatpush2.msra.mxu0 0.0
      %3995 = vmatprep.subr.mxu0 0.0
      %3996 = vmatpush2.msra.mxu0 0.0
      %3997 = vmatprep.subr.mxu0 0.0
      %3998 = vmatpush2.msra.mxu0 0.0
      %3999 = vmatprep.subr.mxu0 0.0
      %4000 = vmatpush2.msra.mxu0 0.0
      %4001 = vmatprep.subr.mxu0 0.0
      %4002 = vmatpush2.msra.mxu0 0.0
      %4003 = vmatprep.subr.mxu0 0.0
      %4004 = vmatpush2.msra.mxu0 0.0
      %4005 = vmatprep.subr.mxu0 0.0
      %4006 = vmatpush2.msra.mxu0 0.0
      %4007 = vmatprep.subr.mxu0 0.0
      %4008 = vmatpush2.msra.mxu0 0.0
      %4009 = vmatprep.subr.mxu0 0.0
      %4010 = vmatpush2.msra.mxu0 0.0
      %4011 = vmatprep.subr.mxu0 0.0
      %4012 = vmatpush2.msra.mxu0 0.0
      %4013 = vmatprep.subr.mxu0 0.0
      %4014 = vmatpush2.msra.mxu0 0.0
      %4015 = vmatprep.mubr.f32.mxu0 0.0
      %4016 = vmatmul.mubr.f32.gmra.mxu0 %v3931
      %v4017 = vpop.f32.mrf.mxu0
      %v4018 = vadd.f32 0.0, %v4017
      %v4019 = vpop.f32.mrf.mxu0
      %v4020 = vadd.f32 0.0, %v4019
      %4021 = vdwg.mxu0
      %4022 = vmatprep.subr.mxu0 0.0
      %4023 = vmatpush1.msra.mxu0 0.0
      %4024 = vmatprep.subr.mxu0 0.0
      %4025 = vmatpush1.msra.mxu0 0.0
      %4026 = vmatprep.subr.mxu0 0.0
      %4027 = vmatpush1.msra.mxu0 0.0
      %4028 = vmatprep.subr.mxu0 0.0
      %4029 = vmatpush1.msra.mxu0 0.0
      %4030 = vmatprep.subr.mxu0 0.0
      %4031 = vmatpush1.msra.mxu0 0.0
      %4032 = vmatprep.subr.mxu0 0.0
      %4033 = vmatpush1.msra.mxu0 0.0
      %4034 = vmatprep.subr.mxu0 0.0
      %4035 = vmatpush1.msra.mxu0 0.0
      %4036 = vmatprep.subr.mxu0 0.0
      %4037 = vmatpush1.msra.mxu0 0.0
      %4038 = vmatprep.subr.mxu0 0.0
      %4039 = vmatpush1.msra.mxu0 0.0
      %4040 = vmatprep.subr.mxu0 0.0
      %4041 = vmatpush1.msra.mxu0 0.0
      %4042 = vmatprep.subr.mxu0 0.0
      %4043 = vmatpush1.msra.mxu0 0.0
      %4044 = vmatprep.subr.mxu0 0.0
      %4045 = vmatpush1.msra.mxu0 0.0
      %4046 = vmatprep.subr.mxu0 0.0
      %4047 = vmatpush1.msra.mxu0 0.0
      %4048 = vmatprep.subr.mxu0 0.0
      %4049 = vmatpush1.msra.mxu0 0.0
      %4050 = vmatprep.subr.mxu0 0.0
      %4051 = vmatpush1.msra.mxu0 0.0
      %4052 = vmatprep.subr.mxu0 %v3939
      %4053 = vmatpush1.msra.mxu0 %v3937
      %4054 = vmatprep.subr.mxu0 0.0
      %4055 = vmatpush2.msra.mxu0 0.0
      %4056 = vmatprep.subr.mxu0 0.0
      %4057 = vmatpush2.msra.mxu0 0.0
      %4058 = vmatprep.subr.mxu0 0.0
      %4059 = vmatpush2.msra.mxu0 0.0
      %4060 = vmatprep.subr.mxu0 0.0
      %4061 = vmatpush2.msra.mxu0 0.0
      %4062 = vmatprep.subr.mxu0 0.0
      %4063 = vmatpush2.msra.mxu0 0.0
      %4064 = vmatprep.subr.mxu0 0.0
      %4065 = vmatpush2.msra.mxu0 0.0
      %4066 = vmatprep.subr.mxu0 0.0
      %4067 = vmatpush2.msra.mxu0 0.0
      %4068 = vmatprep.subr.mxu0 0.0
      %4069 = vmatpush2.msra.mxu0 0.0
      %4070 = vmatprep.subr.mxu0 0.0
      %4071 = vmatpush2.msra.mxu0 0.0
      %4072 = vmatprep.subr.mxu0 0.0
      %4073 = vmatpush2.msra.mxu0 0.0
      %4074 = vmatprep.subr.mxu0 0.0
      %4075 = vmatpush2.msra.mxu0 0.0
      %4076 = vmatprep.subr.mxu0 0.0
      %4077 = vmatpush2.msra.mxu0 0.0
      %4078 = vmatprep.subr.mxu0 0.0
      %4079 = vmatpush2.msra.mxu0 0.0
      %4080 = vmatprep.subr.mxu0 0.0
      %4081 = vmatpush2.msra.mxu0 0.0
      %4082 = vmatprep.subr.mxu0 0.0
      %4083 = vmatpush2.msra.mxu0 0.0
      %4084 = vmatprep.subr.mxu0 0.0
      %4085 = vmatpush2.msra.mxu0 0.0
      %4086 = vmatprep.mubr.f32.mxu0 0.0
      %4087 = vmatmul.mubr.f32.gmra.mxu0 %v3931
      %v4088 = vpop.f32.mrf.mxu0
      %v4089 = vadd.f32 0.0, %v4088
      %v4090 = vpop.f32.mrf.mxu0
      %v4091 = vadd.f32 0.0, %v4090
      %4092 = vdwg.mxu0
      %4093 = vmatprep.subr.mxu0 0.0
      %4094 = vmatpush1.msra.mxu0 0.0
      %4095 = vmatprep.subr.mxu0 0.0
      %4096 = vmatpush1.msra.mxu0 0.0
      %4097 = vmatprep.subr.mxu0 0.0
      %4098 = vmatpush1.msra.mxu0 0.0
      %4099 = vmatprep.subr.mxu0 0.0
      %4100 = vmatpush1.msra.mxu0 0.0
      %4101 = vmatprep.subr.mxu0 0.0
      %4102 = vmatpush1.msra.mxu0 0.0
      %4103 = vmatprep.subr.mxu0 0.0
      %4104 = vmatpush1.msra.mxu0 0.0
      %4105 = vmatprep.subr.mxu0 0.0
      %4106 = vmatpush1.msra.mxu0 0.0
      %4107 = vmatprep.subr.mxu0 0.0
      %4108 = vmatpush1.msra.mxu0 0.0
      %4109 = vmatprep.subr.mxu0 0.0
      %4110 = vmatpush1.msra.mxu0 0.0
      %4111 = vmatprep.subr.mxu0 0.0
      %4112 = vmatpush1.msra.mxu0 0.0
      %4113 = vmatprep.subr.mxu0 0.0
      %4114 = vmatpush1.msra.mxu0 0.0
      %4115 = vmatprep.subr.mxu0 0.0
      %4116 = vmatpush1.msra.mxu0 0.0
      %4117 = vmatprep.subr.mxu0 0.0
      %4118 = vmatpush1.msra.mxu0 0.0
      %4119 = vmatprep.subr.mxu0 0.0
      %4120 = vmatpush1.msra.mxu0 0.0
      %4121 = vmatprep.subr.mxu0 0.0
      %4122 = vmatpush1.msra.mxu0 0.0
      %4123 = vmatprep.subr.mxu0 %v3943
      %4124 = vmatpush1.msra.mxu0 %v3941
      %4125 = vmatprep.subr.mxu0 0.0
      %4126 = vmatpush2.msra.mxu0 0.0
      %4127 = vmatprep.subr.mxu0 0.0
      %4128 = vmatpush2.msra.mxu0 0.0
      %4129 = vmatprep.subr.mxu0 0.0
      %4130 = vmatpush2.msra.mxu0 0.0
      %4131 = vmatprep.subr.mxu0 0.0
      %4132 = vmatpush2.msra.mxu0 0.0
      %4133 = vmatprep.subr.mxu0 0.0
      %4134 = vmatpush2.msra.mxu0 0.0
      %4135 = vmatprep.subr.mxu0 0.0
      %4136 = vmatpush2.msra.mxu0 0.0
      %4137 = vmatprep.subr.mxu0 0.0
      %4138 = vmatpush2.msra.mxu0 0.0
      %4139 = vmatprep.subr.mxu0 0.0
      %4140 = vmatpush2.msra.mxu0 0.0
      %4141 = vmatprep.subr.mxu0 0.0
      %4142 = vmatpush2.msra.mxu0 0.0
      %4143 = vmatprep.subr.mxu0 0.0
      %4144 = vmatpush2.msra.mxu0 0.0
      %4145 = vmatprep.subr.mxu0 0.0
      %4146 = vmatpush2.msra.mxu0 0.0
      %4147 = vmatprep.subr.mxu0 0.0
      %4148 = vmatpush2.msra.mxu0 0.0
      %4149 = vmatprep.subr.mxu0 0.0
      %4150 = vmatpush2.msra.mxu0 0.0
      %4151 = vmatprep.subr.mxu0 0.0
      %4152 = vmatpush2.msra.mxu0 0.0
      %4153 = vmatprep.subr.mxu0 0.0
      %4154 = vmatpush2.msra.mxu0 0.0
      %4155 = vmatprep.subr.mxu0 0.0
      %4156 = vmatpush2.msra.mxu0 0.0
      %4157 = vmatprep.mubr.f32.mxu0 0.0
      %4158 = vmatmul.mubr.f32.gmra.mxu0 %v3931
      %v4159 = vpop.f32.mrf.mxu0
      %v4160 = vadd.f32 0.0, %v4159
      %v4161 = vpop.f32.mrf.mxu0
      %v4162 = vadd.f32 0.0, %v4161
      %4163 = vdwg.mxu0
      %4164 = vmatprep.subr.mxu0 0.0
      %4165 = vmatpush1.msra.mxu0 0.0
      %4166 = vmatprep.subr.mxu0 0.0
      %4167 = vmatpush1.msra.mxu0 0.0
      %4168 = vmatprep.subr.mxu0 0.0
      %4169 = vmatpush1.msra.mxu0 0.0
      %4170 = vmatprep.subr.mxu0 0.0
      %4171 = vmatpush1.msra.mxu0 0.0
      %4172 = vmatprep.subr.mxu0 0.0
      %4173 = vmatpush1.msra.mxu0 0.0
      %4174 = vmatprep.subr.mxu0 0.0
      %4175 = vmatpush1.msra.mxu0 0.0
      %4176 = vmatprep.subr.mxu0 0.0
      %4177 = vmatpush1.msra.mxu0 0.0
      %4178 = vmatprep.subr.mxu0 0.0
      %4179 = vmatpush1.msra.mxu0 0.0
      %4180 = vmatprep.subr.mxu0 0.0
      %4181 = vmatpush1.msra.mxu0 0.0
      %4182 = vmatprep.subr.mxu0 0.0
      %4183 = vmatpush1.msra.mxu0 0.0
      %4184 = vmatprep.subr.mxu0 0.0
      %4185 = vmatpush1.msra.mxu0 0.0
      %4186 = vmatprep.subr.mxu0 0.0
      %4187 = vmatpush1.msra.mxu0 0.0
      %4188 = vmatprep.subr.mxu0 0.0
      %4189 = vmatpush1.msra.mxu0 0.0
      %4190 = vmatprep.subr.mxu0 0.0
      %4191 = vmatpush1.msra.mxu0 0.0
      %4192 = vmatprep.subr.mxu0 0.0
      %4193 = vmatpush1.msra.mxu0 0.0
      %4194 = vmatprep.subr.mxu0 %v3947
      %4195 = vmatpush1.msra.mxu0 %v3945
      %4196 = vmatprep.subr.mxu0 0.0
      %4197 = vmatpush2.msra.mxu0 0.0
      %4198 = vmatprep.subr.mxu0 0.0
      %4199 = vmatpush2.msra.mxu0 0.0
      %4200 = vmatprep.subr.mxu0 0.0
      %4201 = vmatpush2.msra.mxu0 0.0
      %4202 = vmatprep.subr.mxu0 0.0
      %4203 = vmatpush2.msra.mxu0 0.0
      %4204 = vmatprep.subr.mxu0 0.0
      %4205 = vmatpush2.msra.mxu0 0.0
      %4206 = vmatprep.subr.mxu0 0.0
      %4207 = vmatpush2.msra.mxu0 0.0
      %4208 = vmatprep.subr.mxu0 0.0
      %4209 = vmatpush2.msra.mxu0 0.0
      %4210 = vmatprep.subr.mxu0 0.0
      %4211 = vmatpush2.msra.mxu0 0.0
      %4212 = vmatprep.subr.mxu0 0.0
      %4213 = vmatpush2.msra.mxu0 0.0
      %4214 = vmatprep.subr.mxu0 0.0
      %4215 = vmatpush2.msra.mxu0 0.0
      %4216 = vmatprep.subr.mxu0 0.0
      %4217 = vmatpush2.msra.mxu0 0.0
      %4218 = vmatprep.subr.mxu0 0.0
      %4219 = vmatpush2.msra.mxu0 0.0
      %4220 = vmatprep.subr.mxu0 0.0
      %4221 = vmatpush2.msra.mxu0 0.0
      %4222 = vmatprep.subr.mxu0 0.0
      %4223 = vmatpush2.msra.mxu0 0.0
      %4224 = vmatprep.subr.mxu0 0.0
      %4225 = vmatpush2.msra.mxu0 0.0
      %4226 = vmatprep.subr.mxu0 0.0
      %4227 = vmatpush2.msra.mxu0 0.0
      %4228 = vmatprep.mubr.f32.mxu0 0.0
      %4229 = vmatmul.mubr.f32.gmra.mxu0 %v3931
      %v4230 = vpop.f32.mrf.mxu0
      %v4231 = vadd.f32 0.0, %v4230
      %v4232 = vpop.f32.mrf.mxu0
      %v4233 = vadd.f32 0.0, %v4232
      %4234 = vdwg.mxu0
      %4235 = vmatprep.subr.mxu0 0.0
      %4236 = vmatpush1.msra.mxu0 0.0
      %4237 = vmatprep.subr.mxu0 0.0
      %4238 = vmatpush1.msra.mxu0 0.0
      %4239 = vmatprep.subr.mxu0 0.0
      %4240 = vmatpush1.msra.mxu0 0.0
      %4241 = vmatprep.subr.mxu0 0.0
      %4242 = vmatpush1.msra.mxu0 0.0
      %4243 = vmatprep.subr.mxu0 0.0
      %4244 = vmatpush1.msra.mxu0 0.0
      %4245 = vmatprep.subr.mxu0 0.0
      %4246 = vmatpush1.msra.mxu0 0.0
      %4247 = vmatprep.subr.mxu0 0.0
      %4248 = vmatpush1.msra.mxu0 0.0
      %4249 = vmatprep.subr.mxu0 0.0
      %4250 = vmatpush1.msra.mxu0 0.0
      %4251 = vmatprep.subr.mxu0 0.0
      %4252 = vmatpush1.msra.mxu0 0.0
      %4253 = vmatprep.subr.mxu0 0.0
      %4254 = vmatpush1.msra.mxu0 0.0
      %4255 = vmatprep.subr.mxu0 0.0
      %4256 = vmatpush1.msra.mxu0 0.0
      %4257 = vmatprep.subr.mxu0 0.0
      %4258 = vmatpush1.msra.mxu0 0.0
      %4259 = vmatprep.subr.mxu0 0.0
      %4260 = vmatpush1.msra.mxu0 0.0
      %4261 = vmatprep.subr.mxu0 0.0
      %4262 = vmatpush1.msra.mxu0 0.0
      %4263 = vmatprep.subr.mxu0 0.0
      %4264 = vmatpush1.msra.mxu0 0.0
      %4265 = vmatprep.subr.mxu0 0.0
      %4266 = vmatpush1.msra.mxu0 %v3949
      %4267 = vmatprep.subr.mxu0 0.0
      %4268 = vmatpush2.msra.mxu0 0.0
      %4269 = vmatprep.subr.mxu0 0.0
      %4270 = vmatpush2.msra.mxu0 0.0
      %4271 = vmatprep.subr.mxu0 0.0
      %4272 = vmatpush2.msra.mxu0 0.0
      %4273 = vmatprep.subr.mxu0 0.0
      %4274 = vmatpush2.msra.mxu0 0.0
      %4275 = vmatprep.subr.mxu0 0.0
      %4276 = vmatpush2.msra.mxu0 0.0
      %4277 = vmatprep.subr.mxu0 0.0
      %4278 = vmatpush2.msra.mxu0 0.0
      %4279 = vmatprep.subr.mxu0 0.0
      %4280 = vmatpush2.msra.mxu0 0.0
      %4281 = vmatprep.subr.mxu0 0.0
      %4282 = vmatpush2.msra.mxu0 0.0
      %4283 = vmatprep.subr.mxu0 0.0
      %4284 = vmatpush2.msra.mxu0 0.0
      %4285 = vmatprep.subr.mxu0 0.0
      %4286 = vmatpush2.msra.mxu0 0.0
      %4287 = vmatprep.subr.mxu0 0.0
      %4288 = vmatpush2.msra.mxu0 0.0
      %4289 = vmatprep.subr.mxu0 0.0
      %4290 = vmatpush2.msra.mxu0 0.0
      %4291 = vmatprep.subr.mxu0 0.0
      %4292 = vmatpush2.msra.mxu0 0.0
      %4293 = vmatprep.subr.mxu0 0.0
      %4294 = vmatpush2.msra.mxu0 0.0
      %4295 = vmatprep.subr.mxu0 0.0
      %4296 = vmatpush2.msra.mxu0 0.0
      %4297 = vmatprep.subr.mxu0 0.0
      %4298 = vmatpush2.msra.mxu0 0.0
      %4299 = vmatprep.mubr.f32.mxu0 0.0
      %4300 = vmatmul.mubr.f32.gmra.mxu0 %v3931
      %v4301 = vpop.f32.mrf.mxu0
      %v4302 = vadd.f32 0.0, %v4301
      %v4303 = vpop.f32.mrf.mxu0
      %4304 = vdwg.mxu0
      %v4305 = vadd.f32 %v3889, %v4018
      %v4306 = vadd.f32 %v3890, %v4020
      %v4307 = vadd.f32 %v3891, %v4089
      %v4308 = vadd.f32 %v3892, %v4091
      %v4309 = vadd.f32 %v3893, %v4160
      %v4310 = vadd.f32 %v3894, %v4162
      %v4311 = vadd.f32 %v3895, %v4231
      %v4312 = vadd.f32 %v3896, %v4233
      %v4313 = vadd.f32 %v3897, %v4302
      %s4314 = scalar_lea.vmem %s1, 80
      %v4315 = vld [vmem:[%s4314] sm:$0xff]
      %4316 = vrot.lane.b32.xlu0 %v171, 56
      %v4317 = vpop.permute.xlu0 %4316
      %4318 = vrot.lane.b32.xlu0 %v188, 56
      %v4319 = vpop.permute.xlu0 %4318
      %4320 = vrot.lane.b32.xlu0 %v172, 56
      %v4321 = vpop.permute.xlu0 %4320
      %4322 = vrot.lane.b32.xlu0 %v189, 56
      %v4323 = vpop.permute.xlu0 %4322
      %4324 = vrot.lane.b32.xlu0 %v173, 56
      %v4325 = vpop.permute.xlu0 %4324
      %4326 = vrot.lane.b32.xlu0 %v190, 56
      %v4327 = vpop.permute.xlu0 %4326
      %4328 = vrot.lane.b32.xlu0 %v174, 56
      %v4329 = vpop.permute.xlu0 %4328
      %4330 = vrot.lane.b32.xlu0 %v191, 56
      %v4331 = vpop.permute.xlu0 %4330
      %4332 = vrot.lane.b32.xlu0 %v175, 56
      %v4333 = vpop.permute.xlu0 %4332
      %4334 = vrot.lane.b32.xlu0 %v1819, 56
      %v4335 = vpop.permute.xlu0 %4334
      %vm4336 = vcmask 457728
      %v4337 = vsel %vm4336, %v4317, %v4319
      %v4338 = vsel %vm4336, %v4319, %v4321
      %v4339 = vsel %vm4336, %v4321, %v4323
      %v4340 = vsel %vm4336, %v4323, %v4325
      %v4341 = vsel %vm4336, %v4325, %v4327
      %v4342 = vsel %vm4336, %v4327, %v4329
      %v4343 = vsel %vm4336, %v4329, %v4331
      %v4344 = vsel %vm4336, %v4331, %v4333
      %v4345 = vsel %vm4336, %v4333, %v4335
      %v4347 = vsel %vm192, %v4315, 0
      %v4349 = vsel %vm196, %v4337, 0
      %v4351 = vsel %vm196, %v4338, 0
      %v4353 = vsel %vm196, %v4339, 0
      %v4355 = vsel %vm196, %v4340, 0
      %v4357 = vsel %vm196, %v4341, 0
      %v4359 = vsel %vm196, %v4342, 0
      %v4361 = vsel %vm196, %v4343, 0
      %v4363 = vsel %vm196, %v4344, 0
      %v4365 = vsel %vm196, %v4345, 0
      %4367 = vmatprep.subr.mxu0 0.0
      %4368 = vmatpush1.msra.mxu0 0.0
      %4369 = vmatprep.subr.mxu0 0.0
      %4370 = vmatpush1.msra.mxu0 0.0
      %4371 = vmatprep.subr.mxu0 0.0
      %4372 = vmatpush1.msra.mxu0 0.0
      %4373 = vmatprep.subr.mxu0 0.0
      %4374 = vmatpush1.msra.mxu0 0.0
      %4375 = vmatprep.subr.mxu0 0.0
      %4376 = vmatpush1.msra.mxu0 0.0
      %4377 = vmatprep.subr.mxu0 0.0
      %4378 = vmatpush1.msra.mxu0 0.0
      %4379 = vmatprep.subr.mxu0 0.0
      %4380 = vmatpush1.msra.mxu0 0.0
      %4381 = vmatprep.subr.mxu0 0.0
      %4382 = vmatpush1.msra.mxu0 0.0
      %4383 = vmatprep.subr.mxu0 0.0
      %4384 = vmatpush1.msra.mxu0 0.0
      %4385 = vmatprep.subr.mxu0 0.0
      %4386 = vmatpush1.msra.mxu0 0.0
      %4387 = vmatprep.subr.mxu0 0.0
      %4388 = vmatpush1.msra.mxu0 0.0
      %4389 = vmatprep.subr.mxu0 0.0
      %4390 = vmatpush1.msra.mxu0 0.0
      %4391 = vmatprep.subr.mxu0 0.0
      %4392 = vmatpush1.msra.mxu0 0.0
      %4393 = vmatprep.subr.mxu0 0.0
      %4394 = vmatpush1.msra.mxu0 0.0
      %4395 = vmatprep.subr.mxu0 0.0
      %4396 = vmatpush1.msra.mxu0 0.0
      %4397 = vmatprep.subr.mxu0 %v4351
      %4398 = vmatpush1.msra.mxu0 %v4349
      %4399 = vmatprep.subr.mxu0 0.0
      %4400 = vmatpush2.msra.mxu0 0.0
      %4401 = vmatprep.subr.mxu0 0.0
      %4402 = vmatpush2.msra.mxu0 0.0
      %4403 = vmatprep.subr.mxu0 0.0
      %4404 = vmatpush2.msra.mxu0 0.0
      %4405 = vmatprep.subr.mxu0 0.0
      %4406 = vmatpush2.msra.mxu0 0.0
      %4407 = vmatprep.subr.mxu0 0.0
      %4408 = vmatpush2.msra.mxu0 0.0
      %4409 = vmatprep.subr.mxu0 0.0
      %4410 = vmatpush2.msra.mxu0 0.0
      %4411 = vmatprep.subr.mxu0 0.0
      %4412 = vmatpush2.msra.mxu0 0.0
      %4413 = vmatprep.subr.mxu0 0.0
      %4414 = vmatpush2.msra.mxu0 0.0
      %4415 = vmatprep.subr.mxu0 0.0
      %4416 = vmatpush2.msra.mxu0 0.0
      %4417 = vmatprep.subr.mxu0 0.0
      %4418 = vmatpush2.msra.mxu0 0.0
      %4419 = vmatprep.subr.mxu0 0.0
      %4420 = vmatpush2.msra.mxu0 0.0
      %4421 = vmatprep.subr.mxu0 0.0
      %4422 = vmatpush2.msra.mxu0 0.0
      %4423 = vmatprep.subr.mxu0 0.0
      %4424 = vmatpush2.msra.mxu0 0.0
      %4425 = vmatprep.subr.mxu0 0.0
      %4426 = vmatpush2.msra.mxu0 0.0
      %4427 = vmatprep.subr.mxu0 0.0
      %4428 = vmatpush2.msra.mxu0 0.0
      %4429 = vmatprep.subr.mxu0 0.0
      %4430 = vmatpush2.msra.mxu0 0.0
      %4431 = vmatprep.mubr.f32.mxu0 0.0
      %4432 = vmatmul.mubr.f32.gmra.mxu0 %v4347
      %v4433 = vpop.f32.mrf.mxu0
      %v4434 = vadd.f32 0.0, %v4433
      %v4435 = vpop.f32.mrf.mxu0
      %v4436 = vadd.f32 0.0, %v4435
      %4437 = vdwg.mxu0
      %4438 = vmatprep.subr.mxu0 0.0
      %4439 = vmatpush1.msra.mxu0 0.0
      %4440 = vmatprep.subr.mxu0 0.0
      %4441 = vmatpush1.msra.mxu0 0.0
      %4442 = vmatprep.subr.mxu0 0.0
      %4443 = vmatpush1.msra.mxu0 0.0
      %4444 = vmatprep.subr.mxu0 0.0
      %4445 = vmatpush1.msra.mxu0 0.0
      %4446 = vmatprep.subr.mxu0 0.0
      %4447 = vmatpush1.msra.mxu0 0.0
      %4448 = vmatprep.subr.mxu0 0.0
      %4449 = vmatpush1.msra.mxu0 0.0
      %4450 = vmatprep.subr.mxu0 0.0
      %4451 = vmatpush1.msra.mxu0 0.0
      %4452 = vmatprep.subr.mxu0 0.0
      %4453 = vmatpush1.msra.mxu0 0.0
      %4454 = vmatprep.subr.mxu0 0.0
      %4455 = vmatpush1.msra.mxu0 0.0
      %4456 = vmatprep.subr.mxu0 0.0
      %4457 = vmatpush1.msra.mxu0 0.0
      %4458 = vmatprep.subr.mxu0 0.0
      %4459 = vmatpush1.msra.mxu0 0.0
      %4460 = vmatprep.subr.mxu0 0.0
      %4461 = vmatpush1.msra.mxu0 0.0
      %4462 = vmatprep.subr.mxu0 0.0
      %4463 = vmatpush1.msra.mxu0 0.0
      %4464 = vmatprep.subr.mxu0 0.0
      %4465 = vmatpush1.msra.mxu0 0.0
      %4466 = vmatprep.subr.mxu0 0.0
      %4467 = vmatpush1.msra.mxu0 0.0
      %4468 = vmatprep.subr.mxu0 %v4355
      %4469 = vmatpush1.msra.mxu0 %v4353
      %4470 = vmatprep.subr.mxu0 0.0
      %4471 = vmatpush2.msra.mxu0 0.0
      %4472 = vmatprep.subr.mxu0 0.0
      %4473 = vmatpush2.msra.mxu0 0.0
      %4474 = vmatprep.subr.mxu0 0.0
      %4475 = vmatpush2.msra.mxu0 0.0
      %4476 = vmatprep.subr.mxu0 0.0
      %4477 = vmatpush2.msra.mxu0 0.0
      %4478 = vmatprep.subr.mxu0 0.0
      %4479 = vmatpush2.msra.mxu0 0.0
      %4480 = vmatprep.subr.mxu0 0.0
      %4481 = vmatpush2.msra.mxu0 0.0
      %4482 = vmatprep.subr.mxu0 0.0
      %4483 = vmatpush2.msra.mxu0 0.0
      %4484 = vmatprep.subr.mxu0 0.0
      %4485 = vmatpush2.msra.mxu0 0.0
      %4486 = vmatprep.subr.mxu0 0.0
      %4487 = vmatpush2.msra.mxu0 0.0
      %4488 = vmatprep.subr.mxu0 0.0
      %4489 = vmatpush2.msra.mxu0 0.0
      %4490 = vmatprep.subr.mxu0 0.0
      %4491 = vmatpush2.msra.mxu0 0.0
      %4492 = vmatprep.subr.mxu0 0.0
      %4493 = vmatpush2.msra.mxu0 0.0
      %4494 = vmatprep.subr.mxu0 0.0
      %4495 = vmatpush2.msra.mxu0 0.0
      %4496 = vmatprep.subr.mxu0 0.0
      %4497 = vmatpush2.msra.mxu0 0.0
      %4498 = vmatprep.subr.mxu0 0.0
      %4499 = vmatpush2.msra.mxu0 0.0
      %4500 = vmatprep.subr.mxu0 0.0
      %4501 = vmatpush2.msra.mxu0 0.0
      %4502 = vmatprep.mubr.f32.mxu0 0.0
      %4503 = vmatmul.mubr.f32.gmra.mxu0 %v4347
      %v4504 = vpop.f32.mrf.mxu0
      %v4505 = vadd.f32 0.0, %v4504
      %v4506 = vpop.f32.mrf.mxu0
      %v4507 = vadd.f32 0.0, %v4506
      %4508 = vdwg.mxu0
      %4509 = vmatprep.subr.mxu0 0.0
      %4510 = vmatpush1.msra.mxu0 0.0
      %4511 = vmatprep.subr.mxu0 0.0
      %4512 = vmatpush1.msra.mxu0 0.0
      %4513 = vmatprep.subr.mxu0 0.0
      %4514 = vmatpush1.msra.mxu0 0.0
      %4515 = vmatprep.subr.mxu0 0.0
      %4516 = vmatpush1.msra.mxu0 0.0
      %4517 = vmatprep.subr.mxu0 0.0
      %4518 = vmatpush1.msra.mxu0 0.0
      %4519 = vmatprep.subr.mxu0 0.0
      %4520 = vmatpush1.msra.mxu0 0.0
      %4521 = vmatprep.subr.mxu0 0.0
      %4522 = vmatpush1.msra.mxu0 0.0
      %4523 = vmatprep.subr.mxu0 0.0
      %4524 = vmatpush1.msra.mxu0 0.0
      %4525 = vmatprep.subr.mxu0 0.0
      %4526 = vmatpush1.msra.mxu0 0.0
      %4527 = vmatprep.subr.mxu0 0.0
      %4528 = vmatpush1.msra.mxu0 0.0
      %4529 = vmatprep.subr.mxu0 0.0
      %4530 = vmatpush1.msra.mxu0 0.0
      %4531 = vmatprep.subr.mxu0 0.0
      %4532 = vmatpush1.msra.mxu0 0.0
      %4533 = vmatprep.subr.mxu0 0.0
      %4534 = vmatpush1.msra.mxu0 0.0
      %4535 = vmatprep.subr.mxu0 0.0
      %4536 = vmatpush1.msra.mxu0 0.0
      %4537 = vmatprep.subr.mxu0 0.0
      %4538 = vmatpush1.msra.mxu0 0.0
      %4539 = vmatprep.subr.mxu0 %v4359
      %4540 = vmatpush1.msra.mxu0 %v4357
      %4541 = vmatprep.subr.mxu0 0.0
      %4542 = vmatpush2.msra.mxu0 0.0
      %4543 = vmatprep.subr.mxu0 0.0
      %4544 = vmatpush2.msra.mxu0 0.0
      %4545 = vmatprep.subr.mxu0 0.0
      %4546 = vmatpush2.msra.mxu0 0.0
      %4547 = vmatprep.subr.mxu0 0.0
      %4548 = vmatpush2.msra.mxu0 0.0
      %4549 = vmatprep.subr.mxu0 0.0
      %4550 = vmatpush2.msra.mxu0 0.0
      %4551 = vmatprep.subr.mxu0 0.0
      %4552 = vmatpush2.msra.mxu0 0.0
      %4553 = vmatprep.subr.mxu0 0.0
      %4554 = vmatpush2.msra.mxu0 0.0
      %4555 = vmatprep.subr.mxu0 0.0
      %4556 = vmatpush2.msra.mxu0 0.0
      %4557 = vmatprep.subr.mxu0 0.0
      %4558 = vmatpush2.msra.mxu0 0.0
      %4559 = vmatprep.subr.mxu0 0.0
      %4560 = vmatpush2.msra.mxu0 0.0
      %4561 = vmatprep.subr.mxu0 0.0
      %4562 = vmatpush2.msra.mxu0 0.0
      %4563 = vmatprep.subr.mxu0 0.0
      %4564 = vmatpush2.msra.mxu0 0.0
      %4565 = vmatprep.subr.mxu0 0.0
      %4566 = vmatpush2.msra.mxu0 0.0
      %4567 = vmatprep.subr.mxu0 0.0
      %4568 = vmatpush2.msra.mxu0 0.0
      %4569 = vmatprep.subr.mxu0 0.0
      %4570 = vmatpush2.msra.mxu0 0.0
      %4571 = vmatprep.subr.mxu0 0.0
      %4572 = vmatpush2.msra.mxu0 0.0
      %4573 = vmatprep.mubr.f32.mxu0 0.0
      %4574 = vmatmul.mubr.f32.gmra.mxu0 %v4347
      %v4575 = vpop.f32.mrf.mxu0
      %v4576 = vadd.f32 0.0, %v4575
      %v4577 = vpop.f32.mrf.mxu0
      %v4578 = vadd.f32 0.0, %v4577
      %4579 = vdwg.mxu0
      %4580 = vmatprep.subr.mxu0 0.0
      %4581 = vmatpush1.msra.mxu0 0.0
      %4582 = vmatprep.subr.mxu0 0.0
      %4583 = vmatpush1.msra.mxu0 0.0
      %4584 = vmatprep.subr.mxu0 0.0
      %4585 = vmatpush1.msra.mxu0 0.0
      %4586 = vmatprep.subr.mxu0 0.0
      %4587 = vmatpush1.msra.mxu0 0.0
      %4588 = vmatprep.subr.mxu0 0.0
      %4589 = vmatpush1.msra.mxu0 0.0
      %4590 = vmatprep.subr.mxu0 0.0
      %4591 = vmatpush1.msra.mxu0 0.0
      %4592 = vmatprep.subr.mxu0 0.0
      %4593 = vmatpush1.msra.mxu0 0.0
      %4594 = vmatprep.subr.mxu0 0.0
      %4595 = vmatpush1.msra.mxu0 0.0
      %4596 = vmatprep.subr.mxu0 0.0
      %4597 = vmatpush1.msra.mxu0 0.0
      %4598 = vmatprep.subr.mxu0 0.0
      %4599 = vmatpush1.msra.mxu0 0.0
      %4600 = vmatprep.subr.mxu0 0.0
      %4601 = vmatpush1.msra.mxu0 0.0
      %4602 = vmatprep.subr.mxu0 0.0
      %4603 = vmatpush1.msra.mxu0 0.0
      %4604 = vmatprep.subr.mxu0 0.0
      %4605 = vmatpush1.msra.mxu0 0.0
      %4606 = vmatprep.subr.mxu0 0.0
      %4607 = vmatpush1.msra.mxu0 0.0
      %4608 = vmatprep.subr.mxu0 0.0
      %4609 = vmatpush1.msra.mxu0 0.0
      %4610 = vmatprep.subr.mxu0 %v4363
      %4611 = vmatpush1.msra.mxu0 %v4361
      %4612 = vmatprep.subr.mxu0 0.0
      %4613 = vmatpush2.msra.mxu0 0.0
      %4614 = vmatprep.subr.mxu0 0.0
      %4615 = vmatpush2.msra.mxu0 0.0
      %4616 = vmatprep.subr.mxu0 0.0
      %4617 = vmatpush2.msra.mxu0 0.0
      %4618 = vmatprep.subr.mxu0 0.0
      %4619 = vmatpush2.msra.mxu0 0.0
      %4620 = vmatprep.subr.mxu0 0.0
      %4621 = vmatpush2.msra.mxu0 0.0
      %4622 = vmatprep.subr.mxu0 0.0
      %4623 = vmatpush2.msra.mxu0 0.0
      %4624 = vmatprep.subr.mxu0 0.0
      %4625 = vmatpush2.msra.mxu0 0.0
      %4626 = vmatprep.subr.mxu0 0.0
      %4627 = vmatpush2.msra.mxu0 0.0
      %4628 = vmatprep.subr.mxu0 0.0
      %4629 = vmatpush2.msra.mxu0 0.0
      %4630 = vmatprep.subr.mxu0 0.0
      %4631 = vmatpush2.msra.mxu0 0.0
      %4632 = vmatprep.subr.mxu0 0.0
      %4633 = vmatpush2.msra.mxu0 0.0
      %4634 = vmatprep.subr.mxu0 0.0
      %4635 = vmatpush2.msra.mxu0 0.0
      %4636 = vmatprep.subr.mxu0 0.0
      %4637 = vmatpush2.msra.mxu0 0.0
      %4638 = vmatprep.subr.mxu0 0.0
      %4639 = vmatpush2.msra.mxu0 0.0
      %4640 = vmatprep.subr.mxu0 0.0
      %4641 = vmatpush2.msra.mxu0 0.0
      %4642 = vmatprep.subr.mxu0 0.0
      %4643 = vmatpush2.msra.mxu0 0.0
      %4644 = vmatprep.mubr.f32.mxu0 0.0
      %4645 = vmatmul.mubr.f32.gmra.mxu0 %v4347
      %v4646 = vpop.f32.mrf.mxu0
      %v4647 = vadd.f32 0.0, %v4646
      %v4648 = vpop.f32.mrf.mxu0
      %v4649 = vadd.f32 0.0, %v4648
      %4650 = vdwg.mxu0
      %4651 = vmatprep.subr.mxu0 0.0
      %4652 = vmatpush1.msra.mxu0 0.0
      %4653 = vmatprep.subr.mxu0 0.0
      %4654 = vmatpush1.msra.mxu0 0.0
      %4655 = vmatprep.subr.mxu0 0.0
      %4656 = vmatpush1.msra.mxu0 0.0
      %4657 = vmatprep.subr.mxu0 0.0
      %4658 = vmatpush1.msra.mxu0 0.0
      %4659 = vmatprep.subr.mxu0 0.0
      %4660 = vmatpush1.msra.mxu0 0.0
      %4661 = vmatprep.subr.mxu0 0.0
      %4662 = vmatpush1.msra.mxu0 0.0
      %4663 = vmatprep.subr.mxu0 0.0
      %4664 = vmatpush1.msra.mxu0 0.0
      %4665 = vmatprep.subr.mxu0 0.0
      %4666 = vmatpush1.msra.mxu0 0.0
      %4667 = vmatprep.subr.mxu0 0.0
      %4668 = vmatpush1.msra.mxu0 0.0
      %4669 = vmatprep.subr.mxu0 0.0
      %4670 = vmatpush1.msra.mxu0 0.0
      %4671 = vmatprep.subr.mxu0 0.0
      %4672 = vmatpush1.msra.mxu0 0.0
      %4673 = vmatprep.subr.mxu0 0.0
      %4674 = vmatpush1.msra.mxu0 0.0
      %4675 = vmatprep.subr.mxu0 0.0
      %4676 = vmatpush1.msra.mxu0 0.0
      %4677 = vmatprep.subr.mxu0 0.0
      %4678 = vmatpush1.msra.mxu0 0.0
      %4679 = vmatprep.subr.mxu0 0.0
      %4680 = vmatpush1.msra.mxu0 0.0
      %4681 = vmatprep.subr.mxu0 0.0
      %4682 = vmatpush1.msra.mxu0 %v4365
      %4683 = vmatprep.subr.mxu0 0.0
      %4684 = vmatpush2.msra.mxu0 0.0
      %4685 = vmatprep.subr.mxu0 0.0
      %4686 = vmatpush2.msra.mxu0 0.0
      %4687 = vmatprep.subr.mxu0 0.0
      %4688 = vmatpush2.msra.mxu0 0.0
      %4689 = vmatprep.subr.mxu0 0.0
      %4690 = vmatpush2.msra.mxu0 0.0
      %4691 = vmatprep.subr.mxu0 0.0
      %4692 = vmatpush2.msra.mxu0 0.0
      %4693 = vmatprep.subr.mxu0 0.0
      %4694 = vmatpush2.msra.mxu0 0.0
      %4695 = vmatprep.subr.mxu0 0.0
      %4696 = vmatpush2.msra.mxu0 0.0
      %4697 = vmatprep.subr.mxu0 0.0
      %4698 = vmatpush2.msra.mxu0 0.0
      %4699 = vmatprep.subr.mxu0 0.0
      %4700 = vmatpush2.msra.mxu0 0.0
      %4701 = vmatprep.subr.mxu0 0.0
      %4702 = vmatpush2.msra.mxu0 0.0
      %4703 = vmatprep.subr.mxu0 0.0
      %4704 = vmatpush2.msra.mxu0 0.0
      %4705 = vmatprep.subr.mxu0 0.0
      %4706 = vmatpush2.msra.mxu0 0.0
      %4707 = vmatprep.subr.mxu0 0.0
      %4708 = vmatpush2.msra.mxu0 0.0
      %4709 = vmatprep.subr.mxu0 0.0
      %4710 = vmatpush2.msra.mxu0 0.0
      %4711 = vmatprep.subr.mxu0 0.0
      %4712 = vmatpush2.msra.mxu0 0.0
      %4713 = vmatprep.subr.mxu0 0.0
      %4714 = vmatpush2.msra.mxu0 0.0
      %4715 = vmatprep.mubr.f32.mxu0 0.0
      %4716 = vmatmul.mubr.f32.gmra.mxu0 %v4347
      %v4717 = vpop.f32.mrf.mxu0
      %v4718 = vadd.f32 0.0, %v4717
      %v4719 = vpop.f32.mrf.mxu0
      %4720 = vdwg.mxu0
      %v4721 = vadd.f32 %v4305, %v4434
      %v4722 = vadd.f32 %v4306, %v4436
      %v4723 = vadd.f32 %v4307, %v4505
      %v4724 = vadd.f32 %v4308, %v4507
      %v4725 = vadd.f32 %v4309, %v4576
      %v4726 = vadd.f32 %v4310, %v4578
      %v4727 = vadd.f32 %v4311, %v4647
      %v4728 = vadd.f32 %v4312, %v4649
      %v4729 = vadd.f32 %v4313, %v4718
      %s4730 = scalar_lea.vmem %s1, 88
      %v4731 = vld [vmem:[%s4730] sm:$0xff]
      %4732 = vrot.lane.b32.xlu0 %v171, 55
      %v4733 = vpop.permute.xlu0 %4732
      %4734 = vrot.lane.b32.xlu0 %v188, 55
      %v4735 = vpop.permute.xlu0 %4734
      %4736 = vrot.lane.b32.xlu0 %v172, 55
      %v4737 = vpop.permute.xlu0 %4736
      %4738 = vrot.lane.b32.xlu0 %v189, 55
      %v4739 = vpop.permute.xlu0 %4738
      %4740 = vrot.lane.b32.xlu0 %v173, 55
      %v4741 = vpop.permute.xlu0 %4740
      %4742 = vrot.lane.b32.xlu0 %v190, 55
      %v4743 = vpop.permute.xlu0 %4742
      %4744 = vrot.lane.b32.xlu0 %v174, 55
      %v4745 = vpop.permute.xlu0 %4744
      %4746 = vrot.lane.b32.xlu0 %v191, 55
      %v4747 = vpop.permute.xlu0 %4746
      %4748 = vrot.lane.b32.xlu0 %v175, 55
      %v4749 = vpop.permute.xlu0 %4748
      %4750 = vrot.lane.b32.xlu0 %v1819, 55
      %v4751 = vpop.permute.xlu0 %4750
      %vm4752 = vcmask 449536
      %v4753 = vsel %vm4752, %v4733, %v4735
      %v4754 = vsel %vm4752, %v4735, %v4737
      %v4755 = vsel %vm4752, %v4737, %v4739
      %v4756 = vsel %vm4752, %v4739, %v4741
      %v4757 = vsel %vm4752, %v4741, %v4743
      %v4758 = vsel %vm4752, %v4743, %v4745
      %v4759 = vsel %vm4752, %v4745, %v4747
      %v4760 = vsel %vm4752, %v4747, %v4749
      %v4761 = vsel %vm4752, %v4749, %v4751
      %v4763 = vsel %vm192, %v4731, 0
      %v4765 = vsel %vm196, %v4753, 0
      %v4767 = vsel %vm196, %v4754, 0
      %v4769 = vsel %vm196, %v4755, 0
      %v4771 = vsel %vm196, %v4756, 0
      %v4773 = vsel %vm196, %v4757, 0
      %v4775 = vsel %vm196, %v4758, 0
      %v4777 = vsel %vm196, %v4759, 0
      %v4779 = vsel %vm196, %v4760, 0
      %v4781 = vsel %vm196, %v4761, 0
      %4783 = vmatprep.subr.mxu0 0.0
      %4784 = vmatpush1.msra.mxu0 0.0
      %4785 = vmatprep.subr.mxu0 0.0
      %4786 = vmatpush1.msra.mxu0 0.0
      %4787 = vmatprep.subr.mxu0 0.0
      %4788 = vmatpush1.msra.mxu0 0.0
      %4789 = vmatprep.subr.mxu0 0.0
      %4790 = vmatpush1.msra.mxu0 0.0
      %4791 = vmatprep.subr.mxu0 0.0
      %4792 = vmatpush1.msra.mxu0 0.0
      %4793 = vmatprep.subr.mxu0 0.0
      %4794 = vmatpush1.msra.mxu0 0.0
      %4795 = vmatprep.subr.mxu0 0.0
      %4796 = vmatpush1.msra.mxu0 0.0
      %4797 = vmatprep.subr.mxu0 0.0
      %4798 = vmatpush1.msra.mxu0 0.0
      %4799 = vmatprep.subr.mxu0 0.0
      %4800 = vmatpush1.msra.mxu0 0.0
      %4801 = vmatprep.subr.mxu0 0.0
      %4802 = vmatpush1.msra.mxu0 0.0
      %4803 = vmatprep.subr.mxu0 0.0
      %4804 = vmatpush1.msra.mxu0 0.0
      %4805 = vmatprep.subr.mxu0 0.0
      %4806 = vmatpush1.msra.mxu0 0.0
      %4807 = vmatprep.subr.mxu0 0.0
      %4808 = vmatpush1.msra.mxu0 0.0
      %4809 = vmatprep.subr.mxu0 0.0
      %4810 = vmatpush1.msra.mxu0 0.0
      %4811 = vmatprep.subr.mxu0 0.0
      %4812 = vmatpush1.msra.mxu0 0.0
      %4813 = vmatprep.subr.mxu0 %v4767
      %4814 = vmatpush1.msra.mxu0 %v4765
      %4815 = vmatprep.subr.mxu0 0.0
      %4816 = vmatpush2.msra.mxu0 0.0
      %4817 = vmatprep.subr.mxu0 0.0
      %4818 = vmatpush2.msra.mxu0 0.0
      %4819 = vmatprep.subr.mxu0 0.0
      %4820 = vmatpush2.msra.mxu0 0.0
      %4821 = vmatprep.subr.mxu0 0.0
      %4822 = vmatpush2.msra.mxu0 0.0
      %4823 = vmatprep.subr.mxu0 0.0
      %4824 = vmatpush2.msra.mxu0 0.0
      %4825 = vmatprep.subr.mxu0 0.0
      %4826 = vmatpush2.msra.mxu0 0.0
      %4827 = vmatprep.subr.mxu0 0.0
      %4828 = vmatpush2.msra.mxu0 0.0
      %4829 = vmatprep.subr.mxu0 0.0
      %4830 = vmatpush2.msra.mxu0 0.0
      %4831 = vmatprep.subr.mxu0 0.0
      %4832 = vmatpush2.msra.mxu0 0.0
      %4833 = vmatprep.subr.mxu0 0.0
      %4834 = vmatpush2.msra.mxu0 0.0
      %4835 = vmatprep.subr.mxu0 0.0
      %4836 = vmatpush2.msra.mxu0 0.0
      %4837 = vmatprep.subr.mxu0 0.0
      %4838 = vmatpush2.msra.mxu0 0.0
      %4839 = vmatprep.subr.mxu0 0.0
      %4840 = vmatpush2.msra.mxu0 0.0
      %4841 = vmatprep.subr.mxu0 0.0
      %4842 = vmatpush2.msra.mxu0 0.0
      %4843 = vmatprep.subr.mxu0 0.0
      %4844 = vmatpush2.msra.mxu0 0.0
      %4845 = vmatprep.subr.mxu0 0.0
      %4846 = vmatpush2.msra.mxu0 0.0
      %4847 = vmatprep.mubr.f32.mxu0 0.0
      %4848 = vmatmul.mubr.f32.gmra.mxu0 %v4763
      %v4849 = vpop.f32.mrf.mxu0
      %v4850 = vadd.f32 0.0, %v4849
      %v4851 = vpop.f32.mrf.mxu0
      %v4852 = vadd.f32 0.0, %v4851
      %4853 = vdwg.mxu0
      %4854 = vmatprep.subr.mxu0 0.0
      %4855 = vmatpush1.msra.mxu0 0.0
      %4856 = vmatprep.subr.mxu0 0.0
      %4857 = vmatpush1.msra.mxu0 0.0
      %4858 = vmatprep.subr.mxu0 0.0
      %4859 = vmatpush1.msra.mxu0 0.0
      %4860 = vmatprep.subr.mxu0 0.0
      %4861 = vmatpush1.msra.mxu0 0.0
      %4862 = vmatprep.subr.mxu0 0.0
      %4863 = vmatpush1.msra.mxu0 0.0
      %4864 = vmatprep.subr.mxu0 0.0
      %4865 = vmatpush1.msra.mxu0 0.0
      %4866 = vmatprep.subr.mxu0 0.0
      %4867 = vmatpush1.msra.mxu0 0.0
      %4868 = vmatprep.subr.mxu0 0.0
      %4869 = vmatpush1.msra.mxu0 0.0
      %4870 = vmatprep.subr.mxu0 0.0
      %4871 = vmatpush1.msra.mxu0 0.0
      %4872 = vmatprep.subr.mxu0 0.0
      %4873 = vmatpush1.msra.mxu0 0.0
      %4874 = vmatprep.subr.mxu0 0.0
      %4875 = vmatpush1.msra.mxu0 0.0
      %4876 = vmatprep.subr.mxu0 0.0
      %4877 = vmatpush1.msra.mxu0 0.0
      %4878 = vmatprep.subr.mxu0 0.0
      %4879 = vmatpush1.msra.mxu0 0.0
      %4880 = vmatprep.subr.mxu0 0.0
      %4881 = vmatpush1.msra.mxu0 0.0
      %4882 = vmatprep.subr.mxu0 0.0
      %4883 = vmatpush1.msra.mxu0 0.0
      %4884 = vmatprep.subr.mxu0 %v4771
      %4885 = vmatpush1.msra.mxu0 %v4769
      %4886 = vmatprep.subr.mxu0 0.0
      %4887 = vmatpush2.msra.mxu0 0.0
      %4888 = vmatprep.subr.mxu0 0.0
      %4889 = vmatpush2.msra.mxu0 0.0
      %4890 = vmatprep.subr.mxu0 0.0
      %4891 = vmatpush2.msra.mxu0 0.0
      %4892 = vmatprep.subr.mxu0 0.0
      %4893 = vmatpush2.msra.mxu0 0.0
      %4894 = vmatprep.subr.mxu0 0.0
      %4895 = vmatpush2.msra.mxu0 0.0
      %4896 = vmatprep.subr.mxu0 0.0
      %4897 = vmatpush2.msra.mxu0 0.0
      %4898 = vmatprep.subr.mxu0 0.0
      %4899 = vmatpush2.msra.mxu0 0.0
      %4900 = vmatprep.subr.mxu0 0.0
      %4901 = vmatpush2.msra.mxu0 0.0
      %4902 = vmatprep.subr.mxu0 0.0
      %4903 = vmatpush2.msra.mxu0 0.0
      %4904 = vmatprep.subr.mxu0 0.0
      %4905 = vmatpush2.msra.mxu0 0.0
      %4906 = vmatprep.subr.mxu0 0.0
      %4907 = vmatpush2.msra.mxu0 0.0
      %4908 = vmatprep.subr.mxu0 0.0
      %4909 = vmatpush2.msra.mxu0 0.0
      %4910 = vmatprep.subr.mxu0 0.0
      %4911 = vmatpush2.msra.mxu0 0.0
      %4912 = vmatprep.subr.mxu0 0.0
      %4913 = vmatpush2.msra.mxu0 0.0
      %4914 = vmatprep.subr.mxu0 0.0
      %4915 = vmatpush2.msra.mxu0 0.0
      %4916 = vmatprep.subr.mxu0 0.0
      %4917 = vmatpush2.msra.mxu0 0.0
      %4918 = vmatprep.mubr.f32.mxu0 0.0
      %4919 = vmatmul.mubr.f32.gmra.mxu0 %v4763
      %v4920 = vpop.f32.mrf.mxu0
      %v4921 = vadd.f32 0.0, %v4920
      %v4922 = vpop.f32.mrf.mxu0
      %v4923 = vadd.f32 0.0, %v4922
      %4924 = vdwg.mxu0
      %4925 = vmatprep.subr.mxu0 0.0
      %4926 = vmatpush1.msra.mxu0 0.0
      %4927 = vmatprep.subr.mxu0 0.0
      %4928 = vmatpush1.msra.mxu0 0.0
      %4929 = vmatprep.subr.mxu0 0.0
      %4930 = vmatpush1.msra.mxu0 0.0
      %4931 = vmatprep.subr.mxu0 0.0
      %4932 = vmatpush1.msra.mxu0 0.0
      %4933 = vmatprep.subr.mxu0 0.0
      %4934 = vmatpush1.msra.mxu0 0.0
      %4935 = vmatprep.subr.mxu0 0.0
      %4936 = vmatpush1.msra.mxu0 0.0
      %4937 = vmatprep.subr.mxu0 0.0
      %4938 = vmatpush1.msra.mxu0 0.0
      %4939 = vmatprep.subr.mxu0 0.0
      %4940 = vmatpush1.msra.mxu0 0.0
      %4941 = vmatprep.subr.mxu0 0.0
      %4942 = vmatpush1.msra.mxu0 0.0
      %4943 = vmatprep.subr.mxu0 0.0
      %4944 = vmatpush1.msra.mxu0 0.0
      %4945 = vmatprep.subr.mxu0 0.0
      %4946 = vmatpush1.msra.mxu0 0.0
      %4947 = vmatprep.subr.mxu0 0.0
      %4948 = vmatpush1.msra.mxu0 0.0
      %4949 = vmatprep.subr.mxu0 0.0
      %4950 = vmatpush1.msra.mxu0 0.0
      %4951 = vmatprep.subr.mxu0 0.0
      %4952 = vmatpush1.msra.mxu0 0.0
      %4953 = vmatprep.subr.mxu0 0.0
      %4954 = vmatpush1.msra.mxu0 0.0
      %4955 = vmatprep.subr.mxu0 %v4775
      %4956 = vmatpush1.msra.mxu0 %v4773
      %4957 = vmatprep.subr.mxu0 0.0
      %4958 = vmatpush2.msra.mxu0 0.0
      %4959 = vmatprep.subr.mxu0 0.0
      %4960 = vmatpush2.msra.mxu0 0.0
      %4961 = vmatprep.subr.mxu0 0.0
      %4962 = vmatpush2.msra.mxu0 0.0
      %4963 = vmatprep.subr.mxu0 0.0
      %4964 = vmatpush2.msra.mxu0 0.0
      %4965 = vmatprep.subr.mxu0 0.0
      %4966 = vmatpush2.msra.mxu0 0.0
      %4967 = vmatprep.subr.mxu0 0.0
      %4968 = vmatpush2.msra.mxu0 0.0
      %4969 = vmatprep.subr.mxu0 0.0
      %4970 = vmatpush2.msra.mxu0 0.0
      %4971 = vmatprep.subr.mxu0 0.0
      %4972 = vmatpush2.msra.mxu0 0.0
      %4973 = vmatprep.subr.mxu0 0.0
      %4974 = vmatpush2.msra.mxu0 0.0
      %4975 = vmatprep.subr.mxu0 0.0
      %4976 = vmatpush2.msra.mxu0 0.0
      %4977 = vmatprep.subr.mxu0 0.0
      %4978 = vmatpush2.msra.mxu0 0.0
      %4979 = vmatprep.subr.mxu0 0.0
      %4980 = vmatpush2.msra.mxu0 0.0
      %4981 = vmatprep.subr.mxu0 0.0
      %4982 = vmatpush2.msra.mxu0 0.0
      %4983 = vmatprep.subr.mxu0 0.0
      %4984 = vmatpush2.msra.mxu0 0.0
      %4985 = vmatprep.subr.mxu0 0.0
      %4986 = vmatpush2.msra.mxu0 0.0
      %4987 = vmatprep.subr.mxu0 0.0
      %4988 = vmatpush2.msra.mxu0 0.0
      %4989 = vmatprep.mubr.f32.mxu0 0.0
      %4990 = vmatmul.mubr.f32.gmra.mxu0 %v4763
      %v4991 = vpop.f32.mrf.mxu0
      %v4992 = vadd.f32 0.0, %v4991
      %v4993 = vpop.f32.mrf.mxu0
      %v4994 = vadd.f32 0.0, %v4993
      %4995 = vdwg.mxu0
      %4996 = vmatprep.subr.mxu0 0.0
      %4997 = vmatpush1.msra.mxu0 0.0
      %4998 = vmatprep.subr.mxu0 0.0
      %4999 = vmatpush1.msra.mxu0 0.0
      %5000 = vmatprep.subr.mxu0 0.0
      %5001 = vmatpush1.msra.mxu0 0.0
      %5002 = vmatprep.subr.mxu0 0.0
      %5003 = vmatpush1.msra.mxu0 0.0
      %5004 = vmatprep.subr.mxu0 0.0
      %5005 = vmatpush1.msra.mxu0 0.0
      %5006 = vmatprep.subr.mxu0 0.0
      %5007 = vmatpush1.msra.mxu0 0.0
      %5008 = vmatprep.subr.mxu0 0.0
      %5009 = vmatpush1.msra.mxu0 0.0
      %5010 = vmatprep.subr.mxu0 0.0
      %5011 = vmatpush1.msra.mxu0 0.0
      %5012 = vmatprep.subr.mxu0 0.0
      %5013 = vmatpush1.msra.mxu0 0.0
      %5014 = vmatprep.subr.mxu0 0.0
      %5015 = vmatpush1.msra.mxu0 0.0
      %5016 = vmatprep.subr.mxu0 0.0
      %5017 = vmatpush1.msra.mxu0 0.0
      %5018 = vmatprep.subr.mxu0 0.0
      %5019 = vmatpush1.msra.mxu0 0.0
      %5020 = vmatprep.subr.mxu0 0.0
      %5021 = vmatpush1.msra.mxu0 0.0
      %5022 = vmatprep.subr.mxu0 0.0
      %5023 = vmatpush1.msra.mxu0 0.0
      %5024 = vmatprep.subr.mxu0 0.0
      %5025 = vmatpush1.msra.mxu0 0.0
      %5026 = vmatprep.subr.mxu0 %v4779
      %5027 = vmatpush1.msra.mxu0 %v4777
      %5028 = vmatprep.subr.mxu0 0.0
      %5029 = vmatpush2.msra.mxu0 0.0
      %5030 = vmatprep.subr.mxu0 0.0
      %5031 = vmatpush2.msra.mxu0 0.0
      %5032 = vmatprep.subr.mxu0 0.0
      %5033 = vmatpush2.msra.mxu0 0.0
      %5034 = vmatprep.subr.mxu0 0.0
      %5035 = vmatpush2.msra.mxu0 0.0
      %5036 = vmatprep.subr.mxu0 0.0
      %5037 = vmatpush2.msra.mxu0 0.0
      %5038 = vmatprep.subr.mxu0 0.0
      %5039 = vmatpush2.msra.mxu0 0.0
      %5040 = vmatprep.subr.mxu0 0.0
      %5041 = vmatpush2.msra.mxu0 0.0
      %5042 = vmatprep.subr.mxu0 0.0
      %5043 = vmatpush2.msra.mxu0 0.0
      %5044 = vmatprep.subr.mxu0 0.0
      %5045 = vmatpush2.msra.mxu0 0.0
      %5046 = vmatprep.subr.mxu0 0.0
      %5047 = vmatpush2.msra.mxu0 0.0
      %5048 = vmatprep.subr.mxu0 0.0
      %5049 = vmatpush2.msra.mxu0 0.0
      %5050 = vmatprep.subr.mxu0 0.0
      %5051 = vmatpush2.msra.mxu0 0.0
      %5052 = vmatprep.subr.mxu0 0.0
      %5053 = vmatpush2.msra.mxu0 0.0
      %5054 = vmatprep.subr.mxu0 0.0
      %5055 = vmatpush2.msra.mxu0 0.0
      %5056 = vmatprep.subr.mxu0 0.0
      %5057 = vmatpush2.msra.mxu0 0.0
      %5058 = vmatprep.subr.mxu0 0.0
      %5059 = vmatpush2.msra.mxu0 0.0
      %5060 = vmatprep.mubr.f32.mxu0 0.0
      %5061 = vmatmul.mubr.f32.gmra.mxu0 %v4763
      %v5062 = vpop.f32.mrf.mxu0
      %v5063 = vadd.f32 0.0, %v5062
      %v5064 = vpop.f32.mrf.mxu0
      %v5065 = vadd.f32 0.0, %v5064
      %5066 = vdwg.mxu0
      %5067 = vmatprep.subr.mxu0 0.0
      %5068 = vmatpush1.msra.mxu0 0.0
      %5069 = vmatprep.subr.mxu0 0.0
      %5070 = vmatpush1.msra.mxu0 0.0
      %5071 = vmatprep.subr.mxu0 0.0
      %5072 = vmatpush1.msra.mxu0 0.0
      %5073 = vmatprep.subr.mxu0 0.0
      %5074 = vmatpush1.msra.mxu0 0.0
      %5075 = vmatprep.subr.mxu0 0.0
      %5076 = vmatpush1.msra.mxu0 0.0
      %5077 = vmatprep.subr.mxu0 0.0
      %5078 = vmatpush1.msra.mxu0 0.0
      %5079 = vmatprep.subr.mxu0 0.0
      %5080 = vmatpush1.msra.mxu0 0.0
      %5081 = vmatprep.subr.mxu0 0.0
      %5082 = vmatpush1.msra.mxu0 0.0
      %5083 = vmatprep.subr.mxu0 0.0
      %5084 = vmatpush1.msra.mxu0 0.0
      %5085 = vmatprep.subr.mxu0 0.0
      %5086 = vmatpush1.msra.mxu0 0.0
      %5087 = vmatprep.subr.mxu0 0.0
      %5088 = vmatpush1.msra.mxu0 0.0
      %5089 = vmatprep.subr.mxu0 0.0
      %5090 = vmatpush1.msra.mxu0 0.0
      %5091 = vmatprep.subr.mxu0 0.0
      %5092 = vmatpush1.msra.mxu0 0.0
      %5093 = vmatprep.subr.mxu0 0.0
      %5094 = vmatpush1.msra.mxu0 0.0
      %5095 = vmatprep.subr.mxu0 0.0
      %5096 = vmatpush1.msra.mxu0 0.0
      %5097 = vmatprep.subr.mxu0 0.0
      %5098 = vmatpush1.msra.mxu0 %v4781
      %5099 = vmatprep.subr.mxu0 0.0
      %5100 = vmatpush2.msra.mxu0 0.0
      %5101 = vmatprep.subr.mxu0 0.0
      %5102 = vmatpush2.msra.mxu0 0.0
      %5103 = vmatprep.subr.mxu0 0.0
      %5104 = vmatpush2.msra.mxu0 0.0
      %5105 = vmatprep.subr.mxu0 0.0
      %5106 = vmatpush2.msra.mxu0 0.0
      %5107 = vmatprep.subr.mxu0 0.0
      %5108 = vmatpush2.msra.mxu0 0.0
      %5109 = vmatprep.subr.mxu0 0.0
      %5110 = vmatpush2.msra.mxu0 0.0
      %5111 = vmatprep.subr.mxu0 0.0
      %5112 = vmatpush2.msra.mxu0 0.0
      %5113 = vmatprep.subr.mxu0 0.0
      %5114 = vmatpush2.msra.mxu0 0.0
      %5115 = vmatprep.subr.mxu0 0.0
      %5116 = vmatpush2.msra.mxu0 0.0
      %5117 = vmatprep.subr.mxu0 0.0
      %5118 = vmatpush2.msra.mxu0 0.0
      %5119 = vmatprep.subr.mxu0 0.0
      %5120 = vmatpush2.msra.mxu0 0.0
      %5121 = vmatprep.subr.mxu0 0.0
      %5122 = vmatpush2.msra.mxu0 0.0
      %5123 = vmatprep.subr.mxu0 0.0
      %5124 = vmatpush2.msra.mxu0 0.0
      %5125 = vmatprep.subr.mxu0 0.0
      %5126 = vmatpush2.msra.mxu0 0.0
      %5127 = vmatprep.subr.mxu0 0.0
      %5128 = vmatpush2.msra.mxu0 0.0
      %5129 = vmatprep.subr.mxu0 0.0
      %5130 = vmatpush2.msra.mxu0 0.0
      %5131 = vmatprep.mubr.f32.mxu0 0.0
      %5132 = vmatmul.mubr.f32.gmra.mxu0 %v4763
      %v5133 = vpop.f32.mrf.mxu0
      %v5134 = vadd.f32 0.0, %v5133
      %v5135 = vpop.f32.mrf.mxu0
      %5136 = vdwg.mxu0
      %v5137 = vadd.f32 %v4721, %v4850
      %v5138 = vadd.f32 %v4722, %v4852
      %v5139 = vadd.f32 %v4723, %v4921
      %v5140 = vadd.f32 %v4724, %v4923
      %v5141 = vadd.f32 %v4725, %v4992
      %v5142 = vadd.f32 %v4726, %v4994
      %v5143 = vadd.f32 %v4727, %v5063
      %v5144 = vadd.f32 %v4728, %v5065
      %v5145 = vadd.f32 %v4729, %v5134
      %s5146 = scalar_lea.vmem %s1, 96
      %v5147 = vld [vmem:[%s5146] sm:$0xff]
      %5148 = vrot.lane.b32.xlu0 %v171, 23
      %v5149 = vpop.permute.xlu0 %5148
      %5150 = vrot.lane.b32.xlu0 %v188, 23
      %v5151 = vpop.permute.xlu0 %5150
      %5152 = vrot.lane.b32.xlu0 %v172, 23
      %v5153 = vpop.permute.xlu0 %5152
      %5154 = vrot.lane.b32.xlu0 %v189, 23
      %v5155 = vpop.permute.xlu0 %5154
      %5156 = vrot.lane.b32.xlu0 %v173, 23
      %v5157 = vpop.permute.xlu0 %5156
      %5158 = vrot.lane.b32.xlu0 %v190, 23
      %v5159 = vpop.permute.xlu0 %5158
      %5160 = vrot.lane.b32.xlu0 %v174, 23
      %v5161 = vpop.permute.xlu0 %5160
      %5162 = vrot.lane.b32.xlu0 %v191, 23
      %v5163 = vpop.permute.xlu0 %5162
      %5164 = vrot.lane.b32.xlu0 %v175, 23
      %v5165 = vpop.permute.xlu0 %5164
      %5166 = vrot.lane.b32.xlu0 %v1819, 23
      %v5167 = vpop.permute.xlu0 %5166
      %vm5168 = vcmask 187392
      %v5169 = vsel %vm5168, %v5149, %v5151
      %v5170 = vsel %vm5168, %v5151, %v5153
      %v5171 = vsel %vm5168, %v5153, %v5155
      %v5172 = vsel %vm5168, %v5155, %v5157
      %v5173 = vsel %vm5168, %v5157, %v5159
      %v5174 = vsel %vm5168, %v5159, %v5161
      %v5175 = vsel %vm5168, %v5161, %v5163
      %v5176 = vsel %vm5168, %v5163, %v5165
      %v5177 = vsel %vm5168, %v5165, %v5167
      %v5179 = vsel %vm192, %v5147, 0
      %v5181 = vsel %vm196, %v5169, 0
      %v5183 = vsel %vm196, %v5170, 0
      %v5185 = vsel %vm196, %v5171, 0
      %v5187 = vsel %vm196, %v5172, 0
      %v5189 = vsel %vm196, %v5173, 0
      %v5191 = vsel %vm196, %v5174, 0
      %v5193 = vsel %vm196, %v5175, 0
      %v5195 = vsel %vm196, %v5176, 0
      %v5197 = vsel %vm196, %v5177, 0
      %5199 = vmatprep.subr.mxu0 0.0
      %5200 = vmatpush1.msra.mxu0 0.0
      %5201 = vmatprep.subr.mxu0 0.0
      %5202 = vmatpush1.msra.mxu0 0.0
      %5203 = vmatprep.subr.mxu0 0.0
      %5204 = vmatpush1.msra.mxu0 0.0
      %5205 = vmatprep.subr.mxu0 0.0
      %5206 = vmatpush1.msra.mxu0 0.0
      %5207 = vmatprep.subr.mxu0 0.0
      %5208 = vmatpush1.msra.mxu0 0.0
      %5209 = vmatprep.subr.mxu0 0.0
      %5210 = vmatpush1.msra.mxu0 0.0
      %5211 = vmatprep.subr.mxu0 0.0
      %5212 = vmatpush1.msra.mxu0 0.0
      %5213 = vmatprep.subr.mxu0 0.0
      %5214 = vmatpush1.msra.mxu0 0.0
      %5215 = vmatprep.subr.mxu0 0.0
      %5216 = vmatpush1.msra.mxu0 0.0
      %5217 = vmatprep.subr.mxu0 0.0
      %5218 = vmatpush1.msra.mxu0 0.0
      %5219 = vmatprep.subr.mxu0 0.0
      %5220 = vmatpush1.msra.mxu0 0.0
      %5221 = vmatprep.subr.mxu0 0.0
      %5222 = vmatpush1.msra.mxu0 0.0
      %5223 = vmatprep.subr.mxu0 0.0
      %5224 = vmatpush1.msra.mxu0 0.0
      %5225 = vmatprep.subr.mxu0 0.0
      %5226 = vmatpush1.msra.mxu0 0.0
      %5227 = vmatprep.subr.mxu0 0.0
      %5228 = vmatpush1.msra.mxu0 0.0
      %5229 = vmatprep.subr.mxu0 %v5183
      %5230 = vmatpush1.msra.mxu0 %v5181
      %5231 = vmatprep.subr.mxu0 0.0
      %5232 = vmatpush2.msra.mxu0 0.0
      %5233 = vmatprep.subr.mxu0 0.0
      %5234 = vmatpush2.msra.mxu0 0.0
      %5235 = vmatprep.subr.mxu0 0.0
      %5236 = vmatpush2.msra.mxu0 0.0
      %5237 = vmatprep.subr.mxu0 0.0
      %5238 = vmatpush2.msra.mxu0 0.0
      %5239 = vmatprep.subr.mxu0 0.0
      %5240 = vmatpush2.msra.mxu0 0.0
      %5241 = vmatprep.subr.mxu0 0.0
      %5242 = vmatpush2.msra.mxu0 0.0
      %5243 = vmatprep.subr.mxu0 0.0
      %5244 = vmatpush2.msra.mxu0 0.0
      %5245 = vmatprep.subr.mxu0 0.0
      %5246 = vmatpush2.msra.mxu0 0.0
      %5247 = vmatprep.subr.mxu0 0.0
      %5248 = vmatpush2.msra.mxu0 0.0
      %5249 = vmatprep.subr.mxu0 0.0
      %5250 = vmatpush2.msra.mxu0 0.0
      %5251 = vmatprep.subr.mxu0 0.0
      %5252 = vmatpush2.msra.mxu0 0.0
      %5253 = vmatprep.subr.mxu0 0.0
      %5254 = vmatpush2.msra.mxu0 0.0
      %5255 = vmatprep.subr.mxu0 0.0
      %5256 = vmatpush2.msra.mxu0 0.0
      %5257 = vmatprep.subr.mxu0 0.0
      %5258 = vmatpush2.msra.mxu0 0.0
      %5259 = vmatprep.subr.mxu0 0.0
      %5260 = vmatpush2.msra.mxu0 0.0
      %5261 = vmatprep.subr.mxu0 0.0
      %5262 = vmatpush2.msra.mxu0 0.0
      %5263 = vmatprep.mubr.f32.mxu0 0.0
      %5264 = vmatmul.mubr.f32.gmra.mxu0 %v5179
      %v5265 = vpop.f32.mrf.mxu0
      %v5266 = vadd.f32 0.0, %v5265
      %v5267 = vpop.f32.mrf.mxu0
      %v5268 = vadd.f32 0.0, %v5267
      %5269 = vdwg.mxu0
      %5270 = vmatprep.subr.mxu0 0.0
      %5271 = vmatpush1.msra.mxu0 0.0
      %5272 = vmatprep.subr.mxu0 0.0
      %5273 = vmatpush1.msra.mxu0 0.0
      %5274 = vmatprep.subr.mxu0 0.0
      %5275 = vmatpush1.msra.mxu0 0.0
      %5276 = vmatprep.subr.mxu0 0.0
      %5277 = vmatpush1.msra.mxu0 0.0
      %5278 = vmatprep.subr.mxu0 0.0
      %5279 = vmatpush1.msra.mxu0 0.0
      %5280 = vmatprep.subr.mxu0 0.0
      %5281 = vmatpush1.msra.mxu0 0.0
      %5282 = vmatprep.subr.mxu0 0.0
      %5283 = vmatpush1.msra.mxu0 0.0
      %5284 = vmatprep.subr.mxu0 0.0
      %5285 = vmatpush1.msra.mxu0 0.0
      %5286 = vmatprep.subr.mxu0 0.0
      %5287 = vmatpush1.msra.mxu0 0.0
      %5288 = vmatprep.subr.mxu0 0.0
      %5289 = vmatpush1.msra.mxu0 0.0
      %5290 = vmatprep.subr.mxu0 0.0
      %5291 = vmatpush1.msra.mxu0 0.0
      %5292 = vmatprep.subr.mxu0 0.0
      %5293 = vmatpush1.msra.mxu0 0.0
      %5294 = vmatprep.subr.mxu0 0.0
      %5295 = vmatpush1.msra.mxu0 0.0
      %5296 = vmatprep.subr.mxu0 0.0
      %5297 = vmatpush1.msra.mxu0 0.0
      %5298 = vmatprep.subr.mxu0 0.0
      %5299 = vmatpush1.msra.mxu0 0.0
      %5300 = vmatprep.subr.mxu0 %v5187
      %5301 = vmatpush1.msra.mxu0 %v5185
      %5302 = vmatprep.subr.mxu0 0.0
      %5303 = vmatpush2.msra.mxu0 0.0
      %5304 = vmatprep.subr.mxu0 0.0
      %5305 = vmatpush2.msra.mxu0 0.0
      %5306 = vmatprep.subr.mxu0 0.0
      %5307 = vmatpush2.msra.mxu0 0.0
      %5308 = vmatprep.subr.mxu0 0.0
      %5309 = vmatpush2.msra.mxu0 0.0
      %5310 = vmatprep.subr.mxu0 0.0
      %5311 = vmatpush2.msra.mxu0 0.0
      %5312 = vmatprep.subr.mxu0 0.0
      %5313 = vmatpush2.msra.mxu0 0.0
      %5314 = vmatprep.subr.mxu0 0.0
      %5315 = vmatpush2.msra.mxu0 0.0
      %5316 = vmatprep.subr.mxu0 0.0
      %5317 = vmatpush2.msra.mxu0 0.0
      %5318 = vmatprep.subr.mxu0 0.0
      %5319 = vmatpush2.msra.mxu0 0.0
      %5320 = vmatprep.subr.mxu0 0.0
      %5321 = vmatpush2.msra.mxu0 0.0
      %5322 = vmatprep.subr.mxu0 0.0
      %5323 = vmatpush2.msra.mxu0 0.0
      %5324 = vmatprep.subr.mxu0 0.0
      %5325 = vmatpush2.msra.mxu0 0.0
      %5326 = vmatprep.subr.mxu0 0.0
      %5327 = vmatpush2.msra.mxu0 0.0
      %5328 = vmatprep.subr.mxu0 0.0
      %5329 = vmatpush2.msra.mxu0 0.0
      %5330 = vmatprep.subr.mxu0 0.0
      %5331 = vmatpush2.msra.mxu0 0.0
      %5332 = vmatprep.subr.mxu0 0.0
      %5333 = vmatpush2.msra.mxu0 0.0
      %5334 = vmatprep.mubr.f32.mxu0 0.0
      %5335 = vmatmul.mubr.f32.gmra.mxu0 %v5179
      %v5336 = vpop.f32.mrf.mxu0
      %v5337 = vadd.f32 0.0, %v5336
      %v5338 = vpop.f32.mrf.mxu0
      %v5339 = vadd.f32 0.0, %v5338
      %5340 = vdwg.mxu0
      %5341 = vmatprep.subr.mxu0 0.0
      %5342 = vmatpush1.msra.mxu0 0.0
      %5343 = vmatprep.subr.mxu0 0.0
      %5344 = vmatpush1.msra.mxu0 0.0
      %5345 = vmatprep.subr.mxu0 0.0
      %5346 = vmatpush1.msra.mxu0 0.0
      %5347 = vmatprep.subr.mxu0 0.0
      %5348 = vmatpush1.msra.mxu0 0.0
      %5349 = vmatprep.subr.mxu0 0.0
      %5350 = vmatpush1.msra.mxu0 0.0
      %5351 = vmatprep.subr.mxu0 0.0
      %5352 = vmatpush1.msra.mxu0 0.0
      %5353 = vmatprep.subr.mxu0 0.0
      %5354 = vmatpush1.msra.mxu0 0.0
      %5355 = vmatprep.subr.mxu0 0.0
      %5356 = vmatpush1.msra.mxu0 0.0
      %5357 = vmatprep.subr.mxu0 0.0
      %5358 = vmatpush1.msra.mxu0 0.0
      %5359 = vmatprep.subr.mxu0 0.0
      %5360 = vmatpush1.msra.mxu0 0.0
      %5361 = vmatprep.subr.mxu0 0.0
      %5362 = vmatpush1.msra.mxu0 0.0
      %5363 = vmatprep.subr.mxu0 0.0
      %5364 = vmatpush1.msra.mxu0 0.0
      %5365 = vmatprep.subr.mxu0 0.0
      %5366 = vmatpush1.msra.mxu0 0.0
      %5367 = vmatprep.subr.mxu0 0.0
      %5368 = vmatpush1.msra.mxu0 0.0
      %5369 = vmatprep.subr.mxu0 0.0
      %5370 = vmatpush1.msra.mxu0 0.0
      %5371 = vmatprep.subr.mxu0 %v5191
      %5372 = vmatpush1.msra.mxu0 %v5189
      %5373 = vmatprep.subr.mxu0 0.0
      %5374 = vmatpush2.msra.mxu0 0.0
      %5375 = vmatprep.subr.mxu0 0.0
      %5376 = vmatpush2.msra.mxu0 0.0
      %5377 = vmatprep.subr.mxu0 0.0
      %5378 = vmatpush2.msra.mxu0 0.0
      %5379 = vmatprep.subr.mxu0 0.0
      %5380 = vmatpush2.msra.mxu0 0.0
      %5381 = vmatprep.subr.mxu0 0.0
      %5382 = vmatpush2.msra.mxu0 0.0
      %5383 = vmatprep.subr.mxu0 0.0
      %5384 = vmatpush2.msra.mxu0 0.0
      %5385 = vmatprep.subr.mxu0 0.0
      %5386 = vmatpush2.msra.mxu0 0.0
      %5387 = vmatprep.subr.mxu0 0.0
      %5388 = vmatpush2.msra.mxu0 0.0
      %5389 = vmatprep.subr.mxu0 0.0
      %5390 = vmatpush2.msra.mxu0 0.0
      %5391 = vmatprep.subr.mxu0 0.0
      %5392 = vmatpush2.msra.mxu0 0.0
      %5393 = vmatprep.subr.mxu0 0.0
      %5394 = vmatpush2.msra.mxu0 0.0
      %5395 = vmatprep.subr.mxu0 0.0
      %5396 = vmatpush2.msra.mxu0 0.0
      %5397 = vmatprep.subr.mxu0 0.0
      %5398 = vmatpush2.msra.mxu0 0.0
      %5399 = vmatprep.subr.mxu0 0.0
      %5400 = vmatpush2.msra.mxu0 0.0
      %5401 = vmatprep.subr.mxu0 0.0
      %5402 = vmatpush2.msra.mxu0 0.0
      %5403 = vmatprep.subr.mxu0 0.0
      %5404 = vmatpush2.msra.mxu0 0.0
      %5405 = vmatprep.mubr.f32.mxu0 0.0
      %5406 = vmatmul.mubr.f32.gmra.mxu0 %v5179
      %v5407 = vpop.f32.mrf.mxu0
      %v5408 = vadd.f32 0.0, %v5407
      %v5409 = vpop.f32.mrf.mxu0
      %v5410 = vadd.f32 0.0, %v5409
      %5411 = vdwg.mxu0
      %5412 = vmatprep.subr.mxu0 0.0
      %5413 = vmatpush1.msra.mxu0 0.0
      %5414 = vmatprep.subr.mxu0 0.0
      %5415 = vmatpush1.msra.mxu0 0.0
      %5416 = vmatprep.subr.mxu0 0.0
      %5417 = vmatpush1.msra.mxu0 0.0
      %5418 = vmatprep.subr.mxu0 0.0
      %5419 = vmatpush1.msra.mxu0 0.0
      %5420 = vmatprep.subr.mxu0 0.0
      %5421 = vmatpush1.msra.mxu0 0.0
      %5422 = vmatprep.subr.mxu0 0.0
      %5423 = vmatpush1.msra.mxu0 0.0
      %5424 = vmatprep.subr.mxu0 0.0
      %5425 = vmatpush1.msra.mxu0 0.0
      %5426 = vmatprep.subr.mxu0 0.0
      %5427 = vmatpush1.msra.mxu0 0.0
      %5428 = vmatprep.subr.mxu0 0.0
      %5429 = vmatpush1.msra.mxu0 0.0
      %5430 = vmatprep.subr.mxu0 0.0
      %5431 = vmatpush1.msra.mxu0 0.0
      %5432 = vmatprep.subr.mxu0 0.0
      %5433 = vmatpush1.msra.mxu0 0.0
      %5434 = vmatprep.subr.mxu0 0.0
      %5435 = vmatpush1.msra.mxu0 0.0
      %5436 = vmatprep.subr.mxu0 0.0
      %5437 = vmatpush1.msra.mxu0 0.0
      %5438 = vmatprep.subr.mxu0 0.0
      %5439 = vmatpush1.msra.mxu0 0.0
      %5440 = vmatprep.subr.mxu0 0.0
      %5441 = vmatpush1.msra.mxu0 0.0
      %5442 = vmatprep.subr.mxu0 %v5195
      %5443 = vmatpush1.msra.mxu0 %v5193
      %5444 = vmatprep.subr.mxu0 0.0
      %5445 = vmatpush2.msra.mxu0 0.0
      %5446 = vmatprep.subr.mxu0 0.0
      %5447 = vmatpush2.msra.mxu0 0.0
      %5448 = vmatprep.subr.mxu0 0.0
      %5449 = vmatpush2.msra.mxu0 0.0
      %5450 = vmatprep.subr.mxu0 0.0
      %5451 = vmatpush2.msra.mxu0 0.0
      %5452 = vmatprep.subr.mxu0 0.0
      %5453 = vmatpush2.msra.mxu0 0.0
      %5454 = vmatprep.subr.mxu0 0.0
      %5455 = vmatpush2.msra.mxu0 0.0
      %5456 = vmatprep.subr.mxu0 0.0
      %5457 = vmatpush2.msra.mxu0 0.0
      %5458 = vmatprep.subr.mxu0 0.0
      %5459 = vmatpush2.msra.mxu0 0.0
      %5460 = vmatprep.subr.mxu0 0.0
      %5461 = vmatpush2.msra.mxu0 0.0
      %5462 = vmatprep.subr.mxu0 0.0
      %5463 = vmatpush2.msra.mxu0 0.0
      %5464 = vmatprep.subr.mxu0 0.0
      %5465 = vmatpush2.msra.mxu0 0.0
      %5466 = vmatprep.subr.mxu0 0.0
      %5467 = vmatpush2.msra.mxu0 0.0
      %5468 = vmatprep.subr.mxu0 0.0
      %5469 = vmatpush2.msra.mxu0 0.0
      %5470 = vmatprep.subr.mxu0 0.0
      %5471 = vmatpush2.msra.mxu0 0.0
      %5472 = vmatprep.subr.mxu0 0.0
      %5473 = vmatpush2.msra.mxu0 0.0
      %5474 = vmatprep.subr.mxu0 0.0
      %5475 = vmatpush2.msra.mxu0 0.0
      %5476 = vmatprep.mubr.f32.mxu0 0.0
      %5477 = vmatmul.mubr.f32.gmra.mxu0 %v5179
      %v5478 = vpop.f32.mrf.mxu0
      %v5479 = vadd.f32 0.0, %v5478
      %v5480 = vpop.f32.mrf.mxu0
      %v5481 = vadd.f32 0.0, %v5480
      %5482 = vdwg.mxu0
      %5483 = vmatprep.subr.mxu0 0.0
      %5484 = vmatpush1.msra.mxu0 0.0
      %5485 = vmatprep.subr.mxu0 0.0
      %5486 = vmatpush1.msra.mxu0 0.0
      %5487 = vmatprep.subr.mxu0 0.0
      %5488 = vmatpush1.msra.mxu0 0.0
      %5489 = vmatprep.subr.mxu0 0.0
      %5490 = vmatpush1.msra.mxu0 0.0
      %5491 = vmatprep.subr.mxu0 0.0
      %5492 = vmatpush1.msra.mxu0 0.0
      %5493 = vmatprep.subr.mxu0 0.0
      %5494 = vmatpush1.msra.mxu0 0.0
      %5495 = vmatprep.subr.mxu0 0.0
      %5496 = vmatpush1.msra.mxu0 0.0
      %5497 = vmatprep.subr.mxu0 0.0
      %5498 = vmatpush1.msra.mxu0 0.0
      %5499 = vmatprep.subr.mxu0 0.0
      %5500 = vmatpush1.msra.mxu0 0.0
      %5501 = vmatprep.subr.mxu0 0.0
      %5502 = vmatpush1.msra.mxu0 0.0
      %5503 = vmatprep.subr.mxu0 0.0
      %5504 = vmatpush1.msra.mxu0 0.0
      %5505 = vmatprep.subr.mxu0 0.0
      %5506 = vmatpush1.msra.mxu0 0.0
      %5507 = vmatprep.subr.mxu0 0.0
      %5508 = vmatpush1.msra.mxu0 0.0
      %5509 = vmatprep.subr.mxu0 0.0
      %5510 = vmatpush1.msra.mxu0 0.0
      %5511 = vmatprep.subr.mxu0 0.0
      %5512 = vmatpush1.msra.mxu0 0.0
      %5513 = vmatprep.subr.mxu0 0.0
      %5514 = vmatpush1.msra.mxu0 %v5197
      %5515 = vmatprep.subr.mxu0 0.0
      %5516 = vmatpush2.msra.mxu0 0.0
      %5517 = vmatprep.subr.mxu0 0.0
      %5518 = vmatpush2.msra.mxu0 0.0
      %5519 = vmatprep.subr.mxu0 0.0
      %5520 = vmatpush2.msra.mxu0 0.0
      %5521 = vmatprep.subr.mxu0 0.0
      %5522 = vmatpush2.msra.mxu0 0.0
      %5523 = vmatprep.subr.mxu0 0.0
      %5524 = vmatpush2.msra.mxu0 0.0
      %5525 = vmatprep.subr.mxu0 0.0
      %5526 = vmatpush2.msra.mxu0 0.0
      %5527 = vmatprep.subr.mxu0 0.0
      %5528 = vmatpush2.msra.mxu0 0.0
      %5529 = vmatprep.subr.mxu0 0.0
      %5530 = vmatpush2.msra.mxu0 0.0
      %5531 = vmatprep.subr.mxu0 0.0
      %5532 = vmatpush2.msra.mxu0 0.0
      %5533 = vmatprep.subr.mxu0 0.0
      %5534 = vmatpush2.msra.mxu0 0.0
      %5535 = vmatprep.subr.mxu0 0.0
      %5536 = vmatpush2.msra.mxu0 0.0
      %5537 = vmatprep.subr.mxu0 0.0
      %5538 = vmatpush2.msra.mxu0 0.0
      %5539 = vmatprep.subr.mxu0 0.0
      %5540 = vmatpush2.msra.mxu0 0.0
      %5541 = vmatprep.subr.mxu0 0.0
      %5542 = vmatpush2.msra.mxu0 0.0
      %5543 = vmatprep.subr.mxu0 0.0
      %5544 = vmatpush2.msra.mxu0 0.0
      %5545 = vmatprep.subr.mxu0 0.0
      %5546 = vmatpush2.msra.mxu0 0.0
      %5547 = vmatprep.mubr.f32.mxu0 0.0
      %5548 = vmatmul.mubr.f32.gmra.mxu0 %v5179
      %v5549 = vpop.f32.mrf.mxu0
      %v5550 = vadd.f32 0.0, %v5549
      %v5551 = vpop.f32.mrf.mxu0
      %5552 = vdwg.mxu0
      %v5553 = vadd.f32 %v5137, %v5266
      %v5554 = vadd.f32 %v5138, %v5268
      %v5555 = vadd.f32 %v5139, %v5337
      %v5556 = vadd.f32 %v5140, %v5339
      %v5557 = vadd.f32 %v5141, %v5408
      %v5558 = vadd.f32 %v5142, %v5410
      %v5559 = vadd.f32 %v5143, %v5479
      %v5560 = vadd.f32 %v5144, %v5481
      %v5561 = vadd.f32 %v5145, %v5550
      %s5562 = scalar_lea.vmem %s1, 104
      %v5563 = vld [vmem:[%s5562] sm:$0xff]
      %5564 = vrot.lane.b32.xlu0 %v171, 22
      %v5565 = vpop.permute.xlu0 %5564
      %5566 = vrot.lane.b32.xlu0 %v188, 22
      %v5567 = vpop.permute.xlu0 %5566
      %5568 = vrot.lane.b32.xlu0 %v172, 22
      %v5569 = vpop.permute.xlu0 %5568
      %5570 = vrot.lane.b32.xlu0 %v189, 22
      %v5571 = vpop.permute.xlu0 %5570
      %5572 = vrot.lane.b32.xlu0 %v173, 22
      %v5573 = vpop.permute.xlu0 %5572
      %5574 = vrot.lane.b32.xlu0 %v190, 22
      %v5575 = vpop.permute.xlu0 %5574
      %5576 = vrot.lane.b32.xlu0 %v174, 22
      %v5577 = vpop.permute.xlu0 %5576
      %5578 = vrot.lane.b32.xlu0 %v191, 22
      %v5579 = vpop.permute.xlu0 %5578
      %5580 = vrot.lane.b32.xlu0 %v175, 22
      %v5581 = vpop.permute.xlu0 %5580
      %5582 = vrot.lane.b32.xlu0 %v1819, 22
      %v5583 = vpop.permute.xlu0 %5582
      %vm5584 = vcmask 179200
      %v5585 = vsel %vm5584, %v5565, %v5567
      %v5586 = vsel %vm5584, %v5567, %v5569
      %v5587 = vsel %vm5584, %v5569, %v5571
      %v5588 = vsel %vm5584, %v5571, %v5573
      %v5589 = vsel %vm5584, %v5573, %v5575
      %v5590 = vsel %vm5584, %v5575, %v5577
      %v5591 = vsel %vm5584, %v5577, %v5579
      %v5592 = vsel %vm5584, %v5579, %v5581
      %v5593 = vsel %vm5584, %v5581, %v5583
      %v5595 = vsel %vm192, %v5563, 0
      %v5597 = vsel %vm196, %v5585, 0
      %v5599 = vsel %vm196, %v5586, 0
      %v5601 = vsel %vm196, %v5587, 0
      %v5603 = vsel %vm196, %v5588, 0
      %v5605 = vsel %vm196, %v5589, 0
      %v5607 = vsel %vm196, %v5590, 0
      %v5609 = vsel %vm196, %v5591, 0
      %v5611 = vsel %vm196, %v5592, 0
      %v5613 = vsel %vm196, %v5593, 0
      %5615 = vmatprep.subr.mxu0 0.0
      %5616 = vmatpush1.msra.mxu0 0.0
      %5617 = vmatprep.subr.mxu0 0.0
      %5618 = vmatpush1.msra.mxu0 0.0
      %5619 = vmatprep.subr.mxu0 0.0
      %5620 = vmatpush1.msra.mxu0 0.0
      %5621 = vmatprep.subr.mxu0 0.0
      %5622 = vmatpush1.msra.mxu0 0.0
      %5623 = vmatprep.subr.mxu0 0.0
      %5624 = vmatpush1.msra.mxu0 0.0
      %5625 = vmatprep.subr.mxu0 0.0
      %5626 = vmatpush1.msra.mxu0 0.0
      %5627 = vmatprep.subr.mxu0 0.0
      %5628 = vmatpush1.msra.mxu0 0.0
      %5629 = vmatprep.subr.mxu0 0.0
      %5630 = vmatpush1.msra.mxu0 0.0
      %5631 = vmatprep.subr.mxu0 0.0
      %5632 = vmatpush1.msra.mxu0 0.0
      %5633 = vmatprep.subr.mxu0 0.0
      %5634 = vmatpush1.msra.mxu0 0.0
      %5635 = vmatprep.subr.mxu0 0.0
      %5636 = vmatpush1.msra.mxu0 0.0
      %5637 = vmatprep.subr.mxu0 0.0
      %5638 = vmatpush1.msra.mxu0 0.0
      %5639 = vmatprep.subr.mxu0 0.0
      %5640 = vmatpush1.msra.mxu0 0.0
      %5641 = vmatprep.subr.mxu0 0.0
      %5642 = vmatpush1.msra.mxu0 0.0
      %5643 = vmatprep.subr.mxu0 0.0
      %5644 = vmatpush1.msra.mxu0 0.0
      %5645 = vmatprep.subr.mxu0 %v5599
      %5646 = vmatpush1.msra.mxu0 %v5597
      %5647 = vmatprep.subr.mxu0 0.0
      %5648 = vmatpush2.msra.mxu0 0.0
      %5649 = vmatprep.subr.mxu0 0.0
      %5650 = vmatpush2.msra.mxu0 0.0
      %5651 = vmatprep.subr.mxu0 0.0
      %5652 = vmatpush2.msra.mxu0 0.0
      %5653 = vmatprep.subr.mxu0 0.0
      %5654 = vmatpush2.msra.mxu0 0.0
      %5655 = vmatprep.subr.mxu0 0.0
      %5656 = vmatpush2.msra.mxu0 0.0
      %5657 = vmatprep.subr.mxu0 0.0
      %5658 = vmatpush2.msra.mxu0 0.0
      %5659 = vmatprep.subr.mxu0 0.0
      %5660 = vmatpush2.msra.mxu0 0.0
      %5661 = vmatprep.subr.mxu0 0.0
      %5662 = vmatpush2.msra.mxu0 0.0
      %5663 = vmatprep.subr.mxu0 0.0
      %5664 = vmatpush2.msra.mxu0 0.0
      %5665 = vmatprep.subr.mxu0 0.0
      %5666 = vmatpush2.msra.mxu0 0.0
      %5667 = vmatprep.subr.mxu0 0.0
      %5668 = vmatpush2.msra.mxu0 0.0
      %5669 = vmatprep.subr.mxu0 0.0
      %5670 = vmatpush2.msra.mxu0 0.0
      %5671 = vmatprep.subr.mxu0 0.0
      %5672 = vmatpush2.msra.mxu0 0.0
      %5673 = vmatprep.subr.mxu0 0.0
      %5674 = vmatpush2.msra.mxu0 0.0
      %5675 = vmatprep.subr.mxu0 0.0
      %5676 = vmatpush2.msra.mxu0 0.0
      %5677 = vmatprep.subr.mxu0 0.0
      %5678 = vmatpush2.msra.mxu0 0.0
      %5679 = vmatprep.mubr.f32.mxu0 0.0
      %5680 = vmatmul.mubr.f32.gmra.mxu0 %v5595
      %v5681 = vpop.f32.mrf.mxu0
      %v5682 = vadd.f32 0.0, %v5681
      %v5683 = vpop.f32.mrf.mxu0
      %v5684 = vadd.f32 0.0, %v5683
      %5685 = vdwg.mxu0
      %5686 = vmatprep.subr.mxu0 0.0
      %5687 = vmatpush1.msra.mxu0 0.0
      %5688 = vmatprep.subr.mxu0 0.0
      %5689 = vmatpush1.msra.mxu0 0.0
      %5690 = vmatprep.subr.mxu0 0.0
      %5691 = vmatpush1.msra.mxu0 0.0
      %5692 = vmatprep.subr.mxu0 0.0
      %5693 = vmatpush1.msra.mxu0 0.0
      %5694 = vmatprep.subr.mxu0 0.0
      %5695 = vmatpush1.msra.mxu0 0.0
      %5696 = vmatprep.subr.mxu0 0.0
      %5697 = vmatpush1.msra.mxu0 0.0
      %5698 = vmatprep.subr.mxu0 0.0
      %5699 = vmatpush1.msra.mxu0 0.0
      %5700 = vmatprep.subr.mxu0 0.0
      %5701 = vmatpush1.msra.mxu0 0.0
      %5702 = vmatprep.subr.mxu0 0.0
      %5703 = vmatpush1.msra.mxu0 0.0
      %5704 = vmatprep.subr.mxu0 0.0
      %5705 = vmatpush1.msra.mxu0 0.0
      %5706 = vmatprep.subr.mxu0 0.0
      %5707 = vmatpush1.msra.mxu0 0.0
      %5708 = vmatprep.subr.mxu0 0.0
      %5709 = vmatpush1.msra.mxu0 0.0
      %5710 = vmatprep.subr.mxu0 0.0
      %5711 = vmatpush1.msra.mxu0 0.0
      %5712 = vmatprep.subr.mxu0 0.0
      %5713 = vmatpush1.msra.mxu0 0.0
      %5714 = vmatprep.subr.mxu0 0.0
      %5715 = vmatpush1.msra.mxu0 0.0
      %5716 = vmatprep.subr.mxu0 %v5603
      %5717 = vmatpush1.msra.mxu0 %v5601
      %5718 = vmatprep.subr.mxu0 0.0
      %5719 = vmatpush2.msra.mxu0 0.0
      %5720 = vmatprep.subr.mxu0 0.0
      %5721 = vmatpush2.msra.mxu0 0.0
      %5722 = vmatprep.subr.mxu0 0.0
      %5723 = vmatpush2.msra.mxu0 0.0
      %5724 = vmatprep.subr.mxu0 0.0
      %5725 = vmatpush2.msra.mxu0 0.0
      %5726 = vmatprep.subr.mxu0 0.0
      %5727 = vmatpush2.msra.mxu0 0.0
      %5728 = vmatprep.subr.mxu0 0.0
      %5729 = vmatpush2.msra.mxu0 0.0
      %5730 = vmatprep.subr.mxu0 0.0
      %5731 = vmatpush2.msra.mxu0 0.0
      %5732 = vmatprep.subr.mxu0 0.0
      %5733 = vmatpush2.msra.mxu0 0.0
      %5734 = vmatprep.subr.mxu0 0.0
      %5735 = vmatpush2.msra.mxu0 0.0
      %5736 = vmatprep.subr.mxu0 0.0
      %5737 = vmatpush2.msra.mxu0 0.0
      %5738 = vmatprep.subr.mxu0 0.0
      %5739 = vmatpush2.msra.mxu0 0.0
      %5740 = vmatprep.subr.mxu0 0.0
      %5741 = vmatpush2.msra.mxu0 0.0
      %5742 = vmatprep.subr.mxu0 0.0
      %5743 = vmatpush2.msra.mxu0 0.0
      %5744 = vmatprep.subr.mxu0 0.0
      %5745 = vmatpush2.msra.mxu0 0.0
      %5746 = vmatprep.subr.mxu0 0.0
      %5747 = vmatpush2.msra.mxu0 0.0
      %5748 = vmatprep.subr.mxu0 0.0
      %5749 = vmatpush2.msra.mxu0 0.0
      %5750 = vmatprep.mubr.f32.mxu0 0.0
      %5751 = vmatmul.mubr.f32.gmra.mxu0 %v5595
      %v5752 = vpop.f32.mrf.mxu0
      %v5753 = vadd.f32 0.0, %v5752
      %v5754 = vpop.f32.mrf.mxu0
      %v5755 = vadd.f32 0.0, %v5754
      %5756 = vdwg.mxu0
      %5757 = vmatprep.subr.mxu0 0.0
      %5758 = vmatpush1.msra.mxu0 0.0
      %5759 = vmatprep.subr.mxu0 0.0
      %5760 = vmatpush1.msra.mxu0 0.0
      %5761 = vmatprep.subr.mxu0 0.0
      %5762 = vmatpush1.msra.mxu0 0.0
      %5763 = vmatprep.subr.mxu0 0.0
      %5764 = vmatpush1.msra.mxu0 0.0
      %5765 = vmatprep.subr.mxu0 0.0
      %5766 = vmatpush1.msra.mxu0 0.0
      %5767 = vmatprep.subr.mxu0 0.0
      %5768 = vmatpush1.msra.mxu0 0.0
      %5769 = vmatprep.subr.mxu0 0.0
      %5770 = vmatpush1.msra.mxu0 0.0
      %5771 = vmatprep.subr.mxu0 0.0
      %5772 = vmatpush1.msra.mxu0 0.0
      %5773 = vmatprep.subr.mxu0 0.0
      %5774 = vmatpush1.msra.mxu0 0.0
      %5775 = vmatprep.subr.mxu0 0.0
      %5776 = vmatpush1.msra.mxu0 0.0
      %5777 = vmatprep.subr.mxu0 0.0
      %5778 = vmatpush1.msra.mxu0 0.0
      %5779 = vmatprep.subr.mxu0 0.0
      %5780 = vmatpush1.msra.mxu0 0.0
      %5781 = vmatprep.subr.mxu0 0.0
      %5782 = vmatpush1.msra.mxu0 0.0
      %5783 = vmatprep.subr.mxu0 0.0
      %5784 = vmatpush1.msra.mxu0 0.0
      %5785 = vmatprep.subr.mxu0 0.0
      %5786 = vmatpush1.msra.mxu0 0.0
      %5787 = vmatprep.subr.mxu0 %v5607
      %5788 = vmatpush1.msra.mxu0 %v5605
      %5789 = vmatprep.subr.mxu0 0.0
      %5790 = vmatpush2.msra.mxu0 0.0
      %5791 = vmatprep.subr.mxu0 0.0
      %5792 = vmatpush2.msra.mxu0 0.0
      %5793 = vmatprep.subr.mxu0 0.0
      %5794 = vmatpush2.msra.mxu0 0.0
      %5795 = vmatprep.subr.mxu0 0.0
      %5796 = vmatpush2.msra.mxu0 0.0
      %5797 = vmatprep.subr.mxu0 0.0
      %5798 = vmatpush2.msra.mxu0 0.0
      %5799 = vmatprep.subr.mxu0 0.0
      %5800 = vmatpush2.msra.mxu0 0.0
      %5801 = vmatprep.subr.mxu0 0.0
      %5802 = vmatpush2.msra.mxu0 0.0
      %5803 = vmatprep.subr.mxu0 0.0
      %5804 = vmatpush2.msra.mxu0 0.0
      %5805 = vmatprep.subr.mxu0 0.0
      %5806 = vmatpush2.msra.mxu0 0.0
      %5807 = vmatprep.subr.mxu0 0.0
      %5808 = vmatpush2.msra.mxu0 0.0
      %5809 = vmatprep.subr.mxu0 0.0
      %5810 = vmatpush2.msra.mxu0 0.0
      %5811 = vmatprep.subr.mxu0 0.0
      %5812 = vmatpush2.msra.mxu0 0.0
      %5813 = vmatprep.subr.mxu0 0.0
      %5814 = vmatpush2.msra.mxu0 0.0
      %5815 = vmatprep.subr.mxu0 0.0
      %5816 = vmatpush2.msra.mxu0 0.0
      %5817 = vmatprep.subr.mxu0 0.0
      %5818 = vmatpush2.msra.mxu0 0.0
      %5819 = vmatprep.subr.mxu0 0.0
      %5820 = vmatpush2.msra.mxu0 0.0
      %5821 = vmatprep.mubr.f32.mxu0 0.0
      %5822 = vmatmul.mubr.f32.gmra.mxu0 %v5595
      %v5823 = vpop.f32.mrf.mxu0
      %v5824 = vadd.f32 0.0, %v5823
      %v5825 = vpop.f32.mrf.mxu0
      %v5826 = vadd.f32 0.0, %v5825
      %5827 = vdwg.mxu0
      %5828 = vmatprep.subr.mxu0 0.0
      %5829 = vmatpush1.msra.mxu0 0.0
      %5830 = vmatprep.subr.mxu0 0.0
      %5831 = vmatpush1.msra.mxu0 0.0
      %5832 = vmatprep.subr.mxu0 0.0
      %5833 = vmatpush1.msra.mxu0 0.0
      %5834 = vmatprep.subr.mxu0 0.0
      %5835 = vmatpush1.msra.mxu0 0.0
      %5836 = vmatprep.subr.mxu0 0.0
      %5837 = vmatpush1.msra.mxu0 0.0
      %5838 = vmatprep.subr.mxu0 0.0
      %5839 = vmatpush1.msra.mxu0 0.0
      %5840 = vmatprep.subr.mxu0 0.0
      %5841 = vmatpush1.msra.mxu0 0.0
      %5842 = vmatprep.subr.mxu0 0.0
      %5843 = vmatpush1.msra.mxu0 0.0
      %5844 = vmatprep.subr.mxu0 0.0
      %5845 = vmatpush1.msra.mxu0 0.0
      %5846 = vmatprep.subr.mxu0 0.0
      %5847 = vmatpush1.msra.mxu0 0.0
      %5848 = vmatprep.subr.mxu0 0.0
      %5849 = vmatpush1.msra.mxu0 0.0
      %5850 = vmatprep.subr.mxu0 0.0
      %5851 = vmatpush1.msra.mxu0 0.0
      %5852 = vmatprep.subr.mxu0 0.0
      %5853 = vmatpush1.msra.mxu0 0.0
      %5854 = vmatprep.subr.mxu0 0.0
      %5855 = vmatpush1.msra.mxu0 0.0
      %5856 = vmatprep.subr.mxu0 0.0
      %5857 = vmatpush1.msra.mxu0 0.0
      %5858 = vmatprep.subr.mxu0 %v5611
      %5859 = vmatpush1.msra.mxu0 %v5609
      %5860 = vmatprep.subr.mxu0 0.0
      %5861 = vmatpush2.msra.mxu0 0.0
      %5862 = vmatprep.subr.mxu0 0.0
      %5863 = vmatpush2.msra.mxu0 0.0
      %5864 = vmatprep.subr.mxu0 0.0
      %5865 = vmatpush2.msra.mxu0 0.0
      %5866 = vmatprep.subr.mxu0 0.0
      %5867 = vmatpush2.msra.mxu0 0.0
      %5868 = vmatprep.subr.mxu0 0.0
      %5869 = vmatpush2.msra.mxu0 0.0
      %5870 = vmatprep.subr.mxu0 0.0
      %5871 = vmatpush2.msra.mxu0 0.0
      %5872 = vmatprep.subr.mxu0 0.0
      %5873 = vmatpush2.msra.mxu0 0.0
      %5874 = vmatprep.subr.mxu0 0.0
      %5875 = vmatpush2.msra.mxu0 0.0
      %5876 = vmatprep.subr.mxu0 0.0
      %5877 = vmatpush2.msra.mxu0 0.0
      %5878 = vmatprep.subr.mxu0 0.0
      %5879 = vmatpush2.msra.mxu0 0.0
      %5880 = vmatprep.subr.mxu0 0.0
      %5881 = vmatpush2.msra.mxu0 0.0
      %5882 = vmatprep.subr.mxu0 0.0
      %5883 = vmatpush2.msra.mxu0 0.0
      %5884 = vmatprep.subr.mxu0 0.0
      %5885 = vmatpush2.msra.mxu0 0.0
      %5886 = vmatprep.subr.mxu0 0.0
      %5887 = vmatpush2.msra.mxu0 0.0
      %5888 = vmatprep.subr.mxu0 0.0
      %5889 = vmatpush2.msra.mxu0 0.0
      %5890 = vmatprep.subr.mxu0 0.0
      %5891 = vmatpush2.msra.mxu0 0.0
      %5892 = vmatprep.mubr.f32.mxu0 0.0
      %5893 = vmatmul.mubr.f32.gmra.mxu0 %v5595
      %v5894 = vpop.f32.mrf.mxu0
      %v5895 = vadd.f32 0.0, %v5894
      %v5896 = vpop.f32.mrf.mxu0
      %v5897 = vadd.f32 0.0, %v5896
      %5898 = vdwg.mxu0
      %5899 = vmatprep.subr.mxu0 0.0
      %5900 = vmatpush1.msra.mxu0 0.0
      %5901 = vmatprep.subr.mxu0 0.0
      %5902 = vmatpush1.msra.mxu0 0.0
      %5903 = vmatprep.subr.mxu0 0.0
      %5904 = vmatpush1.msra.mxu0 0.0
      %5905 = vmatprep.subr.mxu0 0.0
      %5906 = vmatpush1.msra.mxu0 0.0
      %5907 = vmatprep.subr.mxu0 0.0
      %5908 = vmatpush1.msra.mxu0 0.0
      %5909 = vmatprep.subr.mxu0 0.0
      %5910 = vmatpush1.msra.mxu0 0.0
      %5911 = vmatprep.subr.mxu0 0.0
      %5912 = vmatpush1.msra.mxu0 0.0
      %5913 = vmatprep.subr.mxu0 0.0
      %5914 = vmatpush1.msra.mxu0 0.0
      %5915 = vmatprep.subr.mxu0 0.0
      %5916 = vmatpush1.msra.mxu0 0.0
      %5917 = vmatprep.subr.mxu0 0.0
      %5918 = vmatpush1.msra.mxu0 0.0
      %5919 = vmatprep.subr.mxu0 0.0
      %5920 = vmatpush1.msra.mxu0 0.0
      %5921 = vmatprep.subr.mxu0 0.0
      %5922 = vmatpush1.msra.mxu0 0.0
      %5923 = vmatprep.subr.mxu0 0.0
      %5924 = vmatpush1.msra.mxu0 0.0
      %5925 = vmatprep.subr.mxu0 0.0
      %5926 = vmatpush1.msra.mxu0 0.0
      %5927 = vmatprep.subr.mxu0 0.0
      %5928 = vmatpush1.msra.mxu0 0.0
      %5929 = vmatprep.subr.mxu0 0.0
      %5930 = vmatpush1.msra.mxu0 %v5613
      %5931 = vmatprep.subr.mxu0 0.0
      %5932 = vmatpush2.msra.mxu0 0.0
      %5933 = vmatprep.subr.mxu0 0.0
      %5934 = vmatpush2.msra.mxu0 0.0
      %5935 = vmatprep.subr.mxu0 0.0
      %5936 = vmatpush2.msra.mxu0 0.0
      %5937 = vmatprep.subr.mxu0 0.0
      %5938 = vmatpush2.msra.mxu0 0.0
      %5939 = vmatprep.subr.mxu0 0.0
      %5940 = vmatpush2.msra.mxu0 0.0
      %5941 = vmatprep.subr.mxu0 0.0
      %5942 = vmatpush2.msra.mxu0 0.0
      %5943 = vmatprep.subr.mxu0 0.0
      %5944 = vmatpush2.msra.mxu0 0.0
      %5945 = vmatprep.subr.mxu0 0.0
      %5946 = vmatpush2.msra.mxu0 0.0
      %5947 = vmatprep.subr.mxu0 0.0
      %5948 = vmatpush2.msra.mxu0 0.0
      %5949 = vmatprep.subr.mxu0 0.0
      %5950 = vmatpush2.msra.mxu0 0.0
      %5951 = vmatprep.subr.mxu0 0.0
      %5952 = vmatpush2.msra.mxu0 0.0
      %5953 = vmatprep.subr.mxu0 0.0
      %5954 = vmatpush2.msra.mxu0 0.0
      %5955 = vmatprep.subr.mxu0 0.0
      %5956 = vmatpush2.msra.mxu0 0.0
      %5957 = vmatprep.subr.mxu0 0.0
      %5958 = vmatpush2.msra.mxu0 0.0
      %5959 = vmatprep.subr.mxu0 0.0
      %5960 = vmatpush2.msra.mxu0 0.0
      %5961 = vmatprep.subr.mxu0 0.0
      %5962 = vmatpush2.msra.mxu0 0.0
      %5963 = vmatprep.mubr.f32.mxu0 0.0
      %5964 = vmatmul.mubr.f32.gmra.mxu0 %v5595
      %v5965 = vpop.f32.mrf.mxu0
      %v5966 = vadd.f32 0.0, %v5965
      %v5967 = vpop.f32.mrf.mxu0
      %5968 = vdwg.mxu0
      %v5969 = vadd.f32 %v5553, %v5682
      %v5970 = vadd.f32 %v5554, %v5684
      %v5971 = vadd.f32 %v5555, %v5753
      %v5972 = vadd.f32 %v5556, %v5755
      %v5973 = vadd.f32 %v5557, %v5824
      %v5974 = vadd.f32 %v5558, %v5826
      %v5975 = vadd.f32 %v5559, %v5895
      %v5976 = vadd.f32 %v5560, %v5897
      %v5977 = vadd.f32 %v5561, %v5966
      %s5978 = scalar_lea.vmem %s1, 112
      %v5979 = vld [vmem:[%s5978] sm:$0xff]
      %5980 = vrot.lane.b32.xlu0 %v171, 21
      %v5981 = vpop.permute.xlu0 %5980
      %5982 = vrot.lane.b32.xlu0 %v188, 21
      %v5983 = vpop.permute.xlu0 %5982
      %5984 = vrot.lane.b32.xlu0 %v172, 21
      %v5985 = vpop.permute.xlu0 %5984
      %5986 = vrot.lane.b32.xlu0 %v189, 21
      %v5987 = vpop.permute.xlu0 %5986
      %5988 = vrot.lane.b32.xlu0 %v173, 21
      %v5989 = vpop.permute.xlu0 %5988
      %5990 = vrot.lane.b32.xlu0 %v190, 21
      %v5991 = vpop.permute.xlu0 %5990
      %5992 = vrot.lane.b32.xlu0 %v174, 21
      %v5993 = vpop.permute.xlu0 %5992
      %5994 = vrot.lane.b32.xlu0 %v191, 21
      %v5995 = vpop.permute.xlu0 %5994
      %5996 = vrot.lane.b32.xlu0 %v175, 21
      %v5997 = vpop.permute.xlu0 %5996
      %5998 = vrot.lane.b32.xlu0 %v1819, 21
      %v5999 = vpop.permute.xlu0 %5998
      %vm6000 = vcmask 171008
      %v6001 = vsel %vm6000, %v5981, %v5983
      %v6002 = vsel %vm6000, %v5983, %v5985
      %v6003 = vsel %vm6000, %v5985, %v5987
      %v6004 = vsel %vm6000, %v5987, %v5989
      %v6005 = vsel %vm6000, %v5989, %v5991
      %v6006 = vsel %vm6000, %v5991, %v5993
      %v6007 = vsel %vm6000, %v5993, %v5995
      %v6008 = vsel %vm6000, %v5995, %v5997
      %v6009 = vsel %vm6000, %v5997, %v5999
      %v6011 = vsel %vm192, %v5979, 0
      %v6013 = vsel %vm196, %v6001, 0
      %v6015 = vsel %vm196, %v6002, 0
      %v6017 = vsel %vm196, %v6003, 0
      %v6019 = vsel %vm196, %v6004, 0
      %v6021 = vsel %vm196, %v6005, 0
      %v6023 = vsel %vm196, %v6006, 0
      %v6025 = vsel %vm196, %v6007, 0
      %v6027 = vsel %vm196, %v6008, 0
      %v6029 = vsel %vm196, %v6009, 0
      %6031 = vmatprep.subr.mxu0 0.0
      %6032 = vmatpush1.msra.mxu0 0.0
      %6033 = vmatprep.subr.mxu0 0.0
      %6034 = vmatpush1.msra.mxu0 0.0
      %6035 = vmatprep.subr.mxu0 0.0
      %6036 = vmatpush1.msra.mxu0 0.0
      %6037 = vmatprep.subr.mxu0 0.0
      %6038 = vmatpush1.msra.mxu0 0.0
      %6039 = vmatprep.subr.mxu0 0.0
      %6040 = vmatpush1.msra.mxu0 0.0
      %6041 = vmatprep.subr.mxu0 0.0
      %6042 = vmatpush1.msra.mxu0 0.0
      %6043 = vmatprep.subr.mxu0 0.0
      %6044 = vmatpush1.msra.mxu0 0.0
      %6045 = vmatprep.subr.mxu0 0.0
      %6046 = vmatpush1.msra.mxu0 0.0
      %6047 = vmatprep.subr.mxu0 0.0
      %6048 = vmatpush1.msra.mxu0 0.0
      %6049 = vmatprep.subr.mxu0 0.0
      %6050 = vmatpush1.msra.mxu0 0.0
      %6051 = vmatprep.subr.mxu0 0.0
      %6052 = vmatpush1.msra.mxu0 0.0
      %6053 = vmatprep.subr.mxu0 0.0
      %6054 = vmatpush1.msra.mxu0 0.0
      %6055 = vmatprep.subr.mxu0 0.0
      %6056 = vmatpush1.msra.mxu0 0.0
      %6057 = vmatprep.subr.mxu0 0.0
      %6058 = vmatpush1.msra.mxu0 0.0
      %6059 = vmatprep.subr.mxu0 0.0
      %6060 = vmatpush1.msra.mxu0 0.0
      %6061 = vmatprep.subr.mxu0 %v6015
      %6062 = vmatpush1.msra.mxu0 %v6013
      %6063 = vmatprep.subr.mxu0 0.0
      %6064 = vmatpush2.msra.mxu0 0.0
      %6065 = vmatprep.subr.mxu0 0.0
      %6066 = vmatpush2.msra.mxu0 0.0
      %6067 = vmatprep.subr.mxu0 0.0
      %6068 = vmatpush2.msra.mxu0 0.0
      %6069 = vmatprep.subr.mxu0 0.0
      %6070 = vmatpush2.msra.mxu0 0.0
      %6071 = vmatprep.subr.mxu0 0.0
      %6072 = vmatpush2.msra.mxu0 0.0
      %6073 = vmatprep.subr.mxu0 0.0
      %6074 = vmatpush2.msra.mxu0 0.0
      %6075 = vmatprep.subr.mxu0 0.0
      %6076 = vmatpush2.msra.mxu0 0.0
      %6077 = vmatprep.subr.mxu0 0.0
      %6078 = vmatpush2.msra.mxu0 0.0
      %6079 = vmatprep.subr.mxu0 0.0
      %6080 = vmatpush2.msra.mxu0 0.0
      %6081 = vmatprep.subr.mxu0 0.0
      %6082 = vmatpush2.msra.mxu0 0.0
      %6083 = vmatprep.subr.mxu0 0.0
      %6084 = vmatpush2.msra.mxu0 0.0
      %6085 = vmatprep.subr.mxu0 0.0
      %6086 = vmatpush2.msra.mxu0 0.0
      %6087 = vmatprep.subr.mxu0 0.0
      %6088 = vmatpush2.msra.mxu0 0.0
      %6089 = vmatprep.subr.mxu0 0.0
      %6090 = vmatpush2.msra.mxu0 0.0
      %6091 = vmatprep.subr.mxu0 0.0
      %6092 = vmatpush2.msra.mxu0 0.0
      %6093 = vmatprep.subr.mxu0 0.0
      %6094 = vmatpush2.msra.mxu0 0.0
      %6095 = vmatprep.mubr.f32.mxu0 0.0
      %6096 = vmatmul.mubr.f32.gmra.mxu0 %v6011
      %v6097 = vpop.f32.mrf.mxu0
      %v6098 = vadd.f32 0.0, %v6097
      %v6099 = vpop.f32.mrf.mxu0
      %v6100 = vadd.f32 0.0, %v6099
      %6101 = vdwg.mxu0
      %6102 = vmatprep.subr.mxu0 0.0
      %6103 = vmatpush1.msra.mxu0 0.0
      %6104 = vmatprep.subr.mxu0 0.0
      %6105 = vmatpush1.msra.mxu0 0.0
      %6106 = vmatprep.subr.mxu0 0.0
      %6107 = vmatpush1.msra.mxu0 0.0
      %6108 = vmatprep.subr.mxu0 0.0
      %6109 = vmatpush1.msra.mxu0 0.0
      %6110 = vmatprep.subr.mxu0 0.0
      %6111 = vmatpush1.msra.mxu0 0.0
      %6112 = vmatprep.subr.mxu0 0.0
      %6113 = vmatpush1.msra.mxu0 0.0
      %6114 = vmatprep.subr.mxu0 0.0
      %6115 = vmatpush1.msra.mxu0 0.0
      %6116 = vmatprep.subr.mxu0 0.0
      %6117 = vmatpush1.msra.mxu0 0.0
      %6118 = vmatprep.subr.mxu0 0.0
      %6119 = vmatpush1.msra.mxu0 0.0
      %6120 = vmatprep.subr.mxu0 0.0
      %6121 = vmatpush1.msra.mxu0 0.0
      %6122 = vmatprep.subr.mxu0 0.0
      %6123 = vmatpush1.msra.mxu0 0.0
      %6124 = vmatprep.subr.mxu0 0.0
      %6125 = vmatpush1.msra.mxu0 0.0
      %6126 = vmatprep.subr.mxu0 0.0
      %6127 = vmatpush1.msra.mxu0 0.0
      %6128 = vmatprep.subr.mxu0 0.0
      %6129 = vmatpush1.msra.mxu0 0.0
      %6130 = vmatprep.subr.mxu0 0.0
      %6131 = vmatpush1.msra.mxu0 0.0
      %6132 = vmatprep.subr.mxu0 %v6019
      %6133 = vmatpush1.msra.mxu0 %v6017
      %6134 = vmatprep.subr.mxu0 0.0
      %6135 = vmatpush2.msra.mxu0 0.0
      %6136 = vmatprep.subr.mxu0 0.0
      %6137 = vmatpush2.msra.mxu0 0.0
      %6138 = vmatprep.subr.mxu0 0.0
      %6139 = vmatpush2.msra.mxu0 0.0
      %6140 = vmatprep.subr.mxu0 0.0
      %6141 = vmatpush2.msra.mxu0 0.0
      %6142 = vmatprep.subr.mxu0 0.0
      %6143 = vmatpush2.msra.mxu0 0.0
      %6144 = vmatprep.subr.mxu0 0.0
      %6145 = vmatpush2.msra.mxu0 0.0
      %6146 = vmatprep.subr.mxu0 0.0
      %6147 = vmatpush2.msra.mxu0 0.0
      %6148 = vmatprep.subr.mxu0 0.0
      %6149 = vmatpush2.msra.mxu0 0.0
      %6150 = vmatprep.subr.mxu0 0.0
      %6151 = vmatpush2.msra.mxu0 0.0
      %6152 = vmatprep.subr.mxu0 0.0
      %6153 = vmatpush2.msra.mxu0 0.0
      %6154 = vmatprep.subr.mxu0 0.0
      %6155 = vmatpush2.msra.mxu0 0.0
      %6156 = vmatprep.subr.mxu0 0.0
      %6157 = vmatpush2.msra.mxu0 0.0
      %6158 = vmatprep.subr.mxu0 0.0
      %6159 = vmatpush2.msra.mxu0 0.0
      %6160 = vmatprep.subr.mxu0 0.0
      %6161 = vmatpush2.msra.mxu0 0.0
      %6162 = vmatprep.subr.mxu0 0.0
      %6163 = vmatpush2.msra.mxu0 0.0
      %6164 = vmatprep.subr.mxu0 0.0
      %6165 = vmatpush2.msra.mxu0 0.0
      %6166 = vmatprep.mubr.f32.mxu0 0.0
      %6167 = vmatmul.mubr.f32.gmra.mxu0 %v6011
      %v6168 = vpop.f32.mrf.mxu0
      %v6169 = vadd.f32 0.0, %v6168
      %v6170 = vpop.f32.mrf.mxu0
      %v6171 = vadd.f32 0.0, %v6170
      %6172 = vdwg.mxu0
      %6173 = vmatprep.subr.mxu0 0.0
      %6174 = vmatpush1.msra.mxu0 0.0
      %6175 = vmatprep.subr.mxu0 0.0
      %6176 = vmatpush1.msra.mxu0 0.0
      %6177 = vmatprep.subr.mxu0 0.0
      %6178 = vmatpush1.msra.mxu0 0.0
      %6179 = vmatprep.subr.mxu0 0.0
      %6180 = vmatpush1.msra.mxu0 0.0
      %6181 = vmatprep.subr.mxu0 0.0
      %6182 = vmatpush1.msra.mxu0 0.0
      %6183 = vmatprep.subr.mxu0 0.0
      %6184 = vmatpush1.msra.mxu0 0.0
      %6185 = vmatprep.subr.mxu0 0.0
      %6186 = vmatpush1.msra.mxu0 0.0
      %6187 = vmatprep.subr.mxu0 0.0
      %6188 = vmatpush1.msra.mxu0 0.0
      %6189 = vmatprep.subr.mxu0 0.0
      %6190 = vmatpush1.msra.mxu0 0.0
      %6191 = vmatprep.subr.mxu0 0.0
      %6192 = vmatpush1.msra.mxu0 0.0
      %6193 = vmatprep.subr.mxu0 0.0
      %6194 = vmatpush1.msra.mxu0 0.0
      %6195 = vmatprep.subr.mxu0 0.0
      %6196 = vmatpush1.msra.mxu0 0.0
      %6197 = vmatprep.subr.mxu0 0.0
      %6198 = vmatpush1.msra.mxu0 0.0
      %6199 = vmatprep.subr.mxu0 0.0
      %6200 = vmatpush1.msra.mxu0 0.0
      %6201 = vmatprep.subr.mxu0 0.0
      %6202 = vmatpush1.msra.mxu0 0.0
      %6203 = vmatprep.subr.mxu0 %v6023
      %6204 = vmatpush1.msra.mxu0 %v6021
      %6205 = vmatprep.subr.mxu0 0.0
      %6206 = vmatpush2.msra.mxu0 0.0
      %6207 = vmatprep.subr.mxu0 0.0
      %6208 = vmatpush2.msra.mxu0 0.0
      %6209 = vmatprep.subr.mxu0 0.0
      %6210 = vmatpush2.msra.mxu0 0.0
      %6211 = vmatprep.subr.mxu0 0.0
      %6212 = vmatpush2.msra.mxu0 0.0
      %6213 = vmatprep.subr.mxu0 0.0
      %6214 = vmatpush2.msra.mxu0 0.0
      %6215 = vmatprep.subr.mxu0 0.0
      %6216 = vmatpush2.msra.mxu0 0.0
      %6217 = vmatprep.subr.mxu0 0.0
      %6218 = vmatpush2.msra.mxu0 0.0
      %6219 = vmatprep.subr.mxu0 0.0
      %6220 = vmatpush2.msra.mxu0 0.0
      %6221 = vmatprep.subr.mxu0 0.0
      %6222 = vmatpush2.msra.mxu0 0.0
      %6223 = vmatprep.subr.mxu0 0.0
      %6224 = vmatpush2.msra.mxu0 0.0
      %6225 = vmatprep.subr.mxu0 0.0
      %6226 = vmatpush2.msra.mxu0 0.0
      %6227 = vmatprep.subr.mxu0 0.0
      %6228 = vmatpush2.msra.mxu0 0.0
      %6229 = vmatprep.subr.mxu0 0.0
      %6230 = vmatpush2.msra.mxu0 0.0
      %6231 = vmatprep.subr.mxu0 0.0
      %6232 = vmatpush2.msra.mxu0 0.0
      %6233 = vmatprep.subr.mxu0 0.0
      %6234 = vmatpush2.msra.mxu0 0.0
      %6235 = vmatprep.subr.mxu0 0.0
      %6236 = vmatpush2.msra.mxu0 0.0
      %6237 = vmatprep.mubr.f32.mxu0 0.0
      %6238 = vmatmul.mubr.f32.gmra.mxu0 %v6011
      %v6239 = vpop.f32.mrf.mxu0
      %v6240 = vadd.f32 0.0, %v6239
      %v6241 = vpop.f32.mrf.mxu0
      %v6242 = vadd.f32 0.0, %v6241
      %6243 = vdwg.mxu0
      %6244 = vmatprep.subr.mxu0 0.0
      %6245 = vmatpush1.msra.mxu0 0.0
      %6246 = vmatprep.subr.mxu0 0.0
      %6247 = vmatpush1.msra.mxu0 0.0
      %6248 = vmatprep.subr.mxu0 0.0
      %6249 = vmatpush1.msra.mxu0 0.0
      %6250 = vmatprep.subr.mxu0 0.0
      %6251 = vmatpush1.msra.mxu0 0.0
      %6252 = vmatprep.subr.mxu0 0.0
      %6253 = vmatpush1.msra.mxu0 0.0
      %6254 = vmatprep.subr.mxu0 0.0
      %6255 = vmatpush1.msra.mxu0 0.0
      %6256 = vmatprep.subr.mxu0 0.0
      %6257 = vmatpush1.msra.mxu0 0.0
      %6258 = vmatprep.subr.mxu0 0.0
      %6259 = vmatpush1.msra.mxu0 0.0
      %6260 = vmatprep.subr.mxu0 0.0
      %6261 = vmatpush1.msra.mxu0 0.0
      %6262 = vmatprep.subr.mxu0 0.0
      %6263 = vmatpush1.msra.mxu0 0.0
      %6264 = vmatprep.subr.mxu0 0.0
      %6265 = vmatpush1.msra.mxu0 0.0
      %6266 = vmatprep.subr.mxu0 0.0
      %6267 = vmatpush1.msra.mxu0 0.0
      %6268 = vmatprep.subr.mxu0 0.0
      %6269 = vmatpush1.msra.mxu0 0.0
      %6270 = vmatprep.subr.mxu0 0.0
      %6271 = vmatpush1.msra.mxu0 0.0
      %6272 = vmatprep.subr.mxu0 0.0
      %6273 = vmatpush1.msra.mxu0 0.0
      %6274 = vmatprep.subr.mxu0 %v6027
      %6275 = vmatpush1.msra.mxu0 %v6025
      %6276 = vmatprep.subr.mxu0 0.0
      %6277 = vmatpush2.msra.mxu0 0.0
      %6278 = vmatprep.subr.mxu0 0.0
      %6279 = vmatpush2.msra.mxu0 0.0
      %6280 = vmatprep.subr.mxu0 0.0
      %6281 = vmatpush2.msra.mxu0 0.0
      %6282 = vmatprep.subr.mxu0 0.0
      %6283 = vmatpush2.msra.mxu0 0.0
      %6284 = vmatprep.subr.mxu0 0.0
      %6285 = vmatpush2.msra.mxu0 0.0
      %6286 = vmatprep.subr.mxu0 0.0
      %6287 = vmatpush2.msra.mxu0 0.0
      %6288 = vmatprep.subr.mxu0 0.0
      %6289 = vmatpush2.msra.mxu0 0.0
      %6290 = vmatprep.subr.mxu0 0.0
      %6291 = vmatpush2.msra.mxu0 0.0
      %6292 = vmatprep.subr.mxu0 0.0
      %6293 = vmatpush2.msra.mxu0 0.0
      %6294 = vmatprep.subr.mxu0 0.0
      %6295 = vmatpush2.msra.mxu0 0.0
      %6296 = vmatprep.subr.mxu0 0.0
      %6297 = vmatpush2.msra.mxu0 0.0
      %6298 = vmatprep.subr.mxu0 0.0
      %6299 = vmatpush2.msra.mxu0 0.0
      %6300 = vmatprep.subr.mxu0 0.0
      %6301 = vmatpush2.msra.mxu0 0.0
      %6302 = vmatprep.subr.mxu0 0.0
      %6303 = vmatpush2.msra.mxu0 0.0
      %6304 = vmatprep.subr.mxu0 0.0
      %6305 = vmatpush2.msra.mxu0 0.0
      %6306 = vmatprep.subr.mxu0 0.0
      %6307 = vmatpush2.msra.mxu0 0.0
      %6308 = vmatprep.mubr.f32.mxu0 0.0
      %6309 = vmatmul.mubr.f32.gmra.mxu0 %v6011
      %v6310 = vpop.f32.mrf.mxu0
      %v6311 = vadd.f32 0.0, %v6310
      %v6312 = vpop.f32.mrf.mxu0
      %v6313 = vadd.f32 0.0, %v6312
      %6314 = vdwg.mxu0
      %6315 = vmatprep.subr.mxu0 0.0
      %6316 = vmatpush1.msra.mxu0 0.0
      %6317 = vmatprep.subr.mxu0 0.0
      %6318 = vmatpush1.msra.mxu0 0.0
      %6319 = vmatprep.subr.mxu0 0.0
      %6320 = vmatpush1.msra.mxu0 0.0
      %6321 = vmatprep.subr.mxu0 0.0
      %6322 = vmatpush1.msra.mxu0 0.0
      %6323 = vmatprep.subr.mxu0 0.0
      %6324 = vmatpush1.msra.mxu0 0.0
      %6325 = vmatprep.subr.mxu0 0.0
      %6326 = vmatpush1.msra.mxu0 0.0
      %6327 = vmatprep.subr.mxu0 0.0
      %6328 = vmatpush1.msra.mxu0 0.0
      %6329 = vmatprep.subr.mxu0 0.0
      %6330 = vmatpush1.msra.mxu0 0.0
      %6331 = vmatprep.subr.mxu0 0.0
      %6332 = vmatpush1.msra.mxu0 0.0
      %6333 = vmatprep.subr.mxu0 0.0
      %6334 = vmatpush1.msra.mxu0 0.0
      %6335 = vmatprep.subr.mxu0 0.0
      %6336 = vmatpush1.msra.mxu0 0.0
      %6337 = vmatprep.subr.mxu0 0.0
      %6338 = vmatpush1.msra.mxu0 0.0
      %6339 = vmatprep.subr.mxu0 0.0
      %6340 = vmatpush1.msra.mxu0 0.0
      %6341 = vmatprep.subr.mxu0 0.0
      %6342 = vmatpush1.msra.mxu0 0.0
      %6343 = vmatprep.subr.mxu0 0.0
      %6344 = vmatpush1.msra.mxu0 0.0
      %6345 = vmatprep.subr.mxu0 0.0
      %6346 = vmatpush1.msra.mxu0 %v6029
      %6347 = vmatprep.subr.mxu0 0.0
      %6348 = vmatpush2.msra.mxu0 0.0
      %6349 = vmatprep.subr.mxu0 0.0
      %6350 = vmatpush2.msra.mxu0 0.0
      %6351 = vmatprep.subr.mxu0 0.0
      %6352 = vmatpush2.msra.mxu0 0.0
      %6353 = vmatprep.subr.mxu0 0.0
      %6354 = vmatpush2.msra.mxu0 0.0
      %6355 = vmatprep.subr.mxu0 0.0
      %6356 = vmatpush2.msra.mxu0 0.0
      %6357 = vmatprep.subr.mxu0 0.0
      %6358 = vmatpush2.msra.mxu0 0.0
      %6359 = vmatprep.subr.mxu0 0.0
      %6360 = vmatpush2.msra.mxu0 0.0
      %6361 = vmatprep.subr.mxu0 0.0
      %6362 = vmatpush2.msra.mxu0 0.0
      %6363 = vmatprep.subr.mxu0 0.0
      %6364 = vmatpush2.msra.mxu0 0.0
      %6365 = vmatprep.subr.mxu0 0.0
      %6366 = vmatpush2.msra.mxu0 0.0
      %6367 = vmatprep.subr.mxu0 0.0
      %6368 = vmatpush2.msra.mxu0 0.0
      %6369 = vmatprep.subr.mxu0 0.0
      %6370 = vmatpush2.msra.mxu0 0.0
      %6371 = vmatprep.subr.mxu0 0.0
      %6372 = vmatpush2.msra.mxu0 0.0
      %6373 = vmatprep.subr.mxu0 0.0
      %6374 = vmatpush2.msra.mxu0 0.0
      %6375 = vmatprep.subr.mxu0 0.0
      %6376 = vmatpush2.msra.mxu0 0.0
      %6377 = vmatprep.subr.mxu0 0.0
      %6378 = vmatpush2.msra.mxu0 0.0
      %6379 = vmatprep.mubr.f32.mxu0 0.0
      %6380 = vmatmul.mubr.f32.gmra.mxu0 %v6011
      %v6381 = vpop.f32.mrf.mxu0
      %v6382 = vadd.f32 0.0, %v6381
      %v6383 = vpop.f32.mrf.mxu0
      %6384 = vdwg.mxu0
      %v6385 = vadd.f32 %v5969, %v6098
      %v6386 = vadd.f32 %v5970, %v6100
      %v6387 = vadd.f32 %v5971, %v6169
      %v6388 = vadd.f32 %v5972, %v6171
      %v6389 = vadd.f32 %v5973, %v6240
      %v6390 = vadd.f32 %v5974, %v6242
      %v6391 = vadd.f32 %v5975, %v6311
      %v6392 = vadd.f32 %v5976, %v6313
      %v6393 = vadd.f32 %v5977, %v6382
      %s6394 = scalar_lea.vmem %s1, 120
      %v6395 = vld [vmem:[%s6394] sm:$0xff]
      %6396 = vrot.lane.b32.xlu0 %v171, 20
      %v6397 = vpop.permute.xlu0 %6396
      %6398 = vrot.lane.b32.xlu0 %v188, 20
      %v6399 = vpop.permute.xlu0 %6398
      %6400 = vrot.lane.b32.xlu0 %v172, 20
      %v6401 = vpop.permute.xlu0 %6400
      %6402 = vrot.lane.b32.xlu0 %v189, 20
      %v6403 = vpop.permute.xlu0 %6402
      %6404 = vrot.lane.b32.xlu0 %v173, 20
      %v6405 = vpop.permute.xlu0 %6404
      %6406 = vrot.lane.b32.xlu0 %v190, 20
      %v6407 = vpop.permute.xlu0 %6406
      %6408 = vrot.lane.b32.xlu0 %v174, 20
      %v6409 = vpop.permute.xlu0 %6408
      %6410 = vrot.lane.b32.xlu0 %v191, 20
      %v6411 = vpop.permute.xlu0 %6410
      %6412 = vrot.lane.b32.xlu0 %v175, 20
      %v6413 = vpop.permute.xlu0 %6412
      %6414 = vrot.lane.b32.xlu0 %v1819, 20
      %v6415 = vpop.permute.xlu0 %6414
      %vm6416 = vcmask 162816
      %v6417 = vsel %vm6416, %v6397, %v6399
      %v6418 = vsel %vm6416, %v6399, %v6401
      %v6419 = vsel %vm6416, %v6401, %v6403
      %v6420 = vsel %vm6416, %v6403, %v6405
      %v6421 = vsel %vm6416, %v6405, %v6407
      %v6422 = vsel %vm6416, %v6407, %v6409
      %v6423 = vsel %vm6416, %v6409, %v6411
      %v6424 = vsel %vm6416, %v6411, %v6413
      %v6425 = vsel %vm6416, %v6413, %v6415
      %v6427 = vsel %vm192, %v6395, 0
      %v6429 = vsel %vm196, %v6417, 0
      %v6431 = vsel %vm196, %v6418, 0
      %v6433 = vsel %vm196, %v6419, 0
      %v6435 = vsel %vm196, %v6420, 0
      %v6437 = vsel %vm196, %v6421, 0
      %v6439 = vsel %vm196, %v6422, 0
      %v6441 = vsel %vm196, %v6423, 0
      %v6443 = vsel %vm196, %v6424, 0
      %v6445 = vsel %vm196, %v6425, 0
      %6447 = vmatprep.subr.mxu0 0.0
      %6448 = vmatpush1.msra.mxu0 0.0
      %6449 = vmatprep.subr.mxu0 0.0
      %6450 = vmatpush1.msra.mxu0 0.0
      %6451 = vmatprep.subr.mxu0 0.0
      %6452 = vmatpush1.msra.mxu0 0.0
      %6453 = vmatprep.subr.mxu0 0.0
      %6454 = vmatpush1.msra.mxu0 0.0
      %6455 = vmatprep.subr.mxu0 0.0
      %6456 = vmatpush1.msra.mxu0 0.0
      %6457 = vmatprep.subr.mxu0 0.0
      %6458 = vmatpush1.msra.mxu0 0.0
      %6459 = vmatprep.subr.mxu0 0.0
      %6460 = vmatpush1.msra.mxu0 0.0
      %6461 = vmatprep.subr.mxu0 0.0
      %6462 = vmatpush1.msra.mxu0 0.0
      %6463 = vmatprep.subr.mxu0 0.0
      %6464 = vmatpush1.msra.mxu0 0.0
      %6465 = vmatprep.subr.mxu0 0.0
      %6466 = vmatpush1.msra.mxu0 0.0
      %6467 = vmatprep.subr.mxu0 0.0
      %6468 = vmatpush1.msra.mxu0 0.0
      %6469 = vmatprep.subr.mxu0 0.0
      %6470 = vmatpush1.msra.mxu0 0.0
      %6471 = vmatprep.subr.mxu0 0.0
      %6472 = vmatpush1.msra.mxu0 0.0
      %6473 = vmatprep.subr.mxu0 0.0
      %6474 = vmatpush1.msra.mxu0 0.0
      %6475 = vmatprep.subr.mxu0 0.0
      %6476 = vmatpush1.msra.mxu0 0.0
      %6477 = vmatprep.subr.mxu0 %v6431
      %6478 = vmatpush1.msra.mxu0 %v6429
      %6479 = vmatprep.subr.mxu0 0.0
      %6480 = vmatpush2.msra.mxu0 0.0
      %6481 = vmatprep.subr.mxu0 0.0
      %6482 = vmatpush2.msra.mxu0 0.0
      %6483 = vmatprep.subr.mxu0 0.0
      %6484 = vmatpush2.msra.mxu0 0.0
      %6485 = vmatprep.subr.mxu0 0.0
      %6486 = vmatpush2.msra.mxu0 0.0
      %6487 = vmatprep.subr.mxu0 0.0
      %6488 = vmatpush2.msra.mxu0 0.0
      %6489 = vmatprep.subr.mxu0 0.0
      %6490 = vmatpush2.msra.mxu0 0.0
      %6491 = vmatprep.subr.mxu0 0.0
      %6492 = vmatpush2.msra.mxu0 0.0
      %6493 = vmatprep.subr.mxu0 0.0
      %6494 = vmatpush2.msra.mxu0 0.0
      %6495 = vmatprep.subr.mxu0 0.0
      %6496 = vmatpush2.msra.mxu0 0.0
      %6497 = vmatprep.subr.mxu0 0.0
      %6498 = vmatpush2.msra.mxu0 0.0
      %6499 = vmatprep.subr.mxu0 0.0
      %6500 = vmatpush2.msra.mxu0 0.0
      %6501 = vmatprep.subr.mxu0 0.0
      %6502 = vmatpush2.msra.mxu0 0.0
      %6503 = vmatprep.subr.mxu0 0.0
      %6504 = vmatpush2.msra.mxu0 0.0
      %6505 = vmatprep.subr.mxu0 0.0
      %6506 = vmatpush2.msra.mxu0 0.0
      %6507 = vmatprep.subr.mxu0 0.0
      %6508 = vmatpush2.msra.mxu0 0.0
      %6509 = vmatprep.subr.mxu0 0.0
      %6510 = vmatpush2.msra.mxu0 0.0
      %6511 = vmatprep.mubr.f32.mxu0 0.0
      %6512 = vmatmul.mubr.f32.gmra.mxu0 %v6427
      %v6513 = vpop.f32.mrf.mxu0
      %v6514 = vadd.f32 0.0, %v6513
      %v6515 = vpop.f32.mrf.mxu0
      %v6516 = vadd.f32 0.0, %v6515
      %6517 = vdwg.mxu0
      %6518 = vmatprep.subr.mxu0 0.0
      %6519 = vmatpush1.msra.mxu0 0.0
      %6520 = vmatprep.subr.mxu0 0.0
      %6521 = vmatpush1.msra.mxu0 0.0
      %6522 = vmatprep.subr.mxu0 0.0
      %6523 = vmatpush1.msra.mxu0 0.0
      %6524 = vmatprep.subr.mxu0 0.0
      %6525 = vmatpush1.msra.mxu0 0.0
      %6526 = vmatprep.subr.mxu0 0.0
      %6527 = vmatpush1.msra.mxu0 0.0
      %6528 = vmatprep.subr.mxu0 0.0
      %6529 = vmatpush1.msra.mxu0 0.0
      %6530 = vmatprep.subr.mxu0 0.0
      %6531 = vmatpush1.msra.mxu0 0.0
      %6532 = vmatprep.subr.mxu0 0.0
      %6533 = vmatpush1.msra.mxu0 0.0
      %6534 = vmatprep.subr.mxu0 0.0
      %6535 = vmatpush1.msra.mxu0 0.0
      %6536 = vmatprep.subr.mxu0 0.0
      %6537 = vmatpush1.msra.mxu0 0.0
      %6538 = vmatprep.subr.mxu0 0.0
      %6539 = vmatpush1.msra.mxu0 0.0
      %6540 = vmatprep.subr.mxu0 0.0
      %6541 = vmatpush1.msra.mxu0 0.0
      %6542 = vmatprep.subr.mxu0 0.0
      %6543 = vmatpush1.msra.mxu0 0.0
      %6544 = vmatprep.subr.mxu0 0.0
      %6545 = vmatpush1.msra.mxu0 0.0
      %6546 = vmatprep.subr.mxu0 0.0
      %6547 = vmatpush1.msra.mxu0 0.0
      %6548 = vmatprep.subr.mxu0 %v6435
      %6549 = vmatpush1.msra.mxu0 %v6433
      %6550 = vmatprep.subr.mxu0 0.0
      %6551 = vmatpush2.msra.mxu0 0.0
      %6552 = vmatprep.subr.mxu0 0.0
      %6553 = vmatpush2.msra.mxu0 0.0
      %6554 = vmatprep.subr.mxu0 0.0
      %6555 = vmatpush2.msra.mxu0 0.0
      %6556 = vmatprep.subr.mxu0 0.0
      %6557 = vmatpush2.msra.mxu0 0.0
      %6558 = vmatprep.subr.mxu0 0.0
      %6559 = vmatpush2.msra.mxu0 0.0
      %6560 = vmatprep.subr.mxu0 0.0
      %6561 = vmatpush2.msra.mxu0 0.0
      %6562 = vmatprep.subr.mxu0 0.0
      %6563 = vmatpush2.msra.mxu0 0.0
      %6564 = vmatprep.subr.mxu0 0.0
      %6565 = vmatpush2.msra.mxu0 0.0
      %6566 = vmatprep.subr.mxu0 0.0
      %6567 = vmatpush2.msra.mxu0 0.0
      %6568 = vmatprep.subr.mxu0 0.0
      %6569 = vmatpush2.msra.mxu0 0.0
      %6570 = vmatprep.subr.mxu0 0.0
      %6571 = vmatpush2.msra.mxu0 0.0
      %6572 = vmatprep.subr.mxu0 0.0
      %6573 = vmatpush2.msra.mxu0 0.0
      %6574 = vmatprep.subr.mxu0 0.0
      %6575 = vmatpush2.msra.mxu0 0.0
      %6576 = vmatprep.subr.mxu0 0.0
      %6577 = vmatpush2.msra.mxu0 0.0
      %6578 = vmatprep.subr.mxu0 0.0
      %6579 = vmatpush2.msra.mxu0 0.0
      %6580 = vmatprep.subr.mxu0 0.0
      %6581 = vmatpush2.msra.mxu0 0.0
      %6582 = vmatprep.mubr.f32.mxu0 0.0
      %6583 = vmatmul.mubr.f32.gmra.mxu0 %v6427
      %v6584 = vpop.f32.mrf.mxu0
      %v6585 = vadd.f32 0.0, %v6584
      %v6586 = vpop.f32.mrf.mxu0
      %v6587 = vadd.f32 0.0, %v6586
      %6588 = vdwg.mxu0
      %6589 = vmatprep.subr.mxu0 0.0
      %6590 = vmatpush1.msra.mxu0 0.0
      %6591 = vmatprep.subr.mxu0 0.0
      %6592 = vmatpush1.msra.mxu0 0.0
      %6593 = vmatprep.subr.mxu0 0.0
      %6594 = vmatpush1.msra.mxu0 0.0
      %6595 = vmatprep.subr.mxu0 0.0
      %6596 = vmatpush1.msra.mxu0 0.0
      %6597 = vmatprep.subr.mxu0 0.0
      %6598 = vmatpush1.msra.mxu0 0.0
      %6599 = vmatprep.subr.mxu0 0.0
      %6600 = vmatpush1.msra.mxu0 0.0
      %6601 = vmatprep.subr.mxu0 0.0
      %6602 = vmatpush1.msra.mxu0 0.0
      %6603 = vmatprep.subr.mxu0 0.0
      %6604 = vmatpush1.msra.mxu0 0.0
      %6605 = vmatprep.subr.mxu0 0.0
      %6606 = vmatpush1.msra.mxu0 0.0
      %6607 = vmatprep.subr.mxu0 0.0
      %6608 = vmatpush1.msra.mxu0 0.0
      %6609 = vmatprep.subr.mxu0 0.0
      %6610 = vmatpush1.msra.mxu0 0.0
      %6611 = vmatprep.subr.mxu0 0.0
      %6612 = vmatpush1.msra.mxu0 0.0
      %6613 = vmatprep.subr.mxu0 0.0
      %6614 = vmatpush1.msra.mxu0 0.0
      %6615 = vmatprep.subr.mxu0 0.0
      %6616 = vmatpush1.msra.mxu0 0.0
      %6617 = vmatprep.subr.mxu0 0.0
      %6618 = vmatpush1.msra.mxu0 0.0
      %6619 = vmatprep.subr.mxu0 %v6439
      %6620 = vmatpush1.msra.mxu0 %v6437
      %6621 = vmatprep.subr.mxu0 0.0
      %6622 = vmatpush2.msra.mxu0 0.0
      %6623 = vmatprep.subr.mxu0 0.0
      %6624 = vmatpush2.msra.mxu0 0.0
      %6625 = vmatprep.subr.mxu0 0.0
      %6626 = vmatpush2.msra.mxu0 0.0
      %6627 = vmatprep.subr.mxu0 0.0
      %6628 = vmatpush2.msra.mxu0 0.0
      %6629 = vmatprep.subr.mxu0 0.0
      %6630 = vmatpush2.msra.mxu0 0.0
      %6631 = vmatprep.subr.mxu0 0.0
      %6632 = vmatpush2.msra.mxu0 0.0
      %6633 = vmatprep.subr.mxu0 0.0
      %6634 = vmatpush2.msra.mxu0 0.0
      %6635 = vmatprep.subr.mxu0 0.0
      %6636 = vmatpush2.msra.mxu0 0.0
      %6637 = vmatprep.subr.mxu0 0.0
      %6638 = vmatpush2.msra.mxu0 0.0
      %6639 = vmatprep.subr.mxu0 0.0
      %6640 = vmatpush2.msra.mxu0 0.0
      %6641 = vmatprep.subr.mxu0 0.0
      %6642 = vmatpush2.msra.mxu0 0.0
      %6643 = vmatprep.subr.mxu0 0.0
      %6644 = vmatpush2.msra.mxu0 0.0
      %6645 = vmatprep.subr.mxu0 0.0
      %6646 = vmatpush2.msra.mxu0 0.0
      %6647 = vmatprep.subr.mxu0 0.0
      %6648 = vmatpush2.msra.mxu0 0.0
      %6649 = vmatprep.subr.mxu0 0.0
      %6650 = vmatpush2.msra.mxu0 0.0
      %6651 = vmatprep.subr.mxu0 0.0
      %6652 = vmatpush2.msra.mxu0 0.0
      %6653 = vmatprep.mubr.f32.mxu0 0.0
      %6654 = vmatmul.mubr.f32.gmra.mxu0 %v6427
      %v6655 = vpop.f32.mrf.mxu0
      %v6656 = vadd.f32 0.0, %v6655
      %v6657 = vpop.f32.mrf.mxu0
      %v6658 = vadd.f32 0.0, %v6657
      %6659 = vdwg.mxu0
      %6660 = vmatprep.subr.mxu0 0.0
      %6661 = vmatpush1.msra.mxu0 0.0
      %6662 = vmatprep.subr.mxu0 0.0
      %6663 = vmatpush1.msra.mxu0 0.0
      %6664 = vmatprep.subr.mxu0 0.0
      %6665 = vmatpush1.msra.mxu0 0.0
      %6666 = vmatprep.subr.mxu0 0.0
      %6667 = vmatpush1.msra.mxu0 0.0
      %6668 = vmatprep.subr.mxu0 0.0
      %6669 = vmatpush1.msra.mxu0 0.0
      %6670 = vmatprep.subr.mxu0 0.0
      %6671 = vmatpush1.msra.mxu0 0.0
      %6672 = vmatprep.subr.mxu0 0.0
      %6673 = vmatpush1.msra.mxu0 0.0
      %6674 = vmatprep.subr.mxu0 0.0
      %6675 = vmatpush1.msra.mxu0 0.0
      %6676 = vmatprep.subr.mxu0 0.0
      %6677 = vmatpush1.msra.mxu0 0.0
      %6678 = vmatprep.subr.mxu0 0.0
      %6679 = vmatpush1.msra.mxu0 0.0
      %6680 = vmatprep.subr.mxu0 0.0
      %6681 = vmatpush1.msra.mxu0 0.0
      %6682 = vmatprep.subr.mxu0 0.0
      %6683 = vmatpush1.msra.mxu0 0.0
      %6684 = vmatprep.subr.mxu0 0.0
      %6685 = vmatpush1.msra.mxu0 0.0
      %6686 = vmatprep.subr.mxu0 0.0
      %6687 = vmatpush1.msra.mxu0 0.0
      %6688 = vmatprep.subr.mxu0 0.0
      %6689 = vmatpush1.msra.mxu0 0.0
      %6690 = vmatprep.subr.mxu0 %v6443
      %6691 = vmatpush1.msra.mxu0 %v6441
      %6692 = vmatprep.subr.mxu0 0.0
      %6693 = vmatpush2.msra.mxu0 0.0
      %6694 = vmatprep.subr.mxu0 0.0
      %6695 = vmatpush2.msra.mxu0 0.0
      %6696 = vmatprep.subr.mxu0 0.0
      %6697 = vmatpush2.msra.mxu0 0.0
      %6698 = vmatprep.subr.mxu0 0.0
      %6699 = vmatpush2.msra.mxu0 0.0
      %6700 = vmatprep.subr.mxu0 0.0
      %6701 = vmatpush2.msra.mxu0 0.0
      %6702 = vmatprep.subr.mxu0 0.0
      %6703 = vmatpush2.msra.mxu0 0.0
      %6704 = vmatprep.subr.mxu0 0.0
      %6705 = vmatpush2.msra.mxu0 0.0
      %6706 = vmatprep.subr.mxu0 0.0
      %6707 = vmatpush2.msra.mxu0 0.0
      %6708 = vmatprep.subr.mxu0 0.0
      %6709 = vmatpush2.msra.mxu0 0.0
      %6710 = vmatprep.subr.mxu0 0.0
      %6711 = vmatpush2.msra.mxu0 0.0
      %6712 = vmatprep.subr.mxu0 0.0
      %6713 = vmatpush2.msra.mxu0 0.0
      %6714 = vmatprep.subr.mxu0 0.0
      %6715 = vmatpush2.msra.mxu0 0.0
      %6716 = vmatprep.subr.mxu0 0.0
      %6717 = vmatpush2.msra.mxu0 0.0
      %6718 = vmatprep.subr.mxu0 0.0
      %6719 = vmatpush2.msra.mxu0 0.0
      %6720 = vmatprep.subr.mxu0 0.0
      %6721 = vmatpush2.msra.mxu0 0.0
      %6722 = vmatprep.subr.mxu0 0.0
      %6723 = vmatpush2.msra.mxu0 0.0
      %6724 = vmatprep.mubr.f32.mxu0 0.0
      %6725 = vmatmul.mubr.f32.gmra.mxu0 %v6427
      %v6726 = vpop.f32.mrf.mxu0
      %v6727 = vadd.f32 0.0, %v6726
      %v6728 = vpop.f32.mrf.mxu0
      %v6729 = vadd.f32 0.0, %v6728
      %6730 = vdwg.mxu0
      %6731 = vmatprep.subr.mxu0 0.0
      %6732 = vmatpush1.msra.mxu0 0.0
      %6733 = vmatprep.subr.mxu0 0.0
      %6734 = vmatpush1.msra.mxu0 0.0
      %6735 = vmatprep.subr.mxu0 0.0
      %6736 = vmatpush1.msra.mxu0 0.0
      %6737 = vmatprep.subr.mxu0 0.0
      %6738 = vmatpush1.msra.mxu0 0.0
      %6739 = vmatprep.subr.mxu0 0.0
      %6740 = vmatpush1.msra.mxu0 0.0
      %6741 = vmatprep.subr.mxu0 0.0
      %6742 = vmatpush1.msra.mxu0 0.0
      %6743 = vmatprep.subr.mxu0 0.0
      %6744 = vmatpush1.msra.mxu0 0.0
      %6745 = vmatprep.subr.mxu0 0.0
      %6746 = vmatpush1.msra.mxu0 0.0
      %6747 = vmatprep.subr.mxu0 0.0
      %6748 = vmatpush1.msra.mxu0 0.0
      %6749 = vmatprep.subr.mxu0 0.0
      %6750 = vmatpush1.msra.mxu0 0.0
      %6751 = vmatprep.subr.mxu0 0.0
      %6752 = vmatpush1.msra.mxu0 0.0
      %6753 = vmatprep.subr.mxu0 0.0
      %6754 = vmatpush1.msra.mxu0 0.0
      %6755 = vmatprep.subr.mxu0 0.0
      %6756 = vmatpush1.msra.mxu0 0.0
      %6757 = vmatprep.subr.mxu0 0.0
      %6758 = vmatpush1.msra.mxu0 0.0
      %6759 = vmatprep.subr.mxu0 0.0
      %6760 = vmatpush1.msra.mxu0 0.0
      %6761 = vmatprep.subr.mxu0 0.0
      %6762 = vmatpush1.msra.mxu0 %v6445
      %6763 = vmatprep.subr.mxu0 0.0
      %6764 = vmatpush2.msra.mxu0 0.0
      %6765 = vmatprep.subr.mxu0 0.0
      %6766 = vmatpush2.msra.mxu0 0.0
      %6767 = vmatprep.subr.mxu0 0.0
      %6768 = vmatpush2.msra.mxu0 0.0
      %6769 = vmatprep.subr.mxu0 0.0
      %6770 = vmatpush2.msra.mxu0 0.0
      %6771 = vmatprep.subr.mxu0 0.0
      %6772 = vmatpush2.msra.mxu0 0.0
      %6773 = vmatprep.subr.mxu0 0.0
      %6774 = vmatpush2.msra.mxu0 0.0
      %6775 = vmatprep.subr.mxu0 0.0
      %6776 = vmatpush2.msra.mxu0 0.0
      %6777 = vmatprep.subr.mxu0 0.0
      %6778 = vmatpush2.msra.mxu0 0.0
      %6779 = vmatprep.subr.mxu0 0.0
      %6780 = vmatpush2.msra.mxu0 0.0
      %6781 = vmatprep.subr.mxu0 0.0
      %6782 = vmatpush2.msra.mxu0 0.0
      %6783 = vmatprep.subr.mxu0 0.0
      %6784 = vmatpush2.msra.mxu0 0.0
      %6785 = vmatprep.subr.mxu0 0.0
      %6786 = vmatpush2.msra.mxu0 0.0
      %6787 = vmatprep.subr.mxu0 0.0
      %6788 = vmatpush2.msra.mxu0 0.0
      %6789 = vmatprep.subr.mxu0 0.0
      %6790 = vmatpush2.msra.mxu0 0.0
      %6791 = vmatprep.subr.mxu0 0.0
      %6792 = vmatpush2.msra.mxu0 0.0
      %6793 = vmatprep.subr.mxu0 0.0
      %6794 = vmatpush2.msra.mxu0 0.0
      %6795 = vmatprep.mubr.f32.mxu0 0.0
      %6796 = vmatmul.mubr.f32.gmra.mxu0 %v6427
      %v6797 = vpop.f32.mrf.mxu0
      %v6798 = vadd.f32 0.0, %v6797
      %v6799 = vpop.f32.mrf.mxu0
      %6800 = vdwg.mxu0
      %v6801 = vadd.f32 %v6385, %v6514
      %v6802 = vadd.f32 %v6386, %v6516
      %v6803 = vadd.f32 %v6387, %v6585
      %v6804 = vadd.f32 %v6388, %v6587
      %v6805 = vadd.f32 %v6389, %v6656
      %v6806 = vadd.f32 %v6390, %v6658
      %v6807 = vadd.f32 %v6391, %v6727
      %v6808 = vadd.f32 %v6392, %v6729
      %v6809 = vadd.f32 %v6393, %v6798
      %6810 = vst [vmem:[%s170] sm:$0xff] %v6801
      %6811 = vst [vmem:[%s170 + $0x8] sm:$0xff] %v6802
      %6812 = vst [vmem:[%s170 + $0x10] sm:$0xff] %v6803
      %6813 = vst [vmem:[%s170 + $0x18] sm:$0xff] %v6804
      %6814 = vst [vmem:[%s170 + $0x20] sm:$0xff] %v6805
      %6815 = vst [vmem:[%s170 + $0x28] sm:$0xff] %v6806
      %6816 = vst [vmem:[%s170 + $0x30] sm:$0xff] %v6807
      %6817 = vst [vmem:[%s170 + $0x38] sm:$0xff] %v6808
      %vm6818 = vcmask 785408
      %6819 = vst.msk [vmem:[%s170 + $0x40] sm:$0xff] %vm6818, %v6809
      %p6820 = scmp.lt.s32.totalorder %s14, 1
      %s6821 = scalar_select %p6820, %s14, 1
      %s6822 = smul.addr %s6821, 9
      %s6823 = smul.addr %s6822, 8
      %s6824 = scalar_lea.vmem %s3, %s6823
      // Predicated region
      $region33: #{conv_transpose2d_forward.1} parent=31 // pred_check
        %p6825 = pneg %p100
      $region34: #{conv_transpose2d_forward.1} parent=31 // pred_check_branch
        %6827 = sbr.rel (%p6825) target = $region36
      $region35: #{conv_transpose2d_forward.1} parent=31 // pred_region
        _
      $region36: #{conv_transpose2d_forward.1} parent=31 // pred_fallthru
        _
    $region32: #{conv_transpose2d_forward.1} parent=5 // pred_fallthru
      _
    %p6828 = scmp.le.s32.totalorder 2, %s9
    // Predicated region
    $region37: #{conv_transpose2d_forward.1} parent=5 // pred_check
      %p6829 = pneg %p6828
    $region38: #{conv_transpose2d_forward.1} parent=5 // pred_check_branch
      %6831 = sbr.rel (%p6829) target = $region40
    $region39: #{conv_transpose2d_forward.1} parent=5 // pred_region
      %s6832 = ssub.s32 %s9, 2
      // Predicated region
      $region41: #{conv_transpose2d_forward.1} parent=39 // pred_check
        %p6833 = pneg %p106
      $region42: #{conv_transpose2d_forward.1} parent=39 // pred_check_branch
        %6835 = sbr.rel (%p6833) target = $region44
      $region43: #{conv_transpose2d_forward.1} parent=39 // pred_region
        %p6836 = scmp.lt.s32.totalorder %s15, 1
        %s6837 = scalar_select %p6836, %s15, 1
        %s6838 = smul.addr %s6837, 9
        %s6839 = smul.addr %s6838, 8
        %s6840 = scalar_lea.vmem %s3, %s6839
      $region44: #{conv_transpose2d_forward.1} parent=39 // pred_fallthru
        _
    $region40: #{conv_transpose2d_forward.1} parent=5 // pred_fallthru
      _
  $region6: #{conv_transpose2d_forward.1} parent=0 // loop_footer
    %s13 = sadd.s32 1, %s9
  $region7: #{conv_transpose2d_forward.1} parent=0 // loop_footer_branch
    %8 = sbr.rel target = $region3
  $region8: #{conv_transpose2d_forward.1} parent=0 // loop_exit
    _

</llo_original>
